<compile_context>
chip_gen: v7x
topology: tpu7x:2x2x1
jax: 0.10.0
libtpu: 0.0.40
codegen_flags: <defaults>
</compile_context>

<pallas_src>
import functools

import jax
import jax.numpy as jnp
from jax import lax
from jax.experimental import pallas as pl
from jax.experimental.pallas import tpu as pltpu
import numpy as np


def _bottleneck_kernel(use_im2col, x_ref, w1_ref, b1_ref, w2_ref, b2_ref,
                       w3_ref, b3_ref, o_ref, pad_ref, *maybe_col):
    """One (batch element, row tile) per grid step.

    x_ref  : (H+2, W, Cin)   f32  row-padded image (pad rows are don't-care)
    w1_ref : (Cin, Cw)       bf16 conv1 1x1 weight, BN1 scale folded in
    w2_ref : (9*Cw, Cw)      bf16 conv2 3x3 weight (dy-major, dx, Cw), BN2 folded
    w3_ref : (Cw, Cout)      bf16 conv3 1x1 weight, BN3 scale folded in
    b*_ref : (1, C)          f32  folded BN biases
    o_ref  : (TH, W, Cout)   bf16 output row tile
    pad_ref: (TH+2, Wp, Cw)  bf16 zero-padded conv2 input, Wp = roundup(W+2, 8)
    maybe_col: ((TH*W, 9*Cw) bf16,) im2col staging — only on the v5e path
    """
    _, W, Cin = x_ref.shape
    TH, _, Cout = o_ref.shape
    Cw = w1_ref.shape[1]

    r = pl.program_id(1)
    n_r = pl.num_programs(1)
    row0 = pl.multiple_of(r * TH, TH)          # top image row of this tile

    # ---- conv1 (1x1) + bn1 + relu: ONE matmul over TH+2 rows (tile + halos) --
    # Window in padded coords [row0, row0+TH+2) == image rows row0-1 .. row0+TH.
    xw = x_ref[pl.ds(row0, TH + 2), :, :]                       # (TH+2, W, Cin)
    hp = jnp.dot(xw.reshape((TH + 2) * W, Cin).astype(jnp.bfloat16), w1_ref[...],
                 preferred_element_type=jnp.float32)
    hp = jnp.maximum(hp + b1_ref[...], 0.0).reshape(TH + 2, W, Cw)
    # Zero the halo rows that fall outside the image (== conv2's zero padding
    # of the post-ReLU h1).  Branch-free -> every grid step is independent.
    ri = lax.broadcasted_iota(jnp.int32, (TH + 2, 1, 1), 0)
    keep = ((ri > 0) | (r > 0)) & ((ri < TH + 1) | (r < n_r - 1))
    hp = jnp.where(keep, hp, 0.0)
    pad_ref[:, 1:W + 1, :] = hp.astype(jnp.bfloat16)            # single store

    # Left/right zero-padding columns (only 2*(TH+2)*Cw elems; rewritten every
    # step — do NOT convert to a one-time init, scratch is per-core).
    zcol = jnp.zeros((TH + 2, 1, Cw), jnp.bfloat16)
    pad_ref[:, 0:1, :] = zcol
    pad_ref[:, W + 1:W + 2, :] = zcol
    # Columns W+2 .. Wp-1 are never read — no need to initialize them.

    # ---- conv2 (3x3, pad=1) + bn2 + relu ------------------------------------
    taps = [(dy, dx) for dy in range(3) for dx in range(3)]
    if use_im2col:
        # v5e: single big-K matmul (MXU-bound; staging copies hide under it).
        col_ref = maybe_col[0]
        for t, (dy, dx) in enumerate(taps):
            col_ref[:, t * Cw:(t + 1) * Cw] = (
                pad_ref[dy:dy + TH, dx:dx + W, :].reshape(TH * W, Cw))
        h2 = jnp.dot(col_ref[...], w2_ref[...],
                     preferred_element_type=jnp.float32)
    else:
        # v6e/v7x: no staging buffer — 9 direct accumulating matmuls.
        h2 = jnp.zeros((TH * W, Cw), jnp.float32)
        for t, (dy, dx) in enumerate(taps):
            lhs = pad_ref[dy:dy + TH, dx:dx + W, :].reshape(TH * W, Cw)
            h2 = h2 + jnp.dot(lhs, w2_ref[t * Cw:(t + 1) * Cw, :],
                              preferred_element_type=jnp.float32)
    h2 = jnp.maximum(h2 + b2_ref[...], 0.0).astype(jnp.bfloat16)

    # ---- conv3 (1x1) + bn3 + identity add + relu, 128-lane Cout chunks ------
    CO = 128 if Cout % 128 == 0 else Cout   # non-multiple-of-128 Cout: no chunking
    for c0 in range(0, Cout, CO):
        h3 = jnp.dot(h2, w3_ref[:, c0:c0 + CO],
                     preferred_element_type=jnp.float32).reshape(TH, W, CO)
        # Residual rows in padded coords [row0+1, row0+1+TH) == image tile rows.
        x_res = x_ref[pl.ds(row0 + 1, TH), :, c0:c0 + CO].astype(jnp.float32)
        out = jnp.maximum(h3 + b3_ref[:, c0:c0 + CO] + x_res, 0.0)
        o_ref[:, :, c0:c0 + CO] = out.astype(o_ref.dtype)


def _tpu_gen():
    """Best-effort TPU generation detection for gen-specific dispatch."""
    try:
        kind = jax.devices()[0].device_kind.lower()
    except Exception:  # pragma: no cover
        kind = ""
    if "v5" in kind:
        return 5
    if "v7" in kind:
        return 7
    return 6


def bottleneck_pallas_nhwc(x_nhwc, params, *, row_tile=None,
                           out_dtype=jnp.bfloat16):
    """Bottleneck forward (stride=1, no downsample). NHWC in / NHWC (bf16) out.

    Keep activations NHWC end-to-end in a full network; convert NCHW<->NHWC
    once at the network boundary, not per block.
    """
    w1, b1, w2, b2, w3, b3 = params
    N, H, W, Cin = x_nhwc.shape
    Cw = w1.shape[1]
    Cout = w3.shape[1]
    assert Cin == Cout, "identity residual requires Cin == Cout"

    # Row tile: smallest divisor of H with TH*W >= 256 (fills the 256-wide MXU
    # on v6e/v7x); fall back to full H.  A non-dividing row_tile silently falls
    # back to H (degrades perf, never correctness).
    if row_tile is None:
        TH = H
        for t in range(1, H + 1):
            if H % t == 0 and t * W >= 256:
                TH = t
                break
    elif H % row_tile == 0:
        TH = row_tile
    else:
        TH = H
    n_r = H // TH

    gen = _tpu_gen()
    use_im2col = (gen == 5)              # v5e keeps the big-K im2col matmul
    single_buf = (gen == 7)              # v7x: 64 MiB VMEM -> single-buffer residents
    vmem_limit = (48 << 20) if gen == 7 else (64 << 20)

    Wp = ((W + 2 + 7) // 8) * 8          # sublane-aligned padded width

    # Row-pad x by one row top/bottom so the fused conv1 window (TH+2 rows) is
    # always an in-bounds dynamic slice; the pad rows' values are never used.
    # TODO(synk): in a fused multi-block stage, emit activations already
    # row-padded to avoid this per-block pad copy.
    x_pad = jnp.pad(x_nhwc, ((0, 0), (1, 1), (0, 0), (0, 0)))

    if single_buf:
        def spec(shape, index_map):
            return pl.BlockSpec(shape, index_map, pipeline_mode=pl.Buffered(1))
    else:
        def spec(shape, index_map):
            return pl.BlockSpec(shape, index_map)

    def full(a):
        nd = a.ndim
        return spec(a.shape, lambda n, r: (0,) * nd)

    scratch = [pltpu.VMEM((TH + 2, Wp, Cw), jnp.bfloat16)]      # padded h1
    if use_im2col:
        scratch.append(pltpu.VMEM((TH * W, 9 * Cw), jnp.bfloat16))  # im2col (v5e)

    kernel = functools.partial(_bottleneck_kernel, use_im2col)

    return pl.pallas_call(
        kernel,
        out_shape=jax.ShapeDtypeStruct((N, H, W, Cout), out_dtype),
        grid_spec=pltpu.PrefetchScalarGridSpec(
            num_scalar_prefetch=0,
            grid=(N, n_r),
            in_specs=[
                # Full (row-padded) image per batch element; block index only
                # depends on n, so the HBM->VMEM DMA happens once per n.
                spec((None, H + 2, W, Cin), lambda n, r: (n, 0, 0, 0)),
                # Weights / biases: constant index maps -> DMA'd once.
                full(w1), full(b1), full(w2), full(b2), full(w3), full(b3),
            ],
            out_specs=pl.BlockSpec((None, TH, W, Cout),
                                   lambda n, r: (n, r, 0, 0)),
            scratch_shapes=scratch,
        ),
        compiler_params=pltpu.CompilerParams(
            dimension_semantics=("parallel", "parallel"),
            vmem_limit_bytes=vmem_limit),
    )(x_pad, w1, b1, w2, b2, w3, b3)


# ---------------------------------------------------------------------------
# Parameter construction (deterministic, synthetic) and pure-JAX reference.
# ---------------------------------------------------------------------------
def make_params(key, inplanes, planes, base_width=64, groups=1):
    """Synthetic Bottleneck params with BN (eval mode) folded into the convs."""
    width = int(planes * (base_width / 64.0)) * groups
    out_planes = planes * 4          # Bottleneck.expansion
    eps = 1e-5
    ks = jax.random.split(key, 6)

    def bn(k, c):
        kg, kb, km, kv = jax.random.split(k, 4)
        gamma = jax.random.uniform(kg, (c,), jnp.float32, 0.5, 1.5)
        beta = jax.random.uniform(kb, (c,), jnp.float32, -0.5, 0.5)
        mean = jax.random.uniform(km, (c,), jnp.float32, -0.5, 0.5)
        var = jax.random.uniform(kv, (c,), jnp.float32, 0.5, 1.5)
        scale = gamma / jnp.sqrt(var + eps)
        bias = beta - mean * scale
        return scale, bias

    # PyTorch-layout (OIHW) conv weights, then folded + rearranged for the MXU.
    w1_oihw = 0.1 * jax.random.normal(ks[0], (width, inplanes, 1, 1), jnp.float32)
    w2_oihw = 0.1 * jax.random.normal(ks[1], (width, width, 3, 3), jnp.float32)
    w3_oihw = 0.1 * jax.random.normal(ks[2], (out_planes, width, 1, 1), jnp.float32)
    s1, b1 = bn(ks[3], width)
    s2, b2 = bn(ks[4], width)
    s3, b3 = bn(ks[5], out_planes)

    # Fold BN scale into the conv weights (per output channel); cast to bf16.
    w1 = (jnp.transpose(w1_oihw[:, :, 0, 0], (1, 0)) * s1[None, :]
          ).astype(jnp.bfloat16)                                   # (Cin, Cw)
    w2_hwio = jnp.transpose(w2_oihw, (2, 3, 1, 0)) * s2[None, None, None, :]
    w2 = w2_hwio.reshape(9 * width, width).astype(jnp.bfloat16)    # (9*Cw, Cw)
    w3 = (jnp.transpose(w3_oihw[:, :, 0, 0], (1, 0)) * s3[None, :]
          ).astype(jnp.bfloat16)                                   # (Cw, Cout)

    return (w1, b1.reshape(1, -1).astype(jnp.float32),
            w2, b2.reshape(1, -1).astype(jnp.float32),
            w3, b3.reshape(1, -1).astype(jnp.float32))


def bottleneck_reference(x_nchw, params):
    """Plain-JAX NCHW reference using the same folded bf16 weights."""
    w1, b1, w2, b2, w3, b3 = params
    Cin, Cw = w1.shape
    Cout = w3.shape[1]
    dn = ("NCHW", "OIHW", "NCHW")

    w1_oihw = jnp.transpose(w1, (1, 0)).reshape(Cw, Cin, 1, 1)
    w2_oihw = jnp.transpose(w2.reshape(3, 3, Cw, Cw), (3, 2, 0, 1))
    w3_oihw = jnp.transpose(w3, (1, 0)).reshape(Cout, Cw, 1, 1)

    def bias(y, b):
        return y + b.reshape(1, -1, 1, 1)

    h = lax.conv_general_dilated(x_nchw.astype(jnp.bfloat16), w1_oihw, (1, 1),
                                 "VALID", dimension_numbers=dn,
                                 preferred_element_type=jnp.float32)
    h = jnp.maximum(bias(h, b1), 0.0).astype(jnp.bfloat16)
    h = lax.conv_general_dilated(h, w2_oihw, (1, 1), ((1, 1), (1, 1)),
                                 dimension_numbers=dn,
                                 preferred_element_type=jnp.float32)
    h = jnp.maximum(bias(h, b2), 0.0).astype(jnp.bfloat16)
    h = lax.conv_general_dilated(h, w3_oihw, (1, 1), "VALID",
                                 dimension_numbers=dn,
                                 preferred_element_type=jnp.float32)
    h = bias(h, b3)
    return jnp.maximum(h + x_nchw, 0.0)


if __name__ == "__main__":
    key = jax.random.PRNGKey(0)
    k_x, k_p = jax.random.split(key)

    # A stride=1 Bottleneck from resnet50 layer2: inplanes=512, planes=128
    # (width=128, out=512) — all channel dims are multiples of 128, so every
    # matmul operand / output tile is lane-dense.  Spatial kept small.
    N, inplanes, planes, H, W = 2, 512, 128, 16, 16
    x_nchw = jax.random.normal(k_x, (N, inplanes, H, W), jnp.float32)
    params = make_params(k_p, inplanes, planes)

    # Layout conversion happens once at the model boundary; the Pallas wrapper
    # itself is NHWC-native (no per-block transposes).
    x_nhwc = jnp.transpose(x_nchw, (0, 2, 3, 1))
    out_nhwc = jax.block_until_ready(bottleneck_pallas_nhwc(x_nhwc, params))
    out_nchw = jnp.transpose(out_nhwc.astype(jnp.float32), (0, 3, 1, 2))

    ref = jax.block_until_ready(bottleneck_reference(x_nchw, params))
    np.testing.assert_allclose(np.asarray(out_nchw), np.asarray(ref),
                               rtol=2e-2, atol=2e-2)
    print("KERNEL_OK")
</pallas_src>

<mosaic_0001>
module attributes {stable_mosaic.version = 11 : i64} {
  func.func @_bottleneck_kernel(%arg0: i32, %arg1: i32, %arg2: memref<1x18x16x512xf32, #tpu.memory_space<vmem>>, %arg3: memref<512x128xbf16, #tpu.memory_space<vmem>>, %arg4: memref<1x128xf32, #tpu.memory_space<vmem>>, %arg5: memref<1152x128xbf16, #tpu.memory_space<vmem>>, %arg6: memref<1x128xf32, #tpu.memory_space<vmem>>, %arg7: memref<128x512xbf16, #tpu.memory_space<vmem>>, %arg8: memref<1x512xf32, #tpu.memory_space<vmem>>, %arg9: memref<1x16x16x512xbf16, #tpu.memory_space<vmem>>, %arg10: memref<18x24x128xbf16, #tpu.memory_space<vmem>>) attributes {dimension_semantics = [#tpu.dimension_semantics<parallel>, #tpu.dimension_semantics<parallel>], iteration_bounds = array<i64: 2, 1>, scalar_prefetch = 0 : i64, scratch_operands = 1 : i64, tpu.core_type = #tpu.core_type<tc>, window_params = [{transform_indices = @transform_0, window_bounds = array<i64: 1, 18, 16, 512>}, {pipeline_mode = #tpu.pipeline_mode<synchronous>, transform_indices = @transform_1, window_bounds = array<i64: 512, 128>}, {pipeline_mode = #tpu.pipeline_mode<synchronous>, transform_indices = @transform_2, window_bounds = array<i64: 1, 128>}, {pipeline_mode = #tpu.pipeline_mode<synchronous>, transform_indices = @transform_3, window_bounds = array<i64: 1152, 128>}, {pipeline_mode = #tpu.pipeline_mode<synchronous>, transform_indices = @transform_4, window_bounds = array<i64: 1, 128>}, {pipeline_mode = #tpu.pipeline_mode<synchronous>, transform_indices = @transform_5, window_bounds = array<i64: 128, 512>}, {pipeline_mode = #tpu.pipeline_mode<synchronous>, transform_indices = @transform_6, window_bounds = array<i64: 1, 512>}, {transform_indices = @transform_7, window_bounds = array<i64: 1, 16, 16, 512>}]} {
    %c16_i32 = arith.constant 16 : i32
    %0 = arith.muli %arg1, %c16_i32 : i32
    %1 = tpu.assume_multiple %0, 16 : i32
    %c0 = arith.constant 0 : index
    %2 = arith.index_cast %1 : i32 to index
    %c0_0 = arith.constant 0 : index
    %c0_1 = arith.constant 0 : index
    %3 = vector.load %arg2[%c0, %2, %c0_0, %c0_1] : memref<1x18x16x512xf32, #tpu.memory_space<vmem>>, vector<1x18x16x512xf32>
    %4 = vector.shape_cast %3 : vector<1x18x16x512xf32> to vector<18x16x512xf32>
    %5 = vector.shape_cast %4 : vector<18x16x512xf32> to vector<288x512xf32>
    %6 = arith.truncf %5 : vector<288x512xf32> to vector<288x512xbf16>
    %c0_2 = arith.constant 0 : index
    %c0_3 = arith.constant 0 : index
    %7 = vector.load %arg3[%c0_2, %c0_3] : memref<512x128xbf16, #tpu.memory_space<vmem>>, vector<512x128xbf16>
    %cst = arith.constant dense<0.000000e+00> : vector<288x128xf32>
    %8 = tpu.matmul %6, %7, %cst {dimension_numbers = #tpu.dot_dimension_numbers<[1], [0], [0], [1], [0, 0, 1, 1], [], []>} : vector<288x512xbf16>, vector<512x128xbf16>, vector<288x128xf32> -> vector<288x128xf32>
    %c0_4 = arith.constant 0 : index
    %c0_5 = arith.constant 0 : index
    %9 = vector.load %arg4[%c0_4, %c0_5] : memref<1x128xf32, #tpu.memory_space<vmem>>, vector<1x128xf32>
    %10 = vector.broadcast %9 : vector<1x128xf32> to vector<288x128xf32>
    %11 = arith.addf %8, %10 : vector<288x128xf32>
    %cst_6 = arith.constant 0.000000e+00 : f32
    %12 = vector.broadcast %cst_6 : f32 to vector<288x128xf32>
    %13 = arith.maximumf %11, %12 : vector<288x128xf32>
    %14 = vector.shape_cast %13 : vector<288x128xf32> to vector<18x16x128xf32>
    %15 = tpu.iota {dimensions = array<i32: 0>} : vector<18x1x1xi32>
    %c0_i32 = arith.constant 0 : i32
    %16 = vector.broadcast %c0_i32 : i32 to vector<18x1x1xi32>
    %17 = arith.cmpi sgt, %15, %16 : vector<18x1x1xi32>
    %c0_i32_7 = arith.constant 0 : i32
    %18 = arith.cmpi sgt, %arg1, %c0_i32_7 : i32
    %19 = vector.broadcast %18 : i1 to vector<18x1x1xi1>
    %20 = arith.ori %17, %19 : vector<18x1x1xi1>
    %c17_i32 = arith.constant 17 : i32
    %21 = vector.broadcast %c17_i32 : i32 to vector<18x1x1xi32>
    %22 = arith.cmpi slt, %15, %21 : vector<18x1x1xi32>
    %c0_i32_8 = arith.constant 0 : i32
    %23 = arith.cmpi slt, %arg1, %c0_i32_8 : i32
    %24 = vector.broadcast %23 : i1 to vector<18x1x1xi1>
    %25 = arith.ori %22, %24 : vector<18x1x1xi1>
    %26 = arith.andi %20, %25 : vector<18x1x1xi1>
    %cst_9 = arith.constant 0.000000e+00 : f32
    %27 = vector.shape_cast %26 : vector<18x1x1xi1> to vector<18x1x1xi1>
    %28 = vector.broadcast %27 : vector<18x1x1xi1> to vector<18x16x128xi1>
    %29 = vector.broadcast %cst_9 : f32 to vector<18x16x128xf32>
    %30 = arith.select %28, %14, %29 : vector<18x16x128xi1>, vector<18x16x128xf32>
    %31 = arith.truncf %30 : vector<18x16x128xf32> to vector<18x16x128xbf16>
    %c0_10 = arith.constant 0 : index
    %c1 = arith.constant 1 : index
    %c0_11 = arith.constant 0 : index
    %32 = vector.load %arg10[%c0_10, %c1, %c0_11] : memref<18x24x128xbf16, #tpu.memory_space<vmem>>, vector<18x16x128xbf16>
    tpu.vector_store %arg10[%c0_10, %c1, %c0_11], %31 {strides = array<i32>} : memref<18x24x128xbf16, #tpu.memory_space<vmem>>, vector<18x16x128xbf16>,
    %cst_12 = arith.constant 0.000000e+00 : bf16
    %33 = vector.broadcast %cst_12 : bf16 to vector<18x1x128xbf16>
    %c0_13 = arith.constant 0 : index
    %c0_14 = arith.constant 0 : index
    %c0_15 = arith.constant 0 : index
    %34 = vector.load %arg10[%c0_13, %c0_14, %c0_15] : memref<18x24x128xbf16, #tpu.memory_space<vmem>>, vector<18x1x128xbf16>
    tpu.vector_store %arg10[%c0_13, %c0_14, %c0_15], %33 {strides = array<i32>} : memref<18x24x128xbf16, #tpu.memory_space<vmem>>, vector<18x1x128xbf16>,
    %c0_16 = arith.constant 0 : index
    %c17 = arith.constant 17 : index
    %c0_17 = arith.constant 0 : index
    %35 = vector.load %arg10[%c0_16, %c17, %c0_17] : memref<18x24x128xbf16, #tpu.memory_space<vmem>>, vector<18x1x128xbf16>
    tpu.vector_store %arg10[%c0_16, %c17, %c0_17], %33 {strides = array<i32>} : memref<18x24x128xbf16, #tpu.memory_space<vmem>>, vector<18x1x128xbf16>,
    %cst_18 = arith.constant 0.000000e+00 : f32
    %36 = vector.broadcast %cst_18 : f32 to vector<256x128xf32>
    %c0_19 = arith.constant 0 : index
    %c0_20 = arith.constant 0 : index
    %c0_21 = arith.constant 0 : index
    %37 = vector.load %arg10[%c0_19, %c0_20, %c0_21] : memref<18x24x128xbf16, #tpu.memory_space<vmem>>, vector<16x16x128xbf16>
    %38 = vector.shape_cast %37 : vector<16x16x128xbf16> to vector<256x128xbf16>
    %c0_22 = arith.constant 0 : index
    %c0_23 = arith.constant 0 : index
    %39 = vector.load %arg5[%c0_22, %c0_23] : memref<1152x128xbf16, #tpu.memory_space<vmem>>, vector<128x128xbf16>
    %cst_24 = arith.constant dense<0.000000e+00> : vector<256x128xf32>
    %40 = tpu.matmul %38, %39, %cst_24 {dimension_numbers = #tpu.dot_dimension_numbers<[1], [0], [0], [1], [0, 0, 1, 1], [], []>} : vector<256x128xbf16>, vector<128x128xbf16>, vector<256x128xf32> -> vector<256x128xf32>
    %41 = arith.addf %36, %40 : vector<256x128xf32>
    %c0_25 = arith.constant 0 : index
    %c1_26 = arith.constant 1 : index
    %c0_27 = arith.constant 0 : index
    %42 = vector.load %arg10[%c0_25, %c1_26, %c0_27] : memref<18x24x128xbf16, #tpu.memory_space<vmem>>, vector<16x16x128xbf16>
    %43 = vector.shape_cast %42 : vector<16x16x128xbf16> to vector<256x128xbf16>
    %c128 = arith.constant 128 : index
    %c0_28 = arith.constant 0 : index
    %44 = vector.load %arg5[%c128, %c0_28] : memref<1152x128xbf16, #tpu.memory_space<vmem>>, vector<128x128xbf16>
    %cst_29 = arith.constant dense<0.000000e+00> : vector<256x128xf32>
    %45 = tpu.matmul %43, %44, %cst_29 {dimension_numbers = #tpu.dot_dimension_numbers<[1], [0], [0], [1], [0, 0, 1, 1], [], []>} : vector<256x128xbf16>, vector<128x128xbf16>, vector<256x128xf32> -> vector<256x128xf32>
    %46 = arith.addf %41, %45 : vector<256x128xf32>
    %c0_30 = arith.constant 0 : index
    %c2 = arith.constant 2 : index
    %c0_31 = arith.constant 0 : index
    %47 = vector.load %arg10[%c0_30, %c2, %c0_31] : memref<18x24x128xbf16, #tpu.memory_space<vmem>>, vector<16x16x128xbf16>
    %48 = vector.shape_cast %47 : vector<16x16x128xbf16> to vector<256x128xbf16>
    %c256 = arith.constant 256 : index
    %c0_32 = arith.constant 0 : index
    %49 = vector.load %arg5[%c256, %c0_32] : memref<1152x128xbf16, #tpu.memory_space<vmem>>, vector<128x128xbf16>
    %cst_33 = arith.constant dense<0.000000e+00> : vector<256x128xf32>
    %50 = tpu.matmul %48, %49, %cst_33 {dimension_numbers = #tpu.dot_dimension_numbers<[1], [0], [0], [1], [0, 0, 1, 1], [], []>} : vector<256x128xbf16>, vector<128x128xbf16>, vector<256x128xf32> -> vector<256x128xf32>
    %51 = arith.addf %46, %50 : vector<256x128xf32>
    %c1_34 = arith.constant 1 : index
    %c0_35 = arith.constant 0 : index
    %c0_36 = arith.constant 0 : index
    %52 = vector.load %arg10[%c1_34, %c0_35, %c0_36] : memref<18x24x128xbf16, #tpu.memory_space<vmem>>, vector<16x16x128xbf16>
    %53 = vector.shape_cast %52 : vector<16x16x128xbf16> to vector<256x128xbf16>
    %c384 = arith.constant 384 : index
    %c0_37 = arith.constant 0 : index
    %54 = vector.load %arg5[%c384, %c0_37] : memref<1152x128xbf16, #tpu.memory_space<vmem>>, vector<128x128xbf16>
    %cst_38 = arith.constant dense<0.000000e+00> : vector<256x128xf32>
    %55 = tpu.matmul %53, %54, %cst_38 {dimension_numbers = #tpu.dot_dimension_numbers<[1], [0], [0], [1], [0, 0, 1, 1], [], []>} : vector<256x128xbf16>, vector<128x128xbf16>, vector<256x128xf32> -> vector<256x128xf32>
    %56 = arith.addf %51, %55 : vector<256x128xf32>
    %c1_39 = arith.constant 1 : index
    %c1_40 = arith.constant 1 : index
    %c0_41 = arith.constant 0 : index
    %57 = vector.load %arg10[%c1_39, %c1_40, %c0_41] : memref<18x24x128xbf16, #tpu.memory_space<vmem>>, vector<16x16x128xbf16>
    %58 = vector.shape_cast %57 : vector<16x16x128xbf16> to vector<256x128xbf16>
    %c512 = arith.constant 512 : index
    %c0_42 = arith.constant 0 : index
    %59 = vector.load %arg5[%c512, %c0_42] : memref<1152x128xbf16, #tpu.memory_space<vmem>>, vector<128x128xbf16>
    %cst_43 = arith.constant dense<0.000000e+00> : vector<256x128xf32>
    %60 = tpu.matmul %58, %59, %cst_43 {dimension_numbers = #tpu.dot_dimension_numbers<[1], [0], [0], [1], [0, 0, 1, 1], [], []>} : vector<256x128xbf16>, vector<128x128xbf16>, vector<256x128xf32> -> vector<256x128xf32>
    %61 = arith.addf %56, %60 : vector<256x128xf32>
    %c1_44 = arith.constant 1 : index
    %c2_45 = arith.constant 2 : index
    %c0_46 = arith.constant 0 : index
    %62 = vector.load %arg10[%c1_44, %c2_45, %c0_46] : memref<18x24x128xbf16, #tpu.memory_space<vmem>>, vector<16x16x128xbf16>
    %63 = vector.shape_cast %62 : vector<16x16x128xbf16> to vector<256x128xbf16>
    %c640 = arith.constant 640 : index
    %c0_47 = arith.constant 0 : index
    %64 = vector.load %arg5[%c640, %c0_47] : memref<1152x128xbf16, #tpu.memory_space<vmem>>, vector<128x128xbf16>
    %cst_48 = arith.constant dense<0.000000e+00> : vector<256x128xf32>
    %65 = tpu.matmul %63, %64, %cst_48 {dimension_numbers = #tpu.dot_dimension_numbers<[1], [0], [0], [1], [0, 0, 1, 1], [], []>} : vector<256x128xbf16>, vector<128x128xbf16>, vector<256x128xf32> -> vector<256x128xf32>
    %66 = arith.addf %61, %65 : vector<256x128xf32>
    %c2_49 = arith.constant 2 : index
    %c0_50 = arith.constant 0 : index
    %c0_51 = arith.constant 0 : index
    %67 = vector.load %arg10[%c2_49, %c0_50, %c0_51] : memref<18x24x128xbf16, #tpu.memory_space<vmem>>, vector<16x16x128xbf16>
    %68 = vector.shape_cast %67 : vector<16x16x128xbf16> to vector<256x128xbf16>
    %c768 = arith.constant 768 : index
    %c0_52 = arith.constant 0 : index
    %69 = vector.load %arg5[%c768, %c0_52] : memref<1152x128xbf16, #tpu.memory_space<vmem>>, vector<128x128xbf16>
    %cst_53 = arith.constant dense<0.000000e+00> : vector<256x128xf32>
    %70 = tpu.matmul %68, %69, %cst_53 {dimension_numbers = #tpu.dot_dimension_numbers<[1], [0], [0], [1], [0, 0, 1, 1], [], []>} : vector<256x128xbf16>, vector<128x128xbf16>, vector<256x128xf32> -> vector<256x128xf32>
    %71 = arith.addf %66, %70 : vector<256x128xf32>
    %c2_54 = arith.constant 2 : index
    %c1_55 = arith.constant 1 : index
    %c0_56 = arith.constant 0 : index
    %72 = vector.load %arg10[%c2_54, %c1_55, %c0_56] : memref<18x24x128xbf16, #tpu.memory_space<vmem>>, vector<16x16x128xbf16>
    %73 = vector.shape_cast %72 : vector<16x16x128xbf16> to vector<256x128xbf16>
    %c896 = arith.constant 896 : index
    %c0_57 = arith.constant 0 : index
    %74 = vector.load %arg5[%c896, %c0_57] : memref<1152x128xbf16, #tpu.memory_space<vmem>>, vector<128x128xbf16>
    %cst_58 = arith.constant dense<0.000000e+00> : vector<256x128xf32>
    %75 = tpu.matmul %73, %74, %cst_58 {dimension_numbers = #tpu.dot_dimension_numbers<[1], [0], [0], [1], [0, 0, 1, 1], [], []>} : vector<256x128xbf16>, vector<128x128xbf16>, vector<256x128xf32> -> vector<256x128xf32>
    %76 = arith.addf %71, %75 : vector<256x128xf32>
    %c2_59 = arith.constant 2 : index
    %c2_60 = arith.constant 2 : index
    %c0_61 = arith.constant 0 : index
    %77 = vector.load %arg10[%c2_59, %c2_60, %c0_61] : memref<18x24x128xbf16, #tpu.memory_space<vmem>>, vector<16x16x128xbf16>
    %78 = vector.shape_cast %77 : vector<16x16x128xbf16> to vector<256x128xbf16>
    %c1024 = arith.constant 1024 : index
    %c0_62 = arith.constant 0 : index
    %79 = vector.load %arg5[%c1024, %c0_62] : memref<1152x128xbf16, #tpu.memory_space<vmem>>, vector<128x128xbf16>
    %cst_63 = arith.constant dense<0.000000e+00> : vector<256x128xf32>
    %80 = tpu.matmul %78, %79, %cst_63 {dimension_numbers = #tpu.dot_dimension_numbers<[1], [0], [0], [1], [0, 0, 1, 1], [], []>} : vector<256x128xbf16>, vector<128x128xbf16>, vector<256x128xf32> -> vector<256x128xf32>
    %81 = arith.addf %76, %80 : vector<256x128xf32>
    %c0_64 = arith.constant 0 : index
    %c0_65 = arith.constant 0 : index
    %82 = vector.load %arg6[%c0_64, %c0_65] : memref<1x128xf32, #tpu.memory_space<vmem>>, vector<1x128xf32>
    %83 = vector.broadcast %82 : vector<1x128xf32> to vector<256x128xf32>
    %84 = arith.addf %81, %83 : vector<256x128xf32>
    %cst_66 = arith.constant 0.000000e+00 : f32
    %85 = vector.broadcast %cst_66 : f32 to vector<256x128xf32>
    %86 = arith.maximumf %84, %85 : vector<256x128xf32>
    %87 = arith.truncf %86 : vector<256x128xf32> to vector<256x128xbf16>
    %c0_67 = arith.constant 0 : index
    %c0_68 = arith.constant 0 : index
    %88 = vector.load %arg7[%c0_67, %c0_68] : memref<128x512xbf16, #tpu.memory_space<vmem>>, vector<128x128xbf16>
    %cst_69 = arith.constant dense<0.000000e+00> : vector<256x128xf32>
    %89 = tpu.matmul %87, %88, %cst_69 {dimension_numbers = #tpu.dot_dimension_numbers<[1], [0], [0], [1], [0, 0, 1, 1], [], []>} : vector<256x128xbf16>, vector<128x128xbf16>, vector<256x128xf32> -> vector<256x128xf32>
    %90 = vector.shape_cast %89 : vector<256x128xf32> to vector<16x16x128xf32>
    %c1_i32 = arith.constant 1 : i32
    %91 = arith.addi %1, %c1_i32 : i32
    %c0_70 = arith.constant 0 : index
    %92 = arith.index_cast %91 : i32 to index
    %c0_71 = arith.constant 0 : index
    %c0_72 = arith.constant 0 : index
    %93 = vector.load %arg2[%c0_70, %92, %c0_71, %c0_72] : memref<1x18x16x512xf32, #tpu.memory_space<vmem>>, vector<1x16x16x128xf32>
    %94 = vector.shape_cast %93 : vector<1x16x16x128xf32> to vector<16x16x128xf32>
    %c0_73 = arith.constant 0 : index
    %c0_74 = arith.constant 0 : index
    %95 = vector.load %arg8[%c0_73, %c0_74] : memref<1x512xf32, #tpu.memory_space<vmem>>, vector<1x128xf32>
    %96 = vector.shape_cast %95 : vector<1x128xf32> to vector<1x1x128xf32>
    %97 = vector.broadcast %96 : vector<1x1x128xf32> to vector<16x16x128xf32>
    %98 = arith.addf %90, %97 : vector<16x16x128xf32>
    %99 = arith.addf %98, %94 : vector<16x16x128xf32>
    %cst_75 = arith.constant 0.000000e+00 : f32
    %100 = vector.broadcast %cst_75 : f32 to vector<16x16x128xf32>
    %101 = arith.maximumf %99, %100 : vector<16x16x128xf32>
    %102 = arith.truncf %101 : vector<16x16x128xf32> to vector<16x16x128xbf16>
    %c0_76 = arith.constant 0 : index
    %c0_77 = arith.constant 0 : index
    %c0_78 = arith.constant 0 : index
    %c0_79 = arith.constant 0 : index
    %103 = vector.load %arg9[%c0_76, %c0_77, %c0_78, %c0_79] : memref<1x16x16x512xbf16, #tpu.memory_space<vmem>>, vector<1x16x16x128xbf16>
    %104 = vector.shape_cast %103 : vector<1x16x16x128xbf16> to vector<16x16x128xbf16>
    %105 = vector.shape_cast %102 : vector<16x16x128xbf16> to vector<1x16x16x128xbf16>
    tpu.vector_store %arg9[%c0_76, %c0_77, %c0_78, %c0_79], %105 {strides = array<i32>} : memref<1x16x16x512xbf16, #tpu.memory_space<vmem>>, vector<1x16x16x128xbf16>,
    %c0_80 = arith.constant 0 : index
    %c128_81 = arith.constant 128 : index
    %106 = vector.load %arg7[%c0_80, %c128_81] : memref<128x512xbf16, #tpu.memory_space<vmem>>, vector<128x128xbf16>
    %cst_82 = arith.constant dense<0.000000e+00> : vector<256x128xf32>
    %107 = tpu.matmul %87, %106, %cst_82 {dimension_numbers = #tpu.dot_dimension_numbers<[1], [0], [0], [1], [0, 0, 1, 1], [], []>} : vector<256x128xbf16>, vector<128x128xbf16>, vector<256x128xf32> -> vector<256x128xf32>
    %108 = vector.shape_cast %107 : vector<256x128xf32> to vector<16x16x128xf32>
    %c1_i32_83 = arith.constant 1 : i32
    %109 = arith.addi %1, %c1_i32_83 : i32
    %c0_84 = arith.constant 0 : index
    %110 = arith.index_cast %109 : i32 to index
    %c0_85 = arith.constant 0 : index
    %c128_86 = arith.constant 128 : index
    %111 = vector.load %arg2[%c0_84, %110, %c0_85, %c128_86] : memref<1x18x16x512xf32, #tpu.memory_space<vmem>>, vector<1x16x16x128xf32>
    %112 = vector.shape_cast %111 : vector<1x16x16x128xf32> to vector<16x16x128xf32>
    %c0_87 = arith.constant 0 : index
    %c128_88 = arith.constant 128 : index
    %113 = vector.load %arg8[%c0_87, %c128_88] : memref<1x512xf32, #tpu.memory_space<vmem>>, vector<1x128xf32>
    %114 = vector.shape_cast %113 : vector<1x128xf32> to vector<1x1x128xf32>
    %115 = vector.broadcast %114 : vector<1x1x128xf32> to vector<16x16x128xf32>
    %116 = arith.addf %108, %115 : vector<16x16x128xf32>
    %117 = arith.addf %116, %112 : vector<16x16x128xf32>
    %cst_89 = arith.constant 0.000000e+00 : f32
    %118 = vector.broadcast %cst_89 : f32 to vector<16x16x128xf32>
    %119 = arith.maximumf %117, %118 : vector<16x16x128xf32>
    %120 = arith.truncf %119 : vector<16x16x128xf32> to vector<16x16x128xbf16>
    %c0_90 = arith.constant 0 : index
    %c0_91 = arith.constant 0 : index
    %c0_92 = arith.constant 0 : index
    %c128_93 = arith.constant 128 : index
    %121 = vector.load %arg9[%c0_90, %c0_91, %c0_92, %c128_93] : memref<1x16x16x512xbf16, #tpu.memory_space<vmem>>, vector<1x16x16x128xbf16>
    %122 = vector.shape_cast %121 : vector<1x16x16x128xbf16> to vector<16x16x128xbf16>
    %123 = vector.shape_cast %120 : vector<16x16x128xbf16> to vector<1x16x16x128xbf16>
    tpu.vector_store %arg9[%c0_90, %c0_91, %c0_92, %c128_93], %123 {strides = array<i32>} : memref<1x16x16x512xbf16, #tpu.memory_space<vmem>>, vector<1x16x16x128xbf16>,
    %c0_94 = arith.constant 0 : index
    %c256_95 = arith.constant 256 : index
    %124 = vector.load %arg7[%c0_94, %c256_95] : memref<128x512xbf16, #tpu.memory_space<vmem>>, vector<128x128xbf16>
    %cst_96 = arith.constant dense<0.000000e+00> : vector<256x128xf32>
    %125 = tpu.matmul %87, %124, %cst_96 {dimension_numbers = #tpu.dot_dimension_numbers<[1], [0], [0], [1], [0, 0, 1, 1], [], []>} : vector<256x128xbf16>, vector<128x128xbf16>, vector<256x128xf32> -> vector<256x128xf32>
    %126 = vector.shape_cast %125 : vector<256x128xf32> to vector<16x16x128xf32>
    %c1_i32_97 = arith.constant 1 : i32
    %127 = arith.addi %1, %c1_i32_97 : i32
    %c0_98 = arith.constant 0 : index
    %128 = arith.index_cast %127 : i32 to index
    %c0_99 = arith.constant 0 : index
    %c256_100 = arith.constant 256 : index
    %129 = vector.load %arg2[%c0_98, %128, %c0_99, %c256_100] : memref<1x18x16x512xf32, #tpu.memory_space<vmem>>, vector<1x16x16x128xf32>
    %130 = vector.shape_cast %129 : vector<1x16x16x128xf32> to vector<16x16x128xf32>
    %c0_101 = arith.constant 0 : index
    %c256_102 = arith.constant 256 : index
    %131 = vector.load %arg8[%c0_101, %c256_102] : memref<1x512xf32, #tpu.memory_space<vmem>>, vector<1x128xf32>
    %132 = vector.shape_cast %131 : vector<1x128xf32> to vector<1x1x128xf32>
    %133 = vector.broadcast %132 : vector<1x1x128xf32> to vector<16x16x128xf32>
    %134 = arith.addf %126, %133 : vector<16x16x128xf32>
    %135 = arith.addf %134, %130 : vector<16x16x128xf32>
    %cst_103 = arith.constant 0.000000e+00 : f32
    %136 = vector.broadcast %cst_103 : f32 to vector<16x16x128xf32>
    %137 = arith.maximumf %135, %136 : vector<16x16x128xf32>
    %138 = arith.truncf %137 : vector<16x16x128xf32> to vector<16x16x128xbf16>
    %c0_104 = arith.constant 0 : index
    %c0_105 = arith.constant 0 : index
    %c0_106 = arith.constant 0 : index
    %c256_107 = arith.constant 256 : index
    %139 = vector.load %arg9[%c0_104, %c0_105, %c0_106, %c256_107] : memref<1x16x16x512xbf16, #tpu.memory_space<vmem>>, vector<1x16x16x128xbf16>
    %140 = vector.shape_cast %139 : vector<1x16x16x128xbf16> to vector<16x16x128xbf16>
    %141 = vector.shape_cast %138 : vector<16x16x128xbf16> to vector<1x16x16x128xbf16>
    tpu.vector_store %arg9[%c0_104, %c0_105, %c0_106, %c256_107], %141 {strides = array<i32>} : memref<1x16x16x512xbf16, #tpu.memory_space<vmem>>, vector<1x16x16x128xbf16>,
    %c0_108 = arith.constant 0 : index
    %c384_109 = arith.constant 384 : index
    %142 = vector.load %arg7[%c0_108, %c384_109] : memref<128x512xbf16, #tpu.memory_space<vmem>>, vector<128x128xbf16>
    %cst_110 = arith.constant dense<0.000000e+00> : vector<256x128xf32>
    %143 = tpu.matmul %87, %142, %cst_110 {dimension_numbers = #tpu.dot_dimension_numbers<[1], [0], [0], [1], [0, 0, 1, 1], [], []>} : vector<256x128xbf16>, vector<128x128xbf16>, vector<256x128xf32> -> vector<256x128xf32>
    %144 = vector.shape_cast %143 : vector<256x128xf32> to vector<16x16x128xf32>
    %c1_i32_111 = arith.constant 1 : i32
    %145 = arith.addi %1, %c1_i32_111 : i32
    %c0_112 = arith.constant 0 : index
    %146 = arith.index_cast %145 : i32 to index
    %c0_113 = arith.constant 0 : index
    %c384_114 = arith.constant 384 : index
    %147 = vector.load %arg2[%c0_112, %146, %c0_113, %c384_114] : memref<1x18x16x512xf32, #tpu.memory_space<vmem>>, vector<1x16x16x128xf32>
    %148 = vector.shape_cast %147 : vector<1x16x16x128xf32> to vector<16x16x128xf32>
    %c0_115 = arith.constant 0 : index
    %c384_116 = arith.constant 384 : index
    %149 = vector.load %arg8[%c0_115, %c384_116] : memref<1x512xf32, #tpu.memory_space<vmem>>, vector<1x128xf32>
    %150 = vector.shape_cast %149 : vector<1x128xf32> to vector<1x1x128xf32>
    %151 = vector.broadcast %150 : vector<1x1x128xf32> to vector<16x16x128xf32>
    %152 = arith.addf %144, %151 : vector<16x16x128xf32>
    %153 = arith.addf %152, %148 : vector<16x16x128xf32>
    %cst_117 = arith.constant 0.000000e+00 : f32
    %154 = vector.broadcast %cst_117 : f32 to vector<16x16x128xf32>
    %155 = arith.maximumf %153, %154 : vector<16x16x128xf32>
    %156 = arith.truncf %155 : vector<16x16x128xf32> to vector<16x16x128xbf16>
    %c0_118 = arith.constant 0 : index
    %c0_119 = arith.constant 0 : index
    %c0_120 = arith.constant 0 : index
    %c384_121 = arith.constant 384 : index
    %157 = vector.load %arg9[%c0_118, %c0_119, %c0_120, %c384_121] : memref<1x16x16x512xbf16, #tpu.memory_space<vmem>>, vector<1x16x16x128xbf16>
    %158 = vector.shape_cast %157 : vector<1x16x16x128xbf16> to vector<16x16x128xbf16>
    %159 = vector.shape_cast %156 : vector<16x16x128xbf16> to vector<1x16x16x128xbf16>
    tpu.vector_store %arg9[%c0_118, %c0_119, %c0_120, %c384_121], %159 {strides = array<i32>} : memref<1x16x16x512xbf16, #tpu.memory_space<vmem>>, vector<1x16x16x128xbf16>,
    return
  }
  func.func @transform_0(%arg0: i32, %arg1: i32) -> (i32, i32, i32, i32) {
    %c0_i32 = arith.constant 0 : i32
    %c0_i32_0 = arith.constant 0 : i32
    %c0_i32_1 = arith.constant 0 : i32
    %c0_i32_2 = arith.constant 0 : i32
    return %arg0, %c0_i32, %c0_i32_0, %c0_i32_1 : i32, i32, i32, i32
  }
  func.func @transform_1(%arg0: i32, %arg1: i32) -> (i32, i32) {
    %c0_i32 = arith.constant 0 : i32
    %c0_i32_0 = arith.constant 0 : i32
    %c0_i32_1 = arith.constant 0 : i32
    return %c0_i32, %c0_i32_0 : i32, i32
  }
  func.func @transform_2(%arg0: i32, %arg1: i32) -> (i32, i32) {
    %c0_i32 = arith.constant 0 : i32
    %c0_i32_0 = arith.constant 0 : i32
    %c0_i32_1 = arith.constant 0 : i32
    return %c0_i32, %c0_i32_0 : i32, i32
  }
  func.func @transform_3(%arg0: i32, %arg1: i32) -> (i32, i32) {
    %c0_i32 = arith.constant 0 : i32
    %c0_i32_0 = arith.constant 0 : i32
    %c0_i32_1 = arith.constant 0 : i32
    return %c0_i32, %c0_i32_0 : i32, i32
  }
  func.func @transform_4(%arg0: i32, %arg1: i32) -> (i32, i32) {
    %c0_i32 = arith.constant 0 : i32
    %c0_i32_0 = arith.constant 0 : i32
    %c0_i32_1 = arith.constant 0 : i32
    return %c0_i32, %c0_i32_0 : i32, i32
  }
  func.func @transform_5(%arg0: i32, %arg1: i32) -> (i32, i32) {
    %c0_i32 = arith.constant 0 : i32
    %c0_i32_0 = arith.constant 0 : i32
    %c0_i32_1 = arith.constant 0 : i32
    return %c0_i32, %c0_i32_0 : i32, i32
  }
  func.func @transform_6(%arg0: i32, %arg1: i32) -> (i32, i32) {
    %c0_i32 = arith.constant 0 : i32
    %c0_i32_0 = arith.constant 0 : i32
    %c0_i32_1 = arith.constant 0 : i32
    return %c0_i32, %c0_i32_0 : i32, i32
  }
  func.func @transform_7(%arg0: i32, %arg1: i32) -> (i32, i32, i32, i32) {
    %c0_i32 = arith.constant 0 : i32
    %c0_i32_0 = arith.constant 0 : i32
    %c0_i32_1 = arith.constant 0 : i32
    return %arg0, %arg1, %c0_i32, %c0_i32_0 : i32, i32, i32, i32
  }
}

</mosaic_0001>

<llo_original>
// kernel: tpu_custom_call.1
$region0: #{tpu_custom_call.1}
  #allocation0 [shape = 'u32[]', space=smem, size = 0x4, offset = 0x4, fixed_abs, tag = 'smem constant byte address 0x4 - core index']
  #allocation1 [shape = 'u32[144,128]{1,0:T(1,128)}', space=vmem, size = 0x12000, scoped, tag = 'internal scratch']
  #allocation2 [shape = 'bf16[18,24,128]{2,1,0:T(8,128)(2,1)}', space=vmem, size = 0x1b000, scoped, tag = 'scratch operand']
  %s0 = inlined_call_operand.hbm [shape: f32[2,18,16,512], index: 0, kind: input, shape index: {}]
  %s1 = inlined_call_operand.hbm [shape: bf16[512,128], index: 1, kind: input, shape index: {}]
  %s2 = inlined_call_operand.hbm [shape: f32[1,128], index: 2, kind: input, shape index: {}]
  %s3 = inlined_call_operand.hbm [shape: bf16[1152,128], index: 3, kind: input, shape index: {}]
  %s4 = inlined_call_operand.hbm [shape: f32[1,128], index: 4, kind: input, shape index: {}]
  %s5 = inlined_call_operand.hbm [shape: bf16[128,512], index: 5, kind: input, shape index: {}]
  %s6 = inlined_call_operand.hbm [shape: f32[1,512], index: 6, kind: input, shape index: {}]
  %s7 = inlined_call_operand.hbm [shape: bf16[2,16,16,512], index: 7, kind: output, shape index: {}]
  %s8 = sld [smem:[#allocation0]]
  $region89: #{tpu_custom_call.1} parent=0
    _
  %s10 = ssub.s32 1, %s8
  %s11 = scalar_select 0, %s10, %s8
  $region1: #{tpu_custom_call.1} parent=0
    #allocation3 [shape = 'u8[1179648]{0}', space=vmem, size = 0x120000, scoped, tag = 'input window, operand 0']
    #allocation4 [shape = 's32[2]{0}', space=sflag, size = 0x8, scoped, tag = 'scoped memory for tpu_custom_call.1']
    #allocation5 [shape = 's32[2]{0}', space=sflag, size = 0x8, scoped, tag = 'scoped memory for tpu_custom_call.1']
    #allocation6 [shape = 'u8[131072]{0}', space=vmem, size = 0x20000, scoped, tag = 'input window, operand 1, single buffered']
    #allocation7 [shape = 's32[1]{0}', space=sflag, size = 0x4, scoped, tag = 'scoped memory for tpu_custom_call.1']
    #allocation8 [shape = 'u8[512]{0}', space=vmem, size = 0x400, scoped, tag = 'input window, operand 2, single buffered']
    #allocation9 [shape = 'u8[294912]{0}', space=vmem, size = 0x48000, scoped, tag = 'input window, operand 3, single buffered']
    #allocation10 [shape = 's32[1]{0}', space=sflag, size = 0x4, scoped, tag = 'scoped memory for tpu_custom_call.1']
    #allocation11 [shape = 'u8[512]{0}', space=vmem, size = 0x400, scoped, tag = 'input window, operand 4, single buffered']
    #allocation12 [shape = 'u8[131072]{0}', space=vmem, size = 0x20000, scoped, tag = 'input window, operand 5, single buffered']
    #allocation13 [shape = 's32[1]{0}', space=sflag, size = 0x4, scoped, tag = 'scoped memory for tpu_custom_call.1']
    #allocation14 [shape = 'u8[2048]{0}', space=vmem, size = 0x800, scoped, tag = 'input window, operand 6, single buffered']
    #allocation15 [shape = 'u8[524288]{0}', space=vmem, size = 0x80000, scoped, tag = 'output window, operand 0']
    %12 = vsyncpa [#allocation4], 0
    %s13 = scalar_lea.sflag [#allocation4], 1
    %14 = vsyncpa %s13, 0
    %15 = vsyncpa [#allocation7], 0
    %16 = vsyncpa [#allocation10], 0
    %17 = vsyncpa [#allocation13], 0
    %18 = vsyncpa [#allocation5], 0
    %s19 = scalar_lea.sflag [#allocation5], 1
    %20 = vsyncpa %s19, 0
    loop: start=0, step=1, limit=4
    $region2: #{tpu_custom_call.1} parent=1 // loop_pre_header
      _
    $region3: #{tpu_custom_call.1} parent=1 // loop_header
      %s22 = sphi 0, %s26
      %p23 = scmp.ge.s32.totalorder %s22, 4
      %s29 = sphi 0, %s41
      %s30 = sphi 0, %s37
      %s31 = sphi 0, %s29
      %s32 = sphi 0, %s30
      %s33 = sphi 0, %s31
      %s34 = sphi 0, %s32
      %s44 = sphi 0, %s46
      %s47 = sphi 0, %s44
      %s48 = sphi 0, %s47
      %s64 = sphi 0, %s48
      %s68 = sphi 0, %s68
      %s70 = sphi 0, %s68
      %s71 = sphi 0, %s70
      %s85 = sphi 0, %s71
      %s89 = sphi 0, %s89
      %s91 = sphi 0, %s89
      %s92 = sphi 0, %s91
      %s106 = sphi 0, %s92
      %s110 = sphi 0, %s110
      %s112 = sphi 0, %s110
      %s113 = sphi 0, %s112
      %s127 = sphi 0, %s113
      %s131 = sphi 0, %s131
      %s133 = sphi 0, %s131
      %s134 = sphi 0, %s133
      %s148 = sphi 0, %s134
      %s152 = sphi 0, %s152
      %s154 = sphi 0, %s152
      %s155 = sphi 0, %s154
      %s169 = sphi 0, %s155
      %s173 = sphi 0, %s173
      %s175 = sphi 0, %s173
      %s176 = sphi 0, %s175
      %s190 = sphi 0, %s176
      %s198 = sphi 0, %s200
      %s201 = sphi 0, %s198
      %s202 = sphi 0, %s201
      %s218 = sphi 0, %s202
    $region4: #{tpu_custom_call.1} parent=1 // loop_header_branch
      %25 = sbr.rel (%p23) target = $region8
    $region5: #{tpu_custom_call.1} parent=1 // loop_body
      %s27 = ssub.s32 %s22, 1
      %s28 = ssub.s32 %s22, 2
      %s35 = sadd.s32 1, %s30
      %p36 = scmp.ge.s32.totalorder %s35, 1
      %s37 = scalar_select %p36, 0, %s35
      %s38 = sadd.s32 1, %s29
      %s39 = scalar_select %p36, %s38, %s29
      %p40 = scmp.ge.s32.totalorder %s39, 2
      %s41 = scalar_select %p40, 0, %s39
      %s42 = ssub.s32 %s29, %s41
      %p43 = scmp.eq.s32.totalorder %s42, 0
      %s45 = sadd.s32 %s44, 1
      %s46 = scalar_select %p43, %s44, %s45
      %p49 = pneg %p43
      %p50 = scmp.eq.s32.totalorder %s22, 1
      %p51 = por %p49, %p50
      %p52 = scmp.ne.s32.totalorder %s44, %s47
      %p53 = scmp.eq.s32.totalorder %s22, 0
      %p54 = por %p52, %p53
      %p55 = scmp.ne.s32.totalorder %s44, %s47
      %p56 = scmp.eq.s32.totalorder %s27, 1
      %p57 = por %p55, %p56
      %p58 = scmp.ne.s32.totalorder %s47, %s48
      %p59 = scmp.eq.s32.totalorder %s27, 0
      %p60 = por %p58, %p59
      %p61 = scmp.ne.s32.totalorder %s47, %s48
      %p62 = scmp.eq.s32.totalorder %s28, 1
      %p63 = por %p61, %p62
      %p65 = scmp.ne.s32.totalorder %s48, %s64
      %p66 = scmp.eq.s32.totalorder %s28, 0
      %p67 = por %p65, %p66
      %s69 = sadd.s32 %s68, 1
      %p72 = scmp.eq.s32.totalorder %s22, 1
      %p73 = scmp.ne.s32.totalorder %s68, %s70
      %p74 = scmp.eq.s32.totalorder %s22, 0
      %p75 = por %p73, %p74
      %p76 = scmp.ne.s32.totalorder %s68, %s70
      %p77 = scmp.eq.s32.totalorder %s27, 1
      %p78 = por %p76, %p77
      %p79 = scmp.ne.s32.totalorder %s70, %s71
      %p80 = scmp.eq.s32.totalorder %s27, 0
      %p81 = por %p79, %p80
      %p82 = scmp.ne.s32.totalorder %s70, %s71
      %p83 = scmp.eq.s32.totalorder %s28, 1
      %p84 = por %p82, %p83
      %p86 = scmp.ne.s32.totalorder %s71, %s85
      %p87 = scmp.eq.s32.totalorder %s28, 0
      %p88 = por %p86, %p87
      %s90 = sadd.s32 %s89, 1
      %p93 = scmp.eq.s32.totalorder %s22, 1
      %p94 = scmp.ne.s32.totalorder %s89, %s91
      %p95 = scmp.eq.s32.totalorder %s22, 0
      %p96 = por %p94, %p95
      %p97 = scmp.ne.s32.totalorder %s89, %s91
      %p98 = scmp.eq.s32.totalorder %s27, 1
      %p99 = por %p97, %p98
      %p100 = scmp.ne.s32.totalorder %s91, %s92
      %p101 = scmp.eq.s32.totalorder %s27, 0
      %p102 = por %p100, %p101
      %p103 = scmp.ne.s32.totalorder %s91, %s92
      %p104 = scmp.eq.s32.totalorder %s28, 1
      %p105 = por %p103, %p104
      %p107 = scmp.ne.s32.totalorder %s92, %s106
      %p108 = scmp.eq.s32.totalorder %s28, 0
      %p109 = por %p107, %p108
      %s111 = sadd.s32 %s110, 1
      %p114 = scmp.eq.s32.totalorder %s22, 1
      %p115 = scmp.ne.s32.totalorder %s110, %s112
      %p116 = scmp.eq.s32.totalorder %s22, 0
      %p117 = por %p115, %p116
      %p118 = scmp.ne.s32.totalorder %s110, %s112
      %p119 = scmp.eq.s32.totalorder %s27, 1
      %p120 = por %p118, %p119
      %p121 = scmp.ne.s32.totalorder %s112, %s113
      %p122 = scmp.eq.s32.totalorder %s27, 0
      %p123 = por %p121, %p122
      %p124 = scmp.ne.s32.totalorder %s112, %s113
      %p125 = scmp.eq.s32.totalorder %s28, 1
      %p126 = por %p124, %p125
      %p128 = scmp.ne.s32.totalorder %s113, %s127
      %p129 = scmp.eq.s32.totalorder %s28, 0
      %p130 = por %p128, %p129
      %s132 = sadd.s32 %s131, 1
      %p135 = scmp.eq.s32.totalorder %s22, 1
      %p136 = scmp.ne.s32.totalorder %s131, %s133
      %p137 = scmp.eq.s32.totalorder %s22, 0
      %p138 = por %p136, %p137
      %p139 = scmp.ne.s32.totalorder %s131, %s133
      %p140 = scmp.eq.s32.totalorder %s27, 1
      %p141 = por %p139, %p140
      %p142 = scmp.ne.s32.totalorder %s133, %s134
      %p143 = scmp.eq.s32.totalorder %s27, 0
      %p144 = por %p142, %p143
      %p145 = scmp.ne.s32.totalorder %s133, %s134
      %p146 = scmp.eq.s32.totalorder %s28, 1
      %p147 = por %p145, %p146
      %p149 = scmp.ne.s32.totalorder %s134, %s148
      %p150 = scmp.eq.s32.totalorder %s28, 0
      %p151 = por %p149, %p150
      %s153 = sadd.s32 %s152, 1
      %p156 = scmp.eq.s32.totalorder %s22, 1
      %p157 = scmp.ne.s32.totalorder %s152, %s154
      %p158 = scmp.eq.s32.totalorder %s22, 0
      %p159 = por %p157, %p158
      %p160 = scmp.ne.s32.totalorder %s152, %s154
      %p161 = scmp.eq.s32.totalorder %s27, 1
      %p162 = por %p160, %p161
      %p163 = scmp.ne.s32.totalorder %s154, %s155
      %p164 = scmp.eq.s32.totalorder %s27, 0
      %p165 = por %p163, %p164
      %p166 = scmp.ne.s32.totalorder %s154, %s155
      %p167 = scmp.eq.s32.totalorder %s28, 1
      %p168 = por %p166, %p167
      %p170 = scmp.ne.s32.totalorder %s155, %s169
      %p171 = scmp.eq.s32.totalorder %s28, 0
      %p172 = por %p170, %p171
      %s174 = sadd.s32 %s173, 1
      %p177 = scmp.eq.s32.totalorder %s22, 1
      %p178 = scmp.ne.s32.totalorder %s173, %s175
      %p179 = scmp.eq.s32.totalorder %s22, 0
      %p180 = por %p178, %p179
      %p181 = scmp.ne.s32.totalorder %s173, %s175
      %p182 = scmp.eq.s32.totalorder %s27, 1
      %p183 = por %p181, %p182
      %p184 = scmp.ne.s32.totalorder %s175, %s176
      %p185 = scmp.eq.s32.totalorder %s27, 0
      %p186 = por %p184, %p185
      %p187 = scmp.ne.s32.totalorder %s175, %s176
      %p188 = scmp.eq.s32.totalorder %s28, 1
      %p189 = por %p187, %p188
      %p191 = scmp.ne.s32.totalorder %s176, %s190
      %p192 = scmp.eq.s32.totalorder %s28, 0
      %p193 = por %p191, %p192
      %s194 = ssub.s32 %s29, %s41
      %s195 = ssub.s32 %s30, %s37
      %s196 = sor.u32 %s194, %s195
      %p197 = scmp.eq.s32.totalorder %s196, 0
      %s199 = sadd.s32 %s198, 1
      %s200 = scalar_select %p197, %s198, %s199
      %p203 = pneg %p197
      %p204 = scmp.eq.s32.totalorder %s22, 1
      %p205 = por %p203, %p204
      %p206 = scmp.ne.s32.totalorder %s198, %s201
      %p207 = scmp.eq.s32.totalorder %s22, 0
      %p208 = por %p206, %p207
      %p209 = scmp.ne.s32.totalorder %s198, %s201
      %p210 = scmp.eq.s32.totalorder %s27, 1
      %p211 = por %p209, %p210
      %p212 = scmp.ne.s32.totalorder %s201, %s202
      %p213 = scmp.eq.s32.totalorder %s27, 0
      %p214 = por %p212, %p213
      %p215 = scmp.ne.s32.totalorder %s201, %s202
      %p216 = scmp.eq.s32.totalorder %s28, 1
      %p217 = por %p215, %p216
      %p219 = scmp.ne.s32.totalorder %s202, %s218
      %p220 = scmp.eq.s32.totalorder %s28, 0
      %p221 = por %p219, %p220
      %p222 = scmp.le.s32.totalorder 1, %s22
      %p223 = scmp.lt.s32.totalorder %s22, 3
      %p224 = pnand %p222, %p223
      %p225 = pneg %p224
      // Predicated region
      $region9: #{tpu_custom_call.1} parent=5 // pred_check
        _
      $region10: #{tpu_custom_call.1} parent=5 // pred_check_branch
        %227 = sbr.rel (%p224) target = $region12
      $region11: #{tpu_custom_call.1} parent=5 // pred_region
        %s228 = ssub.s32 %s22, 1
        // Predicated region
        $region13: #{tpu_custom_call.1} parent=11 // pred_check
          %p229 = pneg %p81
        $region14: #{tpu_custom_call.1} parent=11 // pred_check_branch
          %231 = sbr.rel (%p229) target = $region16
        $region15: #{tpu_custom_call.1} parent=11 // pred_region
          %s233 = ssub.s32 4096, 4096
          %234 = vsyncadd [#allocation7], %s233
          %s235 = sshll.u32 [#allocation6], 4
          %s236 = int_to_ptr.vmem [resolvable:$true] %s235
          %241 = dma.hbm_to_vmem [thread:$0]  %s1, 4096, %s236, [#allocation7], 64, 64, 4
        $region16: #{tpu_custom_call.1} parent=11 // pred_fallthru
          _
        // Predicated region
        $region17: #{tpu_custom_call.1} parent=11 // pred_check
          %p242 = pneg %p102
        $region18: #{tpu_custom_call.1} parent=11 // pred_check_branch
          %244 = sbr.rel (%p242) target = $region20
        $region19: #{tpu_custom_call.1} parent=11 // pred_region
          %s246 = ssub.s32 16, 16
          %247 = vsyncadd [#allocation7], %s246
          %s249 = sshll.u32 [#allocation8], 4
          %s250 = int_to_ptr.vmem [resolvable:$true] %s249
          %252 = dma.hbm_to_vmem [thread:$0]  %s2, 16, %s250, [#allocation7]
        $region20: #{tpu_custom_call.1} parent=11 // pred_fallthru
          _
        // Predicated region
        $region21: #{tpu_custom_call.1} parent=11 // pred_check
          %p253 = pneg %p123
        $region22: #{tpu_custom_call.1} parent=11 // pred_check_branch
          %255 = sbr.rel (%p253) target = $region24
        $region23: #{tpu_custom_call.1} parent=11 // pred_region
          %s257 = ssub.s32 9216, 9216
          %258 = vsyncadd [#allocation10], %s257
          %s259 = sshll.u32 [#allocation9], 4
          %s260 = int_to_ptr.vmem [resolvable:$true] %s259
          %265 = dma.hbm_to_vmem [thread:$0]  %s3, 9216, %s260, [#allocation10], 64, 64, 4
        $region24: #{tpu_custom_call.1} parent=11 // pred_fallthru
          _
        // Predicated region
        $region25: #{tpu_custom_call.1} parent=11 // pred_check
          %p266 = pneg %p144
        $region26: #{tpu_custom_call.1} parent=11 // pred_check_branch
          %268 = sbr.rel (%p266) target = $region28
        $region27: #{tpu_custom_call.1} parent=11 // pred_region
          %s270 = ssub.s32 16, 16
          %271 = vsyncadd [#allocation10], %s270
          %s273 = sshll.u32 [#allocation11], 4
          %s274 = int_to_ptr.vmem [resolvable:$true] %s273
          %276 = dma.hbm_to_vmem [thread:$0]  %s4, 16, %s274, [#allocation10]
        $region28: #{tpu_custom_call.1} parent=11 // pred_fallthru
          _
        // Predicated region
        $region29: #{tpu_custom_call.1} parent=11 // pred_check
          %p277 = pneg %p165
        $region30: #{tpu_custom_call.1} parent=11 // pred_check_branch
          %279 = sbr.rel (%p277) target = $region32
        $region31: #{tpu_custom_call.1} parent=11 // pred_region
          %s281 = ssub.s32 4096, 4096
          %282 = vsyncadd [#allocation13], %s281
          %s283 = sshll.u32 [#allocation12], 4
          %s284 = int_to_ptr.vmem [resolvable:$true] %s283
          %289 = dma.hbm_to_vmem [thread:$0]  %s5, 4096, %s284, [#allocation13], 256, 256, 16
        $region32: #{tpu_custom_call.1} parent=11 // pred_fallthru
          _
        // Predicated region
        $region33: #{tpu_custom_call.1} parent=11 // pred_check
          %p290 = pneg %p186
        $region34: #{tpu_custom_call.1} parent=11 // pred_check_branch
          %292 = sbr.rel (%p290) target = $region36
        $region35: #{tpu_custom_call.1} parent=11 // pred_region
          %s294 = ssub.s32 64, 64
          %295 = vsyncadd [#allocation13], %s294
          %s297 = sshll.u32 [#allocation14], 4
          %s298 = int_to_ptr.vmem [resolvable:$true] %s297
          %300 = dma.hbm_to_vmem [thread:$0]  %s6, 64, %s298, [#allocation13]
        $region36: #{tpu_custom_call.1} parent=11 // pred_fallthru
          _
      $region12: #{tpu_custom_call.1} parent=5 // pred_fallthru
        _
      %p301 = scmp.lt.s32.totalorder %s22, 2
      // Predicated region
      $region37: #{tpu_custom_call.1} parent=5 // pred_check
        %p302 = pneg %p301
      $region38: #{tpu_custom_call.1} parent=5 // pred_check_branch
        %304 = sbr.rel (%p302) target = $region40
      $region39: #{tpu_custom_call.1} parent=5 // pred_region
        // Predicated region
        $region41: #{tpu_custom_call.1} parent=39 // pred_check
          %p305 = pneg %p54
        $region42: #{tpu_custom_call.1} parent=39 // pred_check_branch
          %307 = sbr.rel (%p305) target = $region44
        $region43: #{tpu_custom_call.1} parent=39 // pred_region
          %s308 = sand.u32 %s44, 1
          %s309 = scalar_lea.sflag [#allocation4], %s308
          %s310 = sand.u32 %s44, 1
          %s311 = smul.addr %s310, 1152
          %s312 = scalar_lea.vmem [#allocation3], %s311
          %s314 = ssub.s32 18432, 18432
          %315 = vsyncadd %s309, %s314
          %s316 = smul.addr %s29, 144
          %s317 = smul.addr %s316, 128
          %s318 = scalar_lea.hbm %s0, %s317
          %s319 = sshll.u32 %s312, 4
          %s320 = int_to_ptr.vmem [resolvable:$true] %s319
          %325 = dma.hbm_to_vmem [thread:$0]  %s318, 18432, %s320, %s309, 512, 512, 32
        $region44: #{tpu_custom_call.1} parent=39 // pred_fallthru
          _
      $region40: #{tpu_custom_call.1} parent=5 // pred_fallthru
        _
      %p326 = scmp.le.s32.totalorder 1, %s22
      %p327 = scmp.lt.s32.totalorder %s22, 3
      %p328 = pnand %p326, %p327
      %p329 = pneg %p328
      // Predicated region
      $region45: #{tpu_custom_call.1} parent=5 // pred_check
        _
      $region46: #{tpu_custom_call.1} parent=5 // pred_check_branch
        %331 = sbr.rel (%p328) target = $region48
      $region47: #{tpu_custom_call.1} parent=5 // pred_region
        %s332 = ssub.s32 %s22, 1
        %s333 = sand.u32 %s47, 1
        %s334 = scalar_lea.sflag [#allocation4], %s333
        %s335 = sand.u32 %s47, 1
        %s336 = smul.addr %s335, 1152
        %s337 = scalar_lea.vmem [#allocation3], %s336
        // Predicated region
        $region49: #{tpu_custom_call.1} parent=47 // pred_check
          %p338 = pneg %p60
        $region50: #{tpu_custom_call.1} parent=47 // pred_check_branch
          %340 = sbr.rel (%p338) target = $region52
        $region51: #{tpu_custom_call.1} parent=47 // pred_region
          %341 = dma.done %s334, 18432
        $region52: #{tpu_custom_call.1} parent=47 // pred_fallthru
          _
        // Predicated region
        $region53: #{tpu_custom_call.1} parent=47 // pred_check
          %p342 = pneg %p81
        $region54: #{tpu_custom_call.1} parent=47 // pred_check_branch
          %344 = sbr.rel (%p342) target = $region56
        $region55: #{tpu_custom_call.1} parent=47 // pred_region
          %345 = dma.done [#allocation7], 4096
        $region56: #{tpu_custom_call.1} parent=47 // pred_fallthru
          _
        // Predicated region
        $region57: #{tpu_custom_call.1} parent=47 // pred_check
          %p346 = pneg %p102
        $region58: #{tpu_custom_call.1} parent=47 // pred_check_branch
          %348 = sbr.rel (%p346) target = $region60
        $region59: #{tpu_custom_call.1} parent=47 // pred_region
          %349 = dma.done [#allocation7], 16
        $region60: #{tpu_custom_call.1} parent=47 // pred_fallthru
          _
        // Predicated region
        $region61: #{tpu_custom_call.1} parent=47 // pred_check
          %p350 = pneg %p123
        $region62: #{tpu_custom_call.1} parent=47 // pred_check_branch
          %352 = sbr.rel (%p350) target = $region64
        $region63: #{tpu_custom_call.1} parent=47 // pred_region
          %353 = dma.done [#allocation10], 9216
        $region64: #{tpu_custom_call.1} parent=47 // pred_fallthru
          _
        // Predicated region
        $region65: #{tpu_custom_call.1} parent=47 // pred_check
          %p354 = pneg %p144
        $region66: #{tpu_custom_call.1} parent=47 // pred_check_branch
          %356 = sbr.rel (%p354) target = $region68
        $region67: #{tpu_custom_call.1} parent=47 // pred_region
          %357 = dma.done [#allocation10], 16
        $region68: #{tpu_custom_call.1} parent=47 // pred_fallthru
          _
        // Predicated region
        $region69: #{tpu_custom_call.1} parent=47 // pred_check
          %p358 = pneg %p165
        $region70: #{tpu_custom_call.1} parent=47 // pred_check_branch
          %360 = sbr.rel (%p358) target = $region72
        $region71: #{tpu_custom_call.1} parent=47 // pred_region
          %361 = dma.done [#allocation13], 4096
        $region72: #{tpu_custom_call.1} parent=47 // pred_fallthru
          _
        // Predicated region
        $region73: #{tpu_custom_call.1} parent=47 // pred_check
          %p362 = pneg %p186
        $region74: #{tpu_custom_call.1} parent=47 // pred_check_branch
          %364 = sbr.rel (%p362) target = $region76
        $region75: #{tpu_custom_call.1} parent=47 // pred_region
          %365 = dma.done [#allocation13], 64
        $region76: #{tpu_custom_call.1} parent=47 // pred_fallthru
          _
        %s366 = sand.u32 %s47, 1
        %s367 = scalar_lea.sflag [#allocation4], %s366
        %s368 = sand.u32 %s47, 1
        %s369 = smul.addr %s368, 1152
        %s370 = scalar_lea.vmem [#allocation3], %s369
        %p371 = pneg %p60
        %p372 = pneg %p57
        %p373 = pneg %p81
        %p374 = pneg %p78
        %p375 = pneg %p102
        %p376 = pneg %p99
        %p377 = pneg %p123
        %p378 = pneg %p120
        %p379 = pneg %p144
        %p380 = pneg %p141
        %p381 = pneg %p165
        %p382 = pneg %p162
        %p383 = pneg %p186
        %p384 = pneg %p183
        %p385 = pneg %p214
        %p386 = pneg %p211
        %s387 = sand.u32 %s201, 1
        %s388 = scalar_lea.sflag [#allocation5], %s387
        %s389 = sand.u32 %s201, 1
        %s390 = smul.addr %s389, 512
        %s391 = scalar_lea.vmem [#allocation15], %s390
        %s392 = smul.u32 16, %s32
        %s394 = smul.u32 %s32, 16
        %s395 = smul.u32 %s394, 8
        %s396 = smul.addr %s395, 8
        %s397 = scalar_lea.vmem %s337, %s396 [#allocation3]
        %v398 = vld [vmem:[%s397] sm:$0xff]
        %v399 = vld [vmem:[%s397 + $0x8] sm:$0xff]
        %v400 = vld [vmem:[%s397 + $0x10] sm:$0xff]
        %v401 = vld [vmem:[%s397 + $0x18] sm:$0xff]
        %v402 = vld [vmem:[%s397 + $0x20] sm:$0xff]
        %v403 = vld [vmem:[%s397 + $0x28] sm:$0xff]
        %v404 = vld [vmem:[%s397 + $0x30] sm:$0xff]
        %v405 = vld [vmem:[%s397 + $0x38] sm:$0xff]
        %v406 = vld [vmem:[%s397 + $0x40] sm:$0xff]
        %v407 = vld [vmem:[%s397 + $0x48] sm:$0xff]
        %v408 = vld [vmem:[%s397 + $0x50] sm:$0xff]
        %v409 = vld [vmem:[%s397 + $0x58] sm:$0xff]
        %v410 = vld [vmem:[%s397 + $0x60] sm:$0xff]
        %v411 = vld [vmem:[%s397 + $0x68] sm:$0xff]
        %v412 = vld [vmem:[%s397 + $0x70] sm:$0xff]
        %v413 = vld [vmem:[%s397 + $0x78] sm:$0xff]
        %v414 = vld [vmem:[%s397 + $0x80] sm:$0xff]
        %v415 = vld [vmem:[%s397 + $0x88] sm:$0xff]
        %v416 = vld [vmem:[%s397 + $0x90] sm:$0xff]
        %v417 = vld [vmem:[%s397 + $0x98] sm:$0xff]
        %v418 = vld [vmem:[%s397 + $0xa0] sm:$0xff]
        %v419 = vld [vmem:[%s397 + $0xa8] sm:$0xff]
        %v420 = vld [vmem:[%s397 + $0xb0] sm:$0xff]
        %v421 = vld [vmem:[%s397 + $0xb8] sm:$0xff]
        %v422 = vld [vmem:[%s397 + $0xc0] sm:$0xff]
        %v423 = vld [vmem:[%s397 + $0xc8] sm:$0xff]
        %v424 = vld [vmem:[%s397 + $0xd0] sm:$0xff]
        %v425 = vld [vmem:[%s397 + $0xd8] sm:$0xff]
        %v426 = vld [vmem:[%s397 + $0xe0] sm:$0xff]
        %v427 = vld [vmem:[%s397 + $0xe8] sm:$0xff]
        %v428 = vld [vmem:[%s397 + $0xf0] sm:$0xff]
        %v429 = vld [vmem:[%s397 + $0xf8] sm:$0xff]
        %v430 = vld [vmem:[%s397 + $0x100] sm:$0xff]
        %v431 = vld [vmem:[%s397 + $0x108] sm:$0xff]
        %v432 = vld [vmem:[%s397 + $0x110] sm:$0xff]
        %v433 = vld [vmem:[%s397 + $0x118] sm:$0xff]
        %v434 = vld [vmem:[%s397 + $0x120] sm:$0xff]
        %v435 = vld [vmem:[%s397 + $0x128] sm:$0xff]
        %v436 = vld [vmem:[%s397 + $0x130] sm:$0xff]
        %v437 = vld [vmem:[%s397 + $0x138] sm:$0xff]
        %v438 = vld [vmem:[%s397 + $0x140] sm:$0xff]
        %v439 = vld [vmem:[%s397 + $0x148] sm:$0xff]
        %v440 = vld [vmem:[%s397 + $0x150] sm:$0xff]
        %v441 = vld [vmem:[%s397 + $0x158] sm:$0xff]
        %v442 = vld [vmem:[%s397 + $0x160] sm:$0xff]
        %v443 = vld [vmem:[%s397 + $0x168] sm:$0xff]
        %v444 = vld [vmem:[%s397 + $0x170] sm:$0xff]
        %v445 = vld [vmem:[%s397 + $0x178] sm:$0xff]
        %v446 = vld [vmem:[%s397 + $0x180] sm:$0xff]
        %v447 = vld [vmem:[%s397 + $0x188] sm:$0xff]
        %v448 = vld [vmem:[%s397 + $0x190] sm:$0xff]
        %v449 = vld [vmem:[%s397 + $0x198] sm:$0xff]
        %v450 = vld [vmem:[%s397 + $0x1a0] sm:$0xff]
        %v451 = vld [vmem:[%s397 + $0x1a8] sm:$0xff]
        %v452 = vld [vmem:[%s397 + $0x1b0] sm:$0xff]
        %v453 = vld [vmem:[%s397 + $0x1b8] sm:$0xff]
        %v454 = vld [vmem:[%s397 + $0x1c0] sm:$0xff]
        %v455 = vld [vmem:[%s397 + $0x1c8] sm:$0xff]
        %v456 = vld [vmem:[%s397 + $0x1d0] sm:$0xff]
        %v457 = vld [vmem:[%s397 + $0x1d8] sm:$0xff]
        %v458 = vld [vmem:[%s397 + $0x1e0] sm:$0xff]
        %v459 = vld [vmem:[%s397 + $0x1e8] sm:$0xff]
        %v460 = vld [vmem:[%s397 + $0x1f0] sm:$0xff]
        %v461 = vld [vmem:[%s397 + $0x1f8] sm:$0xff]
        %v462 = vld [vmem:[%s397 + $0x200] sm:$0xff]
        %v463 = vld [vmem:[%s397 + $0x208] sm:$0xff]
        %v464 = vld [vmem:[%s397 + $0x210] sm:$0xff]
        %v465 = vld [vmem:[%s397 + $0x218] sm:$0xff]
        %v466 = vld [vmem:[%s397 + $0x220] sm:$0xff]
        %v467 = vld [vmem:[%s397 + $0x228] sm:$0xff]
        %v468 = vld [vmem:[%s397 + $0x230] sm:$0xff]
        %v469 = vld [vmem:[%s397 + $0x238] sm:$0xff]
        %v470 = vld [vmem:[%s397 + $0x240] sm:$0xff]
        %v471 = vld [vmem:[%s397 + $0x248] sm:$0xff]
        %v472 = vld [vmem:[%s397 + $0x250] sm:$0xff]
        %v473 = vld [vmem:[%s397 + $0x258] sm:$0xff]
        %v474 = vld [vmem:[%s397 + $0x260] sm:$0xff]
        %v475 = vld [vmem:[%s397 + $0x268] sm:$0xff]
        %v476 = vld [vmem:[%s397 + $0x270] sm:$0xff]
        %v477 = vld [vmem:[%s397 + $0x278] sm:$0xff]
        %v478 = vld [vmem:[%s397 + $0x280] sm:$0xff]
        %v479 = vld [vmem:[%s397 + $0x288] sm:$0xff]
        %v480 = vld [vmem:[%s397 + $0x290] sm:$0xff]
        %v481 = vld [vmem:[%s397 + $0x298] sm:$0xff]
        %v482 = vld [vmem:[%s397 + $0x2a0] sm:$0xff]
        %v483 = vld [vmem:[%s397 + $0x2a8] sm:$0xff]
        %v484 = vld [vmem:[%s397 + $0x2b0] sm:$0xff]
        %v485 = vld [vmem:[%s397 + $0x2b8] sm:$0xff]
        %v486 = vld [vmem:[%s397 + $0x2c0] sm:$0xff]
        %v487 = vld [vmem:[%s397 + $0x2c8] sm:$0xff]
        %v488 = vld [vmem:[%s397 + $0x2d0] sm:$0xff]
        %v489 = vld [vmem:[%s397 + $0x2d8] sm:$0xff]
        %v490 = vld [vmem:[%s397 + $0x2e0] sm:$0xff]
        %v491 = vld [vmem:[%s397 + $0x2e8] sm:$0xff]
        %v492 = vld [vmem:[%s397 + $0x2f0] sm:$0xff]
        %v493 = vld [vmem:[%s397 + $0x2f8] sm:$0xff]
        %v494 = vld [vmem:[%s397 + $0x300] sm:$0xff]
        %v495 = vld [vmem:[%s397 + $0x308] sm:$0xff]
        %v496 = vld [vmem:[%s397 + $0x310] sm:$0xff]
        %v497 = vld [vmem:[%s397 + $0x318] sm:$0xff]
        %v498 = vld [vmem:[%s397 + $0x320] sm:$0xff]
        %v499 = vld [vmem:[%s397 + $0x328] sm:$0xff]
        %v500 = vld [vmem:[%s397 + $0x330] sm:$0xff]
        %v501 = vld [vmem:[%s397 + $0x338] sm:$0xff]
        %v502 = vld [vmem:[%s397 + $0x340] sm:$0xff]
        %v503 = vld [vmem:[%s397 + $0x348] sm:$0xff]
        %v504 = vld [vmem:[%s397 + $0x350] sm:$0xff]
        %v505 = vld [vmem:[%s397 + $0x358] sm:$0xff]
        %v506 = vld [vmem:[%s397 + $0x360] sm:$0xff]
        %v507 = vld [vmem:[%s397 + $0x368] sm:$0xff]
        %v508 = vld [vmem:[%s397 + $0x370] sm:$0xff]
        %v509 = vld [vmem:[%s397 + $0x378] sm:$0xff]
        %v510 = vld [vmem:[%s397 + $0x380] sm:$0xff]
        %v511 = vld [vmem:[%s397 + $0x388] sm:$0xff]
        %v512 = vld [vmem:[%s397 + $0x390] sm:$0xff]
        %v513 = vld [vmem:[%s397 + $0x398] sm:$0xff]
        %v514 = vld [vmem:[%s397 + $0x3a0] sm:$0xff]
        %v515 = vld [vmem:[%s397 + $0x3a8] sm:$0xff]
        %v516 = vld [vmem:[%s397 + $0x3b0] sm:$0xff]
        %v517 = vld [vmem:[%s397 + $0x3b8] sm:$0xff]
        %v518 = vld [vmem:[%s397 + $0x3c0] sm:$0xff]
        %v519 = vld [vmem:[%s397 + $0x3c8] sm:$0xff]
        %v520 = vld [vmem:[%s397 + $0x3d0] sm:$0xff]
        %v521 = vld [vmem:[%s397 + $0x3d8] sm:$0xff]
        %v522 = vld [vmem:[%s397 + $0x3e0] sm:$0xff]
        %v523 = vld [vmem:[%s397 + $0x3e8] sm:$0xff]
        %v524 = vld [vmem:[%s397 + $0x3f0] sm:$0xff]
        %v525 = vld [vmem:[%s397 + $0x3f8] sm:$0xff]
        %v526 = vld [vmem:[%s397 + $0x400] sm:$0xff]
        %v527 = vld [vmem:[%s397 + $0x408] sm:$0xff]
        %v528 = vld [vmem:[%s397 + $0x410] sm:$0xff]
        %v529 = vld [vmem:[%s397 + $0x418] sm:$0xff]
        %v530 = vld [vmem:[%s397 + $0x420] sm:$0xff]
        %v531 = vld [vmem:[%s397 + $0x428] sm:$0xff]
        %v532 = vld [vmem:[%s397 + $0x430] sm:$0xff]
        %v533 = vld [vmem:[%s397 + $0x438] sm:$0xff]
        %v534 = vld [vmem:[%s397 + $0x440] sm:$0xff]
        %v535 = vld [vmem:[%s397 + $0x448] sm:$0xff]
        %v536 = vld [vmem:[%s397 + $0x450] sm:$0xff]
        %v537 = vld [vmem:[%s397 + $0x458] sm:$0xff]
        %v538 = vld [vmem:[%s397 + $0x460] sm:$0xff]
        %v539 = vld [vmem:[%s397 + $0x468] sm:$0xff]
        %v540 = vld [vmem:[%s397 + $0x470] sm:$0xff]
        %v541 = vld [vmem:[%s397 + $0x478] sm:$0xff]
        %v542 = vpack.c.bf16 %v402, %v398
        %v543 = vpack.c.bf16 %v403, %v399
        %v544 = vpack.c.bf16 %v404, %v400
        %v545 = vpack.c.bf16 %v405, %v401
        %v546 = vpack.c.bf16 %v410, %v406
        %v547 = vpack.c.bf16 %v411, %v407
        %v548 = vpack.c.bf16 %v412, %v408
        %v549 = vpack.c.bf16 %v413, %v409
        %v550 = vpack.c.bf16 %v418, %v414
        %v551 = vpack.c.bf16 %v419, %v415
        %v552 = vpack.c.bf16 %v420, %v416
        %v553 = vpack.c.bf16 %v421, %v417
        %v554 = vpack.c.bf16 %v426, %v422
        %v555 = vpack.c.bf16 %v427, %v423
        %v556 = vpack.c.bf16 %v428, %v424
        %v557 = vpack.c.bf16 %v429, %v425
        %v558 = vpack.c.bf16 %v434, %v430
        %v559 = vpack.c.bf16 %v435, %v431
        %v560 = vpack.c.bf16 %v436, %v432
        %v561 = vpack.c.bf16 %v437, %v433
        %v562 = vpack.c.bf16 %v442, %v438
        %v563 = vpack.c.bf16 %v443, %v439
        %v564 = vpack.c.bf16 %v444, %v440
        %v565 = vpack.c.bf16 %v445, %v441
        %v566 = vpack.c.bf16 %v450, %v446
        %v567 = vpack.c.bf16 %v451, %v447
        %v568 = vpack.c.bf16 %v452, %v448
        %v569 = vpack.c.bf16 %v453, %v449
        %v570 = vpack.c.bf16 %v458, %v454
        %v571 = vpack.c.bf16 %v459, %v455
        %v572 = vpack.c.bf16 %v460, %v456
        %v573 = vpack.c.bf16 %v461, %v457
        %v574 = vpack.c.bf16 %v466, %v462
        %v575 = vpack.c.bf16 %v467, %v463
        %v576 = vpack.c.bf16 %v468, %v464
        %v577 = vpack.c.bf16 %v469, %v465
        %v578 = vpack.c.bf16 %v474, %v470
        %v579 = vpack.c.bf16 %v475, %v471
        %v580 = vpack.c.bf16 %v476, %v472
        %v581 = vpack.c.bf16 %v477, %v473
        %v582 = vpack.c.bf16 %v482, %v478
        %v583 = vpack.c.bf16 %v483, %v479
        %v584 = vpack.c.bf16 %v484, %v480
        %v585 = vpack.c.bf16 %v485, %v481
        %v586 = vpack.c.bf16 %v490, %v486
        %v587 = vpack.c.bf16 %v491, %v487
        %v588 = vpack.c.bf16 %v492, %v488
        %v589 = vpack.c.bf16 %v493, %v489
        %v590 = vpack.c.bf16 %v498, %v494
        %v591 = vpack.c.bf16 %v499, %v495
        %v592 = vpack.c.bf16 %v500, %v496
        %v593 = vpack.c.bf16 %v501, %v497
        %v594 = vpack.c.bf16 %v506, %v502
        %v595 = vpack.c.bf16 %v507, %v503
        %v596 = vpack.c.bf16 %v508, %v504
        %v597 = vpack.c.bf16 %v509, %v505
        %v598 = vpack.c.bf16 %v514, %v510
        %v599 = vpack.c.bf16 %v515, %v511
        %v600 = vpack.c.bf16 %v516, %v512
        %v601 = vpack.c.bf16 %v517, %v513
        %v602 = vpack.c.bf16 %v522, %v518
        %v603 = vpack.c.bf16 %v523, %v519
        %v604 = vpack.c.bf16 %v524, %v520
        %v605 = vpack.c.bf16 %v525, %v521
        %v606 = vpack.c.bf16 %v530, %v526
        %v607 = vpack.c.bf16 %v531, %v527
        %v608 = vpack.c.bf16 %v532, %v528
        %v609 = vpack.c.bf16 %v533, %v529
        %v610 = vpack.c.bf16 %v538, %v534
        %v611 = vpack.c.bf16 %v539, %v535
        %v612 = vpack.c.bf16 %v540, %v536
        %v613 = vpack.c.bf16 %v541, %v537
        %v614 = vld [vmem:[#allocation6] sm:$0xf]
        %v615 = vld [vmem:[#allocation6 + $0x4] sm:$0xf]
        %v616 = vld [vmem:[#allocation6 + $0x8] sm:$0xf]
        %v617 = vld [vmem:[#allocation6 + $0xc] sm:$0xf]
        %v618 = vld [vmem:[#allocation6 + $0x10] sm:$0xf]
        %v619 = vld [vmem:[#allocation6 + $0x14] sm:$0xf]
        %v620 = vld [vmem:[#allocation6 + $0x18] sm:$0xf]
        %v621 = vld [vmem:[#allocation6 + $0x1c] sm:$0xf]
        %v622 = vld [vmem:[#allocation6 + $0x20] sm:$0xf]
        %v623 = vld [vmem:[#allocation6 + $0x24] sm:$0xf]
        %v624 = vld [vmem:[#allocation6 + $0x28] sm:$0xf]
        %v625 = vld [vmem:[#allocation6 + $0x2c] sm:$0xf]
        %v626 = vld [vmem:[#allocation6 + $0x30] sm:$0xf]
        %v627 = vld [vmem:[#allocation6 + $0x34] sm:$0xf]
        %v628 = vld [vmem:[#allocation6 + $0x38] sm:$0xf]
        %v629 = vld [vmem:[#allocation6 + $0x3c] sm:$0xf]
        %v630 = vld [vmem:[#allocation6 + $0x40] sm:$0xf]
        %v631 = vld [vmem:[#allocation6 + $0x44] sm:$0xf]
        %v632 = vld [vmem:[#allocation6 + $0x48] sm:$0xf]
        %v633 = vld [vmem:[#allocation6 + $0x4c] sm:$0xf]
        %v634 = vld [vmem:[#allocation6 + $0x50] sm:$0xf]
        %v635 = vld [vmem:[#allocation6 + $0x54] sm:$0xf]
        %v636 = vld [vmem:[#allocation6 + $0x58] sm:$0xf]
        %v637 = vld [vmem:[#allocation6 + $0x5c] sm:$0xf]
        %v638 = vld [vmem:[#allocation6 + $0x60] sm:$0xf]
        %v639 = vld [vmem:[#allocation6 + $0x64] sm:$0xf]
        %v640 = vld [vmem:[#allocation6 + $0x68] sm:$0xf]
        %v641 = vld [vmem:[#allocation6 + $0x6c] sm:$0xf]
        %v642 = vld [vmem:[#allocation6 + $0x70] sm:$0xf]
        %v643 = vld [vmem:[#allocation6 + $0x74] sm:$0xf]
        %v644 = vld [vmem:[#allocation6 + $0x78] sm:$0xf]
        %v645 = vld [vmem:[#allocation6 + $0x7c] sm:$0xf]
        %v646 = vld [vmem:[#allocation6 + $0x80] sm:$0xf]
        %v647 = vld [vmem:[#allocation6 + $0x84] sm:$0xf]
        %v648 = vld [vmem:[#allocation6 + $0x88] sm:$0xf]
        %v649 = vld [vmem:[#allocation6 + $0x8c] sm:$0xf]
        %v650 = vld [vmem:[#allocation6 + $0x90] sm:$0xf]
        %v651 = vld [vmem:[#allocation6 + $0x94] sm:$0xf]
        %v652 = vld [vmem:[#allocation6 + $0x98] sm:$0xf]
        %v653 = vld [vmem:[#allocation6 + $0x9c] sm:$0xf]
        %v654 = vld [vmem:[#allocation6 + $0xa0] sm:$0xf]
        %v655 = vld [vmem:[#allocation6 + $0xa4] sm:$0xf]
        %v656 = vld [vmem:[#allocation6 + $0xa8] sm:$0xf]
        %v657 = vld [vmem:[#allocation6 + $0xac] sm:$0xf]
        %v658 = vld [vmem:[#allocation6 + $0xb0] sm:$0xf]
        %v659 = vld [vmem:[#allocation6 + $0xb4] sm:$0xf]
        %v660 = vld [vmem:[#allocation6 + $0xb8] sm:$0xf]
        %v661 = vld [vmem:[#allocation6 + $0xbc] sm:$0xf]
        %v662 = vld [vmem:[#allocation6 + $0xc0] sm:$0xf]
        %v663 = vld [vmem:[#allocation6 + $0xc4] sm:$0xf]
        %v664 = vld [vmem:[#allocation6 + $0xc8] sm:$0xf]
        %v665 = vld [vmem:[#allocation6 + $0xcc] sm:$0xf]
        %v666 = vld [vmem:[#allocation6 + $0xd0] sm:$0xf]
        %v667 = vld [vmem:[#allocation6 + $0xd4] sm:$0xf]
        %v668 = vld [vmem:[#allocation6 + $0xd8] sm:$0xf]
        %v669 = vld [vmem:[#allocation6 + $0xdc] sm:$0xf]
        %v670 = vld [vmem:[#allocation6 + $0xe0] sm:$0xf]
        %v671 = vld [vmem:[#allocation6 + $0xe4] sm:$0xf]
        %v672 = vld [vmem:[#allocation6 + $0xe8] sm:$0xf]
        %v673 = vld [vmem:[#allocation6 + $0xec] sm:$0xf]
        %v674 = vld [vmem:[#allocation6 + $0xf0] sm:$0xf]
        %v675 = vld [vmem:[#allocation6 + $0xf4] sm:$0xf]
        %v676 = vld [vmem:[#allocation6 + $0xf8] sm:$0xf]
        %v677 = vld [vmem:[#allocation6 + $0xfc] sm:$0xf]
        %v678 = vld [vmem:[#allocation8] sm:$0x1]
        %v680 = vlaneseq
        %v681 = vshrl.u32 %v680, 7
        %v682 = vsub.s32 0, %v681
        %v683 = vrot.slane %v678, %v682
        %v749 = vunpack.c.l.b16 %v614
        %v750 = vunpack.c.l.b16 %v615
        %v751 = vunpack.c.l.b16 %v616
        %v752 = vunpack.c.l.b16 %v617
        %v753 = vunpack.c.l.b16 %v618
        %v754 = vunpack.c.l.b16 %v619
        %v755 = vunpack.c.l.b16 %v620
        %v756 = vunpack.c.l.b16 %v621
        %v757 = vunpack.c.l.b16 %v622
        %v758 = vunpack.c.l.b16 %v623
        %v759 = vunpack.c.l.b16 %v624
        %v760 = vunpack.c.l.b16 %v625
        %v761 = vunpack.c.l.b16 %v626
        %v762 = vunpack.c.l.b16 %v627
        %v763 = vunpack.c.l.b16 %v628
        %v764 = vunpack.c.l.b16 %v629
        %v765 = vunpack.c.l.b16 %v630
        %v766 = vunpack.c.l.b16 %v631
        %v767 = vunpack.c.l.b16 %v632
        %v768 = vunpack.c.l.b16 %v633
        %v769 = vunpack.c.l.b16 %v634
        %v770 = vunpack.c.l.b16 %v635
        %v771 = vunpack.c.l.b16 %v636
        %v772 = vunpack.c.l.b16 %v637
        %v773 = vunpack.c.l.b16 %v638
        %v774 = vunpack.c.l.b16 %v639
        %v775 = vunpack.c.l.b16 %v640
        %v776 = vunpack.c.l.b16 %v641
        %v777 = vunpack.c.l.b16 %v642
        %v778 = vunpack.c.l.b16 %v643
        %v779 = vunpack.c.l.b16 %v644
        %v780 = vunpack.c.l.b16 %v645
        %v781 = vunpack.c.l.b16 %v646
        %v782 = vunpack.c.l.b16 %v647
        %v783 = vunpack.c.l.b16 %v648
        %v784 = vunpack.c.l.b16 %v649
        %v785 = vunpack.c.l.b16 %v650
        %v786 = vunpack.c.l.b16 %v651
        %v787 = vunpack.c.l.b16 %v652
        %v788 = vunpack.c.l.b16 %v653
        %v789 = vunpack.c.l.b16 %v654
        %v790 = vunpack.c.l.b16 %v655
        %v791 = vunpack.c.l.b16 %v656
        %v792 = vunpack.c.l.b16 %v657
        %v793 = vunpack.c.l.b16 %v658
        %v794 = vunpack.c.l.b16 %v659
        %v795 = vunpack.c.l.b16 %v660
        %v796 = vunpack.c.l.b16 %v661
        %v797 = vunpack.c.l.b16 %v662
        %v798 = vunpack.c.l.b16 %v663
        %v799 = vunpack.c.l.b16 %v664
        %v800 = vunpack.c.l.b16 %v665
        %v801 = vunpack.c.l.b16 %v666
        %v802 = vunpack.c.l.b16 %v667
        %v803 = vunpack.c.l.b16 %v668
        %v804 = vunpack.c.l.b16 %v669
        %v805 = vunpack.c.l.b16 %v670
        %v806 = vunpack.c.l.b16 %v671
        %v807 = vunpack.c.l.b16 %v672
        %v808 = vunpack.c.l.b16 %v673
        %v809 = vunpack.c.l.b16 %v674
        %v810 = vunpack.c.l.b16 %v675
        %v811 = vunpack.c.l.b16 %v676
        %v812 = vunpack.c.l.b16 %v677
        %v813 = vpack.c.b16 %v750, %v749
        %v814 = vpack.c.b16 %v752, %v751
        %v815 = vpack.c.b16 %v754, %v753
        %v816 = vpack.c.b16 %v756, %v755
        %v817 = vpack.c.b16 %v758, %v757
        %v818 = vpack.c.b16 %v760, %v759
        %v819 = vpack.c.b16 %v762, %v761
        %v820 = vpack.c.b16 %v764, %v763
        %v821 = vpack.c.b16 %v766, %v765
        %v822 = vpack.c.b16 %v768, %v767
        %v823 = vpack.c.b16 %v770, %v769
        %v824 = vpack.c.b16 %v772, %v771
        %v825 = vpack.c.b16 %v774, %v773
        %v826 = vpack.c.b16 %v776, %v775
        %v827 = vpack.c.b16 %v778, %v777
        %v828 = vpack.c.b16 %v780, %v779
        %v829 = vpack.c.b16 %v782, %v781
        %v830 = vpack.c.b16 %v784, %v783
        %v831 = vpack.c.b16 %v786, %v785
        %v832 = vpack.c.b16 %v788, %v787
        %v833 = vpack.c.b16 %v790, %v789
        %v834 = vpack.c.b16 %v792, %v791
        %v835 = vpack.c.b16 %v794, %v793
        %v836 = vpack.c.b16 %v796, %v795
        %v837 = vpack.c.b16 %v798, %v797
        %v838 = vpack.c.b16 %v800, %v799
        %v839 = vpack.c.b16 %v802, %v801
        %v840 = vpack.c.b16 %v804, %v803
        %v841 = vpack.c.b16 %v806, %v805
        %v842 = vpack.c.b16 %v808, %v807
        %v843 = vpack.c.b16 %v810, %v809
        %v844 = vpack.c.b16 %v812, %v811
        %877 = vmatprep.subr.bf16.mxu0 0
        %878 = vmatpush1.bf16.msra.mxu0 %v813
        %879 = vmatprep.subr.bf16.mxu0 0
        %880 = vmatpush1.bf16.msra.mxu0 %v814
        %881 = vmatprep.subr.bf16.mxu0 0
        %882 = vmatpush1.bf16.msra.mxu0 %v815
        %883 = vmatprep.subr.bf16.mxu0 0
        %884 = vmatpush1.bf16.msra.mxu0 %v816
        %885 = vmatprep.subr.bf16.mxu0 0
        %886 = vmatpush1.bf16.msra.mxu0 %v817
        %887 = vmatprep.subr.bf16.mxu0 0
        %888 = vmatpush1.bf16.msra.mxu0 %v818
        %889 = vmatprep.subr.bf16.mxu0 0
        %890 = vmatpush1.bf16.msra.mxu0 %v819
        %891 = vmatprep.subr.bf16.mxu0 0
        %892 = vmatpush1.bf16.msra.mxu0 %v820
        %893 = vmatprep.subr.bf16.mxu0 0
        %894 = vmatpush1.bf16.msra.mxu0 %v821
        %895 = vmatprep.subr.bf16.mxu0 0
        %896 = vmatpush1.bf16.msra.mxu0 %v822
        %897 = vmatprep.subr.bf16.mxu0 0
        %898 = vmatpush1.bf16.msra.mxu0 %v823
        %899 = vmatprep.subr.bf16.mxu0 0
        %900 = vmatpush1.bf16.msra.mxu0 %v824
        %901 = vmatprep.subr.bf16.mxu0 0
        %902 = vmatpush1.bf16.msra.mxu0 %v825
        %903 = vmatprep.subr.bf16.mxu0 0
        %904 = vmatpush1.bf16.msra.mxu0 %v826
        %905 = vmatprep.subr.bf16.mxu0 0
        %906 = vmatpush1.bf16.msra.mxu0 %v827
        %907 = vmatprep.subr.bf16.mxu0 0
        %908 = vmatpush1.bf16.msra.mxu0 %v828
        %909 = vmatprep.mubr.bf16.mxu0 %v543
        %910 = vmatmul.mubr.bf16.gmra.mrb[0].mxu0 %v542
        %v911 = vpop.f32.mrb[0].mxu0
        %v912 = vadd.f32 %v683, %v911
        %v913 = vpop.f32.mrb[0].mxu0
        %v914 = vpop.f32.mrb[0].mxu0
        %v915 = vadd.f32 %v683, %v914
        %v916 = vpop.f32.mrb[0].mxu0
        %917 = vmatprep.mubr.bf16.mxu0 %v547
        %918 = vmatmul.mubr.bf16.gmra.mrb[0].mxu0 %v546
        %v919 = vpop.f32.mrb[0].mxu0
        %v920 = vadd.f32 %v683, %v919
        %v921 = vpop.f32.mrb[0].mxu0
        %v922 = vpop.f32.mrb[0].mxu0
        %v923 = vadd.f32 %v683, %v922
        %v924 = vpop.f32.mrb[0].mxu0
        %925 = vmatprep.mubr.bf16.mxu0 %v551
        %926 = vmatmul.mubr.bf16.gmra.mrb[0].mxu0 %v550
        %v927 = vpop.f32.mrb[0].mxu0
        %v928 = vadd.f32 %v683, %v927
        %v929 = vpop.f32.mrb[0].mxu0
        %v930 = vpop.f32.mrb[0].mxu0
        %v931 = vadd.f32 %v683, %v930
        %v932 = vpop.f32.mrb[0].mxu0
        %933 = vmatprep.mubr.bf16.mxu0 %v555
        %934 = vmatmul.mubr.bf16.gmra.mrb[0].mxu0 %v554
        %v935 = vpop.f32.mrb[0].mxu0
        %v936 = vadd.f32 %v683, %v935
        %v937 = vpop.f32.mrb[0].mxu0
        %v938 = vpop.f32.mrb[0].mxu0
        %v939 = vadd.f32 %v683, %v938
        %v940 = vpop.f32.mrb[0].mxu0
        %941 = vmatprep.mubr.bf16.mxu0 %v559
        %942 = vmatmul.mubr.bf16.gmra.mrb[0].mxu0 %v558
        %v943 = vpop.f32.mrb[0].mxu0
        %v944 = vadd.f32 %v683, %v943
        %v945 = vpop.f32.mrb[0].mxu0
        %v946 = vpop.f32.mrb[0].mxu0
        %v947 = vadd.f32 %v683, %v946
        %v948 = vpop.f32.mrb[0].mxu0
        %949 = vmatprep.mubr.bf16.mxu0 %v563
        %950 = vmatmul.mubr.bf16.gmra.mrb[0].mxu0 %v562
        %v951 = vpop.f32.mrb[0].mxu0
        %v952 = vadd.f32 %v683, %v951
        %v953 = vpop.f32.mrb[0].mxu0
        %v954 = vpop.f32.mrb[0].mxu0
        %v955 = vadd.f32 %v683, %v954
        %v956 = vpop.f32.mrb[0].mxu0
        %957 = vmatprep.mubr.bf16.mxu0 %v567
        %958 = vmatmul.mubr.bf16.gmra.mrb[0].mxu0 %v566
        %v959 = vpop.f32.mrb[0].mxu0
        %v960 = vadd.f32 %v683, %v959
        %v961 = vpop.f32.mrb[0].mxu0
        %v962 = vpop.f32.mrb[0].mxu0
        %v963 = vadd.f32 %v683, %v962
        %v964 = vpop.f32.mrb[0].mxu0
        %965 = vmatprep.mubr.bf16.mxu0 %v571
        %966 = vmatmul.mubr.bf16.gmra.mrb[0].mxu0 %v570
        %v967 = vpop.f32.mrb[0].mxu0
        %v968 = vadd.f32 %v683, %v967
        %v969 = vpop.f32.mrb[0].mxu0
        %v970 = vpop.f32.mrb[0].mxu0
        %v971 = vadd.f32 %v683, %v970
        %v972 = vpop.f32.mrb[0].mxu0
        %973 = vmatprep.mubr.bf16.mxu0 %v575
        %974 = vmatmul.mubr.bf16.gmra.mrb[0].mxu0 %v574
        %v975 = vpop.f32.mrb[0].mxu0
        %v976 = vadd.f32 %v683, %v975
        %v977 = vpop.f32.mrb[0].mxu0
        %v978 = vpop.f32.mrb[0].mxu0
        %v979 = vadd.f32 %v683, %v978
        %v980 = vpop.f32.mrb[0].mxu0
        %981 = vmatprep.mubr.bf16.mxu0 %v579
        %982 = vmatmul.mubr.bf16.gmra.mrb[0].mxu0 %v578
        %v983 = vpop.f32.mrb[0].mxu0
        %v984 = vadd.f32 %v683, %v983
        %v985 = vpop.f32.mrb[0].mxu0
        %v986 = vpop.f32.mrb[0].mxu0
        %v987 = vadd.f32 %v683, %v986
        %v988 = vpop.f32.mrb[0].mxu0
        %989 = vmatprep.mubr.bf16.mxu0 %v583
        %990 = vmatmul.mubr.bf16.gmra.mrb[0].mxu0 %v582
        %v991 = vpop.f32.mrb[0].mxu0
        %v992 = vadd.f32 %v683, %v991
        %v993 = vpop.f32.mrb[0].mxu0
        %v994 = vpop.f32.mrb[0].mxu0
        %v995 = vadd.f32 %v683, %v994
        %v996 = vpop.f32.mrb[0].mxu0
        %997 = vmatprep.mubr.bf16.mxu0 %v587
        %998 = vmatmul.mubr.bf16.gmra.mrb[0].mxu0 %v586
        %v999 = vpop.f32.mrb[0].mxu0
        %v1000 = vadd.f32 %v683, %v999
        %v1001 = vpop.f32.mrb[0].mxu0
        %v1002 = vpop.f32.mrb[0].mxu0
        %v1003 = vadd.f32 %v683, %v1002
        %v1004 = vpop.f32.mrb[0].mxu0
        %1005 = vmatprep.mubr.bf16.mxu0 %v591
        %1006 = vmatmul.mubr.bf16.gmra.mrb[0].mxu0 %v590
        %v1007 = vpop.f32.mrb[0].mxu0
        %v1008 = vadd.f32 %v683, %v1007
        %v1009 = vpop.f32.mrb[0].mxu0
        %v1010 = vpop.f32.mrb[0].mxu0
        %v1011 = vadd.f32 %v683, %v1010
        %v1012 = vpop.f32.mrb[0].mxu0
        %1013 = vmatprep.mubr.bf16.mxu0 %v595
        %1014 = vmatmul.mubr.bf16.gmra.mrb[0].mxu0 %v594
        %v1015 = vpop.f32.mrb[0].mxu0
        %v1016 = vadd.f32 %v683, %v1015
        %v1017 = vpop.f32.mrb[0].mxu0
        %v1018 = vpop.f32.mrb[0].mxu0
        %v1019 = vadd.f32 %v683, %v1018
        %v1020 = vpop.f32.mrb[0].mxu0
        %1021 = vmatprep.mubr.bf16.mxu0 %v599
        %1022 = vmatmul.mubr.bf16.gmra.mrb[0].mxu0 %v598
        %v1023 = vpop.f32.mrb[0].mxu0
        %v1024 = vadd.f32 %v683, %v1023
        %v1025 = vpop.f32.mrb[0].mxu0
        %v1026 = vpop.f32.mrb[0].mxu0
        %v1027 = vadd.f32 %v683, %v1026
        %v1028 = vpop.f32.mrb[0].mxu0
        %1029 = vmatprep.mubr.bf16.mxu0 %v603
        %1030 = vmatmul.mubr.bf16.gmra.mrb[0].mxu0 %v602
        %v1031 = vpop.f32.mrb[0].mxu0
        %v1032 = vadd.f32 %v683, %v1031
        %v1033 = vpop.f32.mrb[0].mxu0
        %v1034 = vpop.f32.mrb[0].mxu0
        %v1035 = vadd.f32 %v683, %v1034
        %v1036 = vpop.f32.mrb[0].mxu0
        %1037 = vmatprep.mubr.bf16.mxu0 %v607
        %1038 = vmatmul.mubr.bf16.gmra.mrb[0].mxu0 %v606
        %v1039 = vpop.f32.mrb[0].mxu0
        %v1040 = vadd.f32 %v683, %v1039
        %v1041 = vpop.f32.mrb[0].mxu0
        %v1042 = vpop.f32.mrb[0].mxu0
        %v1043 = vadd.f32 %v683, %v1042
        %v1044 = vpop.f32.mrb[0].mxu0
        %1045 = vmatprep.mubr.bf16.mxu0 %v611
        %1046 = vmatmul.mubr.bf16.gmra.mrb[0].mxu0 %v610
        %v1047 = vpop.f32.mrb[0].mxu0
        %v1048 = vadd.f32 %v683, %v1047
        %v1049 = vpop.f32.mrb[0].mxu0
        %v1050 = vpop.f32.mrb[0].mxu0
        %v1051 = vadd.f32 %v683, %v1050
        %v1052 = vpop.f32.mrb[0].mxu0
        %1053 = vdwg.mxu0
        %1054 = vmatprep.subr.bf16.mxu0 0
        %1055 = vmatpush1.bf16.msra.mxu0 %v829
        %1056 = vmatprep.subr.bf16.mxu0 0
        %1057 = vmatpush1.bf16.msra.mxu0 %v830
        %1058 = vmatprep.subr.bf16.mxu0 0
        %1059 = vmatpush1.bf16.msra.mxu0 %v831
        %1060 = vmatprep.subr.bf16.mxu0 0
        %1061 = vmatpush1.bf16.msra.mxu0 %v832
        %1062 = vmatprep.subr.bf16.mxu0 0
        %1063 = vmatpush1.bf16.msra.mxu0 %v833
        %1064 = vmatprep.subr.bf16.mxu0 0
        %1065 = vmatpush1.bf16.msra.mxu0 %v834
        %1066 = vmatprep.subr.bf16.mxu0 0
        %1067 = vmatpush1.bf16.msra.mxu0 %v835
        %1068 = vmatprep.subr.bf16.mxu0 0
        %1069 = vmatpush1.bf16.msra.mxu0 %v836
        %1070 = vmatprep.subr.bf16.mxu0 0
        %1071 = vmatpush1.bf16.msra.mxu0 %v837
        %1072 = vmatprep.subr.bf16.mxu0 0
        %1073 = vmatpush1.bf16.msra.mxu0 %v838
        %1074 = vmatprep.subr.bf16.mxu0 0
        %1075 = vmatpush1.bf16.msra.mxu0 %v839
        %1076 = vmatprep.subr.bf16.mxu0 0
        %1077 = vmatpush1.bf16.msra.mxu0 %v840
        %1078 = vmatprep.subr.bf16.mxu0 0
        %1079 = vmatpush1.bf16.msra.mxu0 %v841
        %1080 = vmatprep.subr.bf16.mxu0 0
        %1081 = vmatpush1.bf16.msra.mxu0 %v842
        %1082 = vmatprep.subr.bf16.mxu0 0
        %1083 = vmatpush1.bf16.msra.mxu0 %v843
        %1084 = vmatprep.subr.bf16.mxu0 0
        %1085 = vmatpush1.bf16.msra.mxu0 %v844
        %1086 = vmatprep.mubr.bf16.mxu0 %v545
        %1087 = vmatmul.mubr.bf16.gmra.mrb[0].mxu0 %v544
        %v1088 = vpop.f32.mrb[0].mxu0
        %v1089 = vadd.f32 %v912, %v1088
        %v1090 = vpop.f32.mrb[0].mxu0
        %v1091 = vpop.f32.mrb[0].mxu0
        %v1092 = vadd.f32 %v915, %v1091
        %v1093 = vpop.f32.mrb[0].mxu0
        %1094 = vmatprep.mubr.bf16.mxu0 %v549
        %1095 = vmatmul.mubr.bf16.gmra.mrb[0].mxu0 %v548
        %v1096 = vpop.f32.mrb[0].mxu0
        %v1097 = vadd.f32 %v920, %v1096
        %v1098 = vpop.f32.mrb[0].mxu0
        %v1099 = vpop.f32.mrb[0].mxu0
        %v1100 = vadd.f32 %v923, %v1099
        %v1101 = vpop.f32.mrb[0].mxu0
        %1102 = vmatprep.mubr.bf16.mxu0 %v553
        %1103 = vmatmul.mubr.bf16.gmra.mrb[0].mxu0 %v552
        %v1104 = vpop.f32.mrb[0].mxu0
        %v1105 = vadd.f32 %v928, %v1104
        %v1106 = vpop.f32.mrb[0].mxu0
        %v1107 = vpop.f32.mrb[0].mxu0
        %v1108 = vadd.f32 %v931, %v1107
        %v1109 = vpop.f32.mrb[0].mxu0
        %1110 = vmatprep.mubr.bf16.mxu0 %v557
        %1111 = vmatmul.mubr.bf16.gmra.mrb[0].mxu0 %v556
        %v1112 = vpop.f32.mrb[0].mxu0
        %v1113 = vadd.f32 %v936, %v1112
        %v1114 = vpop.f32.mrb[0].mxu0
        %v1115 = vpop.f32.mrb[0].mxu0
        %v1116 = vadd.f32 %v939, %v1115
        %v1117 = vpop.f32.mrb[0].mxu0
        %1118 = vmatprep.mubr.bf16.mxu0 %v561
        %1119 = vmatmul.mubr.bf16.gmra.mrb[0].mxu0 %v560
        %v1120 = vpop.f32.mrb[0].mxu0
        %v1121 = vadd.f32 %v944, %v1120
        %v1122 = vpop.f32.mrb[0].mxu0
        %v1123 = vpop.f32.mrb[0].mxu0
        %v1124 = vadd.f32 %v947, %v1123
        %v1125 = vpop.f32.mrb[0].mxu0
        %1126 = vmatprep.mubr.bf16.mxu0 %v565
        %1127 = vmatmul.mubr.bf16.gmra.mrb[0].mxu0 %v564
        %v1128 = vpop.f32.mrb[0].mxu0
        %v1129 = vadd.f32 %v952, %v1128
        %v1130 = vpop.f32.mrb[0].mxu0
        %v1131 = vpop.f32.mrb[0].mxu0
        %v1132 = vadd.f32 %v955, %v1131
        %v1133 = vpop.f32.mrb[0].mxu0
        %1134 = vmatprep.mubr.bf16.mxu0 %v569
        %1135 = vmatmul.mubr.bf16.gmra.mrb[0].mxu0 %v568
        %v1136 = vpop.f32.mrb[0].mxu0
        %v1137 = vadd.f32 %v960, %v1136
        %v1138 = vpop.f32.mrb[0].mxu0
        %v1139 = vpop.f32.mrb[0].mxu0
        %v1140 = vadd.f32 %v963, %v1139
        %v1141 = vpop.f32.mrb[0].mxu0
        %1142 = vmatprep.mubr.bf16.mxu0 %v573
        %1143 = vmatmul.mubr.bf16.gmra.mrb[0].mxu0 %v572
        %v1144 = vpop.f32.mrb[0].mxu0
        %v1145 = vadd.f32 %v968, %v1144
        %v1146 = vpop.f32.mrb[0].mxu0
        %v1147 = vpop.f32.mrb[0].mxu0
        %v1148 = vadd.f32 %v971, %v1147
        %v1149 = vpop.f32.mrb[0].mxu0
        %1150 = vmatprep.mubr.bf16.mxu0 %v577
        %1151 = vmatmul.mubr.bf16.gmra.mrb[0].mxu0 %v576
        %v1152 = vpop.f32.mrb[0].mxu0
        %v1153 = vadd.f32 %v976, %v1152
        %v1154 = vpop.f32.mrb[0].mxu0
        %v1155 = vpop.f32.mrb[0].mxu0
        %v1156 = vadd.f32 %v979, %v1155
        %v1157 = vpop.f32.mrb[0].mxu0
        %1158 = vmatprep.mubr.bf16.mxu0 %v581
        %1159 = vmatmul.mubr.bf16.gmra.mrb[0].mxu0 %v580
        %v1160 = vpop.f32.mrb[0].mxu0
        %v1161 = vadd.f32 %v984, %v1160
        %v1162 = vpop.f32.mrb[0].mxu0
        %v1163 = vpop.f32.mrb[0].mxu0
        %v1164 = vadd.f32 %v987, %v1163
        %v1165 = vpop.f32.mrb[0].mxu0
        %1166 = vmatprep.mubr.bf16.mxu0 %v585
        %1167 = vmatmul.mubr.bf16.gmra.mrb[0].mxu0 %v584
        %v1168 = vpop.f32.mrb[0].mxu0
        %v1169 = vadd.f32 %v992, %v1168
        %v1170 = vpop.f32.mrb[0].mxu0
        %v1171 = vpop.f32.mrb[0].mxu0
        %v1172 = vadd.f32 %v995, %v1171
        %v1173 = vpop.f32.mrb[0].mxu0
        %1174 = vmatprep.mubr.bf16.mxu0 %v589
        %1175 = vmatmul.mubr.bf16.gmra.mrb[0].mxu0 %v588
        %v1176 = vpop.f32.mrb[0].mxu0
        %v1177 = vadd.f32 %v1000, %v1176
        %v1178 = vpop.f32.mrb[0].mxu0
        %v1179 = vpop.f32.mrb[0].mxu0
        %v1180 = vadd.f32 %v1003, %v1179
        %v1181 = vpop.f32.mrb[0].mxu0
        %1182 = vmatprep.mubr.bf16.mxu0 %v593
        %1183 = vmatmul.mubr.bf16.gmra.mrb[0].mxu0 %v592
        %v1184 = vpop.f32.mrb[0].mxu0
        %v1185 = vadd.f32 %v1008, %v1184
        %v1186 = vpop.f32.mrb[0].mxu0
        %v1187 = vpop.f32.mrb[0].mxu0
        %v1188 = vadd.f32 %v1011, %v1187
        %v1189 = vpop.f32.mrb[0].mxu0
        %1190 = vmatprep.mubr.bf16.mxu0 %v597
        %1191 = vmatmul.mubr.bf16.gmra.mrb[0].mxu0 %v596
        %v1192 = vpop.f32.mrb[0].mxu0
        %v1193 = vadd.f32 %v1016, %v1192
        %v1194 = vpop.f32.mrb[0].mxu0
        %v1195 = vpop.f32.mrb[0].mxu0
        %v1196 = vadd.f32 %v1019, %v1195
        %v1197 = vpop.f32.mrb[0].mxu0
        %1198 = vmatprep.mubr.bf16.mxu0 %v601
        %1199 = vmatmul.mubr.bf16.gmra.mrb[0].mxu0 %v600
        %v1200 = vpop.f32.mrb[0].mxu0
        %v1201 = vadd.f32 %v1024, %v1200
        %v1202 = vpop.f32.mrb[0].mxu0
        %v1203 = vpop.f32.mrb[0].mxu0
        %v1204 = vadd.f32 %v1027, %v1203
        %v1205 = vpop.f32.mrb[0].mxu0
        %1206 = vmatprep.mubr.bf16.mxu0 %v605
        %1207 = vmatmul.mubr.bf16.gmra.mrb[0].mxu0 %v604
        %v1208 = vpop.f32.mrb[0].mxu0
        %v1209 = vadd.f32 %v1032, %v1208
        %v1210 = vpop.f32.mrb[0].mxu0
        %v1211 = vpop.f32.mrb[0].mxu0
        %v1212 = vadd.f32 %v1035, %v1211
        %v1213 = vpop.f32.mrb[0].mxu0
        %1214 = vmatprep.mubr.bf16.mxu0 %v609
        %1215 = vmatmul.mubr.bf16.gmra.mrb[0].mxu0 %v608
        %v1216 = vpop.f32.mrb[0].mxu0
        %v1217 = vadd.f32 %v1040, %v1216
        %v1218 = vpop.f32.mrb[0].mxu0
        %v1219 = vpop.f32.mrb[0].mxu0
        %v1220 = vadd.f32 %v1043, %v1219
        %v1221 = vpop.f32.mrb[0].mxu0
        %1222 = vmatprep.mubr.bf16.mxu0 %v613
        %1223 = vmatmul.mubr.bf16.gmra.mrb[0].mxu0 %v612
        %v1224 = vpop.f32.mrb[0].mxu0
        %v1225 = vadd.f32 %v1048, %v1224
        %v1226 = vpop.f32.mrb[0].mxu0
        %v1227 = vpop.f32.mrb[0].mxu0
        %v1228 = vadd.f32 %v1051, %v1227
        %v1229 = vpop.f32.mrb[0].mxu0
        %1230 = vdwg.mxu0
        %v1231 = vmax.f32 %v1089, 0.0
        %v1232 = vmax.f32 %v1092, 0.0
        %v1233 = vmax.f32 %v1097, 0.0
        %v1234 = vmax.f32 %v1100, 0.0
        %v1235 = vmax.f32 %v1105, 0.0
        %v1236 = vmax.f32 %v1108, 0.0
        %v1237 = vmax.f32 %v1113, 0.0
        %v1238 = vmax.f32 %v1116, 0.0
        %v1239 = vmax.f32 %v1121, 0.0
        %v1240 = vmax.f32 %v1124, 0.0
        %v1241 = vmax.f32 %v1129, 0.0
        %v1242 = vmax.f32 %v1132, 0.0
        %v1243 = vmax.f32 %v1137, 0.0
        %v1244 = vmax.f32 %v1140, 0.0
        %v1245 = vmax.f32 %v1145, 0.0
        %v1246 = vmax.f32 %v1148, 0.0
        %v1247 = vmax.f32 %v1153, 0.0
        %v1248 = vmax.f32 %v1156, 0.0
        %v1249 = vmax.f32 %v1161, 0.0
        %v1250 = vmax.f32 %v1164, 0.0
        %v1251 = vmax.f32 %v1169, 0.0
        %v1252 = vmax.f32 %v1172, 0.0
        %v1253 = vmax.f32 %v1177, 0.0
        %v1254 = vmax.f32 %v1180, 0.0
        %v1255 = vmax.f32 %v1185, 0.0
        %v1256 = vmax.f32 %v1188, 0.0
        %v1257 = vmax.f32 %v1193, 0.0
        %v1258 = vmax.f32 %v1196, 0.0
        %v1259 = vmax.f32 %v1201, 0.0
        %v1260 = vmax.f32 %v1204, 0.0
        %v1261 = vmax.f32 %v1209, 0.0
        %v1262 = vmax.f32 %v1212, 0.0
        %v1263 = vmax.f32 %v1217, 0.0
        %v1264 = vmax.f32 %v1220, 0.0
        %v1265 = vmax.f32 %v1225, 0.0
        %v1266 = vmax.f32 %v1228, 0.0
        %p1267 = scmp.gt.s32.totalorder %s32, 0
        %s1268 = scalar_select %p1267, 1, 0
        %v1269 = vstv %s1268
        %vm1270 = vcmp.eq.s32.totalorder %v1269, 1
        %p1271 = scmp.lt.s32.totalorder %s32, 0
        %s1272 = scalar_select %p1271, 1, 0
        %v1273 = vstv %s1272
        %vm1274 = vcmp.eq.s32.totalorder %v1273, 1
        %v1275 = vsel %vm1270, 1, 0
        %v1276 = vsel %vm1274, 1, 0
        %vm1277 = vcmp.eq.s32.totalorder %v1275, 1
        %vm1278 = vcmp.eq.s32.totalorder %v1276, 1
        %v1279 = vsel %vm1277, %v1231, 0.0
        %v1280 = vsel %vm1277, %v1232, 0.0
        %v1281 = vsel 1, %v1233, 0.0
        %v1282 = vsel 1, %v1234, 0.0
        %v1283 = vsel 1, %v1235, 0.0
        %v1284 = vsel 1, %v1236, 0.0
        %v1285 = vsel 1, %v1237, 0.0
        %v1286 = vsel 1, %v1238, 0.0
        %v1287 = vsel 1, %v1239, 0.0
        %v1288 = vsel 1, %v1240, 0.0
        %v1289 = vsel 1, %v1241, 0.0
        %v1290 = vsel 1, %v1242, 0.0
        %v1291 = vsel 1, %v1243, 0.0
        %v1292 = vsel 1, %v1244, 0.0
        %v1293 = vsel 1, %v1245, 0.0
        %v1294 = vsel 1, %v1246, 0.0
        %v1295 = vsel 1, %v1247, 0.0
        %v1296 = vsel 1, %v1248, 0.0
        %v1297 = vsel 1, %v1249, 0.0
        %v1298 = vsel 1, %v1250, 0.0
        %v1299 = vsel 1, %v1251, 0.0
        %v1300 = vsel 1, %v1252, 0.0
        %v1301 = vsel 1, %v1253, 0.0
        %v1302 = vsel 1, %v1254, 0.0
        %v1303 = vsel 1, %v1255, 0.0
        %v1304 = vsel 1, %v1256, 0.0
        %v1305 = vsel 1, %v1257, 0.0
        %v1306 = vsel 1, %v1258, 0.0
        %v1307 = vsel 1, %v1259, 0.0
        %v1308 = vsel 1, %v1260, 0.0
        %v1309 = vsel 1, %v1261, 0.0
        %v1310 = vsel 1, %v1262, 0.0
        %v1311 = vsel 1, %v1263, 0.0
        %v1312 = vsel 1, %v1264, 0.0
        %v1313 = vsel %vm1278, %v1265, 0.0
        %v1314 = vsel %vm1278, %v1266, 0.0
        %v1315 = vpack.c.bf16 %v1280, %v1279
        %v1316 = vpack.c.bf16 %v1282, %v1281
        %v1317 = vpack.c.bf16 %v1284, %v1283
        %v1318 = vpack.c.bf16 %v1286, %v1285
        %v1319 = vpack.c.bf16 %v1288, %v1287
        %v1320 = vpack.c.bf16 %v1290, %v1289
        %v1321 = vpack.c.bf16 %v1292, %v1291
        %v1322 = vpack.c.bf16 %v1294, %v1293
        %v1323 = vpack.c.bf16 %v1296, %v1295
        %v1324 = vpack.c.bf16 %v1298, %v1297
        %v1325 = vpack.c.bf16 %v1300, %v1299
        %v1326 = vpack.c.bf16 %v1302, %v1301
        %v1327 = vpack.c.bf16 %v1304, %v1303
        %v1328 = vpack.c.bf16 %v1306, %v1305
        %v1329 = vpack.c.bf16 %v1308, %v1307
        %v1330 = vpack.c.bf16 %v1310, %v1309
        %v1331 = vpack.c.bf16 %v1312, %v1311
        %v1332 = vpack.c.bf16 %v1314, %v1313
        %v1351 = vunpack.c.l.b16 %v1315
        %v1352 = vunpack.c.h.b16 %v1315
        %v1353 = vunpack.c.l.b16 %v1316
        %v1354 = vunpack.c.h.b16 %v1316
        %v1355 = vunpack.c.l.b16 %v1317
        %v1356 = vunpack.c.h.b16 %v1317
        %v1357 = vunpack.c.l.b16 %v1318
        %v1358 = vunpack.c.h.b16 %v1318
        %v1359 = vunpack.c.l.b16 %v1319
        %v1360 = vunpack.c.h.b16 %v1319
        %v1361 = vunpack.c.l.b16 %v1320
        %v1362 = vunpack.c.h.b16 %v1320
        %v1363 = vunpack.c.l.b16 %v1321
        %v1364 = vunpack.c.h.b16 %v1321
        %v1365 = vunpack.c.l.b16 %v1322
        %v1366 = vunpack.c.h.b16 %v1322
        %v1367 = vunpack.c.l.b16 %v1323
        %v1368 = vunpack.c.h.b16 %v1323
        %v1369 = vunpack.c.l.b16 %v1324
        %v1370 = vunpack.c.h.b16 %v1324
        %v1371 = vunpack.c.l.b16 %v1325
        %v1372 = vunpack.c.h.b16 %v1325
        %v1373 = vunpack.c.l.b16 %v1326
        %v1374 = vunpack.c.h.b16 %v1326
        %v1375 = vunpack.c.l.b16 %v1327
        %v1376 = vunpack.c.h.b16 %v1327
        %v1377 = vunpack.c.l.b16 %v1328
        %v1378 = vunpack.c.h.b16 %v1328
        %v1379 = vunpack.c.l.b16 %v1329
        %v1380 = vunpack.c.h.b16 %v1329
        %v1381 = vunpack.c.l.b16 %v1330
        %v1382 = vunpack.c.h.b16 %v1330
        %v1383 = vunpack.c.l.b16 %v1331
        %v1384 = vunpack.c.h.b16 %v1331
        %v1385 = vunpack.c.l.b16 %v1332
        %v1386 = vunpack.c.h.b16 %v1332
        %v1387 = vpack.c.b16 %v1351, %v1351
        %v1388 = vpack.c.b16 %v1352, %v1352
        %v1389 = vpack.c.b16 %v1353, %v1353
        %v1390 = vpack.c.b16 %v1354, %v1354
        %v1391 = vpack.c.b16 %v1355, %v1355
        %v1392 = vpack.c.b16 %v1356, %v1356
        %v1393 = vpack.c.b16 %v1357, %v1357
        %v1394 = vpack.c.b16 %v1358, %v1358
        %v1395 = vpack.c.b16 %v1359, %v1359
        %v1396 = vpack.c.b16 %v1360, %v1360
        %v1397 = vpack.c.b16 %v1361, %v1361
        %v1398 = vpack.c.b16 %v1362, %v1362
        %v1399 = vpack.c.b16 %v1363, %v1363
        %v1400 = vpack.c.b16 %v1364, %v1364
        %v1401 = vpack.c.b16 %v1365, %v1365
        %v1402 = vpack.c.b16 %v1366, %v1366
        %v1403 = vpack.c.b16 %v1367, %v1367
        %v1404 = vpack.c.b16 %v1368, %v1368
        %v1405 = vpack.c.b16 %v1369, %v1369
        %v1406 = vpack.c.b16 %v1370, %v1370
        %v1407 = vpack.c.b16 %v1371, %v1371
        %v1408 = vpack.c.b16 %v1372, %v1372
        %v1409 = vpack.c.b16 %v1373, %v1373
        %v1410 = vpack.c.b16 %v1374, %v1374
        %v1411 = vpack.c.b16 %v1375, %v1375
        %v1412 = vpack.c.b16 %v1376, %v1376
        %v1413 = vpack.c.b16 %v1377, %v1377
        %v1414 = vpack.c.b16 %v1378, %v1378
        %v1415 = vpack.c.b16 %v1379, %v1379
        %v1416 = vpack.c.b16 %v1380, %v1380
        %v1417 = vpack.c.b16 %v1381, %v1381
        %v1418 = vpack.c.b16 %v1382, %v1382
        %v1419 = vpack.c.b16 %v1383, %v1383
        %v1420 = vpack.c.b16 %v1384, %v1384
        %v1421 = vpack.c.b16 %v1385, %v1385
        %v1422 = vpack.c.b16 %v1386, %v1386
        %vm1423 = vsmask.f32 256
        %vm1424 = vsmask.f32 4368
        %vm1425 = vmor %vm1423, %vm1424
        %v1427 = vshrl.u32 %v1387, 16
        %v1429 = vrot.slane %v1427, 7
        %v1430 = vshll.u32 %v1387, 16
        %v1432 = vor.u32 %v1429, %v1430
        %v1433 = vrot.slane %v1429, 4
        %v1435 = vshrl.u32 %v1388, 16
        %v1437 = vrot.slane %v1435, 7
        %v1438 = vshll.u32 %v1388, 16
        %v1440 = vor.u32 %v1437, %v1438
        %v1441 = vsel %vm1425, %v1433, %v1440
        %v1442 = vrot.slane %v1437, 4
        %v1444 = vshrl.u32 %v1389, 16
        %v1446 = vrot.slane %v1444, 7
        %v1447 = vshll.u32 %v1389, 16
        %v1449 = vor.u32 %v1446, %v1447
        %v1450 = vrot.slane %v1446, 4
        %v1452 = vshrl.u32 %v1390, 16
        %v1454 = vrot.slane %v1452, 7
        %v1455 = vshll.u32 %v1390, 16
        %v1457 = vor.u32 %v1454, %v1455
        %v1458 = vsel %vm1425, %v1450, %v1457
        %v1459 = vrot.slane %v1454, 4
        %v1461 = vshrl.u32 %v1391, 16
        %v1463 = vrot.slane %v1461, 7
        %v1464 = vshll.u32 %v1391, 16
        %v1466 = vor.u32 %v1463, %v1464
        %v1467 = vrot.slane %v1463, 4
        %v1469 = vshrl.u32 %v1392, 16
        %v1471 = vrot.slane %v1469, 7
        %v1472 = vshll.u32 %v1392, 16
        %v1474 = vor.u32 %v1471, %v1472
        %v1475 = vsel %vm1425, %v1467, %v1474
        %v1476 = vrot.slane %v1471, 4
        %v1478 = vshrl.u32 %v1393, 16
        %v1480 = vrot.slane %v1478, 7
        %v1481 = vshll.u32 %v1393, 16
        %v1483 = vor.u32 %v1480, %v1481
        %v1484 = vrot.slane %v1480, 4
        %v1486 = vshrl.u32 %v1394, 16
        %v1488 = vrot.slane %v1486, 7
        %v1489 = vshll.u32 %v1394, 16
        %v1491 = vor.u32 %v1488, %v1489
        %v1492 = vsel %vm1425, %v1484, %v1491
        %v1493 = vrot.slane %v1488, 4
        %v1495 = vshrl.u32 %v1395, 16
        %v1497 = vrot.slane %v1495, 7
        %v1498 = vshll.u32 %v1395, 16
        %v1500 = vor.u32 %v1497, %v1498
        %v1501 = vrot.slane %v1497, 4
        %v1503 = vshrl.u32 %v1396, 16
        %v1505 = vrot.slane %v1503, 7
        %v1506 = vshll.u32 %v1396, 16
        %v1508 = vor.u32 %v1505, %v1506
        %v1509 = vsel %vm1425, %v1501, %v1508
        %v1510 = vrot.slane %v1505, 4
        %v1512 = vshrl.u32 %v1397, 16
        %v1514 = vrot.slane %v1512, 7
        %v1515 = vshll.u32 %v1397, 16
        %v1517 = vor.u32 %v1514, %v1515
        %v1518 = vrot.slane %v1514, 4
        %v1520 = vshrl.u32 %v1398, 16
        %v1522 = vrot.slane %v1520, 7
        %v1523 = vshll.u32 %v1398, 16
        %v1525 = vor.u32 %v1522, %v1523
        %v1526 = vsel %vm1425, %v1518, %v1525
        %v1527 = vrot.slane %v1522, 4
        %v1529 = vshrl.u32 %v1399, 16
        %v1531 = vrot.slane %v1529, 7
        %v1532 = vshll.u32 %v1399, 16
        %v1534 = vor.u32 %v1531, %v1532
        %v1535 = vrot.slane %v1531, 4
        %v1537 = vshrl.u32 %v1400, 16
        %v1539 = vrot.slane %v1537, 7
        %v1540 = vshll.u32 %v1400, 16
        %v1542 = vor.u32 %v1539, %v1540
        %v1543 = vsel %vm1425, %v1535, %v1542
        %v1544 = vrot.slane %v1539, 4
        %v1546 = vshrl.u32 %v1401, 16
        %v1548 = vrot.slane %v1546, 7
        %v1549 = vshll.u32 %v1401, 16
        %v1551 = vor.u32 %v1548, %v1549
        %v1552 = vrot.slane %v1548, 4
        %v1554 = vshrl.u32 %v1402, 16
        %v1556 = vrot.slane %v1554, 7
        %v1557 = vshll.u32 %v1402, 16
        %v1559 = vor.u32 %v1556, %v1557
        %v1560 = vsel %vm1425, %v1552, %v1559
        %v1561 = vrot.slane %v1556, 4
        %v1563 = vshrl.u32 %v1403, 16
        %v1565 = vrot.slane %v1563, 7
        %v1566 = vshll.u32 %v1403, 16
        %v1568 = vor.u32 %v1565, %v1566
        %v1569 = vrot.slane %v1565, 4
        %v1571 = vshrl.u32 %v1404, 16
        %v1573 = vrot.slane %v1571, 7
        %v1574 = vshll.u32 %v1404, 16
        %v1576 = vor.u32 %v1573, %v1574
        %v1577 = vsel %vm1425, %v1569, %v1576
        %v1578 = vrot.slane %v1573, 4
        %v1580 = vshrl.u32 %v1405, 16
        %v1582 = vrot.slane %v1580, 7
        %v1583 = vshll.u32 %v1405, 16
        %v1585 = vor.u32 %v1582, %v1583
        %v1586 = vrot.slane %v1582, 4
        %v1588 = vshrl.u32 %v1406, 16
        %v1590 = vrot.slane %v1588, 7
        %v1591 = vshll.u32 %v1406, 16
        %v1593 = vor.u32 %v1590, %v1591
        %v1594 = vsel %vm1425, %v1586, %v1593
        %v1595 = vrot.slane %v1590, 4
        %v1597 = vshrl.u32 %v1407, 16
        %v1599 = vrot.slane %v1597, 7
        %v1600 = vshll.u32 %v1407, 16
        %v1602 = vor.u32 %v1599, %v1600
        %v1603 = vrot.slane %v1599, 4
        %v1605 = vshrl.u32 %v1408, 16
        %v1607 = vrot.slane %v1605, 7
        %v1608 = vshll.u32 %v1408, 16
        %v1610 = vor.u32 %v1607, %v1608
        %v1611 = vsel %vm1425, %v1603, %v1610
        %v1612 = vrot.slane %v1607, 4
        %v1614 = vshrl.u32 %v1409, 16
        %v1616 = vrot.slane %v1614, 7
        %v1617 = vshll.u32 %v1409, 16
        %v1619 = vor.u32 %v1616, %v1617
        %v1620 = vrot.slane %v1616, 4
        %v1622 = vshrl.u32 %v1410, 16
        %v1624 = vrot.slane %v1622, 7
        %v1625 = vshll.u32 %v1410, 16
        %v1627 = vor.u32 %v1624, %v1625
        %v1628 = vsel %vm1425, %v1620, %v1627
        %v1629 = vrot.slane %v1624, 4
        %v1631 = vshrl.u32 %v1411, 16
        %v1633 = vrot.slane %v1631, 7
        %v1634 = vshll.u32 %v1411, 16
        %v1636 = vor.u32 %v1633, %v1634
        %v1637 = vrot.slane %v1633, 4
        %v1639 = vshrl.u32 %v1412, 16
        %v1641 = vrot.slane %v1639, 7
        %v1642 = vshll.u32 %v1412, 16
        %v1644 = vor.u32 %v1641, %v1642
        %v1645 = vsel %vm1425, %v1637, %v1644
        %v1646 = vrot.slane %v1641, 4
        %v1648 = vshrl.u32 %v1413, 16
        %v1650 = vrot.slane %v1648, 7
        %v1651 = vshll.u32 %v1413, 16
        %v1653 = vor.u32 %v1650, %v1651
        %v1654 = vrot.slane %v1650, 4
        %v1656 = vshrl.u32 %v1414, 16
        %v1658 = vrot.slane %v1656, 7
        %v1659 = vshll.u32 %v1414, 16
        %v1661 = vor.u32 %v1658, %v1659
        %v1662 = vsel %vm1425, %v1654, %v1661
        %v1663 = vrot.slane %v1658, 4
        %v1665 = vshrl.u32 %v1415, 16
        %v1667 = vrot.slane %v1665, 7
        %v1668 = vshll.u32 %v1415, 16
        %v1670 = vor.u32 %v1667, %v1668
        %v1671 = vrot.slane %v1667, 4
        %v1673 = vshrl.u32 %v1416, 16
        %v1675 = vrot.slane %v1673, 7
        %v1676 = vshll.u32 %v1416, 16
        %v1678 = vor.u32 %v1675, %v1676
        %v1679 = vsel %vm1425, %v1671, %v1678
        %v1680 = vrot.slane %v1675, 4
        %v1682 = vshrl.u32 %v1417, 16
        %v1684 = vrot.slane %v1682, 7
        %v1685 = vshll.u32 %v1417, 16
        %v1687 = vor.u32 %v1684, %v1685
        %v1688 = vrot.slane %v1684, 4
        %v1690 = vshrl.u32 %v1418, 16
        %v1692 = vrot.slane %v1690, 7
        %v1693 = vshll.u32 %v1418, 16
        %v1695 = vor.u32 %v1692, %v1693
        %v1696 = vsel %vm1425, %v1688, %v1695
        %v1697 = vrot.slane %v1692, 4
        %v1699 = vshrl.u32 %v1419, 16
        %v1701 = vrot.slane %v1699, 7
        %v1702 = vshll.u32 %v1419, 16
        %v1704 = vor.u32 %v1701, %v1702
        %v1705 = vrot.slane %v1701, 4
        %v1707 = vshrl.u32 %v1420, 16
        %v1709 = vrot.slane %v1707, 7
        %v1710 = vshll.u32 %v1420, 16
        %v1712 = vor.u32 %v1709, %v1710
        %v1713 = vsel %vm1425, %v1705, %v1712
        %v1714 = vrot.slane %v1709, 4
        %v1716 = vshrl.u32 %v1421, 16
        %v1718 = vrot.slane %v1716, 7
        %v1719 = vshll.u32 %v1421, 16
        %v1721 = vor.u32 %v1718, %v1719
        %v1722 = vrot.slane %v1718, 4
        %v1724 = vshrl.u32 %v1422, 16
        %v1726 = vrot.slane %v1724, 7
        %v1727 = vshll.u32 %v1422, 16
        %v1729 = vor.u32 %v1726, %v1727
        %v1730 = vsel %vm1425, %v1722, %v1729
        %v1731 = vrot.slane %v1726, 4
        %vm1786 = vcmask 1043456
        %vm1787 = vsmask.f32 7938
        %vm1788 = vmand %vm1786, %vm1787
        %v1789 = vld [vmem:[#allocation2] sm:$0xf]
        %v1790 = vsel %vm1788, %v1432, %v1789
        %1791 = vst [vmem:[#allocation2] sm:$0xf] %v1790
        %1792 = vst [vmem:[#allocation2 + $0x4] sm:$0xf] %v1441
        %vm1793 = vcmask 1040384
        %vm1794 = vmand %vm1793, %vm1423
        %v1795 = vld [vmem:[#allocation2 + $0x8] sm:$0x1]
        %v1796 = vsel %vm1794, %v1442, %v1795
        %1797 = vst [vmem:[#allocation2 + $0x8] sm:$0x1] %v1796
        %v1798 = vld [vmem:[#allocation2 + $0xc] sm:$0xf]
        %v1799 = vsel %vm1788, %v1449, %v1798
        %1800 = vst [vmem:[#allocation2 + $0xc] sm:$0xf] %v1799
        %1801 = vst [vmem:[#allocation2 + $0x10] sm:$0xf] %v1458
        %v1802 = vld [vmem:[#allocation2 + $0x14] sm:$0x1]
        %v1803 = vsel %vm1794, %v1459, %v1802
        %1804 = vst [vmem:[#allocation2 + $0x14] sm:$0x1] %v1803
        %v1805 = vld [vmem:[#allocation2 + $0x18] sm:$0xf]
        %v1806 = vsel %vm1788, %v1466, %v1805
        %1807 = vst [vmem:[#allocation2 + $0x18] sm:$0xf] %v1806
        %1808 = vst [vmem:[#allocation2 + $0x1c] sm:$0xf] %v1475
        %v1809 = vld [vmem:[#allocation2 + $0x20] sm:$0x1]
        %v1810 = vsel %vm1794, %v1476, %v1809
        %1811 = vst [vmem:[#allocation2 + $0x20] sm:$0x1] %v1810
        %v1812 = vld [vmem:[#allocation2 + $0x24] sm:$0xf]
        %v1813 = vsel %vm1788, %v1483, %v1812
        %1814 = vst [vmem:[#allocation2 + $0x24] sm:$0xf] %v1813
        %1815 = vst [vmem:[#allocation2 + $0x28] sm:$0xf] %v1492
        %v1816 = vld [vmem:[#allocation2 + $0x2c] sm:$0x1]
        %v1817 = vsel %vm1794, %v1493, %v1816
        %1818 = vst [vmem:[#allocation2 + $0x2c] sm:$0x1] %v1817
        %v1819 = vld [vmem:[#allocation2 + $0x30] sm:$0xf]
        %v1820 = vsel %vm1788, %v1500, %v1819
        %1821 = vst [vmem:[#allocation2 + $0x30] sm:$0xf] %v1820
        %1822 = vst [vmem:[#allocation2 + $0x34] sm:$0xf] %v1509
        %v1823 = vld [vmem:[#allocation2 + $0x38] sm:$0x1]
        %v1824 = vsel %vm1794, %v1510, %v1823
        %1825 = vst [vmem:[#allocation2 + $0x38] sm:$0x1] %v1824
        %v1826 = vld [vmem:[#allocation2 + $0x3c] sm:$0xf]
        %v1827 = vsel %vm1788, %v1517, %v1826
        %1828 = vst [vmem:[#allocation2 + $0x3c] sm:$0xf] %v1827
        %1829 = vst [vmem:[#allocation2 + $0x40] sm:$0xf] %v1526
        %v1830 = vld [vmem:[#allocation2 + $0x44] sm:$0x1]
        %v1831 = vsel %vm1794, %v1527, %v1830
        %1832 = vst [vmem:[#allocation2 + $0x44] sm:$0x1] %v1831
        %v1833 = vld [vmem:[#allocation2 + $0x48] sm:$0xf]
        %v1834 = vsel %vm1788, %v1534, %v1833
        %1835 = vst [vmem:[#allocation2 + $0x48] sm:$0xf] %v1834
        %1836 = vst [vmem:[#allocation2 + $0x4c] sm:$0xf] %v1543
        %v1837 = vld [vmem:[#allocation2 + $0x50] sm:$0x1]
        %v1838 = vsel %vm1794, %v1544, %v1837
        %1839 = vst [vmem:[#allocation2 + $0x50] sm:$0x1] %v1838
        %v1840 = vld [vmem:[#allocation2 + $0x54] sm:$0xf]
        %v1841 = vsel %vm1788, %v1551, %v1840
        %1842 = vst [vmem:[#allocation2 + $0x54] sm:$0xf] %v1841
        %1843 = vst [vmem:[#allocation2 + $0x58] sm:$0xf] %v1560
        %v1844 = vld [vmem:[#allocation2 + $0x5c] sm:$0x1]
        %v1845 = vsel %vm1794, %v1561, %v1844
        %1846 = vst [vmem:[#allocation2 + $0x5c] sm:$0x1] %v1845
        %v1847 = vld [vmem:[#allocation2 + $0x60] sm:$0xf]
        %v1848 = vsel %vm1788, %v1568, %v1847
        %1849 = vst [vmem:[#allocation2 + $0x60] sm:$0xf] %v1848
        %1850 = vst [vmem:[#allocation2 + $0x64] sm:$0xf] %v1577
        %v1851 = vld [vmem:[#allocation2 + $0x68] sm:$0x1]
        %v1852 = vsel %vm1794, %v1578, %v1851
        %1853 = vst [vmem:[#allocation2 + $0x68] sm:$0x1] %v1852
        %v1854 = vld [vmem:[#allocation2 + $0x6c] sm:$0xf]
        %v1855 = vsel %vm1788, %v1585, %v1854
        %1856 = vst [vmem:[#allocation2 + $0x6c] sm:$0xf] %v1855
        %1857 = vst [vmem:[#allocation2 + $0x70] sm:$0xf] %v1594
        %v1858 = vld [vmem:[#allocation2 + $0x74] sm:$0x1]
        %v1859 = vsel %vm1794, %v1595, %v1858
        %1860 = vst [vmem:[#allocation2 + $0x74] sm:$0x1] %v1859
        %v1861 = vld [vmem:[#allocation2 + $0x78] sm:$0xf]
        %v1862 = vsel %vm1788, %v1602, %v1861
        %1863 = vst [vmem:[#allocation2 + $0x78] sm:$0xf] %v1862
        %1864 = vst [vmem:[#allocation2 + $0x7c] sm:$0xf] %v1611
        %v1865 = vld [vmem:[#allocation2 + $0x80] sm:$0x1]
        %v1866 = vsel %vm1794, %v1612, %v1865
        %1867 = vst [vmem:[#allocation2 + $0x80] sm:$0x1] %v1866
        %v1868 = vld [vmem:[#allocation2 + $0x84] sm:$0xf]
        %v1869 = vsel %vm1788, %v1619, %v1868
        %1870 = vst [vmem:[#allocation2 + $0x84] sm:$0xf] %v1869
        %1871 = vst [vmem:[#allocation2 + $0x88] sm:$0xf] %v1628
        %v1872 = vld [vmem:[#allocation2 + $0x8c] sm:$0x1]
        %v1873 = vsel %vm1794, %v1629, %v1872
        %1874 = vst [vmem:[#allocation2 + $0x8c] sm:$0x1] %v1873
        %v1875 = vld [vmem:[#allocation2 + $0x90] sm:$0xf]
        %v1876 = vsel %vm1788, %v1636, %v1875
        %1877 = vst [vmem:[#allocation2 + $0x90] sm:$0xf] %v1876
        %1878 = vst [vmem:[#allocation2 + $0x94] sm:$0xf] %v1645
        %v1879 = vld [vmem:[#allocation2 + $0x98] sm:$0x1]
        %v1880 = vsel %vm1794, %v1646, %v1879
        %1881 = vst [vmem:[#allocation2 + $0x98] sm:$0x1] %v1880
        %v1882 = vld [vmem:[#allocation2 + $0x9c] sm:$0xf]
        %v1883 = vsel %vm1788, %v1653, %v1882
        %1884 = vst [vmem:[#allocation2 + $0x9c] sm:$0xf] %v1883
        %1885 = vst [vmem:[#allocation2 + $0xa0] sm:$0xf] %v1662
        %v1886 = vld [vmem:[#allocation2 + $0xa4] sm:$0x1]
        %v1887 = vsel %vm1794, %v1663, %v1886
        %1888 = vst [vmem:[#allocation2 + $0xa4] sm:$0x1] %v1887
        %v1889 = vld [vmem:[#allocation2 + $0xa8] sm:$0xf]
        %v1890 = vsel %vm1788, %v1670, %v1889
        %1891 = vst [vmem:[#allocation2 + $0xa8] sm:$0xf] %v1890
        %1892 = vst [vmem:[#allocation2 + $0xac] sm:$0xf] %v1679
        %v1893 = vld [vmem:[#allocation2 + $0xb0] sm:$0x1]
        %v1894 = vsel %vm1794, %v1680, %v1893
        %1895 = vst [vmem:[#allocation2 + $0xb0] sm:$0x1] %v1894
        %v1896 = vld [vmem:[#allocation2 + $0xb4] sm:$0xf]
        %v1897 = vsel %vm1788, %v1687, %v1896
        %1898 = vst [vmem:[#allocation2 + $0xb4] sm:$0xf] %v1897
        %1899 = vst [vmem:[#allocation2 + $0xb8] sm:$0xf] %v1696
        %v1900 = vld [vmem:[#allocation2 + $0xbc] sm:$0x1]
        %v1901 = vsel %vm1794, %v1697, %v1900
        %1902 = vst [vmem:[#allocation2 + $0xbc] sm:$0x1] %v1901
        %v1903 = vld [vmem:[#allocation2 + $0xc0] sm:$0xf]
        %v1904 = vsel %vm1788, %v1704, %v1903
        %1905 = vst [vmem:[#allocation2 + $0xc0] sm:$0xf] %v1904
        %1906 = vst [vmem:[#allocation2 + $0xc4] sm:$0xf] %v1713
        %v1907 = vld [vmem:[#allocation2 + $0xc8] sm:$0x1]
        %v1908 = vsel %vm1794, %v1714, %v1907
        %1909 = vst [vmem:[#allocation2 + $0xc8] sm:$0x1] %v1908
        %v1910 = vld [vmem:[#allocation2 + $0xcc] sm:$0xf]
        %v1911 = vsel %vm1788, %v1721, %v1910
        %1912 = vst [vmem:[#allocation2 + $0xcc] sm:$0xf] %v1911
        %1913 = vst [vmem:[#allocation2 + $0xd0] sm:$0xf] %v1730
        %v1914 = vld [vmem:[#allocation2 + $0xd4] sm:$0x1]
        %v1915 = vsel %vm1794, %v1731, %v1914
        %1916 = vst [vmem:[#allocation2 + $0xd4] sm:$0x1] %v1915
        %v1917 = vld [vmem:[#allocation2] sm:$0x1]
        %v1918 = vsel %vm1794, 0, %v1917
        %1919 = vst [vmem:[#allocation2] sm:$0x1] %v1918
        %v1920 = vld [vmem:[#allocation2 + $0xc] sm:$0x1]
        %v1921 = vsel %vm1794, 0, %v1920
        %1922 = vst [vmem:[#allocation2 + $0xc] sm:$0x1] %v1921
        %v1923 = vld [vmem:[#allocation2 + $0x18] sm:$0x1]
        %v1924 = vsel %vm1794, 0, %v1923
        %1925 = vst [vmem:[#allocation2 + $0x18] sm:$0x1] %v1924
        %v1926 = vld [vmem:[#allocation2 + $0x24] sm:$0x1]
        %v1927 = vsel %vm1794, 0, %v1926
        %1928 = vst [vmem:[#allocation2 + $0x24] sm:$0x1] %v1927
        %v1929 = vld [vmem:[#allocation2 + $0x30] sm:$0x1]
        %v1930 = vsel %vm1794, 0, %v1929
        %1931 = vst [vmem:[#allocation2 + $0x30] sm:$0x1] %v1930
        %v1932 = vld [vmem:[#allocation2 + $0x3c] sm:$0x1]
        %v1933 = vsel %vm1794, 0, %v1932
        %1934 = vst [vmem:[#allocation2 + $0x3c] sm:$0x1] %v1933
        %v1935 = vld [vmem:[#allocation2 + $0x48] sm:$0x1]
        %v1936 = vsel %vm1794, 0, %v1935
        %1937 = vst [vmem:[#allocation2 + $0x48] sm:$0x1] %v1936
        %v1938 = vld [vmem:[#allocation2 + $0x54] sm:$0x1]
        %v1939 = vsel %vm1794, 0, %v1938
        %1940 = vst [vmem:[#allocation2 + $0x54] sm:$0x1] %v1939
        %v1941 = vld [vmem:[#allocation2 + $0x60] sm:$0x1]
        %v1942 = vsel %vm1794, 0, %v1941
        %1943 = vst [vmem:[#allocation2 + $0x60] sm:$0x1] %v1942
        %v1944 = vld [vmem:[#allocation2 + $0x6c] sm:$0x1]
        %v1945 = vsel %vm1794, 0, %v1944
        %1946 = vst [vmem:[#allocation2 + $0x6c] sm:$0x1] %v1945
        %v1947 = vld [vmem:[#allocation2 + $0x78] sm:$0x1]
        %v1948 = vsel %vm1794, 0, %v1947
        %1949 = vst [vmem:[#allocation2 + $0x78] sm:$0x1] %v1948
        %v1950 = vld [vmem:[#allocation2 + $0x84] sm:$0x1]
        %v1951 = vsel %vm1794, 0, %v1950
        %1952 = vst [vmem:[#allocation2 + $0x84] sm:$0x1] %v1951
        %v1953 = vld [vmem:[#allocation2 + $0x90] sm:$0x1]
        %v1954 = vsel %vm1794, 0, %v1953
        %1955 = vst [vmem:[#allocation2 + $0x90] sm:$0x1] %v1954
        %v1956 = vld [vmem:[#allocation2 + $0x9c] sm:$0x1]
        %v1957 = vsel %vm1794, 0, %v1956
        %1958 = vst [vmem:[#allocation2 + $0x9c] sm:$0x1] %v1957
        %v1959 = vld [vmem:[#allocation2 + $0xa8] sm:$0x1]
        %v1960 = vsel %vm1794, 0, %v1959
        %1961 = vst [vmem:[#allocation2 + $0xa8] sm:$0x1] %v1960
        %v1962 = vld [vmem:[#allocation2 + $0xb4] sm:$0x1]
        %v1963 = vsel %vm1794, 0, %v1962
        %1964 = vst [vmem:[#allocation2 + $0xb4] sm:$0x1] %v1963
        %v1965 = vld [vmem:[#allocation2 + $0xc0] sm:$0x1]
        %v1966 = vsel %vm1794, 0, %v1965
        %1967 = vst [vmem:[#allocation2 + $0xc0] sm:$0x1] %v1966
        %v1968 = vld [vmem:[#allocation2 + $0xcc] sm:$0x1]
        %v1969 = vsel %vm1794, 0, %v1968
        %1970 = vst [vmem:[#allocation2 + $0xcc] sm:$0x1] %v1969
        %vm1971 = vmand %vm1793, %vm1787
        %v1972 = vld [vmem:[#allocation2 + $0x8] sm:$0x1]
        %v1973 = vsel %vm1971, 0, %v1972
        %1974 = vst [vmem:[#allocation2 + $0x8] sm:$0x1] %v1973
        %v1975 = vld [vmem:[#allocation2 + $0x14] sm:$0x1]
        %v1976 = vsel %vm1971, 0, %v1975
        %1977 = vst [vmem:[#allocation2 + $0x14] sm:$0x1] %v1976
        %v1978 = vld [vmem:[#allocation2 + $0x20] sm:$0x1]
        %v1979 = vsel %vm1971, 0, %v1978
        %1980 = vst [vmem:[#allocation2 + $0x20] sm:$0x1] %v1979
        %v1981 = vld [vmem:[#allocation2 + $0x2c] sm:$0x1]
        %v1982 = vsel %vm1971, 0, %v1981
        %1983 = vst [vmem:[#allocation2 + $0x2c] sm:$0x1] %v1982
        %v1984 = vld [vmem:[#allocation2 + $0x38] sm:$0x1]
        %v1985 = vsel %vm1971, 0, %v1984
        %1986 = vst [vmem:[#allocation2 + $0x38] sm:$0x1] %v1985
        %v1987 = vld [vmem:[#allocation2 + $0x44] sm:$0x1]
        %v1988 = vsel %vm1971, 0, %v1987
        %1989 = vst [vmem:[#allocation2 + $0x44] sm:$0x1] %v1988
        %v1990 = vld [vmem:[#allocation2 + $0x50] sm:$0x1]
        %v1991 = vsel %vm1971, 0, %v1990
        %1992 = vst [vmem:[#allocation2 + $0x50] sm:$0x1] %v1991
        %v1993 = vld [vmem:[#allocation2 + $0x5c] sm:$0x1]
        %v1994 = vsel %vm1971, 0, %v1993
        %1995 = vst [vmem:[#allocation2 + $0x5c] sm:$0x1] %v1994
        %v1996 = vld [vmem:[#allocation2 + $0x68] sm:$0x1]
        %v1997 = vsel %vm1971, 0, %v1996
        %1998 = vst [vmem:[#allocation2 + $0x68] sm:$0x1] %v1997
        %v1999 = vld [vmem:[#allocation2 + $0x74] sm:$0x1]
        %v2000 = vsel %vm1971, 0, %v1999
        %2001 = vst [vmem:[#allocation2 + $0x74] sm:$0x1] %v2000
        %v2002 = vld [vmem:[#allocation2 + $0x80] sm:$0x1]
        %v2003 = vsel %vm1971, 0, %v2002
        %2004 = vst [vmem:[#allocation2 + $0x80] sm:$0x1] %v2003
        %v2005 = vld [vmem:[#allocation2 + $0x8c] sm:$0x1]
        %v2006 = vsel %vm1971, 0, %v2005
        %2007 = vst [vmem:[#allocation2 + $0x8c] sm:$0x1] %v2006
        %v2008 = vld [vmem:[#allocation2 + $0x98] sm:$0x1]
        %v2009 = vsel %vm1971, 0, %v2008
        %2010 = vst [vmem:[#allocation2 + $0x98] sm:$0x1] %v2009
        %v2011 = vld [vmem:[#allocation2 + $0xa4] sm:$0x1]
        %v2012 = vsel %vm1971, 0, %v2011
        %2013 = vst [vmem:[#allocation2 + $0xa4] sm:$0x1] %v2012
        %v2014 = vld [vmem:[#allocation2 + $0xb0] sm:$0x1]
        %v2015 = vsel %vm1971, 0, %v2014
        %2016 = vst [vmem:[#allocation2 + $0xb0] sm:$0x1] %v2015
        %v2017 = vld [vmem:[#allocation2 + $0xbc] sm:$0x1]
        %v2018 = vsel %vm1971, 0, %v2017
        %2019 = vst [vmem:[#allocation2 + $0xbc] sm:$0x1] %v2018
        %v2020 = vld [vmem:[#allocation2 + $0xc8] sm:$0x1]
        %v2021 = vsel %vm1971, 0, %v2020
        %2022 = vst [vmem:[#allocation2 + $0xc8] sm:$0x1] %v2021
        %v2023 = vld [vmem:[#allocation2 + $0xd4] sm:$0x1]
        %v2024 = vsel %vm1971, 0, %v2023
        %2025 = vst [vmem:[#allocation2 + $0xd4] sm:$0x1] %v2024
        %v2026 = vld [vmem:[#allocation2] sm:$0xf]
        %v2027 = vld [vmem:[#allocation2 + $0x4] sm:$0xf]
        %v2028 = vld [vmem:[#allocation2 + $0xc] sm:$0xf]
        %v2029 = vld [vmem:[#allocation2 + $0x10] sm:$0xf]
        %v2030 = vld [vmem:[#allocation2 + $0x18] sm:$0xf]
        %v2031 = vld [vmem:[#allocation2 + $0x1c] sm:$0xf]
        %v2032 = vld [vmem:[#allocation2 + $0x24] sm:$0xf]
        %v2033 = vld [vmem:[#allocation2 + $0x28] sm:$0xf]
        %v2034 = vld [vmem:[#allocation2 + $0x30] sm:$0xf]
        %v2035 = vld [vmem:[#allocation2 + $0x34] sm:$0xf]
        %v2036 = vld [vmem:[#allocation2 + $0x3c] sm:$0xf]
        %v2037 = vld [vmem:[#allocation2 + $0x40] sm:$0xf]
        %v2038 = vld [vmem:[#allocation2 + $0x48] sm:$0xf]
        %v2039 = vld [vmem:[#allocation2 + $0x4c] sm:$0xf]
        %v2040 = vld [vmem:[#allocation2 + $0x54] sm:$0xf]
        %v2041 = vld [vmem:[#allocation2 + $0x58] sm:$0xf]
        %v2042 = vld [vmem:[#allocation2 + $0x60] sm:$0xf]
        %v2043 = vld [vmem:[#allocation2 + $0x64] sm:$0xf]
        %v2044 = vld [vmem:[#allocation2 + $0x6c] sm:$0xf]
        %v2045 = vld [vmem:[#allocation2 + $0x70] sm:$0xf]
        %v2046 = vld [vmem:[#allocation2 + $0x78] sm:$0xf]
        %v2047 = vld [vmem:[#allocation2 + $0x7c] sm:$0xf]
        %v2048 = vld [vmem:[#allocation2 + $0x84] sm:$0xf]
        %v2049 = vld [vmem:[#allocation2 + $0x88] sm:$0xf]
        %v2050 = vld [vmem:[#allocation2 + $0x90] sm:$0xf]
        %v2051 = vld [vmem:[#allocation2 + $0x94] sm:$0xf]
        %v2052 = vld [vmem:[#allocation2 + $0x9c] sm:$0xf]
        %v2053 = vld [vmem:[#allocation2 + $0xa0] sm:$0xf]
        %v2054 = vld [vmem:[#allocation2 + $0xa8] sm:$0xf]
        %v2055 = vld [vmem:[#allocation2 + $0xac] sm:$0xf]
        %v2056 = vld [vmem:[#allocation2 + $0xb4] sm:$0xf]
        %v2057 = vld [vmem:[#allocation2 + $0xb8] sm:$0xf]
        %v2058 = vld [vmem:[#allocation9] sm:$0xf]
        %v2059 = vld [vmem:[#allocation9 + $0x4] sm:$0xf]
        %v2060 = vld [vmem:[#allocation9 + $0x8] sm:$0xf]
        %v2061 = vld [vmem:[#allocation9 + $0xc] sm:$0xf]
        %v2062 = vld [vmem:[#allocation9 + $0x10] sm:$0xf]
        %v2063 = vld [vmem:[#allocation9 + $0x14] sm:$0xf]
        %v2064 = vld [vmem:[#allocation9 + $0x18] sm:$0xf]
        %v2065 = vld [vmem:[#allocation9 + $0x1c] sm:$0xf]
        %v2066 = vld [vmem:[#allocation9 + $0x20] sm:$0xf]
        %v2067 = vld [vmem:[#allocation9 + $0x24] sm:$0xf]
        %v2068 = vld [vmem:[#allocation9 + $0x28] sm:$0xf]
        %v2069 = vld [vmem:[#allocation9 + $0x2c] sm:$0xf]
        %v2070 = vld [vmem:[#allocation9 + $0x30] sm:$0xf]
        %v2071 = vld [vmem:[#allocation9 + $0x34] sm:$0xf]
        %v2072 = vld [vmem:[#allocation9 + $0x38] sm:$0xf]
        %v2073 = vld [vmem:[#allocation9 + $0x3c] sm:$0xf]
        %v2074 = vld [vmem:[#allocation2 + $0x8] sm:$0x1]
        %v2075 = vld [vmem:[#allocation2 + $0x14] sm:$0x1]
        %v2076 = vld [vmem:[#allocation2 + $0x20] sm:$0x1]
        %v2077 = vld [vmem:[#allocation2 + $0x2c] sm:$0x1]
        %v2078 = vld [vmem:[#allocation2 + $0x38] sm:$0x1]
        %v2079 = vld [vmem:[#allocation2 + $0x44] sm:$0x1]
        %v2080 = vld [vmem:[#allocation2 + $0x50] sm:$0x1]
        %v2081 = vld [vmem:[#allocation2 + $0x5c] sm:$0x1]
        %v2082 = vld [vmem:[#allocation2 + $0x68] sm:$0x1]
        %v2083 = vld [vmem:[#allocation2 + $0x74] sm:$0x1]
        %v2084 = vld [vmem:[#allocation2 + $0x80] sm:$0x1]
        %v2085 = vld [vmem:[#allocation2 + $0x8c] sm:$0x1]
        %v2086 = vld [vmem:[#allocation2 + $0x98] sm:$0x1]
        %v2087 = vld [vmem:[#allocation2 + $0xa4] sm:$0x1]
        %v2088 = vld [vmem:[#allocation2 + $0xb0] sm:$0x1]
        %v2089 = vld [vmem:[#allocation2 + $0xbc] sm:$0x1]
        %vm2090 = vsmask.f32 3328
        %vm2091 = vsmask.f32 7440
        %vm2092 = vmor %vm2090, %vm2091
        %v2094 = vshrl.u32 %v2026, 16
        %v2096 = vrot.slane %v2094, 4
        %v2097 = vshll.u32 %v2026, 16
        %v2099 = vrot.slane %v2097, 5
        %v2100 = vor.u32 %v2096, %v2099
        %v2101 = vrot.slane %v2100, 4
        %v2103 = vshll.u32 %v2027, 16
        %v2105 = vrot.slane %v2103, 5
        %v2106 = vsel %vm2092, %v2101, %v2105
        %v2107 = vshrl.u32 %v2027, 16
        %v2109 = vrot.slane %v2107, 4
        %v2110 = vor.u32 %v2109, %v2105
        %v2111 = vrot.slane %v2110, 4
        %v2113 = vshll.u32 %v2074, 16
        %v2115 = vrot.slane %v2113, 5
        %v2116 = vsel %vm2092, %v2111, %v2115
        %v2118 = vshrl.u32 %v2028, 16
        %v2120 = vrot.slane %v2118, 4
        %v2121 = vshll.u32 %v2028, 16
        %v2123 = vrot.slane %v2121, 5
        %v2124 = vor.u32 %v2120, %v2123
        %v2125 = vrot.slane %v2124, 4
        %v2127 = vshll.u32 %v2029, 16
        %v2129 = vrot.slane %v2127, 5
        %v2130 = vsel %vm2092, %v2125, %v2129
        %v2131 = vshrl.u32 %v2029, 16
        %v2133 = vrot.slane %v2131, 4
        %v2134 = vor.u32 %v2133, %v2129
        %v2135 = vrot.slane %v2134, 4
        %v2137 = vshll.u32 %v2075, 16
        %v2139 = vrot.slane %v2137, 5
        %v2140 = vsel %vm2092, %v2135, %v2139
        %v2142 = vshrl.u32 %v2030, 16
        %v2144 = vrot.slane %v2142, 4
        %v2145 = vshll.u32 %v2030, 16
        %v2147 = vrot.slane %v2145, 5
        %v2148 = vor.u32 %v2144, %v2147
        %v2149 = vrot.slane %v2148, 4
        %v2151 = vshll.u32 %v2031, 16
        %v2153 = vrot.slane %v2151, 5
        %v2154 = vsel %vm2092, %v2149, %v2153
        %v2155 = vshrl.u32 %v2031, 16
        %v2157 = vrot.slane %v2155, 4
        %v2158 = vor.u32 %v2157, %v2153
        %v2159 = vrot.slane %v2158, 4
        %v2161 = vshll.u32 %v2076, 16
        %v2163 = vrot.slane %v2161, 5
        %v2164 = vsel %vm2092, %v2159, %v2163
        %v2166 = vshrl.u32 %v2032, 16
        %v2168 = vrot.slane %v2166, 4
        %v2169 = vshll.u32 %v2032, 16
        %v2171 = vrot.slane %v2169, 5
        %v2172 = vor.u32 %v2168, %v2171
        %v2173 = vrot.slane %v2172, 4
        %v2175 = vshll.u32 %v2033, 16
        %v2177 = vrot.slane %v2175, 5
        %v2178 = vsel %vm2092, %v2173, %v2177
        %v2179 = vshrl.u32 %v2033, 16
        %v2181 = vrot.slane %v2179, 4
        %v2182 = vor.u32 %v2181, %v2177
        %v2183 = vrot.slane %v2182, 4
        %v2185 = vshll.u32 %v2077, 16
        %v2187 = vrot.slane %v2185, 5
        %v2188 = vsel %vm2092, %v2183, %v2187
        %v2190 = vshrl.u32 %v2034, 16
        %v2192 = vrot.slane %v2190, 4
        %v2193 = vshll.u32 %v2034, 16
        %v2195 = vrot.slane %v2193, 5
        %v2196 = vor.u32 %v2192, %v2195
        %v2197 = vrot.slane %v2196, 4
        %v2199 = vshll.u32 %v2035, 16
        %v2201 = vrot.slane %v2199, 5
        %v2202 = vsel %vm2092, %v2197, %v2201
        %v2203 = vshrl.u32 %v2035, 16
        %v2205 = vrot.slane %v2203, 4
        %v2206 = vor.u32 %v2205, %v2201
        %v2207 = vrot.slane %v2206, 4
        %v2209 = vshll.u32 %v2078, 16
        %v2211 = vrot.slane %v2209, 5
        %v2212 = vsel %vm2092, %v2207, %v2211
        %v2214 = vshrl.u32 %v2036, 16
        %v2216 = vrot.slane %v2214, 4
        %v2217 = vshll.u32 %v2036, 16
        %v2219 = vrot.slane %v2217, 5
        %v2220 = vor.u32 %v2216, %v2219
        %v2221 = vrot.slane %v2220, 4
        %v2223 = vshll.u32 %v2037, 16
        %v2225 = vrot.slane %v2223, 5
        %v2226 = vsel %vm2092, %v2221, %v2225
        %v2227 = vshrl.u32 %v2037, 16
        %v2229 = vrot.slane %v2227, 4
        %v2230 = vor.u32 %v2229, %v2225
        %v2231 = vrot.slane %v2230, 4
        %v2233 = vshll.u32 %v2079, 16
        %v2235 = vrot.slane %v2233, 5
        %v2236 = vsel %vm2092, %v2231, %v2235
        %v2238 = vshrl.u32 %v2038, 16
        %v2240 = vrot.slane %v2238, 4
        %v2241 = vshll.u32 %v2038, 16
        %v2243 = vrot.slane %v2241, 5
        %v2244 = vor.u32 %v2240, %v2243
        %v2245 = vrot.slane %v2244, 4
        %v2247 = vshll.u32 %v2039, 16
        %v2249 = vrot.slane %v2247, 5
        %v2250 = vsel %vm2092, %v2245, %v2249
        %v2251 = vshrl.u32 %v2039, 16
        %v2253 = vrot.slane %v2251, 4
        %v2254 = vor.u32 %v2253, %v2249
        %v2255 = vrot.slane %v2254, 4
        %v2257 = vshll.u32 %v2080, 16
        %v2259 = vrot.slane %v2257, 5
        %v2260 = vsel %vm2092, %v2255, %v2259
        %v2262 = vshrl.u32 %v2040, 16
        %v2264 = vrot.slane %v2262, 4
        %v2265 = vshll.u32 %v2040, 16
        %v2267 = vrot.slane %v2265, 5
        %v2268 = vor.u32 %v2264, %v2267
        %v2269 = vrot.slane %v2268, 4
        %v2271 = vshll.u32 %v2041, 16
        %v2273 = vrot.slane %v2271, 5
        %v2274 = vsel %vm2092, %v2269, %v2273
        %v2275 = vshrl.u32 %v2041, 16
        %v2277 = vrot.slane %v2275, 4
        %v2278 = vor.u32 %v2277, %v2273
        %v2279 = vrot.slane %v2278, 4
        %v2281 = vshll.u32 %v2081, 16
        %v2283 = vrot.slane %v2281, 5
        %v2284 = vsel %vm2092, %v2279, %v2283
        %v2286 = vshrl.u32 %v2042, 16
        %v2288 = vrot.slane %v2286, 4
        %v2289 = vshll.u32 %v2042, 16
        %v2291 = vrot.slane %v2289, 5
        %v2292 = vor.u32 %v2288, %v2291
        %v2293 = vrot.slane %v2292, 4
        %v2295 = vshll.u32 %v2043, 16
        %v2297 = vrot.slane %v2295, 5
        %v2298 = vsel %vm2092, %v2293, %v2297
        %v2299 = vshrl.u32 %v2043, 16
        %v2301 = vrot.slane %v2299, 4
        %v2302 = vor.u32 %v2301, %v2297
        %v2303 = vrot.slane %v2302, 4
        %v2305 = vshll.u32 %v2082, 16
        %v2307 = vrot.slane %v2305, 5
        %v2308 = vsel %vm2092, %v2303, %v2307
        %v2310 = vshrl.u32 %v2044, 16
        %v2312 = vrot.slane %v2310, 4
        %v2313 = vshll.u32 %v2044, 16
        %v2315 = vrot.slane %v2313, 5
        %v2316 = vor.u32 %v2312, %v2315
        %v2317 = vrot.slane %v2316, 4
        %v2319 = vshll.u32 %v2045, 16
        %v2321 = vrot.slane %v2319, 5
        %v2322 = vsel %vm2092, %v2317, %v2321
        %v2323 = vshrl.u32 %v2045, 16
        %v2325 = vrot.slane %v2323, 4
        %v2326 = vor.u32 %v2325, %v2321
        %v2327 = vrot.slane %v2326, 4
        %v2329 = vshll.u32 %v2083, 16
        %v2331 = vrot.slane %v2329, 5
        %v2332 = vsel %vm2092, %v2327, %v2331
        %v2334 = vshrl.u32 %v2046, 16
        %v2336 = vrot.slane %v2334, 4
        %v2337 = vshll.u32 %v2046, 16
        %v2339 = vrot.slane %v2337, 5
        %v2340 = vor.u32 %v2336, %v2339
        %v2341 = vrot.slane %v2340, 4
        %v2343 = vshll.u32 %v2047, 16
        %v2345 = vrot.slane %v2343, 5
        %v2346 = vsel %vm2092, %v2341, %v2345
        %v2347 = vshrl.u32 %v2047, 16
        %v2349 = vrot.slane %v2347, 4
        %v2350 = vor.u32 %v2349, %v2345
        %v2351 = vrot.slane %v2350, 4
        %v2353 = vshll.u32 %v2084, 16
        %v2355 = vrot.slane %v2353, 5
        %v2356 = vsel %vm2092, %v2351, %v2355
        %v2358 = vshrl.u32 %v2048, 16
        %v2360 = vrot.slane %v2358, 4
        %v2361 = vshll.u32 %v2048, 16
        %v2363 = vrot.slane %v2361, 5
        %v2364 = vor.u32 %v2360, %v2363
        %v2365 = vrot.slane %v2364, 4
        %v2367 = vshll.u32 %v2049, 16
        %v2369 = vrot.slane %v2367, 5
        %v2370 = vsel %vm2092, %v2365, %v2369
        %v2371 = vshrl.u32 %v2049, 16
        %v2373 = vrot.slane %v2371, 4
        %v2374 = vor.u32 %v2373, %v2369
        %v2375 = vrot.slane %v2374, 4
        %v2377 = vshll.u32 %v2085, 16
        %v2379 = vrot.slane %v2377, 5
        %v2380 = vsel %vm2092, %v2375, %v2379
        %v2382 = vshrl.u32 %v2050, 16
        %v2384 = vrot.slane %v2382, 4
        %v2385 = vshll.u32 %v2050, 16
        %v2387 = vrot.slane %v2385, 5
        %v2388 = vor.u32 %v2384, %v2387
        %v2389 = vrot.slane %v2388, 4
        %v2391 = vshll.u32 %v2051, 16
        %v2393 = vrot.slane %v2391, 5
        %v2394 = vsel %vm2092, %v2389, %v2393
        %v2395 = vshrl.u32 %v2051, 16
        %v2397 = vrot.slane %v2395, 4
        %v2398 = vor.u32 %v2397, %v2393
        %v2399 = vrot.slane %v2398, 4
        %v2401 = vshll.u32 %v2086, 16
        %v2403 = vrot.slane %v2401, 5
        %v2404 = vsel %vm2092, %v2399, %v2403
        %v2406 = vshrl.u32 %v2052, 16
        %v2408 = vrot.slane %v2406, 4
        %v2409 = vshll.u32 %v2052, 16
        %v2411 = vrot.slane %v2409, 5
        %v2412 = vor.u32 %v2408, %v2411
        %v2413 = vrot.slane %v2412, 4
        %v2415 = vshll.u32 %v2053, 16
        %v2417 = vrot.slane %v2415, 5
        %v2418 = vsel %vm2092, %v2413, %v2417
        %v2419 = vshrl.u32 %v2053, 16
        %v2421 = vrot.slane %v2419, 4
        %v2422 = vor.u32 %v2421, %v2417
        %v2423 = vrot.slane %v2422, 4
        %v2425 = vshll.u32 %v2087, 16
        %v2427 = vrot.slane %v2425, 5
        %v2428 = vsel %vm2092, %v2423, %v2427
        %v2430 = vshrl.u32 %v2054, 16
        %v2432 = vrot.slane %v2430, 4
        %v2433 = vshll.u32 %v2054, 16
        %v2435 = vrot.slane %v2433, 5
        %v2436 = vor.u32 %v2432, %v2435
        %v2437 = vrot.slane %v2436, 4
        %v2439 = vshll.u32 %v2055, 16
        %v2441 = vrot.slane %v2439, 5
        %v2442 = vsel %vm2092, %v2437, %v2441
        %v2443 = vshrl.u32 %v2055, 16
        %v2445 = vrot.slane %v2443, 4
        %v2446 = vor.u32 %v2445, %v2441
        %v2447 = vrot.slane %v2446, 4
        %v2449 = vshll.u32 %v2088, 16
        %v2451 = vrot.slane %v2449, 5
        %v2452 = vsel %vm2092, %v2447, %v2451
        %v2454 = vshrl.u32 %v2056, 16
        %v2456 = vrot.slane %v2454, 4
        %v2457 = vshll.u32 %v2056, 16
        %v2459 = vrot.slane %v2457, 5
        %v2460 = vor.u32 %v2456, %v2459
        %v2461 = vrot.slane %v2460, 4
        %v2463 = vshll.u32 %v2057, 16
        %v2465 = vrot.slane %v2463, 5
        %v2466 = vsel %vm2092, %v2461, %v2465
        %v2467 = vshrl.u32 %v2057, 16
        %v2469 = vrot.slane %v2467, 4
        %v2470 = vor.u32 %v2469, %v2465
        %v2471 = vrot.slane %v2470, 4
        %v2473 = vshll.u32 %v2089, 16
        %v2475 = vrot.slane %v2473, 5
        %v2476 = vsel %vm2092, %v2471, %v2475
        %v2477 = vld [vmem:[#allocation9 + $0x40] sm:$0xf]
        %v2478 = vld [vmem:[#allocation9 + $0x44] sm:$0xf]
        %v2479 = vld [vmem:[#allocation9 + $0x48] sm:$0xf]
        %v2480 = vld [vmem:[#allocation9 + $0x4c] sm:$0xf]
        %v2481 = vld [vmem:[#allocation9 + $0x50] sm:$0xf]
        %v2482 = vld [vmem:[#allocation9 + $0x54] sm:$0xf]
        %v2483 = vld [vmem:[#allocation9 + $0x58] sm:$0xf]
        %v2484 = vld [vmem:[#allocation9 + $0x5c] sm:$0xf]
        %v2485 = vld [vmem:[#allocation9 + $0x60] sm:$0xf]
        %v2486 = vld [vmem:[#allocation9 + $0x64] sm:$0xf]
        %v2487 = vld [vmem:[#allocation9 + $0x68] sm:$0xf]
        %v2488 = vld [vmem:[#allocation9 + $0x6c] sm:$0xf]
        %v2489 = vld [vmem:[#allocation9 + $0x70] sm:$0xf]
        %v2490 = vld [vmem:[#allocation9 + $0x74] sm:$0xf]
        %v2491 = vld [vmem:[#allocation9 + $0x78] sm:$0xf]
        %v2492 = vld [vmem:[#allocation9 + $0x7c] sm:$0xf]
        %v2493 = vunpack.c.l.b16 %v2106
        %v2494 = vunpack.c.l.b16 %v2116
        %v2495 = vunpack.c.l.b16 %v2130
        %v2496 = vunpack.c.l.b16 %v2140
        %v2497 = vunpack.c.l.b16 %v2154
        %v2498 = vunpack.c.l.b16 %v2164
        %v2499 = vunpack.c.l.b16 %v2178
        %v2500 = vunpack.c.l.b16 %v2188
        %v2501 = vunpack.c.l.b16 %v2202
        %v2502 = vunpack.c.l.b16 %v2212
        %v2503 = vunpack.c.l.b16 %v2226
        %v2504 = vunpack.c.l.b16 %v2236
        %v2505 = vunpack.c.l.b16 %v2250
        %v2506 = vunpack.c.l.b16 %v2260
        %v2507 = vunpack.c.l.b16 %v2274
        %v2508 = vunpack.c.l.b16 %v2284
        %v2509 = vunpack.c.l.b16 %v2298
        %v2510 = vunpack.c.l.b16 %v2308
        %v2511 = vunpack.c.l.b16 %v2322
        %v2512 = vunpack.c.l.b16 %v2332
        %v2513 = vunpack.c.l.b16 %v2346
        %v2514 = vunpack.c.l.b16 %v2356
        %v2515 = vunpack.c.l.b16 %v2370
        %v2516 = vunpack.c.l.b16 %v2380
        %v2517 = vunpack.c.l.b16 %v2394
        %v2518 = vunpack.c.l.b16 %v2404
        %v2519 = vunpack.c.l.b16 %v2418
        %v2520 = vunpack.c.l.b16 %v2428
        %v2521 = vunpack.c.l.b16 %v2442
        %v2522 = vunpack.c.l.b16 %v2452
        %v2523 = vunpack.c.l.b16 %v2466
        %v2524 = vunpack.c.l.b16 %v2476
        %v2525 = vpack.c.b16 %v2494, %v2493
        %v2526 = vpack.c.b16 %v2496, %v2495
        %v2527 = vpack.c.b16 %v2498, %v2497
        %v2528 = vpack.c.b16 %v2500, %v2499
        %v2529 = vpack.c.b16 %v2502, %v2501
        %v2530 = vpack.c.b16 %v2504, %v2503
        %v2531 = vpack.c.b16 %v2506, %v2505
        %v2532 = vpack.c.b16 %v2508, %v2507
        %v2533 = vpack.c.b16 %v2510, %v2509
        %v2534 = vpack.c.b16 %v2512, %v2511
        %v2535 = vpack.c.b16 %v2514, %v2513
        %v2536 = vpack.c.b16 %v2516, %v2515
        %v2537 = vpack.c.b16 %v2518, %v2517
        %v2538 = vpack.c.b16 %v2520, %v2519
        %v2539 = vpack.c.b16 %v2522, %v2521
        %v2540 = vpack.c.b16 %v2524, %v2523
        %v2573 = vunpack.c.l.b16 %v2477
        %v2574 = vunpack.c.l.b16 %v2478
        %v2575 = vunpack.c.l.b16 %v2479
        %v2576 = vunpack.c.l.b16 %v2480
        %v2577 = vunpack.c.l.b16 %v2481
        %v2578 = vunpack.c.l.b16 %v2482
        %v2579 = vunpack.c.l.b16 %v2483
        %v2580 = vunpack.c.l.b16 %v2484
        %v2581 = vunpack.c.l.b16 %v2485
        %v2582 = vunpack.c.l.b16 %v2486
        %v2583 = vunpack.c.l.b16 %v2487
        %v2584 = vunpack.c.l.b16 %v2488
        %v2585 = vunpack.c.l.b16 %v2489
        %v2586 = vunpack.c.l.b16 %v2490
        %v2587 = vunpack.c.l.b16 %v2491
        %v2588 = vunpack.c.l.b16 %v2492
        %v2589 = vpack.c.b16 %v2574, %v2573
        %v2590 = vpack.c.b16 %v2576, %v2575
        %v2591 = vpack.c.b16 %v2578, %v2577
        %v2592 = vpack.c.b16 %v2580, %v2579
        %v2593 = vpack.c.b16 %v2582, %v2581
        %v2594 = vpack.c.b16 %v2584, %v2583
        %v2595 = vpack.c.b16 %v2586, %v2585
        %v2596 = vpack.c.b16 %v2588, %v2587
        %2605 = vmatprep.subr.bf16.mxu0 0
        %2606 = vmatpush1.bf16.msra.mxu0 %v2589
        %2607 = vmatprep.subr.bf16.mxu0 0
        %2608 = vmatpush1.bf16.msra.mxu0 %v2590
        %2609 = vmatprep.subr.bf16.mxu0 0
        %2610 = vmatpush1.bf16.msra.mxu0 %v2591
        %2611 = vmatprep.subr.bf16.mxu0 0
        %2612 = vmatpush1.bf16.msra.mxu0 %v2592
        %2613 = vmatprep.subr.bf16.mxu0 0
        %2614 = vmatpush1.bf16.msra.mxu0 %v2593
        %2615 = vmatprep.subr.bf16.mxu0 0
        %2616 = vmatpush1.bf16.msra.mxu0 %v2594
        %2617 = vmatprep.subr.bf16.mxu0 0
        %2618 = vmatpush1.bf16.msra.mxu0 %v2595
        %2619 = vmatprep.subr.bf16.mxu0 0
        %2620 = vmatpush1.bf16.msra.mxu0 %v2596
        %2621 = vmatprep.subr.bf16.mxu0 0
        %2622 = vmatpush1.bf16.msra.mxu0 0
        %2623 = vmatprep.subr.bf16.mxu0 0
        %2624 = vmatpush1.bf16.msra.mxu0 0
        %2625 = vmatprep.subr.bf16.mxu0 0
        %2626 = vmatpush1.bf16.msra.mxu0 0
        %2627 = vmatprep.subr.bf16.mxu0 0
        %2628 = vmatpush1.bf16.msra.mxu0 0
        %2629 = vmatprep.subr.bf16.mxu0 0
        %2630 = vmatpush1.bf16.msra.mxu0 0
        %2631 = vmatprep.subr.bf16.mxu0 0
        %2632 = vmatpush1.bf16.msra.mxu0 0
        %2633 = vmatprep.subr.bf16.mxu0 0
        %2634 = vmatpush1.bf16.msra.mxu0 0
        %2635 = vmatprep.subr.bf16.mxu0 0
        %2636 = vmatpush1.bf16.msra.mxu0 0
        %2637 = vmatprep.mubr.bf16.mxu0 0
        %2638 = vmatmul.mubr.bf16.gmra.mrb[0].mxu0 %v2525
        %v2639 = vpop.f32.mrb[0].mxu0
        %v2640 = vadd.f32 0.0, %v2639
        %v2641 = vpop.f32.mrb[0].mxu0
        %v2642 = vpop.f32.mrb[0].mxu0
        %v2643 = vadd.f32 0.0, %v2642
        %v2644 = vpop.f32.mrb[0].mxu0
        %2645 = vmatprep.mubr.bf16.mxu0 0
        %2646 = vmatmul.mubr.bf16.gmra.mrb[0].mxu0 %v2526
        %v2647 = vpop.f32.mrb[0].mxu0
        %v2648 = vadd.f32 0.0, %v2647
        %v2649 = vpop.f32.mrb[0].mxu0
        %v2650 = vpop.f32.mrb[0].mxu0
        %v2651 = vadd.f32 0.0, %v2650
        %v2652 = vpop.f32.mrb[0].mxu0
        %2653 = vmatprep.mubr.bf16.mxu0 0
        %2654 = vmatmul.mubr.bf16.gmra.mrb[0].mxu0 %v2527
        %v2655 = vpop.f32.mrb[0].mxu0
        %v2656 = vadd.f32 0.0, %v2655
        %v2657 = vpop.f32.mrb[0].mxu0
        %v2658 = vpop.f32.mrb[0].mxu0
        %v2659 = vadd.f32 0.0, %v2658
        %v2660 = vpop.f32.mrb[0].mxu0
        %2661 = vmatprep.mubr.bf16.mxu0 0
        %2662 = vmatmul.mubr.bf16.gmra.mrb[0].mxu0 %v2528
        %v2663 = vpop.f32.mrb[0].mxu0
        %v2664 = vadd.f32 0.0, %v2663
        %v2665 = vpop.f32.mrb[0].mxu0
        %v2666 = vpop.f32.mrb[0].mxu0
        %v2667 = vadd.f32 0.0, %v2666
        %v2668 = vpop.f32.mrb[0].mxu0
        %2669 = vmatprep.mubr.bf16.mxu0 0
        %2670 = vmatmul.mubr.bf16.gmra.mrb[0].mxu0 %v2529
        %v2671 = vpop.f32.mrb[0].mxu0
        %v2672 = vadd.f32 0.0, %v2671
        %v2673 = vpop.f32.mrb[0].mxu0
        %v2674 = vpop.f32.mrb[0].mxu0
        %v2675 = vadd.f32 0.0, %v2674
        %v2676 = vpop.f32.mrb[0].mxu0
        %2677 = vmatprep.mubr.bf16.mxu0 0
        %2678 = vmatmul.mubr.bf16.gmra.mrb[0].mxu0 %v2530
        %v2679 = vpop.f32.mrb[0].mxu0
        %v2680 = vadd.f32 0.0, %v2679
        %v2681 = vpop.f32.mrb[0].mxu0
        %v2682 = vpop.f32.mrb[0].mxu0
        %v2683 = vadd.f32 0.0, %v2682
        %v2684 = vpop.f32.mrb[0].mxu0
        %2685 = vmatprep.mubr.bf16.mxu0 0
        %2686 = vmatmul.mubr.bf16.gmra.mrb[0].mxu0 %v2531
        %v2687 = vpop.f32.mrb[0].mxu0
        %v2688 = vadd.f32 0.0, %v2687
        %v2689 = vpop.f32.mrb[0].mxu0
        %v2690 = vpop.f32.mrb[0].mxu0
        %v2691 = vadd.f32 0.0, %v2690
        %v2692 = vpop.f32.mrb[0].mxu0
        %2693 = vmatprep.mubr.bf16.mxu0 0
        %2694 = vmatmul.mubr.bf16.gmra.mrb[0].mxu0 %v2532
        %v2695 = vpop.f32.mrb[0].mxu0
        %v2696 = vadd.f32 0.0, %v2695
        %v2697 = vpop.f32.mrb[0].mxu0
        %v2698 = vpop.f32.mrb[0].mxu0
        %v2699 = vadd.f32 0.0, %v2698
        %v2700 = vpop.f32.mrb[0].mxu0
        %2701 = vmatprep.mubr.bf16.mxu0 0
        %2702 = vmatmul.mubr.bf16.gmra.mrb[0].mxu0 %v2533
        %v2703 = vpop.f32.mrb[0].mxu0
        %v2704 = vadd.f32 0.0, %v2703
        %v2705 = vpop.f32.mrb[0].mxu0
        %v2706 = vpop.f32.mrb[0].mxu0
        %v2707 = vadd.f32 0.0, %v2706
        %v2708 = vpop.f32.mrb[0].mxu0
        %2709 = vmatprep.mubr.bf16.mxu0 0
        %2710 = vmatmul.mubr.bf16.gmra.mrb[0].mxu0 %v2534
        %v2711 = vpop.f32.mrb[0].mxu0
        %v2712 = vadd.f32 0.0, %v2711
        %v2713 = vpop.f32.mrb[0].mxu0
        %v2714 = vpop.f32.mrb[0].mxu0
        %v2715 = vadd.f32 0.0, %v2714
        %v2716 = vpop.f32.mrb[0].mxu0
        %2717 = vmatprep.mubr.bf16.mxu0 0
        %2718 = vmatmul.mubr.bf16.gmra.mrb[0].mxu0 %v2535
        %v2719 = vpop.f32.mrb[0].mxu0
        %v2720 = vadd.f32 0.0, %v2719
        %v2721 = vpop.f32.mrb[0].mxu0
        %v2722 = vpop.f32.mrb[0].mxu0
        %v2723 = vadd.f32 0.0, %v2722
        %v2724 = vpop.f32.mrb[0].mxu0
        %2725 = vmatprep.mubr.bf16.mxu0 0
        %2726 = vmatmul.mubr.bf16.gmra.mrb[0].mxu0 %v2536
        %v2727 = vpop.f32.mrb[0].mxu0
        %v2728 = vadd.f32 0.0, %v2727
        %v2729 = vpop.f32.mrb[0].mxu0
        %v2730 = vpop.f32.mrb[0].mxu0
        %v2731 = vadd.f32 0.0, %v2730
        %v2732 = vpop.f32.mrb[0].mxu0
        %2733 = vmatprep.mubr.bf16.mxu0 0
        %2734 = vmatmul.mubr.bf16.gmra.mrb[0].mxu0 %v2537
        %v2735 = vpop.f32.mrb[0].mxu0
        %v2736 = vadd.f32 0.0, %v2735
        %v2737 = vpop.f32.mrb[0].mxu0
        %v2738 = vpop.f32.mrb[0].mxu0
        %v2739 = vadd.f32 0.0, %v2738
        %v2740 = vpop.f32.mrb[0].mxu0
        %2741 = vmatprep.mubr.bf16.mxu0 0
        %2742 = vmatmul.mubr.bf16.gmra.mrb[0].mxu0 %v2538
        %v2743 = vpop.f32.mrb[0].mxu0
        %v2744 = vadd.f32 0.0, %v2743
        %v2745 = vpop.f32.mrb[0].mxu0
        %v2746 = vpop.f32.mrb[0].mxu0
        %v2747 = vadd.f32 0.0, %v2746
        %v2748 = vpop.f32.mrb[0].mxu0
        %2749 = vmatprep.mubr.bf16.mxu0 0
        %2750 = vmatmul.mubr.bf16.gmra.mrb[0].mxu0 %v2539
        %v2751 = vpop.f32.mrb[0].mxu0
        %v2752 = vadd.f32 0.0, %v2751
        %v2753 = vpop.f32.mrb[0].mxu0
        %v2754 = vpop.f32.mrb[0].mxu0
        %v2755 = vadd.f32 0.0, %v2754
        %v2756 = vpop.f32.mrb[0].mxu0
        %2757 = vmatprep.mubr.bf16.mxu0 0
        %2758 = vmatmul.mubr.bf16.gmra.mrb[0].mxu0 %v2540
        %v2759 = vpop.f32.mrb[0].mxu0
        %v2760 = vadd.f32 0.0, %v2759
        %v2761 = vpop.f32.mrb[0].mxu0
        %v2762 = vpop.f32.mrb[0].mxu0
        %v2763 = vadd.f32 0.0, %v2762
        %v2764 = vpop.f32.mrb[0].mxu0
        %2765 = vdwg.mxu0
        %v2798 = vunpack.c.l.b16 %v2026
        %v2799 = vunpack.c.l.b16 %v2027
        %v2800 = vunpack.c.l.b16 %v2028
        %v2801 = vunpack.c.l.b16 %v2029
        %v2802 = vunpack.c.l.b16 %v2030
        %v2803 = vunpack.c.l.b16 %v2031
        %v2804 = vunpack.c.l.b16 %v2032
        %v2805 = vunpack.c.l.b16 %v2033
        %v2806 = vunpack.c.l.b16 %v2034
        %v2807 = vunpack.c.l.b16 %v2035
        %v2808 = vunpack.c.l.b16 %v2036
        %v2809 = vunpack.c.l.b16 %v2037
        %v2810 = vunpack.c.l.b16 %v2038
        %v2811 = vunpack.c.l.b16 %v2039
        %v2812 = vunpack.c.l.b16 %v2040
        %v2813 = vunpack.c.l.b16 %v2041
        %v2814 = vunpack.c.l.b16 %v2042
        %v2815 = vunpack.c.l.b16 %v2043
        %v2816 = vunpack.c.l.b16 %v2044
        %v2817 = vunpack.c.l.b16 %v2045
        %v2818 = vunpack.c.l.b16 %v2046
        %v2819 = vunpack.c.l.b16 %v2047
        %v2820 = vunpack.c.l.b16 %v2048
        %v2821 = vunpack.c.l.b16 %v2049
        %v2822 = vunpack.c.l.b16 %v2050
        %v2823 = vunpack.c.l.b16 %v2051
        %v2824 = vunpack.c.l.b16 %v2052
        %v2825 = vunpack.c.l.b16 %v2053
        %v2826 = vunpack.c.l.b16 %v2054
        %v2827 = vunpack.c.l.b16 %v2055
        %v2828 = vunpack.c.l.b16 %v2056
        %v2829 = vunpack.c.l.b16 %v2057
        %v2830 = vpack.c.b16 %v2799, %v2798
        %v2831 = vpack.c.b16 %v2801, %v2800
        %v2832 = vpack.c.b16 %v2803, %v2802
        %v2833 = vpack.c.b16 %v2805, %v2804
        %v2834 = vpack.c.b16 %v2807, %v2806
        %v2835 = vpack.c.b16 %v2809, %v2808
        %v2836 = vpack.c.b16 %v2811, %v2810
        %v2837 = vpack.c.b16 %v2813, %v2812
        %v2838 = vpack.c.b16 %v2815, %v2814
        %v2839 = vpack.c.b16 %v2817, %v2816
        %v2840 = vpack.c.b16 %v2819, %v2818
        %v2841 = vpack.c.b16 %v2821, %v2820
        %v2842 = vpack.c.b16 %v2823, %v2822
        %v2843 = vpack.c.b16 %v2825, %v2824
        %v2844 = vpack.c.b16 %v2827, %v2826
        %v2845 = vpack.c.b16 %v2829, %v2828
        %v2878 = vunpack.c.l.b16 %v2058
        %v2879 = vunpack.c.l.b16 %v2059
        %v2880 = vunpack.c.l.b16 %v2060
        %v2881 = vunpack.c.l.b16 %v2061
        %v2882 = vunpack.c.l.b16 %v2062
        %v2883 = vunpack.c.l.b16 %v2063
        %v2884 = vunpack.c.l.b16 %v2064
        %v2885 = vunpack.c.l.b16 %v2065
        %v2886 = vunpack.c.l.b16 %v2066
        %v2887 = vunpack.c.l.b16 %v2067
        %v2888 = vunpack.c.l.b16 %v2068
        %v2889 = vunpack.c.l.b16 %v2069
        %v2890 = vunpack.c.l.b16 %v2070
        %v2891 = vunpack.c.l.b16 %v2071
        %v2892 = vunpack.c.l.b16 %v2072
        %v2893 = vunpack.c.l.b16 %v2073
        %v2894 = vpack.c.b16 %v2879, %v2878
        %v2895 = vpack.c.b16 %v2881, %v2880
        %v2896 = vpack.c.b16 %v2883, %v2882
        %v2897 = vpack.c.b16 %v2885, %v2884
        %v2898 = vpack.c.b16 %v2887, %v2886
        %v2899 = vpack.c.b16 %v2889, %v2888
        %v2900 = vpack.c.b16 %v2891, %v2890
        %v2901 = vpack.c.b16 %v2893, %v2892
        %2910 = vmatprep.subr.bf16.mxu0 0
        %2911 = vmatpush1.bf16.msra.mxu0 %v2894
        %2912 = vmatprep.subr.bf16.mxu0 0
        %2913 = vmatpush1.bf16.msra.mxu0 %v2895
        %2914 = vmatprep.subr.bf16.mxu0 0
        %2915 = vmatpush1.bf16.msra.mxu0 %v2896
        %2916 = vmatprep.subr.bf16.mxu0 0
        %2917 = vmatpush1.bf16.msra.mxu0 %v2897
        %2918 = vmatprep.subr.bf16.mxu0 0
        %2919 = vmatpush1.bf16.msra.mxu0 %v2898
        %2920 = vmatprep.subr.bf16.mxu0 0
        %2921 = vmatpush1.bf16.msra.mxu0 %v2899
        %2922 = vmatprep.subr.bf16.mxu0 0
        %2923 = vmatpush1.bf16.msra.mxu0 %v2900
        %2924 = vmatprep.subr.bf16.mxu0 0
        %2925 = vmatpush1.bf16.msra.mxu0 %v2901
        %2926 = vmatprep.subr.bf16.mxu0 0
        %2927 = vmatpush1.bf16.msra.mxu0 0
        %2928 = vmatprep.subr.bf16.mxu0 0
        %2929 = vmatpush1.bf16.msra.mxu0 0
        %2930 = vmatprep.subr.bf16.mxu0 0
        %2931 = vmatpush1.bf16.msra.mxu0 0
        %2932 = vmatprep.subr.bf16.mxu0 0
        %2933 = vmatpush1.bf16.msra.mxu0 0
        %2934 = vmatprep.subr.bf16.mxu0 0
        %2935 = vmatpush1.bf16.msra.mxu0 0
        %2936 = vmatprep.subr.bf16.mxu0 0
        %2937 = vmatpush1.bf16.msra.mxu0 0
        %2938 = vmatprep.subr.bf16.mxu0 0
        %2939 = vmatpush1.bf16.msra.mxu0 0
        %2940 = vmatprep.subr.bf16.mxu0 0
        %2941 = vmatpush1.bf16.msra.mxu0 0
        %2942 = vmatprep.mubr.bf16.mxu0 0
        %2943 = vmatmul.mubr.bf16.gmra.mrb[0].mxu0 %v2830
        %v2944 = vpop.f32.mrb[0].mxu0
        %v2945 = vadd.f32 %v2640, %v2944
        %v2946 = vpop.f32.mrb[0].mxu0
        %v2947 = vpop.f32.mrb[0].mxu0
        %v2948 = vadd.f32 %v2643, %v2947
        %v2949 = vpop.f32.mrb[0].mxu0
        %2950 = vmatprep.mubr.bf16.mxu0 0
        %2951 = vmatmul.mubr.bf16.gmra.mrb[0].mxu0 %v2831
        %v2952 = vpop.f32.mrb[0].mxu0
        %v2953 = vadd.f32 %v2648, %v2952
        %v2954 = vpop.f32.mrb[0].mxu0
        %v2955 = vpop.f32.mrb[0].mxu0
        %v2956 = vadd.f32 %v2651, %v2955
        %v2957 = vpop.f32.mrb[0].mxu0
        %2958 = vmatprep.mubr.bf16.mxu0 0
        %2959 = vmatmul.mubr.bf16.gmra.mrb[0].mxu0 %v2832
        %v2960 = vpop.f32.mrb[0].mxu0
        %v2961 = vadd.f32 %v2656, %v2960
        %v2962 = vpop.f32.mrb[0].mxu0
        %v2963 = vpop.f32.mrb[0].mxu0
        %v2964 = vadd.f32 %v2659, %v2963
        %v2965 = vpop.f32.mrb[0].mxu0
        %2966 = vmatprep.mubr.bf16.mxu0 0
        %2967 = vmatmul.mubr.bf16.gmra.mrb[0].mxu0 %v2833
        %v2968 = vpop.f32.mrb[0].mxu0
        %v2969 = vadd.f32 %v2664, %v2968
        %v2970 = vpop.f32.mrb[0].mxu0
        %v2971 = vpop.f32.mrb[0].mxu0
        %v2972 = vadd.f32 %v2667, %v2971
        %v2973 = vpop.f32.mrb[0].mxu0
        %2974 = vmatprep.mubr.bf16.mxu0 0
        %2975 = vmatmul.mubr.bf16.gmra.mrb[0].mxu0 %v2834
        %v2976 = vpop.f32.mrb[0].mxu0
        %v2977 = vadd.f32 %v2672, %v2976
        %v2978 = vpop.f32.mrb[0].mxu0
        %v2979 = vpop.f32.mrb[0].mxu0
        %v2980 = vadd.f32 %v2675, %v2979
        %v2981 = vpop.f32.mrb[0].mxu0
        %2982 = vmatprep.mubr.bf16.mxu0 0
        %2983 = vmatmul.mubr.bf16.gmra.mrb[0].mxu0 %v2835
        %v2984 = vpop.f32.mrb[0].mxu0
        %v2985 = vadd.f32 %v2680, %v2984
        %v2986 = vpop.f32.mrb[0].mxu0
        %v2987 = vpop.f32.mrb[0].mxu0
        %v2988 = vadd.f32 %v2683, %v2987
        %v2989 = vpop.f32.mrb[0].mxu0
        %2990 = vmatprep.mubr.bf16.mxu0 0
        %2991 = vmatmul.mubr.bf16.gmra.mrb[0].mxu0 %v2836
        %v2992 = vpop.f32.mrb[0].mxu0
        %v2993 = vadd.f32 %v2688, %v2992
        %v2994 = vpop.f32.mrb[0].mxu0
        %v2995 = vpop.f32.mrb[0].mxu0
        %v2996 = vadd.f32 %v2691, %v2995
        %v2997 = vpop.f32.mrb[0].mxu0
        %2998 = vmatprep.mubr.bf16.mxu0 0
        %2999 = vmatmul.mubr.bf16.gmra.mrb[0].mxu0 %v2837
        %v3000 = vpop.f32.mrb[0].mxu0
        %v3001 = vadd.f32 %v2696, %v3000
        %v3002 = vpop.f32.mrb[0].mxu0
        %v3003 = vpop.f32.mrb[0].mxu0
        %v3004 = vadd.f32 %v2699, %v3003
        %v3005 = vpop.f32.mrb[0].mxu0
        %3006 = vmatprep.mubr.bf16.mxu0 0
        %3007 = vmatmul.mubr.bf16.gmra.mrb[0].mxu0 %v2838
        %v3008 = vpop.f32.mrb[0].mxu0
        %v3009 = vadd.f32 %v2704, %v3008
        %v3010 = vpop.f32.mrb[0].mxu0
        %v3011 = vpop.f32.mrb[0].mxu0
        %v3012 = vadd.f32 %v2707, %v3011
        %v3013 = vpop.f32.mrb[0].mxu0
        %3014 = vmatprep.mubr.bf16.mxu0 0
        %3015 = vmatmul.mubr.bf16.gmra.mrb[0].mxu0 %v2839
        %v3016 = vpop.f32.mrb[0].mxu0
        %v3017 = vadd.f32 %v2712, %v3016
        %v3018 = vpop.f32.mrb[0].mxu0
        %v3019 = vpop.f32.mrb[0].mxu0
        %v3020 = vadd.f32 %v2715, %v3019
        %v3021 = vpop.f32.mrb[0].mxu0
        %3022 = vmatprep.mubr.bf16.mxu0 0
        %3023 = vmatmul.mubr.bf16.gmra.mrb[0].mxu0 %v2840
        %v3024 = vpop.f32.mrb[0].mxu0
        %v3025 = vadd.f32 %v2720, %v3024
        %v3026 = vpop.f32.mrb[0].mxu0
        %v3027 = vpop.f32.mrb[0].mxu0
        %v3028 = vadd.f32 %v2723, %v3027
        %v3029 = vpop.f32.mrb[0].mxu0
        %3030 = vmatprep.mubr.bf16.mxu0 0
        %3031 = vmatmul.mubr.bf16.gmra.mrb[0].mxu0 %v2841
        %v3032 = vpop.f32.mrb[0].mxu0
        %v3033 = vadd.f32 %v2728, %v3032
        %v3034 = vpop.f32.mrb[0].mxu0
        %v3035 = vpop.f32.mrb[0].mxu0
        %v3036 = vadd.f32 %v2731, %v3035
        %v3037 = vpop.f32.mrb[0].mxu0
        %3038 = vmatprep.mubr.bf16.mxu0 0
        %3039 = vmatmul.mubr.bf16.gmra.mrb[0].mxu0 %v2842
        %v3040 = vpop.f32.mrb[0].mxu0
        %v3041 = vadd.f32 %v2736, %v3040
        %v3042 = vpop.f32.mrb[0].mxu0
        %v3043 = vpop.f32.mrb[0].mxu0
        %v3044 = vadd.f32 %v2739, %v3043
        %v3045 = vpop.f32.mrb[0].mxu0
        %3046 = vmatprep.mubr.bf16.mxu0 0
        %3047 = vmatmul.mubr.bf16.gmra.mrb[0].mxu0 %v2843
        %v3048 = vpop.f32.mrb[0].mxu0
        %v3049 = vadd.f32 %v2744, %v3048
        %v3050 = vpop.f32.mrb[0].mxu0
        %v3051 = vpop.f32.mrb[0].mxu0
        %v3052 = vadd.f32 %v2747, %v3051
        %v3053 = vpop.f32.mrb[0].mxu0
        %3054 = vmatprep.mubr.bf16.mxu0 0
        %3055 = vmatmul.mubr.bf16.gmra.mrb[0].mxu0 %v2844
        %v3056 = vpop.f32.mrb[0].mxu0
        %v3057 = vadd.f32 %v2752, %v3056
        %v3058 = vpop.f32.mrb[0].mxu0
        %v3059 = vpop.f32.mrb[0].mxu0
        %v3060 = vadd.f32 %v2755, %v3059
        %v3061 = vpop.f32.mrb[0].mxu0
        %3062 = vmatprep.mubr.bf16.mxu0 0
        %3063 = vmatmul.mubr.bf16.gmra.mrb[0].mxu0 %v2845
        %v3064 = vpop.f32.mrb[0].mxu0
        %v3065 = vadd.f32 %v2760, %v3064
        %v3066 = vpop.f32.mrb[0].mxu0
        %v3067 = vpop.f32.mrb[0].mxu0
        %v3068 = vadd.f32 %v2763, %v3067
        %v3069 = vpop.f32.mrb[0].mxu0
        %3070 = vdwg.mxu0
        %v3071 = vld [vmem:[#allocation2] sm:$0xe]
        %v3072 = vld [vmem:[#allocation2 + $0xc] sm:$0xe]
        %v3073 = vld [vmem:[#allocation2 + $0x18] sm:$0xe]
        %v3074 = vld [vmem:[#allocation2 + $0x24] sm:$0xe]
        %v3075 = vld [vmem:[#allocation2 + $0x30] sm:$0xe]
        %v3076 = vld [vmem:[#allocation2 + $0x3c] sm:$0xe]
        %v3077 = vld [vmem:[#allocation2 + $0x48] sm:$0xe]
        %v3078 = vld [vmem:[#allocation2 + $0x54] sm:$0xe]
        %v3079 = vld [vmem:[#allocation2 + $0x60] sm:$0xe]
        %v3080 = vld [vmem:[#allocation2 + $0x6c] sm:$0xe]
        %v3081 = vld [vmem:[#allocation2 + $0x78] sm:$0xe]
        %v3082 = vld [vmem:[#allocation2 + $0x84] sm:$0xe]
        %v3083 = vld [vmem:[#allocation2 + $0x90] sm:$0xe]
        %v3084 = vld [vmem:[#allocation2 + $0x9c] sm:$0xe]
        %v3085 = vld [vmem:[#allocation2 + $0xa8] sm:$0xe]
        %v3086 = vld [vmem:[#allocation2 + $0xb4] sm:$0xe]
        %vm3119 = vcmask 1042432
        %vm3120 = vcmask 1046532
        %vm3121 = vmor %vm3119, %vm3120
        %v3122 = vrot.slane %v3071, 5
        %v3123 = vrot.slane %v3122, 4
        %v3124 = vrot.slane %v2027, 5
        %v3125 = vsel %vm3121, %v3123, %v3124
        %v3126 = vrot.slane %v3124, 4
        %v3127 = vrot.slane %v2074, 5
        %v3128 = vsel %vm3121, %v3126, %v3127
        %v3129 = vrot.slane %v3072, 5
        %v3130 = vrot.slane %v3129, 4
        %v3131 = vrot.slane %v2029, 5
        %v3132 = vsel %vm3121, %v3130, %v3131
        %v3133 = vrot.slane %v3131, 4
        %v3134 = vrot.slane %v2075, 5
        %v3135 = vsel %vm3121, %v3133, %v3134
        %v3136 = vrot.slane %v3073, 5
        %v3137 = vrot.slane %v3136, 4
        %v3138 = vrot.slane %v2031, 5
        %v3139 = vsel %vm3121, %v3137, %v3138
        %v3140 = vrot.slane %v3138, 4
        %v3141 = vrot.slane %v2076, 5
        %v3142 = vsel %vm3121, %v3140, %v3141
        %v3143 = vrot.slane %v3074, 5
        %v3144 = vrot.slane %v3143, 4
        %v3145 = vrot.slane %v2033, 5
        %v3146 = vsel %vm3121, %v3144, %v3145
        %v3147 = vrot.slane %v3145, 4
        %v3148 = vrot.slane %v2077, 5
        %v3149 = vsel %vm3121, %v3147, %v3148
        %v3150 = vrot.slane %v3075, 5
        %v3151 = vrot.slane %v3150, 4
        %v3152 = vrot.slane %v2035, 5
        %v3153 = vsel %vm3121, %v3151, %v3152
        %v3154 = vrot.slane %v3152, 4
        %v3155 = vrot.slane %v2078, 5
        %v3156 = vsel %vm3121, %v3154, %v3155
        %v3157 = vrot.slane %v3076, 5
        %v3158 = vrot.slane %v3157, 4
        %v3159 = vrot.slane %v2037, 5
        %v3160 = vsel %vm3121, %v3158, %v3159
        %v3161 = vrot.slane %v3159, 4
        %v3162 = vrot.slane %v2079, 5
        %v3163 = vsel %vm3121, %v3161, %v3162
        %v3164 = vrot.slane %v3077, 5
        %v3165 = vrot.slane %v3164, 4
        %v3166 = vrot.slane %v2039, 5
        %v3167 = vsel %vm3121, %v3165, %v3166
        %v3168 = vrot.slane %v3166, 4
        %v3169 = vrot.slane %v2080, 5
        %v3170 = vsel %vm3121, %v3168, %v3169
        %v3171 = vrot.slane %v3078, 5
        %v3172 = vrot.slane %v3171, 4
        %v3173 = vrot.slane %v2041, 5
        %v3174 = vsel %vm3121, %v3172, %v3173
        %v3175 = vrot.slane %v3173, 4
        %v3176 = vrot.slane %v2081, 5
        %v3177 = vsel %vm3121, %v3175, %v3176
        %v3178 = vrot.slane %v3079, 5
        %v3179 = vrot.slane %v3178, 4
        %v3180 = vrot.slane %v2043, 5
        %v3181 = vsel %vm3121, %v3179, %v3180
        %v3182 = vrot.slane %v3180, 4
        %v3183 = vrot.slane %v2082, 5
        %v3184 = vsel %vm3121, %v3182, %v3183
        %v3185 = vrot.slane %v3080, 5
        %v3186 = vrot.slane %v3185, 4
        %v3187 = vrot.slane %v2045, 5
        %v3188 = vsel %vm3121, %v3186, %v3187
        %v3189 = vrot.slane %v3187, 4
        %v3190 = vrot.slane %v2083, 5
        %v3191 = vsel %vm3121, %v3189, %v3190
        %v3192 = vrot.slane %v3081, 5
        %v3193 = vrot.slane %v3192, 4
        %v3194 = vrot.slane %v2047, 5
        %v3195 = vsel %vm3121, %v3193, %v3194
        %v3196 = vrot.slane %v3194, 4
        %v3197 = vrot.slane %v2084, 5
        %v3198 = vsel %vm3121, %v3196, %v3197
        %v3199 = vrot.slane %v3082, 5
        %v3200 = vrot.slane %v3199, 4
        %v3201 = vrot.slane %v2049, 5
        %v3202 = vsel %vm3121, %v3200, %v3201
        %v3203 = vrot.slane %v3201, 4
        %v3204 = vrot.slane %v2085, 5
        %v3205 = vsel %vm3121, %v3203, %v3204
        %v3206 = vrot.slane %v3083, 5
        %v3207 = vrot.slane %v3206, 4
        %v3208 = vrot.slane %v2051, 5
        %v3209 = vsel %vm3121, %v3207, %v3208
        %v3210 = vrot.slane %v3208, 4
        %v3211 = vrot.slane %v2086, 5
        %v3212 = vsel %vm3121, %v3210, %v3211
        %v3213 = vrot.slane %v3084, 5
        %v3214 = vrot.slane %v3213, 4
        %v3215 = vrot.slane %v2053, 5
        %v3216 = vsel %vm3121, %v3214, %v3215
        %v3217 = vrot.slane %v3215, 4
        %v3218 = vrot.slane %v2087, 5
        %v3219 = vsel %vm3121, %v3217, %v3218
        %v3220 = vrot.slane %v3085, 5
        %v3221 = vrot.slane %v3220, 4
        %v3222 = vrot.slane %v2055, 5
        %v3223 = vsel %vm3121, %v3221, %v3222
        %v3224 = vrot.slane %v3222, 4
        %v3225 = vrot.slane %v2088, 5
        %v3226 = vsel %vm3121, %v3224, %v3225
        %v3227 = vrot.slane %v3086, 5
        %v3228 = vrot.slane %v3227, 4
        %v3229 = vrot.slane %v2057, 5
        %v3230 = vsel %vm3121, %v3228, %v3229
        %v3231 = vrot.slane %v3229, 4
        %v3232 = vrot.slane %v2089, 5
        %v3233 = vsel %vm3121, %v3231, %v3232
        %v3234 = vld [vmem:[#allocation9 + $0x80] sm:$0xf]
        %v3235 = vld [vmem:[#allocation9 + $0x84] sm:$0xf]
        %v3236 = vld [vmem:[#allocation9 + $0x88] sm:$0xf]
        %v3237 = vld [vmem:[#allocation9 + $0x8c] sm:$0xf]
        %v3238 = vld [vmem:[#allocation9 + $0x90] sm:$0xf]
        %v3239 = vld [vmem:[#allocation9 + $0x94] sm:$0xf]
        %v3240 = vld [vmem:[#allocation9 + $0x98] sm:$0xf]
        %v3241 = vld [vmem:[#allocation9 + $0x9c] sm:$0xf]
        %v3242 = vld [vmem:[#allocation9 + $0xa0] sm:$0xf]
        %v3243 = vld [vmem:[#allocation9 + $0xa4] sm:$0xf]
        %v3244 = vld [vmem:[#allocation9 + $0xa8] sm:$0xf]
        %v3245 = vld [vmem:[#allocation9 + $0xac] sm:$0xf]
        %v3246 = vld [vmem:[#allocation9 + $0xb0] sm:$0xf]
        %v3247 = vld [vmem:[#allocation9 + $0xb4] sm:$0xf]
        %v3248 = vld [vmem:[#allocation9 + $0xb8] sm:$0xf]
        %v3249 = vld [vmem:[#allocation9 + $0xbc] sm:$0xf]
        %v3250 = vunpack.c.l.b16 %v3125
        %v3251 = vunpack.c.l.b16 %v3128
        %v3252 = vunpack.c.l.b16 %v3132
        %v3253 = vunpack.c.l.b16 %v3135
        %v3254 = vunpack.c.l.b16 %v3139
        %v3255 = vunpack.c.l.b16 %v3142
        %v3256 = vunpack.c.l.b16 %v3146
        %v3257 = vunpack.c.l.b16 %v3149
        %v3258 = vunpack.c.l.b16 %v3153
        %v3259 = vunpack.c.l.b16 %v3156
        %v3260 = vunpack.c.l.b16 %v3160
        %v3261 = vunpack.c.l.b16 %v3163
        %v3262 = vunpack.c.l.b16 %v3167
        %v3263 = vunpack.c.l.b16 %v3170
        %v3264 = vunpack.c.l.b16 %v3174
        %v3265 = vunpack.c.l.b16 %v3177
        %v3266 = vunpack.c.l.b16 %v3181
        %v3267 = vunpack.c.l.b16 %v3184
        %v3268 = vunpack.c.l.b16 %v3188
        %v3269 = vunpack.c.l.b16 %v3191
        %v3270 = vunpack.c.l.b16 %v3195
        %v3271 = vunpack.c.l.b16 %v3198
        %v3272 = vunpack.c.l.b16 %v3202
        %v3273 = vunpack.c.l.b16 %v3205
        %v3274 = vunpack.c.l.b16 %v3209
        %v3275 = vunpack.c.l.b16 %v3212
        %v3276 = vunpack.c.l.b16 %v3216
        %v3277 = vunpack.c.l.b16 %v3219
        %v3278 = vunpack.c.l.b16 %v3223
        %v3279 = vunpack.c.l.b16 %v3226
        %v3280 = vunpack.c.l.b16 %v3230
        %v3281 = vunpack.c.l.b16 %v3233
        %v3282 = vpack.c.b16 %v3251, %v3250
        %v3283 = vpack.c.b16 %v3253, %v3252
        %v3284 = vpack.c.b16 %v3255, %v3254
        %v3285 = vpack.c.b16 %v3257, %v3256
        %v3286 = vpack.c.b16 %v3259, %v3258
        %v3287 = vpack.c.b16 %v3261, %v3260
        %v3288 = vpack.c.b16 %v3263, %v3262
        %v3289 = vpack.c.b16 %v3265, %v3264
        %v3290 = vpack.c.b16 %v3267, %v3266
        %v3291 = vpack.c.b16 %v3269, %v3268
        %v3292 = vpack.c.b16 %v3271, %v3270
        %v3293 = vpack.c.b16 %v3273, %v3272
        %v3294 = vpack.c.b16 %v3275, %v3274
        %v3295 = vpack.c.b16 %v3277, %v3276
        %v3296 = vpack.c.b16 %v3279, %v3278
        %v3297 = vpack.c.b16 %v3281, %v3280
        %v3330 = vunpack.c.l.b16 %v3234
        %v3331 = vunpack.c.l.b16 %v3235
        %v3332 = vunpack.c.l.b16 %v3236
        %v3333 = vunpack.c.l.b16 %v3237
        %v3334 = vunpack.c.l.b16 %v3238
        %v3335 = vunpack.c.l.b16 %v3239
        %v3336 = vunpack.c.l.b16 %v3240
        %v3337 = vunpack.c.l.b16 %v3241
        %v3338 = vunpack.c.l.b16 %v3242
        %v3339 = vunpack.c.l.b16 %v3243
        %v3340 = vunpack.c.l.b16 %v3244
        %v3341 = vunpack.c.l.b16 %v3245
        %v3342 = vunpack.c.l.b16 %v3246
        %v3343 = vunpack.c.l.b16 %v3247
        %v3344 = vunpack.c.l.b16 %v3248
        %v3345 = vunpack.c.l.b16 %v3249
        %v3346 = vpack.c.b16 %v3331, %v3330
        %v3347 = vpack.c.b16 %v3333, %v3332
        %v3348 = vpack.c.b16 %v3335, %v3334
        %v3349 = vpack.c.b16 %v3337, %v3336
        %v3350 = vpack.c.b16 %v3339, %v3338
        %v3351 = vpack.c.b16 %v3341, %v3340
        %v3352 = vpack.c.b16 %v3343, %v3342
        %v3353 = vpack.c.b16 %v3345, %v3344
        %3362 = vmatprep.subr.bf16.mxu0 0
        %3363 = vmatpush1.bf16.msra.mxu0 %v3346
        %3364 = vmatprep.subr.bf16.mxu0 0
        %3365 = vmatpush1.bf16.msra.mxu0 %v3347
        %3366 = vmatprep.subr.bf16.mxu0 0
        %3367 = vmatpush1.bf16.msra.mxu0 %v3348
        %3368 = vmatprep.subr.bf16.mxu0 0
        %3369 = vmatpush1.bf16.msra.mxu0 %v3349
        %3370 = vmatprep.subr.bf16.mxu0 0
        %3371 = vmatpush1.bf16.msra.mxu0 %v3350
        %3372 = vmatprep.subr.bf16.mxu0 0
        %3373 = vmatpush1.bf16.msra.mxu0 %v3351
        %3374 = vmatprep.subr.bf16.mxu0 0
        %3375 = vmatpush1.bf16.msra.mxu0 %v3352
        %3376 = vmatprep.subr.bf16.mxu0 0
        %3377 = vmatpush1.bf16.msra.mxu0 %v3353
        %3378 = vmatprep.subr.bf16.mxu0 0
        %3379 = vmatpush1.bf16.msra.mxu0 0
        %3380 = vmatprep.subr.bf16.mxu0 0
        %3381 = vmatpush1.bf16.msra.mxu0 0
        %3382 = vmatprep.subr.bf16.mxu0 0
        %3383 = vmatpush1.bf16.msra.mxu0 0
        %3384 = vmatprep.subr.bf16.mxu0 0
        %3385 = vmatpush1.bf16.msra.mxu0 0
        %3386 = vmatprep.subr.bf16.mxu0 0
        %3387 = vmatpush1.bf16.msra.mxu0 0
        %3388 = vmatprep.subr.bf16.mxu0 0
        %3389 = vmatpush1.bf16.msra.mxu0 0
        %3390 = vmatprep.subr.bf16.mxu0 0
        %3391 = vmatpush1.bf16.msra.mxu0 0
        %3392 = vmatprep.subr.bf16.mxu0 0
        %3393 = vmatpush1.bf16.msra.mxu0 0
        %3394 = vmatprep.mubr.bf16.mxu0 0
        %3395 = vmatmul.mubr.bf16.gmra.mrb[0].mxu0 %v3282
        %v3396 = vpop.f32.mrb[0].mxu0
        %v3397 = vadd.f32 0.0, %v3396
        %v3398 = vpop.f32.mrb[0].mxu0
        %v3399 = vpop.f32.mrb[0].mxu0
        %v3400 = vadd.f32 0.0, %v3399
        %v3401 = vpop.f32.mrb[0].mxu0
        %3402 = vmatprep.mubr.bf16.mxu0 0
        %3403 = vmatmul.mubr.bf16.gmra.mrb[0].mxu0 %v3283
        %v3404 = vpop.f32.mrb[0].mxu0
        %v3405 = vadd.f32 0.0, %v3404
        %v3406 = vpop.f32.mrb[0].mxu0
        %v3407 = vpop.f32.mrb[0].mxu0
        %v3408 = vadd.f32 0.0, %v3407
        %v3409 = vpop.f32.mrb[0].mxu0
        %3410 = vmatprep.mubr.bf16.mxu0 0
        %3411 = vmatmul.mubr.bf16.gmra.mrb[0].mxu0 %v3284
        %v3412 = vpop.f32.mrb[0].mxu0
        %v3413 = vadd.f32 0.0, %v3412
        %v3414 = vpop.f32.mrb[0].mxu0
        %v3415 = vpop.f32.mrb[0].mxu0
        %v3416 = vadd.f32 0.0, %v3415
        %v3417 = vpop.f32.mrb[0].mxu0
        %3418 = vmatprep.mubr.bf16.mxu0 0
        %3419 = vmatmul.mubr.bf16.gmra.mrb[0].mxu0 %v3285
        %v3420 = vpop.f32.mrb[0].mxu0
        %v3421 = vadd.f32 0.0, %v3420
        %v3422 = vpop.f32.mrb[0].mxu0
        %v3423 = vpop.f32.mrb[0].mxu0
        %v3424 = vadd.f32 0.0, %v3423
        %v3425 = vpop.f32.mrb[0].mxu0
        %3426 = vmatprep.mubr.bf16.mxu0 0
        %3427 = vmatmul.mubr.bf16.gmra.mrb[0].mxu0 %v3286
        %v3428 = vpop.f32.mrb[0].mxu0
        %v3429 = vadd.f32 0.0, %v3428
        %v3430 = vpop.f32.mrb[0].mxu0
        %v3431 = vpop.f32.mrb[0].mxu0
        %v3432 = vadd.f32 0.0, %v3431
        %v3433 = vpop.f32.mrb[0].mxu0
        %3434 = vmatprep.mubr.bf16.mxu0 0
        %3435 = vmatmul.mubr.bf16.gmra.mrb[0].mxu0 %v3287
        %v3436 = vpop.f32.mrb[0].mxu0
        %v3437 = vadd.f32 0.0, %v3436
        %v3438 = vpop.f32.mrb[0].mxu0
        %v3439 = vpop.f32.mrb[0].mxu0
        %v3440 = vadd.f32 0.0, %v3439
        %v3441 = vpop.f32.mrb[0].mxu0
        %3442 = vmatprep.mubr.bf16.mxu0 0
        %3443 = vmatmul.mubr.bf16.gmra.mrb[0].mxu0 %v3288
        %v3444 = vpop.f32.mrb[0].mxu0
        %v3445 = vadd.f32 0.0, %v3444
        %v3446 = vpop.f32.mrb[0].mxu0
        %v3447 = vpop.f32.mrb[0].mxu0
        %v3448 = vadd.f32 0.0, %v3447
        %v3449 = vpop.f32.mrb[0].mxu0
        %3450 = vmatprep.mubr.bf16.mxu0 0
        %3451 = vmatmul.mubr.bf16.gmra.mrb[0].mxu0 %v3289
        %v3452 = vpop.f32.mrb[0].mxu0
        %v3453 = vadd.f32 0.0, %v3452
        %v3454 = vpop.f32.mrb[0].mxu0
        %v3455 = vpop.f32.mrb[0].mxu0
        %v3456 = vadd.f32 0.0, %v3455
        %v3457 = vpop.f32.mrb[0].mxu0
        %3458 = vmatprep.mubr.bf16.mxu0 0
        %3459 = vmatmul.mubr.bf16.gmra.mrb[0].mxu0 %v3290
        %v3460 = vpop.f32.mrb[0].mxu0
        %v3461 = vadd.f32 0.0, %v3460
        %v3462 = vpop.f32.mrb[0].mxu0
        %v3463 = vpop.f32.mrb[0].mxu0
        %v3464 = vadd.f32 0.0, %v3463
        %v3465 = vpop.f32.mrb[0].mxu0
        %3466 = vmatprep.mubr.bf16.mxu0 0
        %3467 = vmatmul.mubr.bf16.gmra.mrb[0].mxu0 %v3291
        %v3468 = vpop.f32.mrb[0].mxu0
        %v3469 = vadd.f32 0.0, %v3468
        %v3470 = vpop.f32.mrb[0].mxu0
        %v3471 = vpop.f32.mrb[0].mxu0
        %v3472 = vadd.f32 0.0, %v3471
        %v3473 = vpop.f32.mrb[0].mxu0
        %3474 = vmatprep.mubr.bf16.mxu0 0
        %3475 = vmatmul.mubr.bf16.gmra.mrb[0].mxu0 %v3292
        %v3476 = vpop.f32.mrb[0].mxu0
        %v3477 = vadd.f32 0.0, %v3476
        %v3478 = vpop.f32.mrb[0].mxu0
        %v3479 = vpop.f32.mrb[0].mxu0
        %v3480 = vadd.f32 0.0, %v3479
        %v3481 = vpop.f32.mrb[0].mxu0
        %3482 = vmatprep.mubr.bf16.mxu0 0
        %3483 = vmatmul.mubr.bf16.gmra.mrb[0].mxu0 %v3293
        %v3484 = vpop.f32.mrb[0].mxu0
        %v3485 = vadd.f32 0.0, %v3484
        %v3486 = vpop.f32.mrb[0].mxu0
        %v3487 = vpop.f32.mrb[0].mxu0
        %v3488 = vadd.f32 0.0, %v3487
        %v3489 = vpop.f32.mrb[0].mxu0
        %3490 = vmatprep.mubr.bf16.mxu0 0
        %3491 = vmatmul.mubr.bf16.gmra.mrb[0].mxu0 %v3294
        %v3492 = vpop.f32.mrb[0].mxu0
        %v3493 = vadd.f32 0.0, %v3492
        %v3494 = vpop.f32.mrb[0].mxu0
        %v3495 = vpop.f32.mrb[0].mxu0
        %v3496 = vadd.f32 0.0, %v3495
        %v3497 = vpop.f32.mrb[0].mxu0
        %3498 = vmatprep.mubr.bf16.mxu0 0
        %3499 = vmatmul.mubr.bf16.gmra.mrb[0].mxu0 %v3295
        %v3500 = vpop.f32.mrb[0].mxu0
        %v3501 = vadd.f32 0.0, %v3500
        %v3502 = vpop.f32.mrb[0].mxu0
        %v3503 = vpop.f32.mrb[0].mxu0
        %v3504 = vadd.f32 0.0, %v3503
        %v3505 = vpop.f32.mrb[0].mxu0
        %3506 = vmatprep.mubr.bf16.mxu0 0
        %3507 = vmatmul.mubr.bf16.gmra.mrb[0].mxu0 %v3296
        %v3508 = vpop.f32.mrb[0].mxu0
        %v3509 = vadd.f32 0.0, %v3508
        %v3510 = vpop.f32.mrb[0].mxu0
        %v3511 = vpop.f32.mrb[0].mxu0
        %v3512 = vadd.f32 0.0, %v3511
        %v3513 = vpop.f32.mrb[0].mxu0
        %3514 = vmatprep.mubr.bf16.mxu0 0
        %3515 = vmatmul.mubr.bf16.gmra.mrb[0].mxu0 %v3297
        %v3516 = vpop.f32.mrb[0].mxu0
        %v3517 = vadd.f32 0.0, %v3516
        %v3518 = vpop.f32.mrb[0].mxu0
        %v3519 = vpop.f32.mrb[0].mxu0
        %v3520 = vadd.f32 0.0, %v3519
        %v3521 = vpop.f32.mrb[0].mxu0
        %3522 = vdwg.mxu0
        %v3523 = vadd.f32 %v2945, %v3397
        %v3524 = vadd.f32 %v2948, %v3400
        %v3525 = vadd.f32 %v2953, %v3405
        %v3526 = vadd.f32 %v2956, %v3408
        %v3527 = vadd.f32 %v2961, %v3413
        %v3528 = vadd.f32 %v2964, %v3416
        %v3529 = vadd.f32 %v2969, %v3421
        %v3530 = vadd.f32 %v2972, %v3424
        %v3531 = vadd.f32 %v2977, %v3429
        %v3532 = vadd.f32 %v2980, %v3432
        %v3533 = vadd.f32 %v2985, %v3437
        %v3534 = vadd.f32 %v2988, %v3440
        %v3535 = vadd.f32 %v2993, %v3445
        %v3536 = vadd.f32 %v2996, %v3448
        %v3537 = vadd.f32 %v3001, %v3453
        %v3538 = vadd.f32 %v3004, %v3456
        %v3539 = vadd.f32 %v3009, %v3461
        %v3540 = vadd.f32 %v3012, %v3464
        %v3541 = vadd.f32 %v3017, %v3469
        %v3542 = vadd.f32 %v3020, %v3472
        %v3543 = vadd.f32 %v3025, %v3477
        %v3544 = vadd.f32 %v3028, %v3480
        %v3545 = vadd.f32 %v3033, %v3485
        %v3546 = vadd.f32 %v3036, %v3488
        %v3547 = vadd.f32 %v3041, %v3493
        %v3548 = vadd.f32 %v3044, %v3496
        %v3549 = vadd.f32 %v3049, %v3501
        %v3550 = vadd.f32 %v3052, %v3504
        %v3551 = vadd.f32 %v3057, %v3509
        %v3552 = vadd.f32 %v3060, %v3512
        %v3553 = vadd.f32 %v3065, %v3517
        %v3554 = vadd.f32 %v3068, %v3520
        %s3555 = scalar_lea.vmem [#allocation2], 12
        %v3556 = vld [vmem:[%s3555] sm:$0xf]
        %v3557 = vld [vmem:[%s3555 + $0x4] sm:$0xf]
        %v3558 = vld [vmem:[%s3555 + $0xc] sm:$0xf]
        %v3559 = vld [vmem:[%s3555 + $0x10] sm:$0xf]
        %v3560 = vld [vmem:[%s3555 + $0x18] sm:$0xf]
        %v3561 = vld [vmem:[%s3555 + $0x1c] sm:$0xf]
        %v3562 = vld [vmem:[%s3555 + $0x24] sm:$0xf]
        %v3563 = vld [vmem:[%s3555 + $0x28] sm:$0xf]
        %v3564 = vld [vmem:[%s3555 + $0x30] sm:$0xf]
        %v3565 = vld [vmem:[%s3555 + $0x34] sm:$0xf]
        %v3566 = vld [vmem:[%s3555 + $0x3c] sm:$0xf]
        %v3567 = vld [vmem:[%s3555 + $0x40] sm:$0xf]
        %v3568 = vld [vmem:[%s3555 + $0x48] sm:$0xf]
        %v3569 = vld [vmem:[%s3555 + $0x4c] sm:$0xf]
        %v3570 = vld [vmem:[%s3555 + $0x54] sm:$0xf]
        %v3571 = vld [vmem:[%s3555 + $0x58] sm:$0xf]
        %v3572 = vld [vmem:[%s3555 + $0x60] sm:$0xf]
        %v3573 = vld [vmem:[%s3555 + $0x64] sm:$0xf]
        %v3574 = vld [vmem:[%s3555 + $0x6c] sm:$0xf]
        %v3575 = vld [vmem:[%s3555 + $0x70] sm:$0xf]
        %v3576 = vld [vmem:[%s3555 + $0x78] sm:$0xf]
        %v3577 = vld [vmem:[%s3555 + $0x7c] sm:$0xf]
        %v3578 = vld [vmem:[%s3555 + $0x84] sm:$0xf]
        %v3579 = vld [vmem:[%s3555 + $0x88] sm:$0xf]
        %v3580 = vld [vmem:[%s3555 + $0x90] sm:$0xf]
        %v3581 = vld [vmem:[%s3555 + $0x94] sm:$0xf]
        %v3582 = vld [vmem:[%s3555 + $0x9c] sm:$0xf]
        %v3583 = vld [vmem:[%s3555 + $0xa0] sm:$0xf]
        %v3584 = vld [vmem:[%s3555 + $0xa8] sm:$0xf]
        %v3585 = vld [vmem:[%s3555 + $0xac] sm:$0xf]
        %v3586 = vld [vmem:[%s3555 + $0xb4] sm:$0xf]
        %v3587 = vld [vmem:[%s3555 + $0xb8] sm:$0xf]
        %v3588 = vld [vmem:[#allocation9 + $0xc0] sm:$0xf]
        %v3589 = vld [vmem:[#allocation9 + $0xc4] sm:$0xf]
        %v3590 = vld [vmem:[#allocation9 + $0xc8] sm:$0xf]
        %v3591 = vld [vmem:[#allocation9 + $0xcc] sm:$0xf]
        %v3592 = vld [vmem:[#allocation9 + $0xd0] sm:$0xf]
        %v3593 = vld [vmem:[#allocation9 + $0xd4] sm:$0xf]
        %v3594 = vld [vmem:[#allocation9 + $0xd8] sm:$0xf]
        %v3595 = vld [vmem:[#allocation9 + $0xdc] sm:$0xf]
        %v3596 = vld [vmem:[#allocation9 + $0xe0] sm:$0xf]
        %v3597 = vld [vmem:[#allocation9 + $0xe4] sm:$0xf]
        %v3598 = vld [vmem:[#allocation9 + $0xe8] sm:$0xf]
        %v3599 = vld [vmem:[#allocation9 + $0xec] sm:$0xf]
        %v3600 = vld [vmem:[#allocation9 + $0xf0] sm:$0xf]
        %v3601 = vld [vmem:[#allocation9 + $0xf4] sm:$0xf]
        %v3602 = vld [vmem:[#allocation9 + $0xf8] sm:$0xf]
        %v3603 = vld [vmem:[#allocation9 + $0xfc] sm:$0xf]
        %v3636 = vunpack.c.l.b16 %v3556
        %v3637 = vunpack.c.l.b16 %v3557
        %v3638 = vunpack.c.l.b16 %v3558
        %v3639 = vunpack.c.l.b16 %v3559
        %v3640 = vunpack.c.l.b16 %v3560
        %v3641 = vunpack.c.l.b16 %v3561
        %v3642 = vunpack.c.l.b16 %v3562
        %v3643 = vunpack.c.l.b16 %v3563
        %v3644 = vunpack.c.l.b16 %v3564
        %v3645 = vunpack.c.l.b16 %v3565
        %v3646 = vunpack.c.l.b16 %v3566
        %v3647 = vunpack.c.l.b16 %v3567
        %v3648 = vunpack.c.l.b16 %v3568
        %v3649 = vunpack.c.l.b16 %v3569
        %v3650 = vunpack.c.l.b16 %v3570
        %v3651 = vunpack.c.l.b16 %v3571
        %v3652 = vunpack.c.l.b16 %v3572
        %v3653 = vunpack.c.l.b16 %v3573
        %v3654 = vunpack.c.l.b16 %v3574
        %v3655 = vunpack.c.l.b16 %v3575
        %v3656 = vunpack.c.l.b16 %v3576
        %v3657 = vunpack.c.l.b16 %v3577
        %v3658 = vunpack.c.l.b16 %v3578
        %v3659 = vunpack.c.l.b16 %v3579
        %v3660 = vunpack.c.l.b16 %v3580
        %v3661 = vunpack.c.l.b16 %v3581
        %v3662 = vunpack.c.l.b16 %v3582
        %v3663 = vunpack.c.l.b16 %v3583
        %v3664 = vunpack.c.l.b16 %v3584
        %v3665 = vunpack.c.l.b16 %v3585
        %v3666 = vunpack.c.l.b16 %v3586
        %v3667 = vunpack.c.l.b16 %v3587
        %v3668 = vpack.c.b16 %v3637, %v3636
        %v3669 = vpack.c.b16 %v3639, %v3638
        %v3670 = vpack.c.b16 %v3641, %v3640
        %v3671 = vpack.c.b16 %v3643, %v3642
        %v3672 = vpack.c.b16 %v3645, %v3644
        %v3673 = vpack.c.b16 %v3647, %v3646
        %v3674 = vpack.c.b16 %v3649, %v3648
        %v3675 = vpack.c.b16 %v3651, %v3650
        %v3676 = vpack.c.b16 %v3653, %v3652
        %v3677 = vpack.c.b16 %v3655, %v3654
        %v3678 = vpack.c.b16 %v3657, %v3656
        %v3679 = vpack.c.b16 %v3659, %v3658
        %v3680 = vpack.c.b16 %v3661, %v3660
        %v3681 = vpack.c.b16 %v3663, %v3662
        %v3682 = vpack.c.b16 %v3665, %v3664
        %v3683 = vpack.c.b16 %v3667, %v3666
        %v3716 = vunpack.c.l.b16 %v3588
        %v3717 = vunpack.c.l.b16 %v3589
        %v3718 = vunpack.c.l.b16 %v3590
        %v3719 = vunpack.c.l.b16 %v3591
        %v3720 = vunpack.c.l.b16 %v3592
        %v3721 = vunpack.c.l.b16 %v3593
        %v3722 = vunpack.c.l.b16 %v3594
        %v3723 = vunpack.c.l.b16 %v3595
        %v3724 = vunpack.c.l.b16 %v3596
        %v3725 = vunpack.c.l.b16 %v3597
        %v3726 = vunpack.c.l.b16 %v3598
        %v3727 = vunpack.c.l.b16 %v3599
        %v3728 = vunpack.c.l.b16 %v3600
        %v3729 = vunpack.c.l.b16 %v3601
        %v3730 = vunpack.c.l.b16 %v3602
        %v3731 = vunpack.c.l.b16 %v3603
        %v3732 = vpack.c.b16 %v3717, %v3716
        %v3733 = vpack.c.b16 %v3719, %v3718
        %v3734 = vpack.c.b16 %v3721, %v3720
        %v3735 = vpack.c.b16 %v3723, %v3722
        %v3736 = vpack.c.b16 %v3725, %v3724
        %v3737 = vpack.c.b16 %v3727, %v3726
        %v3738 = vpack.c.b16 %v3729, %v3728
        %v3739 = vpack.c.b16 %v3731, %v3730
        %3748 = vmatprep.subr.bf16.mxu0 0
        %3749 = vmatpush1.bf16.msra.mxu0 %v3732
        %3750 = vmatprep.subr.bf16.mxu0 0
        %3751 = vmatpush1.bf16.msra.mxu0 %v3733
        %3752 = vmatprep.subr.bf16.mxu0 0
        %3753 = vmatpush1.bf16.msra.mxu0 %v3734
        %3754 = vmatprep.subr.bf16.mxu0 0
        %3755 = vmatpush1.bf16.msra.mxu0 %v3735
        %3756 = vmatprep.subr.bf16.mxu0 0
        %3757 = vmatpush1.bf16.msra.mxu0 %v3736
        %3758 = vmatprep.subr.bf16.mxu0 0
        %3759 = vmatpush1.bf16.msra.mxu0 %v3737
        %3760 = vmatprep.subr.bf16.mxu0 0
        %3761 = vmatpush1.bf16.msra.mxu0 %v3738
        %3762 = vmatprep.subr.bf16.mxu0 0
        %3763 = vmatpush1.bf16.msra.mxu0 %v3739
        %3764 = vmatprep.subr.bf16.mxu0 0
        %3765 = vmatpush1.bf16.msra.mxu0 0
        %3766 = vmatprep.subr.bf16.mxu0 0
        %3767 = vmatpush1.bf16.msra.mxu0 0
        %3768 = vmatprep.subr.bf16.mxu0 0
        %3769 = vmatpush1.bf16.msra.mxu0 0
        %3770 = vmatprep.subr.bf16.mxu0 0
        %3771 = vmatpush1.bf16.msra.mxu0 0
        %3772 = vmatprep.subr.bf16.mxu0 0
        %3773 = vmatpush1.bf16.msra.mxu0 0
        %3774 = vmatprep.subr.bf16.mxu0 0
        %3775 = vmatpush1.bf16.msra.mxu0 0
        %3776 = vmatprep.subr.bf16.mxu0 0
        %3777 = vmatpush1.bf16.msra.mxu0 0
        %3778 = vmatprep.subr.bf16.mxu0 0
        %3779 = vmatpush1.bf16.msra.mxu0 0
        %3780 = vmatprep.mubr.bf16.mxu0 0
        %3781 = vmatmul.mubr.bf16.gmra.mrb[0].mxu0 %v3668
        %v3782 = vpop.f32.mrb[0].mxu0
        %v3783 = vadd.f32 0.0, %v3782
        %v3784 = vpop.f32.mrb[0].mxu0
        %v3785 = vpop.f32.mrb[0].mxu0
        %v3786 = vadd.f32 0.0, %v3785
        %v3787 = vpop.f32.mrb[0].mxu0
        %3788 = vmatprep.mubr.bf16.mxu0 0
        %3789 = vmatmul.mubr.bf16.gmra.mrb[0].mxu0 %v3669
        %v3790 = vpop.f32.mrb[0].mxu0
        %v3791 = vadd.f32 0.0, %v3790
        %v3792 = vpop.f32.mrb[0].mxu0
        %v3793 = vpop.f32.mrb[0].mxu0
        %v3794 = vadd.f32 0.0, %v3793
        %v3795 = vpop.f32.mrb[0].mxu0
        %3796 = vmatprep.mubr.bf16.mxu0 0
        %3797 = vmatmul.mubr.bf16.gmra.mrb[0].mxu0 %v3670
        %v3798 = vpop.f32.mrb[0].mxu0
        %v3799 = vadd.f32 0.0, %v3798
        %v3800 = vpop.f32.mrb[0].mxu0
        %v3801 = vpop.f32.mrb[0].mxu0
        %v3802 = vadd.f32 0.0, %v3801
        %v3803 = vpop.f32.mrb[0].mxu0
        %3804 = vmatprep.mubr.bf16.mxu0 0
        %3805 = vmatmul.mubr.bf16.gmra.mrb[0].mxu0 %v3671
        %v3806 = vpop.f32.mrb[0].mxu0
        %v3807 = vadd.f32 0.0, %v3806
        %v3808 = vpop.f32.mrb[0].mxu0
        %v3809 = vpop.f32.mrb[0].mxu0
        %v3810 = vadd.f32 0.0, %v3809
        %v3811 = vpop.f32.mrb[0].mxu0
        %3812 = vmatprep.mubr.bf16.mxu0 0
        %3813 = vmatmul.mubr.bf16.gmra.mrb[0].mxu0 %v3672
        %v3814 = vpop.f32.mrb[0].mxu0
        %v3815 = vadd.f32 0.0, %v3814
        %v3816 = vpop.f32.mrb[0].mxu0
        %v3817 = vpop.f32.mrb[0].mxu0
        %v3818 = vadd.f32 0.0, %v3817
        %v3819 = vpop.f32.mrb[0].mxu0
        %3820 = vmatprep.mubr.bf16.mxu0 0
        %3821 = vmatmul.mubr.bf16.gmra.mrb[0].mxu0 %v3673
        %v3822 = vpop.f32.mrb[0].mxu0
        %v3823 = vadd.f32 0.0, %v3822
        %v3824 = vpop.f32.mrb[0].mxu0
        %v3825 = vpop.f32.mrb[0].mxu0
        %v3826 = vadd.f32 0.0, %v3825
        %v3827 = vpop.f32.mrb[0].mxu0
        %3828 = vmatprep.mubr.bf16.mxu0 0
        %3829 = vmatmul.mubr.bf16.gmra.mrb[0].mxu0 %v3674
        %v3830 = vpop.f32.mrb[0].mxu0
        %v3831 = vadd.f32 0.0, %v3830
        %v3832 = vpop.f32.mrb[0].mxu0
        %v3833 = vpop.f32.mrb[0].mxu0
        %v3834 = vadd.f32 0.0, %v3833
        %v3835 = vpop.f32.mrb[0].mxu0
        %3836 = vmatprep.mubr.bf16.mxu0 0
        %3837 = vmatmul.mubr.bf16.gmra.mrb[0].mxu0 %v3675
        %v3838 = vpop.f32.mrb[0].mxu0
        %v3839 = vadd.f32 0.0, %v3838
        %v3840 = vpop.f32.mrb[0].mxu0
        %v3841 = vpop.f32.mrb[0].mxu0
        %v3842 = vadd.f32 0.0, %v3841
        %v3843 = vpop.f32.mrb[0].mxu0
        %3844 = vmatprep.mubr.bf16.mxu0 0
        %3845 = vmatmul.mubr.bf16.gmra.mrb[0].mxu0 %v3676
        %v3846 = vpop.f32.mrb[0].mxu0
        %v3847 = vadd.f32 0.0, %v3846
        %v3848 = vpop.f32.mrb[0].mxu0
        %v3849 = vpop.f32.mrb[0].mxu0
        %v3850 = vadd.f32 0.0, %v3849
        %v3851 = vpop.f32.mrb[0].mxu0
        %3852 = vmatprep.mubr.bf16.mxu0 0
        %3853 = vmatmul.mubr.bf16.gmra.mrb[0].mxu0 %v3677
        %v3854 = vpop.f32.mrb[0].mxu0
        %v3855 = vadd.f32 0.0, %v3854
        %v3856 = vpop.f32.mrb[0].mxu0
        %v3857 = vpop.f32.mrb[0].mxu0
        %v3858 = vadd.f32 0.0, %v3857
        %v3859 = vpop.f32.mrb[0].mxu0
        %3860 = vmatprep.mubr.bf16.mxu0 0
        %3861 = vmatmul.mubr.bf16.gmra.mrb[0].mxu0 %v3678
        %v3862 = vpop.f32.mrb[0].mxu0
        %v3863 = vadd.f32 0.0, %v3862
        %v3864 = vpop.f32.mrb[0].mxu0
        %v3865 = vpop.f32.mrb[0].mxu0
        %v3866 = vadd.f32 0.0, %v3865
        %v3867 = vpop.f32.mrb[0].mxu0
        %3868 = vmatprep.mubr.bf16.mxu0 0
        %3869 = vmatmul.mubr.bf16.gmra.mrb[0].mxu0 %v3679
        %v3870 = vpop.f32.mrb[0].mxu0
        %v3871 = vadd.f32 0.0, %v3870
        %v3872 = vpop.f32.mrb[0].mxu0
        %v3873 = vpop.f32.mrb[0].mxu0
        %v3874 = vadd.f32 0.0, %v3873
        %v3875 = vpop.f32.mrb[0].mxu0
        %3876 = vmatprep.mubr.bf16.mxu0 0
        %3877 = vmatmul.mubr.bf16.gmra.mrb[0].mxu0 %v3680
        %v3878 = vpop.f32.mrb[0].mxu0
        %v3879 = vadd.f32 0.0, %v3878
        %v3880 = vpop.f32.mrb[0].mxu0
        %v3881 = vpop.f32.mrb[0].mxu0
        %v3882 = vadd.f32 0.0, %v3881
        %v3883 = vpop.f32.mrb[0].mxu0
        %3884 = vmatprep.mubr.bf16.mxu0 0
        %3885 = vmatmul.mubr.bf16.gmra.mrb[0].mxu0 %v3681
        %v3886 = vpop.f32.mrb[0].mxu0
        %v3887 = vadd.f32 0.0, %v3886
        %v3888 = vpop.f32.mrb[0].mxu0
        %v3889 = vpop.f32.mrb[0].mxu0
        %v3890 = vadd.f32 0.0, %v3889
        %v3891 = vpop.f32.mrb[0].mxu0
        %3892 = vmatprep.mubr.bf16.mxu0 0
        %3893 = vmatmul.mubr.bf16.gmra.mrb[0].mxu0 %v3682
        %v3894 = vpop.f32.mrb[0].mxu0
        %v3895 = vadd.f32 0.0, %v3894
        %v3896 = vpop.f32.mrb[0].mxu0
        %v3897 = vpop.f32.mrb[0].mxu0
        %v3898 = vadd.f32 0.0, %v3897
        %v3899 = vpop.f32.mrb[0].mxu0
        %3900 = vmatprep.mubr.bf16.mxu0 0
        %3901 = vmatmul.mubr.bf16.gmra.mrb[0].mxu0 %v3683
        %v3902 = vpop.f32.mrb[0].mxu0
        %v3903 = vadd.f32 0.0, %v3902
        %v3904 = vpop.f32.mrb[0].mxu0
        %v3905 = vpop.f32.mrb[0].mxu0
        %v3906 = vadd.f32 0.0, %v3905
        %v3907 = vpop.f32.mrb[0].mxu0
        %3908 = vdwg.mxu0
        %v3909 = vadd.f32 %v3523, %v3783
        %v3910 = vadd.f32 %v3524, %v3786
        %v3911 = vadd.f32 %v3525, %v3791
        %v3912 = vadd.f32 %v3526, %v3794
        %v3913 = vadd.f32 %v3527, %v3799
        %v3914 = vadd.f32 %v3528, %v3802
        %v3915 = vadd.f32 %v3529, %v3807
        %v3916 = vadd.f32 %v3530, %v3810
        %v3917 = vadd.f32 %v3531, %v3815
        %v3918 = vadd.f32 %v3532, %v3818
        %v3919 = vadd.f32 %v3533, %v3823
        %v3920 = vadd.f32 %v3534, %v3826
        %v3921 = vadd.f32 %v3535, %v3831
        %v3922 = vadd.f32 %v3536, %v3834
        %v3923 = vadd.f32 %v3537, %v3839
        %v3924 = vadd.f32 %v3538, %v3842
        %v3925 = vadd.f32 %v3539, %v3847
        %v3926 = vadd.f32 %v3540, %v3850
        %v3927 = vadd.f32 %v3541, %v3855
        %v3928 = vadd.f32 %v3542, %v3858
        %v3929 = vadd.f32 %v3543, %v3863
        %v3930 = vadd.f32 %v3544, %v3866
        %v3931 = vadd.f32 %v3545, %v3871
        %v3932 = vadd.f32 %v3546, %v3874
        %v3933 = vadd.f32 %v3547, %v3879
        %v3934 = vadd.f32 %v3548, %v3882
        %v3935 = vadd.f32 %v3549, %v3887
        %v3936 = vadd.f32 %v3550, %v3890
        %v3937 = vadd.f32 %v3551, %v3895
        %v3938 = vadd.f32 %v3552, %v3898
        %v3939 = vadd.f32 %v3553, %v3903
        %v3940 = vadd.f32 %v3554, %v3906
        %v3941 = vld [vmem:[%s3555] sm:$0xf]
        %v3942 = vld [vmem:[%s3555 + $0x4] sm:$0xf]
        %v3943 = vld [vmem:[%s3555 + $0x8] sm:$0x1]
        %v3944 = vld [vmem:[%s3555 + $0xc] sm:$0xf]
        %v3945 = vld [vmem:[%s3555 + $0x10] sm:$0xf]
        %v3946 = vld [vmem:[%s3555 + $0x14] sm:$0x1]
        %v3947 = vld [vmem:[%s3555 + $0x18] sm:$0xf]
        %v3948 = vld [vmem:[%s3555 + $0x1c] sm:$0xf]
        %v3949 = vld [vmem:[%s3555 + $0x20] sm:$0x1]
        %v3950 = vld [vmem:[%s3555 + $0x24] sm:$0xf]
        %v3951 = vld [vmem:[%s3555 + $0x28] sm:$0xf]
        %v3952 = vld [vmem:[%s3555 + $0x2c] sm:$0x1]
        %v3953 = vld [vmem:[%s3555 + $0x30] sm:$0xf]
        %v3954 = vld [vmem:[%s3555 + $0x34] sm:$0xf]
        %v3955 = vld [vmem:[%s3555 + $0x38] sm:$0x1]
        %v3956 = vld [vmem:[%s3555 + $0x3c] sm:$0xf]
        %v3957 = vld [vmem:[%s3555 + $0x40] sm:$0xf]
        %v3958 = vld [vmem:[%s3555 + $0x44] sm:$0x1]
        %v3959 = vld [vmem:[%s3555 + $0x48] sm:$0xf]
        %v3960 = vld [vmem:[%s3555 + $0x4c] sm:$0xf]
        %v3961 = vld [vmem:[%s3555 + $0x50] sm:$0x1]
        %v3962 = vld [vmem:[%s3555 + $0x54] sm:$0xf]
        %v3963 = vld [vmem:[%s3555 + $0x58] sm:$0xf]
        %v3964 = vld [vmem:[%s3555 + $0x5c] sm:$0x1]
        %v3965 = vld [vmem:[%s3555 + $0x60] sm:$0xf]
        %v3966 = vld [vmem:[%s3555 + $0x64] sm:$0xf]
        %v3967 = vld [vmem:[%s3555 + $0x68] sm:$0x1]
        %v3968 = vld [vmem:[%s3555 + $0x6c] sm:$0xf]
        %v3969 = vld [vmem:[%s3555 + $0x70] sm:$0xf]
        %v3970 = vld [vmem:[%s3555 + $0x74] sm:$0x1]
        %v3971 = vld [vmem:[%s3555 + $0x78] sm:$0xf]
        %v3972 = vld [vmem:[%s3555 + $0x7c] sm:$0xf]
        %v3973 = vld [vmem:[%s3555 + $0x80] sm:$0x1]
        %v3974 = vld [vmem:[%s3555 + $0x84] sm:$0xf]
        %v3975 = vld [vmem:[%s3555 + $0x88] sm:$0xf]
        %v3976 = vld [vmem:[%s3555 + $0x8c] sm:$0x1]
        %v3977 = vld [vmem:[%s3555 + $0x90] sm:$0xf]
        %v3978 = vld [vmem:[%s3555 + $0x94] sm:$0xf]
        %v3979 = vld [vmem:[%s3555 + $0x98] sm:$0x1]
        %v3980 = vld [vmem:[%s3555 + $0x9c] sm:$0xf]
        %v3981 = vld [vmem:[%s3555 + $0xa0] sm:$0xf]
        %v3982 = vld [vmem:[%s3555 + $0xa4] sm:$0x1]
        %v3983 = vld [vmem:[%s3555 + $0xa8] sm:$0xf]
        %v3984 = vld [vmem:[%s3555 + $0xac] sm:$0xf]
        %v3985 = vld [vmem:[%s3555 + $0xb0] sm:$0x1]
        %v3986 = vld [vmem:[%s3555 + $0xb4] sm:$0xf]
        %v3987 = vld [vmem:[%s3555 + $0xb8] sm:$0xf]
        %v3988 = vld [vmem:[%s3555 + $0xbc] sm:$0x1]
        %v3990 = vshrl.u32 %v3941, 16
        %v3992 = vrot.slane %v3990, 4
        %v3993 = vshll.u32 %v3941, 16
        %v3995 = vrot.slane %v3993, 5
        %v3996 = vor.u32 %v3992, %v3995
        %v3997 = vrot.slane %v3996, 4
        %v3999 = vshll.u32 %v3942, 16
        %v4001 = vrot.slane %v3999, 5
        %v4002 = vsel %vm2092, %v3997, %v4001
        %v4003 = vshrl.u32 %v3942, 16
        %v4005 = vrot.slane %v4003, 4
        %v4006 = vor.u32 %v4005, %v4001
        %v4007 = vrot.slane %v4006, 4
        %v4009 = vshll.u32 %v3943, 16
        %v4011 = vrot.slane %v4009, 5
        %v4012 = vsel %vm2092, %v4007, %v4011
        %v4014 = vshrl.u32 %v3944, 16
        %v4016 = vrot.slane %v4014, 4
        %v4017 = vshll.u32 %v3944, 16
        %v4019 = vrot.slane %v4017, 5
        %v4020 = vor.u32 %v4016, %v4019
        %v4021 = vrot.slane %v4020, 4
        %v4023 = vshll.u32 %v3945, 16
        %v4025 = vrot.slane %v4023, 5
        %v4026 = vsel %vm2092, %v4021, %v4025
        %v4027 = vshrl.u32 %v3945, 16
        %v4029 = vrot.slane %v4027, 4
        %v4030 = vor.u32 %v4029, %v4025
        %v4031 = vrot.slane %v4030, 4
        %v4033 = vshll.u32 %v3946, 16
        %v4035 = vrot.slane %v4033, 5
        %v4036 = vsel %vm2092, %v4031, %v4035
        %v4038 = vshrl.u32 %v3947, 16
        %v4040 = vrot.slane %v4038, 4
        %v4041 = vshll.u32 %v3947, 16
        %v4043 = vrot.slane %v4041, 5
        %v4044 = vor.u32 %v4040, %v4043
        %v4045 = vrot.slane %v4044, 4
        %v4047 = vshll.u32 %v3948, 16
        %v4049 = vrot.slane %v4047, 5
        %v4050 = vsel %vm2092, %v4045, %v4049
        %v4051 = vshrl.u32 %v3948, 16
        %v4053 = vrot.slane %v4051, 4
        %v4054 = vor.u32 %v4053, %v4049
        %v4055 = vrot.slane %v4054, 4
        %v4057 = vshll.u32 %v3949, 16
        %v4059 = vrot.slane %v4057, 5
        %v4060 = vsel %vm2092, %v4055, %v4059
        %v4062 = vshrl.u32 %v3950, 16
        %v4064 = vrot.slane %v4062, 4
        %v4065 = vshll.u32 %v3950, 16
        %v4067 = vrot.slane %v4065, 5
        %v4068 = vor.u32 %v4064, %v4067
        %v4069 = vrot.slane %v4068, 4
        %v4071 = vshll.u32 %v3951, 16
        %v4073 = vrot.slane %v4071, 5
        %v4074 = vsel %vm2092, %v4069, %v4073
        %v4075 = vshrl.u32 %v3951, 16
        %v4077 = vrot.slane %v4075, 4
        %v4078 = vor.u32 %v4077, %v4073
        %v4079 = vrot.slane %v4078, 4
        %v4081 = vshll.u32 %v3952, 16
        %v4083 = vrot.slane %v4081, 5
        %v4084 = vsel %vm2092, %v4079, %v4083
        %v4086 = vshrl.u32 %v3953, 16
        %v4088 = vrot.slane %v4086, 4
        %v4089 = vshll.u32 %v3953, 16
        %v4091 = vrot.slane %v4089, 5
        %v4092 = vor.u32 %v4088, %v4091
        %v4093 = vrot.slane %v4092, 4
        %v4095 = vshll.u32 %v3954, 16
        %v4097 = vrot.slane %v4095, 5
        %v4098 = vsel %vm2092, %v4093, %v4097
        %v4099 = vshrl.u32 %v3954, 16
        %v4101 = vrot.slane %v4099, 4
        %v4102 = vor.u32 %v4101, %v4097
        %v4103 = vrot.slane %v4102, 4
        %v4105 = vshll.u32 %v3955, 16
        %v4107 = vrot.slane %v4105, 5
        %v4108 = vsel %vm2092, %v4103, %v4107
        %v4110 = vshrl.u32 %v3956, 16
        %v4112 = vrot.slane %v4110, 4
        %v4113 = vshll.u32 %v3956, 16
        %v4115 = vrot.slane %v4113, 5
        %v4116 = vor.u32 %v4112, %v4115
        %v4117 = vrot.slane %v4116, 4
        %v4119 = vshll.u32 %v3957, 16
        %v4121 = vrot.slane %v4119, 5
        %v4122 = vsel %vm2092, %v4117, %v4121
        %v4123 = vshrl.u32 %v3957, 16
        %v4125 = vrot.slane %v4123, 4
        %v4126 = vor.u32 %v4125, %v4121
        %v4127 = vrot.slane %v4126, 4
        %v4129 = vshll.u32 %v3958, 16
        %v4131 = vrot.slane %v4129, 5
        %v4132 = vsel %vm2092, %v4127, %v4131
        %v4134 = vshrl.u32 %v3959, 16
        %v4136 = vrot.slane %v4134, 4
        %v4137 = vshll.u32 %v3959, 16
        %v4139 = vrot.slane %v4137, 5
        %v4140 = vor.u32 %v4136, %v4139
        %v4141 = vrot.slane %v4140, 4
        %v4143 = vshll.u32 %v3960, 16
        %v4145 = vrot.slane %v4143, 5
        %v4146 = vsel %vm2092, %v4141, %v4145
        %v4147 = vshrl.u32 %v3960, 16
        %v4149 = vrot.slane %v4147, 4
        %v4150 = vor.u32 %v4149, %v4145
        %v4151 = vrot.slane %v4150, 4
        %v4153 = vshll.u32 %v3961, 16
        %v4155 = vrot.slane %v4153, 5
        %v4156 = vsel %vm2092, %v4151, %v4155
        %v4158 = vshrl.u32 %v3962, 16
        %v4160 = vrot.slane %v4158, 4
        %v4161 = vshll.u32 %v3962, 16
        %v4163 = vrot.slane %v4161, 5
        %v4164 = vor.u32 %v4160, %v4163
        %v4165 = vrot.slane %v4164, 4
        %v4167 = vshll.u32 %v3963, 16
        %v4169 = vrot.slane %v4167, 5
        %v4170 = vsel %vm2092, %v4165, %v4169
        %v4171 = vshrl.u32 %v3963, 16
        %v4173 = vrot.slane %v4171, 4
        %v4174 = vor.u32 %v4173, %v4169
        %v4175 = vrot.slane %v4174, 4
        %v4177 = vshll.u32 %v3964, 16
        %v4179 = vrot.slane %v4177, 5
        %v4180 = vsel %vm2092, %v4175, %v4179
        %v4182 = vshrl.u32 %v3965, 16
        %v4184 = vrot.slane %v4182, 4
        %v4185 = vshll.u32 %v3965, 16
        %v4187 = vrot.slane %v4185, 5
        %v4188 = vor.u32 %v4184, %v4187
        %v4189 = vrot.slane %v4188, 4
        %v4191 = vshll.u32 %v3966, 16
        %v4193 = vrot.slane %v4191, 5
        %v4194 = vsel %vm2092, %v4189, %v4193
        %v4195 = vshrl.u32 %v3966, 16
        %v4197 = vrot.slane %v4195, 4
        %v4198 = vor.u32 %v4197, %v4193
        %v4199 = vrot.slane %v4198, 4
        %v4201 = vshll.u32 %v3967, 16
        %v4203 = vrot.slane %v4201, 5
        %v4204 = vsel %vm2092, %v4199, %v4203
        %v4206 = vshrl.u32 %v3968, 16
        %v4208 = vrot.slane %v4206, 4
        %v4209 = vshll.u32 %v3968, 16
        %v4211 = vrot.slane %v4209, 5
        %v4212 = vor.u32 %v4208, %v4211
        %v4213 = vrot.slane %v4212, 4
        %v4215 = vshll.u32 %v3969, 16
        %v4217 = vrot.slane %v4215, 5
        %v4218 = vsel %vm2092, %v4213, %v4217
        %v4219 = vshrl.u32 %v3969, 16
        %v4221 = vrot.slane %v4219, 4
        %v4222 = vor.u32 %v4221, %v4217
        %v4223 = vrot.slane %v4222, 4
        %v4225 = vshll.u32 %v3970, 16
        %v4227 = vrot.slane %v4225, 5
        %v4228 = vsel %vm2092, %v4223, %v4227
        %v4230 = vshrl.u32 %v3971, 16
        %v4232 = vrot.slane %v4230, 4
        %v4233 = vshll.u32 %v3971, 16
        %v4235 = vrot.slane %v4233, 5
        %v4236 = vor.u32 %v4232, %v4235
        %v4237 = vrot.slane %v4236, 4
        %v4239 = vshll.u32 %v3972, 16
        %v4241 = vrot.slane %v4239, 5
        %v4242 = vsel %vm2092, %v4237, %v4241
        %v4243 = vshrl.u32 %v3972, 16
        %v4245 = vrot.slane %v4243, 4
        %v4246 = vor.u32 %v4245, %v4241
        %v4247 = vrot.slane %v4246, 4
        %v4249 = vshll.u32 %v3973, 16
        %v4251 = vrot.slane %v4249, 5
        %v4252 = vsel %vm2092, %v4247, %v4251
        %v4254 = vshrl.u32 %v3974, 16
        %v4256 = vrot.slane %v4254, 4
        %v4257 = vshll.u32 %v3974, 16
        %v4259 = vrot.slane %v4257, 5
        %v4260 = vor.u32 %v4256, %v4259
        %v4261 = vrot.slane %v4260, 4
        %v4263 = vshll.u32 %v3975, 16
        %v4265 = vrot.slane %v4263, 5
        %v4266 = vsel %vm2092, %v4261, %v4265
        %v4267 = vshrl.u32 %v3975, 16
        %v4269 = vrot.slane %v4267, 4
        %v4270 = vor.u32 %v4269, %v4265
        %v4271 = vrot.slane %v4270, 4
        %v4273 = vshll.u32 %v3976, 16
        %v4275 = vrot.slane %v4273, 5
        %v4276 = vsel %vm2092, %v4271, %v4275
        %v4278 = vshrl.u32 %v3977, 16
        %v4280 = vrot.slane %v4278, 4
        %v4281 = vshll.u32 %v3977, 16
        %v4283 = vrot.slane %v4281, 5
        %v4284 = vor.u32 %v4280, %v4283
        %v4285 = vrot.slane %v4284, 4
        %v4287 = vshll.u32 %v3978, 16
        %v4289 = vrot.slane %v4287, 5
        %v4290 = vsel %vm2092, %v4285, %v4289
        %v4291 = vshrl.u32 %v3978, 16
        %v4293 = vrot.slane %v4291, 4
        %v4294 = vor.u32 %v4293, %v4289
        %v4295 = vrot.slane %v4294, 4
        %v4297 = vshll.u32 %v3979, 16
        %v4299 = vrot.slane %v4297, 5
        %v4300 = vsel %vm2092, %v4295, %v4299
        %v4302 = vshrl.u32 %v3980, 16
        %v4304 = vrot.slane %v4302, 4
        %v4305 = vshll.u32 %v3980, 16
        %v4307 = vrot.slane %v4305, 5
        %v4308 = vor.u32 %v4304, %v4307
        %v4309 = vrot.slane %v4308, 4
        %v4311 = vshll.u32 %v3981, 16
        %v4313 = vrot.slane %v4311, 5
        %v4314 = vsel %vm2092, %v4309, %v4313
        %v4315 = vshrl.u32 %v3981, 16
        %v4317 = vrot.slane %v4315, 4
        %v4318 = vor.u32 %v4317, %v4313
        %v4319 = vrot.slane %v4318, 4
        %v4321 = vshll.u32 %v3982, 16
        %v4323 = vrot.slane %v4321, 5
        %v4324 = vsel %vm2092, %v4319, %v4323
        %v4326 = vshrl.u32 %v3983, 16
        %v4328 = vrot.slane %v4326, 4
        %v4329 = vshll.u32 %v3983, 16
        %v4331 = vrot.slane %v4329, 5
        %v4332 = vor.u32 %v4328, %v4331
        %v4333 = vrot.slane %v4332, 4
        %v4335 = vshll.u32 %v3984, 16
        %v4337 = vrot.slane %v4335, 5
        %v4338 = vsel %vm2092, %v4333, %v4337
        %v4339 = vshrl.u32 %v3984, 16
        %v4341 = vrot.slane %v4339, 4
        %v4342 = vor.u32 %v4341, %v4337
        %v4343 = vrot.slane %v4342, 4
        %v4345 = vshll.u32 %v3985, 16
        %v4347 = vrot.slane %v4345, 5
        %v4348 = vsel %vm2092, %v4343, %v4347
        %v4350 = vshrl.u32 %v3986, 16
        %v4352 = vrot.slane %v4350, 4
        %v4353 = vshll.u32 %v3986, 16
        %v4355 = vrot.slane %v4353, 5
        %v4356 = vor.u32 %v4352, %v4355
        %v4357 = vrot.slane %v4356, 4
        %v4359 = vshll.u32 %v3987, 16
        %v4361 = vrot.slane %v4359, 5
        %v4362 = vsel %vm2092, %v4357, %v4361
        %v4363 = vshrl.u32 %v3987, 16
        %v4365 = vrot.slane %v4363, 4
        %v4366 = vor.u32 %v4365, %v4361
        %v4367 = vrot.slane %v4366, 4
        %v4369 = vshll.u32 %v3988, 16
        %v4371 = vrot.slane %v4369, 5
        %v4372 = vsel %vm2092, %v4367, %v4371
        %v4373 = vld [vmem:[#allocation9 + $0x100] sm:$0xf]
        %v4374 = vld [vmem:[#allocation9 + $0x104] sm:$0xf]
        %v4375 = vld [vmem:[#allocation9 + $0x108] sm:$0xf]
        %v4376 = vld [vmem:[#allocation9 + $0x10c] sm:$0xf]
        %v4377 = vld [vmem:[#allocation9 + $0x110] sm:$0xf]
        %v4378 = vld [vmem:[#allocation9 + $0x114] sm:$0xf]
        %v4379 = vld [vmem:[#allocation9 + $0x118] sm:$0xf]
        %v4380 = vld [vmem:[#allocation9 + $0x11c] sm:$0xf]
        %v4381 = vld [vmem:[#allocation9 + $0x120] sm:$0xf]
        %v4382 = vld [vmem:[#allocation9 + $0x124] sm:$0xf]
        %v4383 = vld [vmem:[#allocation9 + $0x128] sm:$0xf]
        %v4384 = vld [vmem:[#allocation9 + $0x12c] sm:$0xf]
        %v4385 = vld [vmem:[#allocation9 + $0x130] sm:$0xf]
        %v4386 = vld [vmem:[#allocation9 + $0x134] sm:$0xf]
        %v4387 = vld [vmem:[#allocation9 + $0x138] sm:$0xf]
        %v4388 = vld [vmem:[#allocation9 + $0x13c] sm:$0xf]
        %v4389 = vunpack.c.l.b16 %v4002
        %v4390 = vunpack.c.l.b16 %v4012
        %v4391 = vunpack.c.l.b16 %v4026
        %v4392 = vunpack.c.l.b16 %v4036
        %v4393 = vunpack.c.l.b16 %v4050
        %v4394 = vunpack.c.l.b16 %v4060
        %v4395 = vunpack.c.l.b16 %v4074
        %v4396 = vunpack.c.l.b16 %v4084
        %v4397 = vunpack.c.l.b16 %v4098
        %v4398 = vunpack.c.l.b16 %v4108
        %v4399 = vunpack.c.l.b16 %v4122
        %v4400 = vunpack.c.l.b16 %v4132
        %v4401 = vunpack.c.l.b16 %v4146
        %v4402 = vunpack.c.l.b16 %v4156
        %v4403 = vunpack.c.l.b16 %v4170
        %v4404 = vunpack.c.l.b16 %v4180
        %v4405 = vunpack.c.l.b16 %v4194
        %v4406 = vunpack.c.l.b16 %v4204
        %v4407 = vunpack.c.l.b16 %v4218
        %v4408 = vunpack.c.l.b16 %v4228
        %v4409 = vunpack.c.l.b16 %v4242
        %v4410 = vunpack.c.l.b16 %v4252
        %v4411 = vunpack.c.l.b16 %v4266
        %v4412 = vunpack.c.l.b16 %v4276
        %v4413 = vunpack.c.l.b16 %v4290
        %v4414 = vunpack.c.l.b16 %v4300
        %v4415 = vunpack.c.l.b16 %v4314
        %v4416 = vunpack.c.l.b16 %v4324
        %v4417 = vunpack.c.l.b16 %v4338
        %v4418 = vunpack.c.l.b16 %v4348
        %v4419 = vunpack.c.l.b16 %v4362
        %v4420 = vunpack.c.l.b16 %v4372
        %v4421 = vpack.c.b16 %v4390, %v4389
        %v4422 = vpack.c.b16 %v4392, %v4391
        %v4423 = vpack.c.b16 %v4394, %v4393
        %v4424 = vpack.c.b16 %v4396, %v4395
        %v4425 = vpack.c.b16 %v4398, %v4397
        %v4426 = vpack.c.b16 %v4400, %v4399
        %v4427 = vpack.c.b16 %v4402, %v4401
        %v4428 = vpack.c.b16 %v4404, %v4403
        %v4429 = vpack.c.b16 %v4406, %v4405
        %v4430 = vpack.c.b16 %v4408, %v4407
        %v4431 = vpack.c.b16 %v4410, %v4409
        %v4432 = vpack.c.b16 %v4412, %v4411
        %v4433 = vpack.c.b16 %v4414, %v4413
        %v4434 = vpack.c.b16 %v4416, %v4415
        %v4435 = vpack.c.b16 %v4418, %v4417
        %v4436 = vpack.c.b16 %v4420, %v4419
        %v4469 = vunpack.c.l.b16 %v4373
        %v4470 = vunpack.c.l.b16 %v4374
        %v4471 = vunpack.c.l.b16 %v4375
        %v4472 = vunpack.c.l.b16 %v4376
        %v4473 = vunpack.c.l.b16 %v4377
        %v4474 = vunpack.c.l.b16 %v4378
        %v4475 = vunpack.c.l.b16 %v4379
        %v4476 = vunpack.c.l.b16 %v4380
        %v4477 = vunpack.c.l.b16 %v4381
        %v4478 = vunpack.c.l.b16 %v4382
        %v4479 = vunpack.c.l.b16 %v4383
        %v4480 = vunpack.c.l.b16 %v4384
        %v4481 = vunpack.c.l.b16 %v4385
        %v4482 = vunpack.c.l.b16 %v4386
        %v4483 = vunpack.c.l.b16 %v4387
        %v4484 = vunpack.c.l.b16 %v4388
        %v4485 = vpack.c.b16 %v4470, %v4469
        %v4486 = vpack.c.b16 %v4472, %v4471
        %v4487 = vpack.c.b16 %v4474, %v4473
        %v4488 = vpack.c.b16 %v4476, %v4475
        %v4489 = vpack.c.b16 %v4478, %v4477
        %v4490 = vpack.c.b16 %v4480, %v4479
        %v4491 = vpack.c.b16 %v4482, %v4481
        %v4492 = vpack.c.b16 %v4484, %v4483
        %4501 = vmatprep.subr.bf16.mxu0 0
        %4502 = vmatpush1.bf16.msra.mxu0 %v4485
        %4503 = vmatprep.subr.bf16.mxu0 0
        %4504 = vmatpush1.bf16.msra.mxu0 %v4486
        %4505 = vmatprep.subr.bf16.mxu0 0
        %4506 = vmatpush1.bf16.msra.mxu0 %v4487
        %4507 = vmatprep.subr.bf16.mxu0 0
        %4508 = vmatpush1.bf16.msra.mxu0 %v4488
        %4509 = vmatprep.subr.bf16.mxu0 0
        %4510 = vmatpush1.bf16.msra.mxu0 %v4489
        %4511 = vmatprep.subr.bf16.mxu0 0
        %4512 = vmatpush1.bf16.msra.mxu0 %v4490
        %4513 = vmatprep.subr.bf16.mxu0 0
        %4514 = vmatpush1.bf16.msra.mxu0 %v4491
        %4515 = vmatprep.subr.bf16.mxu0 0
        %4516 = vmatpush1.bf16.msra.mxu0 %v4492
        %4517 = vmatprep.subr.bf16.mxu0 0
        %4518 = vmatpush1.bf16.msra.mxu0 0
        %4519 = vmatprep.subr.bf16.mxu0 0
        %4520 = vmatpush1.bf16.msra.mxu0 0
        %4521 = vmatprep.subr.bf16.mxu0 0
        %4522 = vmatpush1.bf16.msra.mxu0 0
        %4523 = vmatprep.subr.bf16.mxu0 0
        %4524 = vmatpush1.bf16.msra.mxu0 0
        %4525 = vmatprep.subr.bf16.mxu0 0
        %4526 = vmatpush1.bf16.msra.mxu0 0
        %4527 = vmatprep.subr.bf16.mxu0 0
        %4528 = vmatpush1.bf16.msra.mxu0 0
        %4529 = vmatprep.subr.bf16.mxu0 0
        %4530 = vmatpush1.bf16.msra.mxu0 0
        %4531 = vmatprep.subr.bf16.mxu0 0
        %4532 = vmatpush1.bf16.msra.mxu0 0
        %4533 = vmatprep.mubr.bf16.mxu0 0
        %4534 = vmatmul.mubr.bf16.gmra.mrb[0].mxu0 %v4421
        %v4535 = vpop.f32.mrb[0].mxu0
        %v4536 = vadd.f32 0.0, %v4535
        %v4537 = vpop.f32.mrb[0].mxu0
        %v4538 = vpop.f32.mrb[0].mxu0
        %v4539 = vadd.f32 0.0, %v4538
        %v4540 = vpop.f32.mrb[0].mxu0
        %4541 = vmatprep.mubr.bf16.mxu0 0
        %4542 = vmatmul.mubr.bf16.gmra.mrb[0].mxu0 %v4422
        %v4543 = vpop.f32.mrb[0].mxu0
        %v4544 = vadd.f32 0.0, %v4543
        %v4545 = vpop.f32.mrb[0].mxu0
        %v4546 = vpop.f32.mrb[0].mxu0
        %v4547 = vadd.f32 0.0, %v4546
        %v4548 = vpop.f32.mrb[0].mxu0
        %4549 = vmatprep.mubr.bf16.mxu0 0
        %4550 = vmatmul.mubr.bf16.gmra.mrb[0].mxu0 %v4423
        %v4551 = vpop.f32.mrb[0].mxu0
        %v4552 = vadd.f32 0.0, %v4551
        %v4553 = vpop.f32.mrb[0].mxu0
        %v4554 = vpop.f32.mrb[0].mxu0
        %v4555 = vadd.f32 0.0, %v4554
        %v4556 = vpop.f32.mrb[0].mxu0
        %4557 = vmatprep.mubr.bf16.mxu0 0
        %4558 = vmatmul.mubr.bf16.gmra.mrb[0].mxu0 %v4424
        %v4559 = vpop.f32.mrb[0].mxu0
        %v4560 = vadd.f32 0.0, %v4559
        %v4561 = vpop.f32.mrb[0].mxu0
        %v4562 = vpop.f32.mrb[0].mxu0
        %v4563 = vadd.f32 0.0, %v4562
        %v4564 = vpop.f32.mrb[0].mxu0
        %4565 = vmatprep.mubr.bf16.mxu0 0
        %4566 = vmatmul.mubr.bf16.gmra.mrb[0].mxu0 %v4425
        %v4567 = vpop.f32.mrb[0].mxu0
        %v4568 = vadd.f32 0.0, %v4567
        %v4569 = vpop.f32.mrb[0].mxu0
        %v4570 = vpop.f32.mrb[0].mxu0
        %v4571 = vadd.f32 0.0, %v4570
        %v4572 = vpop.f32.mrb[0].mxu0
        %4573 = vmatprep.mubr.bf16.mxu0 0
        %4574 = vmatmul.mubr.bf16.gmra.mrb[0].mxu0 %v4426
        %v4575 = vpop.f32.mrb[0].mxu0
        %v4576 = vadd.f32 0.0, %v4575
        %v4577 = vpop.f32.mrb[0].mxu0
        %v4578 = vpop.f32.mrb[0].mxu0
        %v4579 = vadd.f32 0.0, %v4578
        %v4580 = vpop.f32.mrb[0].mxu0
        %4581 = vmatprep.mubr.bf16.mxu0 0
        %4582 = vmatmul.mubr.bf16.gmra.mrb[0].mxu0 %v4427
        %v4583 = vpop.f32.mrb[0].mxu0
        %v4584 = vadd.f32 0.0, %v4583
        %v4585 = vpop.f32.mrb[0].mxu0
        %v4586 = vpop.f32.mrb[0].mxu0
        %v4587 = vadd.f32 0.0, %v4586
        %v4588 = vpop.f32.mrb[0].mxu0
        %4589 = vmatprep.mubr.bf16.mxu0 0
        %4590 = vmatmul.mubr.bf16.gmra.mrb[0].mxu0 %v4428
        %v4591 = vpop.f32.mrb[0].mxu0
        %v4592 = vadd.f32 0.0, %v4591
        %v4593 = vpop.f32.mrb[0].mxu0
        %v4594 = vpop.f32.mrb[0].mxu0
        %v4595 = vadd.f32 0.0, %v4594
        %v4596 = vpop.f32.mrb[0].mxu0
        %4597 = vmatprep.mubr.bf16.mxu0 0
        %4598 = vmatmul.mubr.bf16.gmra.mrb[0].mxu0 %v4429
        %v4599 = vpop.f32.mrb[0].mxu0
        %v4600 = vadd.f32 0.0, %v4599
        %v4601 = vpop.f32.mrb[0].mxu0
        %v4602 = vpop.f32.mrb[0].mxu0
        %v4603 = vadd.f32 0.0, %v4602
        %v4604 = vpop.f32.mrb[0].mxu0
        %4605 = vmatprep.mubr.bf16.mxu0 0
        %4606 = vmatmul.mubr.bf16.gmra.mrb[0].mxu0 %v4430
        %v4607 = vpop.f32.mrb[0].mxu0
        %v4608 = vadd.f32 0.0, %v4607
        %v4609 = vpop.f32.mrb[0].mxu0
        %v4610 = vpop.f32.mrb[0].mxu0
        %v4611 = vadd.f32 0.0, %v4610
        %v4612 = vpop.f32.mrb[0].mxu0
        %4613 = vmatprep.mubr.bf16.mxu0 0
        %4614 = vmatmul.mubr.bf16.gmra.mrb[0].mxu0 %v4431
        %v4615 = vpop.f32.mrb[0].mxu0
        %v4616 = vadd.f32 0.0, %v4615
        %v4617 = vpop.f32.mrb[0].mxu0
        %v4618 = vpop.f32.mrb[0].mxu0
        %v4619 = vadd.f32 0.0, %v4618
        %v4620 = vpop.f32.mrb[0].mxu0
        %4621 = vmatprep.mubr.bf16.mxu0 0
        %4622 = vmatmul.mubr.bf16.gmra.mrb[0].mxu0 %v4432
        %v4623 = vpop.f32.mrb[0].mxu0
        %v4624 = vadd.f32 0.0, %v4623
        %v4625 = vpop.f32.mrb[0].mxu0
        %v4626 = vpop.f32.mrb[0].mxu0
        %v4627 = vadd.f32 0.0, %v4626
        %v4628 = vpop.f32.mrb[0].mxu0
        %4629 = vmatprep.mubr.bf16.mxu0 0
        %4630 = vmatmul.mubr.bf16.gmra.mrb[0].mxu0 %v4433
        %v4631 = vpop.f32.mrb[0].mxu0
        %v4632 = vadd.f32 0.0, %v4631
        %v4633 = vpop.f32.mrb[0].mxu0
        %v4634 = vpop.f32.mrb[0].mxu0
        %v4635 = vadd.f32 0.0, %v4634
        %v4636 = vpop.f32.mrb[0].mxu0
        %4637 = vmatprep.mubr.bf16.mxu0 0
        %4638 = vmatmul.mubr.bf16.gmra.mrb[0].mxu0 %v4434
        %v4639 = vpop.f32.mrb[0].mxu0
        %v4640 = vadd.f32 0.0, %v4639
        %v4641 = vpop.f32.mrb[0].mxu0
        %v4642 = vpop.f32.mrb[0].mxu0
        %v4643 = vadd.f32 0.0, %v4642
        %v4644 = vpop.f32.mrb[0].mxu0
        %4645 = vmatprep.mubr.bf16.mxu0 0
        %4646 = vmatmul.mubr.bf16.gmra.mrb[0].mxu0 %v4435
        %v4647 = vpop.f32.mrb[0].mxu0
        %v4648 = vadd.f32 0.0, %v4647
        %v4649 = vpop.f32.mrb[0].mxu0
        %v4650 = vpop.f32.mrb[0].mxu0
        %v4651 = vadd.f32 0.0, %v4650
        %v4652 = vpop.f32.mrb[0].mxu0
        %4653 = vmatprep.mubr.bf16.mxu0 0
        %4654 = vmatmul.mubr.bf16.gmra.mrb[0].mxu0 %v4436
        %v4655 = vpop.f32.mrb[0].mxu0
        %v4656 = vadd.f32 0.0, %v4655
        %v4657 = vpop.f32.mrb[0].mxu0
        %v4658 = vpop.f32.mrb[0].mxu0
        %v4659 = vadd.f32 0.0, %v4658
        %v4660 = vpop.f32.mrb[0].mxu0
        %4661 = vdwg.mxu0
        %v4662 = vadd.f32 %v3909, %v4536
        %v4663 = vadd.f32 %v3910, %v4539
        %v4664 = vadd.f32 %v3911, %v4544
        %v4665 = vadd.f32 %v3912, %v4547
        %v4666 = vadd.f32 %v3913, %v4552
        %v4667 = vadd.f32 %v3914, %v4555
        %v4668 = vadd.f32 %v3915, %v4560
        %v4669 = vadd.f32 %v3916, %v4563
        %v4670 = vadd.f32 %v3917, %v4568
        %v4671 = vadd.f32 %v3918, %v4571
        %v4672 = vadd.f32 %v3919, %v4576
        %v4673 = vadd.f32 %v3920, %v4579
        %v4674 = vadd.f32 %v3921, %v4584
        %v4675 = vadd.f32 %v3922, %v4587
        %v4676 = vadd.f32 %v3923, %v4592
        %v4677 = vadd.f32 %v3924, %v4595
        %v4678 = vadd.f32 %v3925, %v4600
        %v4679 = vadd.f32 %v3926, %v4603
        %v4680 = vadd.f32 %v3927, %v4608
        %v4681 = vadd.f32 %v3928, %v4611
        %v4682 = vadd.f32 %v3929, %v4616
        %v4683 = vadd.f32 %v3930, %v4619
        %v4684 = vadd.f32 %v3931, %v4624
        %v4685 = vadd.f32 %v3932, %v4627
        %v4686 = vadd.f32 %v3933, %v4632
        %v4687 = vadd.f32 %v3934, %v4635
        %v4688 = vadd.f32 %v3935, %v4640
        %v4689 = vadd.f32 %v3936, %v4643
        %v4690 = vadd.f32 %v3937, %v4648
        %v4691 = vadd.f32 %v3938, %v4651
        %v4692 = vadd.f32 %v3939, %v4656
        %v4693 = vadd.f32 %v3940, %v4659
        %v4694 = vld [vmem:[%s3555] sm:$0xe]
        %v4695 = vld [vmem:[%s3555 + $0xc] sm:$0xe]
        %v4696 = vld [vmem:[%s3555 + $0x18] sm:$0xe]
        %v4697 = vld [vmem:[%s3555 + $0x24] sm:$0xe]
        %v4698 = vld [vmem:[%s3555 + $0x30] sm:$0xe]
        %v4699 = vld [vmem:[%s3555 + $0x3c] sm:$0xe]
        %v4700 = vld [vmem:[%s3555 + $0x48] sm:$0xe]
        %v4701 = vld [vmem:[%s3555 + $0x54] sm:$0xe]
        %v4702 = vld [vmem:[%s3555 + $0x60] sm:$0xe]
        %v4703 = vld [vmem:[%s3555 + $0x6c] sm:$0xe]
        %v4704 = vld [vmem:[%s3555 + $0x78] sm:$0xe]
        %v4705 = vld [vmem:[%s3555 + $0x84] sm:$0xe]
        %v4706 = vld [vmem:[%s3555 + $0x90] sm:$0xe]
        %v4707 = vld [vmem:[%s3555 + $0x9c] sm:$0xe]
        %v4708 = vld [vmem:[%s3555 + $0xa8] sm:$0xe]
        %v4709 = vld [vmem:[%s3555 + $0xb4] sm:$0xe]
        %v4758 = vrot.slane %v4694, 5
        %v4759 = vrot.slane %v4758, 4
        %v4760 = vrot.slane %v3942, 5
        %v4761 = vsel %vm3121, %v4759, %v4760
        %v4762 = vrot.slane %v4760, 4
        %v4763 = vrot.slane %v3943, 5
        %v4764 = vsel %vm3121, %v4762, %v4763
        %v4765 = vrot.slane %v4695, 5
        %v4766 = vrot.slane %v4765, 4
        %v4767 = vrot.slane %v3945, 5
        %v4768 = vsel %vm3121, %v4766, %v4767
        %v4769 = vrot.slane %v4767, 4
        %v4770 = vrot.slane %v3946, 5
        %v4771 = vsel %vm3121, %v4769, %v4770
        %v4772 = vrot.slane %v4696, 5
        %v4773 = vrot.slane %v4772, 4
        %v4774 = vrot.slane %v3948, 5
        %v4775 = vsel %vm3121, %v4773, %v4774
        %v4776 = vrot.slane %v4774, 4
        %v4777 = vrot.slane %v3949, 5
        %v4778 = vsel %vm3121, %v4776, %v4777
        %v4779 = vrot.slane %v4697, 5
        %v4780 = vrot.slane %v4779, 4
        %v4781 = vrot.slane %v3951, 5
        %v4782 = vsel %vm3121, %v4780, %v4781
        %v4783 = vrot.slane %v4781, 4
        %v4784 = vrot.slane %v3952, 5
        %v4785 = vsel %vm3121, %v4783, %v4784
        %v4786 = vrot.slane %v4698, 5
        %v4787 = vrot.slane %v4786, 4
        %v4788 = vrot.slane %v3954, 5
        %v4789 = vsel %vm3121, %v4787, %v4788
        %v4790 = vrot.slane %v4788, 4
        %v4791 = vrot.slane %v3955, 5
        %v4792 = vsel %vm3121, %v4790, %v4791
        %v4793 = vrot.slane %v4699, 5
        %v4794 = vrot.slane %v4793, 4
        %v4795 = vrot.slane %v3957, 5
        %v4796 = vsel %vm3121, %v4794, %v4795
        %v4797 = vrot.slane %v4795, 4
        %v4798 = vrot.slane %v3958, 5
        %v4799 = vsel %vm3121, %v4797, %v4798
        %v4800 = vrot.slane %v4700, 5
        %v4801 = vrot.slane %v4800, 4
        %v4802 = vrot.slane %v3960, 5
        %v4803 = vsel %vm3121, %v4801, %v4802
        %v4804 = vrot.slane %v4802, 4
        %v4805 = vrot.slane %v3961, 5
        %v4806 = vsel %vm3121, %v4804, %v4805
        %v4807 = vrot.slane %v4701, 5
        %v4808 = vrot.slane %v4807, 4
        %v4809 = vrot.slane %v3963, 5
        %v4810 = vsel %vm3121, %v4808, %v4809
        %v4811 = vrot.slane %v4809, 4
        %v4812 = vrot.slane %v3964, 5
        %v4813 = vsel %vm3121, %v4811, %v4812
        %v4814 = vrot.slane %v4702, 5
        %v4815 = vrot.slane %v4814, 4
        %v4816 = vrot.slane %v3966, 5
        %v4817 = vsel %vm3121, %v4815, %v4816
        %v4818 = vrot.slane %v4816, 4
        %v4819 = vrot.slane %v3967, 5
        %v4820 = vsel %vm3121, %v4818, %v4819
        %v4821 = vrot.slane %v4703, 5
        %v4822 = vrot.slane %v4821, 4
        %v4823 = vrot.slane %v3969, 5
        %v4824 = vsel %vm3121, %v4822, %v4823
        %v4825 = vrot.slane %v4823, 4
        %v4826 = vrot.slane %v3970, 5
        %v4827 = vsel %vm3121, %v4825, %v4826
        %v4828 = vrot.slane %v4704, 5
        %v4829 = vrot.slane %v4828, 4
        %v4830 = vrot.slane %v3972, 5
        %v4831 = vsel %vm3121, %v4829, %v4830
        %v4832 = vrot.slane %v4830, 4
        %v4833 = vrot.slane %v3973, 5
        %v4834 = vsel %vm3121, %v4832, %v4833
        %v4835 = vrot.slane %v4705, 5
        %v4836 = vrot.slane %v4835, 4
        %v4837 = vrot.slane %v3975, 5
        %v4838 = vsel %vm3121, %v4836, %v4837
        %v4839 = vrot.slane %v4837, 4
        %v4840 = vrot.slane %v3976, 5
        %v4841 = vsel %vm3121, %v4839, %v4840
        %v4842 = vrot.slane %v4706, 5
        %v4843 = vrot.slane %v4842, 4
        %v4844 = vrot.slane %v3978, 5
        %v4845 = vsel %vm3121, %v4843, %v4844
        %v4846 = vrot.slane %v4844, 4
        %v4847 = vrot.slane %v3979, 5
        %v4848 = vsel %vm3121, %v4846, %v4847
        %v4849 = vrot.slane %v4707, 5
        %v4850 = vrot.slane %v4849, 4
        %v4851 = vrot.slane %v3981, 5
        %v4852 = vsel %vm3121, %v4850, %v4851
        %v4853 = vrot.slane %v4851, 4
        %v4854 = vrot.slane %v3982, 5
        %v4855 = vsel %vm3121, %v4853, %v4854
        %v4856 = vrot.slane %v4708, 5
        %v4857 = vrot.slane %v4856, 4
        %v4858 = vrot.slane %v3984, 5
        %v4859 = vsel %vm3121, %v4857, %v4858
        %v4860 = vrot.slane %v4858, 4
        %v4861 = vrot.slane %v3985, 5
        %v4862 = vsel %vm3121, %v4860, %v4861
        %v4863 = vrot.slane %v4709, 5
        %v4864 = vrot.slane %v4863, 4
        %v4865 = vrot.slane %v3987, 5
        %v4866 = vsel %vm3121, %v4864, %v4865
        %v4867 = vrot.slane %v4865, 4
        %v4868 = vrot.slane %v3988, 5
        %v4869 = vsel %vm3121, %v4867, %v4868
        %v4870 = vld [vmem:[#allocation9 + $0x140] sm:$0xf]
        %v4871 = vld [vmem:[#allocation9 + $0x144] sm:$0xf]
        %v4872 = vld [vmem:[#allocation9 + $0x148] sm:$0xf]
        %v4873 = vld [vmem:[#allocation9 + $0x14c] sm:$0xf]
        %v4874 = vld [vmem:[#allocation9 + $0x150] sm:$0xf]
        %v4875 = vld [vmem:[#allocation9 + $0x154] sm:$0xf]
        %v4876 = vld [vmem:[#allocation9 + $0x158] sm:$0xf]
        %v4877 = vld [vmem:[#allocation9 + $0x15c] sm:$0xf]
        %v4878 = vld [vmem:[#allocation9 + $0x160] sm:$0xf]
        %v4879 = vld [vmem:[#allocation9 + $0x164] sm:$0xf]
        %v4880 = vld [vmem:[#allocation9 + $0x168] sm:$0xf]
        %v4881 = vld [vmem:[#allocation9 + $0x16c] sm:$0xf]
        %v4882 = vld [vmem:[#allocation9 + $0x170] sm:$0xf]
        %v4883 = vld [vmem:[#allocation9 + $0x174] sm:$0xf]
        %v4884 = vld [vmem:[#allocation9 + $0x178] sm:$0xf]
        %v4885 = vld [vmem:[#allocation9 + $0x17c] sm:$0xf]
        %v4886 = vunpack.c.l.b16 %v4761
        %v4887 = vunpack.c.l.b16 %v4764
        %v4888 = vunpack.c.l.b16 %v4768
        %v4889 = vunpack.c.l.b16 %v4771
        %v4890 = vunpack.c.l.b16 %v4775
        %v4891 = vunpack.c.l.b16 %v4778
        %v4892 = vunpack.c.l.b16 %v4782
        %v4893 = vunpack.c.l.b16 %v4785
        %v4894 = vunpack.c.l.b16 %v4789
        %v4895 = vunpack.c.l.b16 %v4792
        %v4896 = vunpack.c.l.b16 %v4796
        %v4897 = vunpack.c.l.b16 %v4799
        %v4898 = vunpack.c.l.b16 %v4803
        %v4899 = vunpack.c.l.b16 %v4806
        %v4900 = vunpack.c.l.b16 %v4810
        %v4901 = vunpack.c.l.b16 %v4813
        %v4902 = vunpack.c.l.b16 %v4817
        %v4903 = vunpack.c.l.b16 %v4820
        %v4904 = vunpack.c.l.b16 %v4824
        %v4905 = vunpack.c.l.b16 %v4827
        %v4906 = vunpack.c.l.b16 %v4831
        %v4907 = vunpack.c.l.b16 %v4834
        %v4908 = vunpack.c.l.b16 %v4838
        %v4909 = vunpack.c.l.b16 %v4841
        %v4910 = vunpack.c.l.b16 %v4845
        %v4911 = vunpack.c.l.b16 %v4848
        %v4912 = vunpack.c.l.b16 %v4852
        %v4913 = vunpack.c.l.b16 %v4855
        %v4914 = vunpack.c.l.b16 %v4859
        %v4915 = vunpack.c.l.b16 %v4862
        %v4916 = vunpack.c.l.b16 %v4866
        %v4917 = vunpack.c.l.b16 %v4869
        %v4918 = vpack.c.b16 %v4887, %v4886
        %v4919 = vpack.c.b16 %v4889, %v4888
        %v4920 = vpack.c.b16 %v4891, %v4890
        %v4921 = vpack.c.b16 %v4893, %v4892
        %v4922 = vpack.c.b16 %v4895, %v4894
        %v4923 = vpack.c.b16 %v4897, %v4896
        %v4924 = vpack.c.b16 %v4899, %v4898
        %v4925 = vpack.c.b16 %v4901, %v4900
        %v4926 = vpack.c.b16 %v4903, %v4902
        %v4927 = vpack.c.b16 %v4905, %v4904
        %v4928 = vpack.c.b16 %v4907, %v4906
        %v4929 = vpack.c.b16 %v4909, %v4908
        %v4930 = vpack.c.b16 %v4911, %v4910
        %v4931 = vpack.c.b16 %v4913, %v4912
        %v4932 = vpack.c.b16 %v4915, %v4914
        %v4933 = vpack.c.b16 %v4917, %v4916
        %v4966 = vunpack.c.l.b16 %v4870
        %v4967 = vunpack.c.l.b16 %v4871
        %v4968 = vunpack.c.l.b16 %v4872
        %v4969 = vunpack.c.l.b16 %v4873
        %v4970 = vunpack.c.l.b16 %v4874
        %v4971 = vunpack.c.l.b16 %v4875
        %v4972 = vunpack.c.l.b16 %v4876
        %v4973 = vunpack.c.l.b16 %v4877
        %v4974 = vunpack.c.l.b16 %v4878
        %v4975 = vunpack.c.l.b16 %v4879
        %v4976 = vunpack.c.l.b16 %v4880
        %v4977 = vunpack.c.l.b16 %v4881
        %v4978 = vunpack.c.l.b16 %v4882
        %v4979 = vunpack.c.l.b16 %v4883
        %v4980 = vunpack.c.l.b16 %v4884
        %v4981 = vunpack.c.l.b16 %v4885
        %v4982 = vpack.c.b16 %v4967, %v4966
        %v4983 = vpack.c.b16 %v4969, %v4968
        %v4984 = vpack.c.b16 %v4971, %v4970
        %v4985 = vpack.c.b16 %v4973, %v4972
        %v4986 = vpack.c.b16 %v4975, %v4974
        %v4987 = vpack.c.b16 %v4977, %v4976
        %v4988 = vpack.c.b16 %v4979, %v4978
        %v4989 = vpack.c.b16 %v4981, %v4980
        %4998 = vmatprep.subr.bf16.mxu0 0
        %4999 = vmatpush1.bf16.msra.mxu0 %v4982
        %5000 = vmatprep.subr.bf16.mxu0 0
        %5001 = vmatpush1.bf16.msra.mxu0 %v4983
        %5002 = vmatprep.subr.bf16.mxu0 0
        %5003 = vmatpush1.bf16.msra.mxu0 %v4984
        %5004 = vmatprep.subr.bf16.mxu0 0
        %5005 = vmatpush1.bf16.msra.mxu0 %v4985
        %5006 = vmatprep.subr.bf16.mxu0 0
        %5007 = vmatpush1.bf16.msra.mxu0 %v4986
        %5008 = vmatprep.subr.bf16.mxu0 0
        %5009 = vmatpush1.bf16.msra.mxu0 %v4987
        %5010 = vmatprep.subr.bf16.mxu0 0
        %5011 = vmatpush1.bf16.msra.mxu0 %v4988
        %5012 = vmatprep.subr.bf16.mxu0 0
        %5013 = vmatpush1.bf16.msra.mxu0 %v4989
        %5014 = vmatprep.subr.bf16.mxu0 0
        %5015 = vmatpush1.bf16.msra.mxu0 0
        %5016 = vmatprep.subr.bf16.mxu0 0
        %5017 = vmatpush1.bf16.msra.mxu0 0
        %5018 = vmatprep.subr.bf16.mxu0 0
        %5019 = vmatpush1.bf16.msra.mxu0 0
        %5020 = vmatprep.subr.bf16.mxu0 0
        %5021 = vmatpush1.bf16.msra.mxu0 0
        %5022 = vmatprep.subr.bf16.mxu0 0
        %5023 = vmatpush1.bf16.msra.mxu0 0
        %5024 = vmatprep.subr.bf16.mxu0 0
        %5025 = vmatpush1.bf16.msra.mxu0 0
        %5026 = vmatprep.subr.bf16.mxu0 0
        %5027 = vmatpush1.bf16.msra.mxu0 0
        %5028 = vmatprep.subr.bf16.mxu0 0
        %5029 = vmatpush1.bf16.msra.mxu0 0
        %5030 = vmatprep.mubr.bf16.mxu0 0
        %5031 = vmatmul.mubr.bf16.gmra.mrb[0].mxu0 %v4918
        %v5032 = vpop.f32.mrb[0].mxu0
        %v5033 = vadd.f32 0.0, %v5032
        %v5034 = vpop.f32.mrb[0].mxu0
        %v5035 = vpop.f32.mrb[0].mxu0
        %v5036 = vadd.f32 0.0, %v5035
        %v5037 = vpop.f32.mrb[0].mxu0
        %5038 = vmatprep.mubr.bf16.mxu0 0
        %5039 = vmatmul.mubr.bf16.gmra.mrb[0].mxu0 %v4919
        %v5040 = vpop.f32.mrb[0].mxu0
        %v5041 = vadd.f32 0.0, %v5040
        %v5042 = vpop.f32.mrb[0].mxu0
        %v5043 = vpop.f32.mrb[0].mxu0
        %v5044 = vadd.f32 0.0, %v5043
        %v5045 = vpop.f32.mrb[0].mxu0
        %5046 = vmatprep.mubr.bf16.mxu0 0
        %5047 = vmatmul.mubr.bf16.gmra.mrb[0].mxu0 %v4920
        %v5048 = vpop.f32.mrb[0].mxu0
        %v5049 = vadd.f32 0.0, %v5048
        %v5050 = vpop.f32.mrb[0].mxu0
        %v5051 = vpop.f32.mrb[0].mxu0
        %v5052 = vadd.f32 0.0, %v5051
        %v5053 = vpop.f32.mrb[0].mxu0
        %5054 = vmatprep.mubr.bf16.mxu0 0
        %5055 = vmatmul.mubr.bf16.gmra.mrb[0].mxu0 %v4921
        %v5056 = vpop.f32.mrb[0].mxu0
        %v5057 = vadd.f32 0.0, %v5056
        %v5058 = vpop.f32.mrb[0].mxu0
        %v5059 = vpop.f32.mrb[0].mxu0
        %v5060 = vadd.f32 0.0, %v5059
        %v5061 = vpop.f32.mrb[0].mxu0
        %5062 = vmatprep.mubr.bf16.mxu0 0
        %5063 = vmatmul.mubr.bf16.gmra.mrb[0].mxu0 %v4922
        %v5064 = vpop.f32.mrb[0].mxu0
        %v5065 = vadd.f32 0.0, %v5064
        %v5066 = vpop.f32.mrb[0].mxu0
        %v5067 = vpop.f32.mrb[0].mxu0
        %v5068 = vadd.f32 0.0, %v5067
        %v5069 = vpop.f32.mrb[0].mxu0
        %5070 = vmatprep.mubr.bf16.mxu0 0
        %5071 = vmatmul.mubr.bf16.gmra.mrb[0].mxu0 %v4923
        %v5072 = vpop.f32.mrb[0].mxu0
        %v5073 = vadd.f32 0.0, %v5072
        %v5074 = vpop.f32.mrb[0].mxu0
        %v5075 = vpop.f32.mrb[0].mxu0
        %v5076 = vadd.f32 0.0, %v5075
        %v5077 = vpop.f32.mrb[0].mxu0
        %5078 = vmatprep.mubr.bf16.mxu0 0
        %5079 = vmatmul.mubr.bf16.gmra.mrb[0].mxu0 %v4924
        %v5080 = vpop.f32.mrb[0].mxu0
        %v5081 = vadd.f32 0.0, %v5080
        %v5082 = vpop.f32.mrb[0].mxu0
        %v5083 = vpop.f32.mrb[0].mxu0
        %v5084 = vadd.f32 0.0, %v5083
        %v5085 = vpop.f32.mrb[0].mxu0
        %5086 = vmatprep.mubr.bf16.mxu0 0
        %5087 = vmatmul.mubr.bf16.gmra.mrb[0].mxu0 %v4925
        %v5088 = vpop.f32.mrb[0].mxu0
        %v5089 = vadd.f32 0.0, %v5088
        %v5090 = vpop.f32.mrb[0].mxu0
        %v5091 = vpop.f32.mrb[0].mxu0
        %v5092 = vadd.f32 0.0, %v5091
        %v5093 = vpop.f32.mrb[0].mxu0
        %5094 = vmatprep.mubr.bf16.mxu0 0
        %5095 = vmatmul.mubr.bf16.gmra.mrb[0].mxu0 %v4926
        %v5096 = vpop.f32.mrb[0].mxu0
        %v5097 = vadd.f32 0.0, %v5096
        %v5098 = vpop.f32.mrb[0].mxu0
        %v5099 = vpop.f32.mrb[0].mxu0
        %v5100 = vadd.f32 0.0, %v5099
        %v5101 = vpop.f32.mrb[0].mxu0
        %5102 = vmatprep.mubr.bf16.mxu0 0
        %5103 = vmatmul.mubr.bf16.gmra.mrb[0].mxu0 %v4927
        %v5104 = vpop.f32.mrb[0].mxu0
        %v5105 = vadd.f32 0.0, %v5104
        %v5106 = vpop.f32.mrb[0].mxu0
        %v5107 = vpop.f32.mrb[0].mxu0
        %v5108 = vadd.f32 0.0, %v5107
        %v5109 = vpop.f32.mrb[0].mxu0
        %5110 = vmatprep.mubr.bf16.mxu0 0
        %5111 = vmatmul.mubr.bf16.gmra.mrb[0].mxu0 %v4928
        %v5112 = vpop.f32.mrb[0].mxu0
        %v5113 = vadd.f32 0.0, %v5112
        %v5114 = vpop.f32.mrb[0].mxu0
        %v5115 = vpop.f32.mrb[0].mxu0
        %v5116 = vadd.f32 0.0, %v5115
        %v5117 = vpop.f32.mrb[0].mxu0
        %5118 = vmatprep.mubr.bf16.mxu0 0
        %5119 = vmatmul.mubr.bf16.gmra.mrb[0].mxu0 %v4929
        %v5120 = vpop.f32.mrb[0].mxu0
        %v5121 = vadd.f32 0.0, %v5120
        %v5122 = vpop.f32.mrb[0].mxu0
        %v5123 = vpop.f32.mrb[0].mxu0
        %v5124 = vadd.f32 0.0, %v5123
        %v5125 = vpop.f32.mrb[0].mxu0
        %5126 = vmatprep.mubr.bf16.mxu0 0
        %5127 = vmatmul.mubr.bf16.gmra.mrb[0].mxu0 %v4930
        %v5128 = vpop.f32.mrb[0].mxu0
        %v5129 = vadd.f32 0.0, %v5128
        %v5130 = vpop.f32.mrb[0].mxu0
        %v5131 = vpop.f32.mrb[0].mxu0
        %v5132 = vadd.f32 0.0, %v5131
        %v5133 = vpop.f32.mrb[0].mxu0
        %5134 = vmatprep.mubr.bf16.mxu0 0
        %5135 = vmatmul.mubr.bf16.gmra.mrb[0].mxu0 %v4931
        %v5136 = vpop.f32.mrb[0].mxu0
        %v5137 = vadd.f32 0.0, %v5136
        %v5138 = vpop.f32.mrb[0].mxu0
        %v5139 = vpop.f32.mrb[0].mxu0
        %v5140 = vadd.f32 0.0, %v5139
        %v5141 = vpop.f32.mrb[0].mxu0
        %5142 = vmatprep.mubr.bf16.mxu0 0
        %5143 = vmatmul.mubr.bf16.gmra.mrb[0].mxu0 %v4932
        %v5144 = vpop.f32.mrb[0].mxu0
        %v5145 = vadd.f32 0.0, %v5144
        %v5146 = vpop.f32.mrb[0].mxu0
        %v5147 = vpop.f32.mrb[0].mxu0
        %v5148 = vadd.f32 0.0, %v5147
        %v5149 = vpop.f32.mrb[0].mxu0
        %5150 = vmatprep.mubr.bf16.mxu0 0
        %5151 = vmatmul.mubr.bf16.gmra.mrb[0].mxu0 %v4933
        %v5152 = vpop.f32.mrb[0].mxu0
        %v5153 = vadd.f32 0.0, %v5152
        %v5154 = vpop.f32.mrb[0].mxu0
        %v5155 = vpop.f32.mrb[0].mxu0
        %v5156 = vadd.f32 0.0, %v5155
        %v5157 = vpop.f32.mrb[0].mxu0
        %5158 = vdwg.mxu0
        %v5159 = vadd.f32 %v4662, %v5033
        %v5160 = vadd.f32 %v4663, %v5036
        %v5161 = vadd.f32 %v4664, %v5041
        %v5162 = vadd.f32 %v4665, %v5044
        %v5163 = vadd.f32 %v4666, %v5049
        %v5164 = vadd.f32 %v4667, %v5052
        %v5165 = vadd.f32 %v4668, %v5057
        %v5166 = vadd.f32 %v4669, %v5060
        %v5167 = vadd.f32 %v4670, %v5065
        %v5168 = vadd.f32 %v4671, %v5068
        %v5169 = vadd.f32 %v4672, %v5073
        %v5170 = vadd.f32 %v4673, %v5076
        %v5171 = vadd.f32 %v4674, %v5081
        %v5172 = vadd.f32 %v4675, %v5084
        %v5173 = vadd.f32 %v4676, %v5089
        %v5174 = vadd.f32 %v4677, %v5092
        %v5175 = vadd.f32 %v4678, %v5097
        %v5176 = vadd.f32 %v4679, %v5100
        %v5177 = vadd.f32 %v4680, %v5105
        %v5178 = vadd.f32 %v4681, %v5108
        %v5179 = vadd.f32 %v4682, %v5113
        %v5180 = vadd.f32 %v4683, %v5116
        %v5181 = vadd.f32 %v4684, %v5121
        %v5182 = vadd.f32 %v4685, %v5124
        %v5183 = vadd.f32 %v4686, %v5129
        %v5184 = vadd.f32 %v4687, %v5132
        %v5185 = vadd.f32 %v4688, %v5137
        %v5186 = vadd.f32 %v4689, %v5140
        %v5187 = vadd.f32 %v4690, %v5145
        %v5188 = vadd.f32 %v4691, %v5148
        %v5189 = vadd.f32 %v4692, %v5153
        %v5190 = vadd.f32 %v4693, %v5156
        %s5191 = scalar_lea.vmem [#allocation2], 24
        %v5192 = vld [vmem:[%s5191] sm:$0xf]
        %v5193 = vld [vmem:[%s5191 + $0x4] sm:$0xf]
        %v5194 = vld [vmem:[%s5191 + $0xc] sm:$0xf]
        %v5195 = vld [vmem:[%s5191 + $0x10] sm:$0xf]
        %v5196 = vld [vmem:[%s5191 + $0x18] sm:$0xf]
        %v5197 = vld [vmem:[%s5191 + $0x1c] sm:$0xf]
        %v5198 = vld [vmem:[%s5191 + $0x24] sm:$0xf]
        %v5199 = vld [vmem:[%s5191 + $0x28] sm:$0xf]
        %v5200 = vld [vmem:[%s5191 + $0x30] sm:$0xf]
        %v5201 = vld [vmem:[%s5191 + $0x34] sm:$0xf]
        %v5202 = vld [vmem:[%s5191 + $0x3c] sm:$0xf]
        %v5203 = vld [vmem:[%s5191 + $0x40] sm:$0xf]
        %v5204 = vld [vmem:[%s5191 + $0x48] sm:$0xf]
        %v5205 = vld [vmem:[%s5191 + $0x4c] sm:$0xf]
        %v5206 = vld [vmem:[%s5191 + $0x54] sm:$0xf]
        %v5207 = vld [vmem:[%s5191 + $0x58] sm:$0xf]
        %v5208 = vld [vmem:[%s5191 + $0x60] sm:$0xf]
        %v5209 = vld [vmem:[%s5191 + $0x64] sm:$0xf]
        %v5210 = vld [vmem:[%s5191 + $0x6c] sm:$0xf]
        %v5211 = vld [vmem:[%s5191 + $0x70] sm:$0xf]
        %v5212 = vld [vmem:[%s5191 + $0x78] sm:$0xf]
        %v5213 = vld [vmem:[%s5191 + $0x7c] sm:$0xf]
        %v5214 = vld [vmem:[%s5191 + $0x84] sm:$0xf]
        %v5215 = vld [vmem:[%s5191 + $0x88] sm:$0xf]
        %v5216 = vld [vmem:[%s5191 + $0x90] sm:$0xf]
        %v5217 = vld [vmem:[%s5191 + $0x94] sm:$0xf]
        %v5218 = vld [vmem:[%s5191 + $0x9c] sm:$0xf]
        %v5219 = vld [vmem:[%s5191 + $0xa0] sm:$0xf]
        %v5220 = vld [vmem:[%s5191 + $0xa8] sm:$0xf]
        %v5221 = vld [vmem:[%s5191 + $0xac] sm:$0xf]
        %v5222 = vld [vmem:[%s5191 + $0xb4] sm:$0xf]
        %v5223 = vld [vmem:[%s5191 + $0xb8] sm:$0xf]
        %v5224 = vld [vmem:[#allocation9 + $0x180] sm:$0xf]
        %v5225 = vld [vmem:[#allocation9 + $0x184] sm:$0xf]
        %v5226 = vld [vmem:[#allocation9 + $0x188] sm:$0xf]
        %v5227 = vld [vmem:[#allocation9 + $0x18c] sm:$0xf]
        %v5228 = vld [vmem:[#allocation9 + $0x190] sm:$0xf]
        %v5229 = vld [vmem:[#allocation9 + $0x194] sm:$0xf]
        %v5230 = vld [vmem:[#allocation9 + $0x198] sm:$0xf]
        %v5231 = vld [vmem:[#allocation9 + $0x19c] sm:$0xf]
        %v5232 = vld [vmem:[#allocation9 + $0x1a0] sm:$0xf]
        %v5233 = vld [vmem:[#allocation9 + $0x1a4] sm:$0xf]
        %v5234 = vld [vmem:[#allocation9 + $0x1a8] sm:$0xf]
        %v5235 = vld [vmem:[#allocation9 + $0x1ac] sm:$0xf]
        %v5236 = vld [vmem:[#allocation9 + $0x1b0] sm:$0xf]
        %v5237 = vld [vmem:[#allocation9 + $0x1b4] sm:$0xf]
        %v5238 = vld [vmem:[#allocation9 + $0x1b8] sm:$0xf]
        %v5239 = vld [vmem:[#allocation9 + $0x1bc] sm:$0xf]
        %v5272 = vunpack.c.l.b16 %v5192
        %v5273 = vunpack.c.l.b16 %v5193
        %v5274 = vunpack.c.l.b16 %v5194
        %v5275 = vunpack.c.l.b16 %v5195
        %v5276 = vunpack.c.l.b16 %v5196
        %v5277 = vunpack.c.l.b16 %v5197
        %v5278 = vunpack.c.l.b16 %v5198
        %v5279 = vunpack.c.l.b16 %v5199
        %v5280 = vunpack.c.l.b16 %v5200
        %v5281 = vunpack.c.l.b16 %v5201
        %v5282 = vunpack.c.l.b16 %v5202
        %v5283 = vunpack.c.l.b16 %v5203
        %v5284 = vunpack.c.l.b16 %v5204
        %v5285 = vunpack.c.l.b16 %v5205
        %v5286 = vunpack.c.l.b16 %v5206
        %v5287 = vunpack.c.l.b16 %v5207
        %v5288 = vunpack.c.l.b16 %v5208
        %v5289 = vunpack.c.l.b16 %v5209
        %v5290 = vunpack.c.l.b16 %v5210
        %v5291 = vunpack.c.l.b16 %v5211
        %v5292 = vunpack.c.l.b16 %v5212
        %v5293 = vunpack.c.l.b16 %v5213
        %v5294 = vunpack.c.l.b16 %v5214
        %v5295 = vunpack.c.l.b16 %v5215
        %v5296 = vunpack.c.l.b16 %v5216
        %v5297 = vunpack.c.l.b16 %v5217
        %v5298 = vunpack.c.l.b16 %v5218
        %v5299 = vunpack.c.l.b16 %v5219
        %v5300 = vunpack.c.l.b16 %v5220
        %v5301 = vunpack.c.l.b16 %v5221
        %v5302 = vunpack.c.l.b16 %v5222
        %v5303 = vunpack.c.l.b16 %v5223
        %v5304 = vpack.c.b16 %v5273, %v5272
        %v5305 = vpack.c.b16 %v5275, %v5274
        %v5306 = vpack.c.b16 %v5277, %v5276
        %v5307 = vpack.c.b16 %v5279, %v5278
        %v5308 = vpack.c.b16 %v5281, %v5280
        %v5309 = vpack.c.b16 %v5283, %v5282
        %v5310 = vpack.c.b16 %v5285, %v5284
        %v5311 = vpack.c.b16 %v5287, %v5286
        %v5312 = vpack.c.b16 %v5289, %v5288
        %v5313 = vpack.c.b16 %v5291, %v5290
        %v5314 = vpack.c.b16 %v5293, %v5292
        %v5315 = vpack.c.b16 %v5295, %v5294
        %v5316 = vpack.c.b16 %v5297, %v5296
        %v5317 = vpack.c.b16 %v5299, %v5298
        %v5318 = vpack.c.b16 %v5301, %v5300
        %v5319 = vpack.c.b16 %v5303, %v5302
        %v5352 = vunpack.c.l.b16 %v5224
        %v5353 = vunpack.c.l.b16 %v5225
        %v5354 = vunpack.c.l.b16 %v5226
        %v5355 = vunpack.c.l.b16 %v5227
        %v5356 = vunpack.c.l.b16 %v5228
        %v5357 = vunpack.c.l.b16 %v5229
        %v5358 = vunpack.c.l.b16 %v5230
        %v5359 = vunpack.c.l.b16 %v5231
        %v5360 = vunpack.c.l.b16 %v5232
        %v5361 = vunpack.c.l.b16 %v5233
        %v5362 = vunpack.c.l.b16 %v5234
        %v5363 = vunpack.c.l.b16 %v5235
        %v5364 = vunpack.c.l.b16 %v5236
        %v5365 = vunpack.c.l.b16 %v5237
        %v5366 = vunpack.c.l.b16 %v5238
        %v5367 = vunpack.c.l.b16 %v5239
        %v5368 = vpack.c.b16 %v5353, %v5352
        %v5369 = vpack.c.b16 %v5355, %v5354
        %v5370 = vpack.c.b16 %v5357, %v5356
        %v5371 = vpack.c.b16 %v5359, %v5358
        %v5372 = vpack.c.b16 %v5361, %v5360
        %v5373 = vpack.c.b16 %v5363, %v5362
        %v5374 = vpack.c.b16 %v5365, %v5364
        %v5375 = vpack.c.b16 %v5367, %v5366
        %5384 = vmatprep.subr.bf16.mxu0 0
        %5385 = vmatpush1.bf16.msra.mxu0 %v5368
        %5386 = vmatprep.subr.bf16.mxu0 0
        %5387 = vmatpush1.bf16.msra.mxu0 %v5369
        %5388 = vmatprep.subr.bf16.mxu0 0
        %5389 = vmatpush1.bf16.msra.mxu0 %v5370
        %5390 = vmatprep.subr.bf16.mxu0 0
        %5391 = vmatpush1.bf16.msra.mxu0 %v5371
        %5392 = vmatprep.subr.bf16.mxu0 0
        %5393 = vmatpush1.bf16.msra.mxu0 %v5372
        %5394 = vmatprep.subr.bf16.mxu0 0
        %5395 = vmatpush1.bf16.msra.mxu0 %v5373
        %5396 = vmatprep.subr.bf16.mxu0 0
        %5397 = vmatpush1.bf16.msra.mxu0 %v5374
        %5398 = vmatprep.subr.bf16.mxu0 0
        %5399 = vmatpush1.bf16.msra.mxu0 %v5375
        %5400 = vmatprep.subr.bf16.mxu0 0
        %5401 = vmatpush1.bf16.msra.mxu0 0
        %5402 = vmatprep.subr.bf16.mxu0 0
        %5403 = vmatpush1.bf16.msra.mxu0 0
        %5404 = vmatprep.subr.bf16.mxu0 0
        %5405 = vmatpush1.bf16.msra.mxu0 0
        %5406 = vmatprep.subr.bf16.mxu0 0
        %5407 = vmatpush1.bf16.msra.mxu0 0
        %5408 = vmatprep.subr.bf16.mxu0 0
        %5409 = vmatpush1.bf16.msra.mxu0 0
        %5410 = vmatprep.subr.bf16.mxu0 0
        %5411 = vmatpush1.bf16.msra.mxu0 0
        %5412 = vmatprep.subr.bf16.mxu0 0
        %5413 = vmatpush1.bf16.msra.mxu0 0
        %5414 = vmatprep.subr.bf16.mxu0 0
        %5415 = vmatpush1.bf16.msra.mxu0 0
        %5416 = vmatprep.mubr.bf16.mxu0 0
        %5417 = vmatmul.mubr.bf16.gmra.mrb[0].mxu0 %v5304
        %v5418 = vpop.f32.mrb[0].mxu0
        %v5419 = vadd.f32 0.0, %v5418
        %v5420 = vpop.f32.mrb[0].mxu0
        %v5421 = vpop.f32.mrb[0].mxu0
        %v5422 = vadd.f32 0.0, %v5421
        %v5423 = vpop.f32.mrb[0].mxu0
        %5424 = vmatprep.mubr.bf16.mxu0 0
        %5425 = vmatmul.mubr.bf16.gmra.mrb[0].mxu0 %v5305
        %v5426 = vpop.f32.mrb[0].mxu0
        %v5427 = vadd.f32 0.0, %v5426
        %v5428 = vpop.f32.mrb[0].mxu0
        %v5429 = vpop.f32.mrb[0].mxu0
        %v5430 = vadd.f32 0.0, %v5429
        %v5431 = vpop.f32.mrb[0].mxu0
        %5432 = vmatprep.mubr.bf16.mxu0 0
        %5433 = vmatmul.mubr.bf16.gmra.mrb[0].mxu0 %v5306
        %v5434 = vpop.f32.mrb[0].mxu0
        %v5435 = vadd.f32 0.0, %v5434
        %v5436 = vpop.f32.mrb[0].mxu0
        %v5437 = vpop.f32.mrb[0].mxu0
        %v5438 = vadd.f32 0.0, %v5437
        %v5439 = vpop.f32.mrb[0].mxu0
        %5440 = vmatprep.mubr.bf16.mxu0 0
        %5441 = vmatmul.mubr.bf16.gmra.mrb[0].mxu0 %v5307
        %v5442 = vpop.f32.mrb[0].mxu0
        %v5443 = vadd.f32 0.0, %v5442
        %v5444 = vpop.f32.mrb[0].mxu0
        %v5445 = vpop.f32.mrb[0].mxu0
        %v5446 = vadd.f32 0.0, %v5445
        %v5447 = vpop.f32.mrb[0].mxu0
        %5448 = vmatprep.mubr.bf16.mxu0 0
        %5449 = vmatmul.mubr.bf16.gmra.mrb[0].mxu0 %v5308
        %v5450 = vpop.f32.mrb[0].mxu0
        %v5451 = vadd.f32 0.0, %v5450
        %v5452 = vpop.f32.mrb[0].mxu0
        %v5453 = vpop.f32.mrb[0].mxu0
        %v5454 = vadd.f32 0.0, %v5453
        %v5455 = vpop.f32.mrb[0].mxu0
        %5456 = vmatprep.mubr.bf16.mxu0 0
        %5457 = vmatmul.mubr.bf16.gmra.mrb[0].mxu0 %v5309
        %v5458 = vpop.f32.mrb[0].mxu0
        %v5459 = vadd.f32 0.0, %v5458
        %v5460 = vpop.f32.mrb[0].mxu0
        %v5461 = vpop.f32.mrb[0].mxu0
        %v5462 = vadd.f32 0.0, %v5461
        %v5463 = vpop.f32.mrb[0].mxu0
        %5464 = vmatprep.mubr.bf16.mxu0 0
        %5465 = vmatmul.mubr.bf16.gmra.mrb[0].mxu0 %v5310
        %v5466 = vpop.f32.mrb[0].mxu0
        %v5467 = vadd.f32 0.0, %v5466
        %v5468 = vpop.f32.mrb[0].mxu0
        %v5469 = vpop.f32.mrb[0].mxu0
        %v5470 = vadd.f32 0.0, %v5469
        %v5471 = vpop.f32.mrb[0].mxu0
        %5472 = vmatprep.mubr.bf16.mxu0 0
        %5473 = vmatmul.mubr.bf16.gmra.mrb[0].mxu0 %v5311
        %v5474 = vpop.f32.mrb[0].mxu0
        %v5475 = vadd.f32 0.0, %v5474
        %v5476 = vpop.f32.mrb[0].mxu0
        %v5477 = vpop.f32.mrb[0].mxu0
        %v5478 = vadd.f32 0.0, %v5477
        %v5479 = vpop.f32.mrb[0].mxu0
        %5480 = vmatprep.mubr.bf16.mxu0 0
        %5481 = vmatmul.mubr.bf16.gmra.mrb[0].mxu0 %v5312
        %v5482 = vpop.f32.mrb[0].mxu0
        %v5483 = vadd.f32 0.0, %v5482
        %v5484 = vpop.f32.mrb[0].mxu0
        %v5485 = vpop.f32.mrb[0].mxu0
        %v5486 = vadd.f32 0.0, %v5485
        %v5487 = vpop.f32.mrb[0].mxu0
        %5488 = vmatprep.mubr.bf16.mxu0 0
        %5489 = vmatmul.mubr.bf16.gmra.mrb[0].mxu0 %v5313
        %v5490 = vpop.f32.mrb[0].mxu0
        %v5491 = vadd.f32 0.0, %v5490
        %v5492 = vpop.f32.mrb[0].mxu0
        %v5493 = vpop.f32.mrb[0].mxu0
        %v5494 = vadd.f32 0.0, %v5493
        %v5495 = vpop.f32.mrb[0].mxu0
        %5496 = vmatprep.mubr.bf16.mxu0 0
        %5497 = vmatmul.mubr.bf16.gmra.mrb[0].mxu0 %v5314
        %v5498 = vpop.f32.mrb[0].mxu0
        %v5499 = vadd.f32 0.0, %v5498
        %v5500 = vpop.f32.mrb[0].mxu0
        %v5501 = vpop.f32.mrb[0].mxu0
        %v5502 = vadd.f32 0.0, %v5501
        %v5503 = vpop.f32.mrb[0].mxu0
        %5504 = vmatprep.mubr.bf16.mxu0 0
        %5505 = vmatmul.mubr.bf16.gmra.mrb[0].mxu0 %v5315
        %v5506 = vpop.f32.mrb[0].mxu0
        %v5507 = vadd.f32 0.0, %v5506
        %v5508 = vpop.f32.mrb[0].mxu0
        %v5509 = vpop.f32.mrb[0].mxu0
        %v5510 = vadd.f32 0.0, %v5509
        %v5511 = vpop.f32.mrb[0].mxu0
        %5512 = vmatprep.mubr.bf16.mxu0 0
        %5513 = vmatmul.mubr.bf16.gmra.mrb[0].mxu0 %v5316
        %v5514 = vpop.f32.mrb[0].mxu0
        %v5515 = vadd.f32 0.0, %v5514
        %v5516 = vpop.f32.mrb[0].mxu0
        %v5517 = vpop.f32.mrb[0].mxu0
        %v5518 = vadd.f32 0.0, %v5517
        %v5519 = vpop.f32.mrb[0].mxu0
        %5520 = vmatprep.mubr.bf16.mxu0 0
        %5521 = vmatmul.mubr.bf16.gmra.mrb[0].mxu0 %v5317
        %v5522 = vpop.f32.mrb[0].mxu0
        %v5523 = vadd.f32 0.0, %v5522
        %v5524 = vpop.f32.mrb[0].mxu0
        %v5525 = vpop.f32.mrb[0].mxu0
        %v5526 = vadd.f32 0.0, %v5525
        %v5527 = vpop.f32.mrb[0].mxu0
        %5528 = vmatprep.mubr.bf16.mxu0 0
        %5529 = vmatmul.mubr.bf16.gmra.mrb[0].mxu0 %v5318
        %v5530 = vpop.f32.mrb[0].mxu0
        %v5531 = vadd.f32 0.0, %v5530
        %v5532 = vpop.f32.mrb[0].mxu0
        %v5533 = vpop.f32.mrb[0].mxu0
        %v5534 = vadd.f32 0.0, %v5533
        %v5535 = vpop.f32.mrb[0].mxu0
        %5536 = vmatprep.mubr.bf16.mxu0 0
        %5537 = vmatmul.mubr.bf16.gmra.mrb[0].mxu0 %v5319
        %v5538 = vpop.f32.mrb[0].mxu0
        %v5539 = vadd.f32 0.0, %v5538
        %v5540 = vpop.f32.mrb[0].mxu0
        %v5541 = vpop.f32.mrb[0].mxu0
        %v5542 = vadd.f32 0.0, %v5541
        %v5543 = vpop.f32.mrb[0].mxu0
        %5544 = vdwg.mxu0
        %v5545 = vadd.f32 %v5159, %v5419
        %v5546 = vadd.f32 %v5160, %v5422
        %v5547 = vadd.f32 %v5161, %v5427
        %v5548 = vadd.f32 %v5162, %v5430
        %v5549 = vadd.f32 %v5163, %v5435
        %v5550 = vadd.f32 %v5164, %v5438
        %v5551 = vadd.f32 %v5165, %v5443
        %v5552 = vadd.f32 %v5166, %v5446
        %v5553 = vadd.f32 %v5167, %v5451
        %v5554 = vadd.f32 %v5168, %v5454
        %v5555 = vadd.f32 %v5169, %v5459
        %v5556 = vadd.f32 %v5170, %v5462
        %v5557 = vadd.f32 %v5171, %v5467
        %v5558 = vadd.f32 %v5172, %v5470
        %v5559 = vadd.f32 %v5173, %v5475
        %v5560 = vadd.f32 %v5174, %v5478
        %v5561 = vadd.f32 %v5175, %v5483
        %v5562 = vadd.f32 %v5176, %v5486
        %v5563 = vadd.f32 %v5177, %v5491
        %v5564 = vadd.f32 %v5178, %v5494
        %v5565 = vadd.f32 %v5179, %v5499
        %v5566 = vadd.f32 %v5180, %v5502
        %v5567 = vadd.f32 %v5181, %v5507
        %v5568 = vadd.f32 %v5182, %v5510
        %v5569 = vadd.f32 %v5183, %v5515
        %v5570 = vadd.f32 %v5184, %v5518
        %v5571 = vadd.f32 %v5185, %v5523
        %v5572 = vadd.f32 %v5186, %v5526
        %v5573 = vadd.f32 %v5187, %v5531
        %v5574 = vadd.f32 %v5188, %v5534
        %v5575 = vadd.f32 %v5189, %v5539
        %v5576 = vadd.f32 %v5190, %v5542
        %v5577 = vld [vmem:[%s5191] sm:$0xf]
        %v5578 = vld [vmem:[%s5191 + $0x4] sm:$0xf]
        %v5579 = vld [vmem:[%s5191 + $0x8] sm:$0x1]
        %v5580 = vld [vmem:[%s5191 + $0xc] sm:$0xf]
        %v5581 = vld [vmem:[%s5191 + $0x10] sm:$0xf]
        %v5582 = vld [vmem:[%s5191 + $0x14] sm:$0x1]
        %v5583 = vld [vmem:[%s5191 + $0x18] sm:$0xf]
        %v5584 = vld [vmem:[%s5191 + $0x1c] sm:$0xf]
        %v5585 = vld [vmem:[%s5191 + $0x20] sm:$0x1]
        %v5586 = vld [vmem:[%s5191 + $0x24] sm:$0xf]
        %v5587 = vld [vmem:[%s5191 + $0x28] sm:$0xf]
        %v5588 = vld [vmem:[%s5191 + $0x2c] sm:$0x1]
        %v5589 = vld [vmem:[%s5191 + $0x30] sm:$0xf]
        %v5590 = vld [vmem:[%s5191 + $0x34] sm:$0xf]
        %v5591 = vld [vmem:[%s5191 + $0x38] sm:$0x1]
        %v5592 = vld [vmem:[%s5191 + $0x3c] sm:$0xf]
        %v5593 = vld [vmem:[%s5191 + $0x40] sm:$0xf]
        %v5594 = vld [vmem:[%s5191 + $0x44] sm:$0x1]
        %v5595 = vld [vmem:[%s5191 + $0x48] sm:$0xf]
        %v5596 = vld [vmem:[%s5191 + $0x4c] sm:$0xf]
        %v5597 = vld [vmem:[%s5191 + $0x50] sm:$0x1]
        %v5598 = vld [vmem:[%s5191 + $0x54] sm:$0xf]
        %v5599 = vld [vmem:[%s5191 + $0x58] sm:$0xf]
        %v5600 = vld [vmem:[%s5191 + $0x5c] sm:$0x1]
        %v5601 = vld [vmem:[%s5191 + $0x60] sm:$0xf]
        %v5602 = vld [vmem:[%s5191 + $0x64] sm:$0xf]
        %v5603 = vld [vmem:[%s5191 + $0x68] sm:$0x1]
        %v5604 = vld [vmem:[%s5191 + $0x6c] sm:$0xf]
        %v5605 = vld [vmem:[%s5191 + $0x70] sm:$0xf]
        %v5606 = vld [vmem:[%s5191 + $0x74] sm:$0x1]
        %v5607 = vld [vmem:[%s5191 + $0x78] sm:$0xf]
        %v5608 = vld [vmem:[%s5191 + $0x7c] sm:$0xf]
        %v5609 = vld [vmem:[%s5191 + $0x80] sm:$0x1]
        %v5610 = vld [vmem:[%s5191 + $0x84] sm:$0xf]
        %v5611 = vld [vmem:[%s5191 + $0x88] sm:$0xf]
        %v5612 = vld [vmem:[%s5191 + $0x8c] sm:$0x1]
        %v5613 = vld [vmem:[%s5191 + $0x90] sm:$0xf]
        %v5614 = vld [vmem:[%s5191 + $0x94] sm:$0xf]
        %v5615 = vld [vmem:[%s5191 + $0x98] sm:$0x1]
        %v5616 = vld [vmem:[%s5191 + $0x9c] sm:$0xf]
        %v5617 = vld [vmem:[%s5191 + $0xa0] sm:$0xf]
        %v5618 = vld [vmem:[%s5191 + $0xa4] sm:$0x1]
        %v5619 = vld [vmem:[%s5191 + $0xa8] sm:$0xf]
        %v5620 = vld [vmem:[%s5191 + $0xac] sm:$0xf]
        %v5621 = vld [vmem:[%s5191 + $0xb0] sm:$0x1]
        %v5622 = vld [vmem:[%s5191 + $0xb4] sm:$0xf]
        %v5623 = vld [vmem:[%s5191 + $0xb8] sm:$0xf]
        %v5624 = vld [vmem:[%s5191 + $0xbc] sm:$0x1]
        %v5626 = vshrl.u32 %v5577, 16
        %v5628 = vrot.slane %v5626, 4
        %v5629 = vshll.u32 %v5577, 16
        %v5631 = vrot.slane %v5629, 5
        %v5632 = vor.u32 %v5628, %v5631
        %v5633 = vrot.slane %v5632, 4
        %v5635 = vshll.u32 %v5578, 16
        %v5637 = vrot.slane %v5635, 5
        %v5638 = vsel %vm2092, %v5633, %v5637
        %v5639 = vshrl.u32 %v5578, 16
        %v5641 = vrot.slane %v5639, 4
        %v5642 = vor.u32 %v5641, %v5637
        %v5643 = vrot.slane %v5642, 4
        %v5645 = vshll.u32 %v5579, 16
        %v5647 = vrot.slane %v5645, 5
        %v5648 = vsel %vm2092, %v5643, %v5647
        %v5650 = vshrl.u32 %v5580, 16
        %v5652 = vrot.slane %v5650, 4
        %v5653 = vshll.u32 %v5580, 16
        %v5655 = vrot.slane %v5653, 5
        %v5656 = vor.u32 %v5652, %v5655
        %v5657 = vrot.slane %v5656, 4
        %v5659 = vshll.u32 %v5581, 16
        %v5661 = vrot.slane %v5659, 5
        %v5662 = vsel %vm2092, %v5657, %v5661
        %v5663 = vshrl.u32 %v5581, 16
        %v5665 = vrot.slane %v5663, 4
        %v5666 = vor.u32 %v5665, %v5661
        %v5667 = vrot.slane %v5666, 4
        %v5669 = vshll.u32 %v5582, 16
        %v5671 = vrot.slane %v5669, 5
        %v5672 = vsel %vm2092, %v5667, %v5671
        %v5674 = vshrl.u32 %v5583, 16
        %v5676 = vrot.slane %v5674, 4
        %v5677 = vshll.u32 %v5583, 16
        %v5679 = vrot.slane %v5677, 5
        %v5680 = vor.u32 %v5676, %v5679
        %v5681 = vrot.slane %v5680, 4
        %v5683 = vshll.u32 %v5584, 16
        %v5685 = vrot.slane %v5683, 5
        %v5686 = vsel %vm2092, %v5681, %v5685
        %v5687 = vshrl.u32 %v5584, 16
        %v5689 = vrot.slane %v5687, 4
        %v5690 = vor.u32 %v5689, %v5685
        %v5691 = vrot.slane %v5690, 4
        %v5693 = vshll.u32 %v5585, 16
        %v5695 = vrot.slane %v5693, 5
        %v5696 = vsel %vm2092, %v5691, %v5695
        %v5698 = vshrl.u32 %v5586, 16
        %v5700 = vrot.slane %v5698, 4
        %v5701 = vshll.u32 %v5586, 16
        %v5703 = vrot.slane %v5701, 5
        %v5704 = vor.u32 %v5700, %v5703
        %v5705 = vrot.slane %v5704, 4
        %v5707 = vshll.u32 %v5587, 16
        %v5709 = vrot.slane %v5707, 5
        %v5710 = vsel %vm2092, %v5705, %v5709
        %v5711 = vshrl.u32 %v5587, 16
        %v5713 = vrot.slane %v5711, 4
        %v5714 = vor.u32 %v5713, %v5709
        %v5715 = vrot.slane %v5714, 4
        %v5717 = vshll.u32 %v5588, 16
        %v5719 = vrot.slane %v5717, 5
        %v5720 = vsel %vm2092, %v5715, %v5719
        %v5722 = vshrl.u32 %v5589, 16
        %v5724 = vrot.slane %v5722, 4
        %v5725 = vshll.u32 %v5589, 16
        %v5727 = vrot.slane %v5725, 5
        %v5728 = vor.u32 %v5724, %v5727
        %v5729 = vrot.slane %v5728, 4
        %v5731 = vshll.u32 %v5590, 16
        %v5733 = vrot.slane %v5731, 5
        %v5734 = vsel %vm2092, %v5729, %v5733
        %v5735 = vshrl.u32 %v5590, 16
        %v5737 = vrot.slane %v5735, 4
        %v5738 = vor.u32 %v5737, %v5733
        %v5739 = vrot.slane %v5738, 4
        %v5741 = vshll.u32 %v5591, 16
        %v5743 = vrot.slane %v5741, 5
        %v5744 = vsel %vm2092, %v5739, %v5743
        %v5746 = vshrl.u32 %v5592, 16
        %v5748 = vrot.slane %v5746, 4
        %v5749 = vshll.u32 %v5592, 16
        %v5751 = vrot.slane %v5749, 5
        %v5752 = vor.u32 %v5748, %v5751
        %v5753 = vrot.slane %v5752, 4
        %v5755 = vshll.u32 %v5593, 16
        %v5757 = vrot.slane %v5755, 5
        %v5758 = vsel %vm2092, %v5753, %v5757
        %v5759 = vshrl.u32 %v5593, 16
        %v5761 = vrot.slane %v5759, 4
        %v5762 = vor.u32 %v5761, %v5757
        %v5763 = vrot.slane %v5762, 4
        %v5765 = vshll.u32 %v5594, 16
        %v5767 = vrot.slane %v5765, 5
        %v5768 = vsel %vm2092, %v5763, %v5767
        %v5770 = vshrl.u32 %v5595, 16
        %v5772 = vrot.slane %v5770, 4
        %v5773 = vshll.u32 %v5595, 16
        %v5775 = vrot.slane %v5773, 5
        %v5776 = vor.u32 %v5772, %v5775
        %v5777 = vrot.slane %v5776, 4
        %v5779 = vshll.u32 %v5596, 16
        %v5781 = vrot.slane %v5779, 5
        %v5782 = vsel %vm2092, %v5777, %v5781
        %v5783 = vshrl.u32 %v5596, 16
        %v5785 = vrot.slane %v5783, 4
        %v5786 = vor.u32 %v5785, %v5781
        %v5787 = vrot.slane %v5786, 4
        %v5789 = vshll.u32 %v5597, 16
        %v5791 = vrot.slane %v5789, 5
        %v5792 = vsel %vm2092, %v5787, %v5791
        %v5794 = vshrl.u32 %v5598, 16
        %v5796 = vrot.slane %v5794, 4
        %v5797 = vshll.u32 %v5598, 16
        %v5799 = vrot.slane %v5797, 5
        %v5800 = vor.u32 %v5796, %v5799
        %v5801 = vrot.slane %v5800, 4
        %v5803 = vshll.u32 %v5599, 16
        %v5805 = vrot.slane %v5803, 5
        %v5806 = vsel %vm2092, %v5801, %v5805
        %v5807 = vshrl.u32 %v5599, 16
        %v5809 = vrot.slane %v5807, 4
        %v5810 = vor.u32 %v5809, %v5805
        %v5811 = vrot.slane %v5810, 4
        %v5813 = vshll.u32 %v5600, 16
        %v5815 = vrot.slane %v5813, 5
        %v5816 = vsel %vm2092, %v5811, %v5815
        %v5818 = vshrl.u32 %v5601, 16
        %v5820 = vrot.slane %v5818, 4
        %v5821 = vshll.u32 %v5601, 16
        %v5823 = vrot.slane %v5821, 5
        %v5824 = vor.u32 %v5820, %v5823
        %v5825 = vrot.slane %v5824, 4
        %v5827 = vshll.u32 %v5602, 16
        %v5829 = vrot.slane %v5827, 5
        %v5830 = vsel %vm2092, %v5825, %v5829
        %v5831 = vshrl.u32 %v5602, 16
        %v5833 = vrot.slane %v5831, 4
        %v5834 = vor.u32 %v5833, %v5829
        %v5835 = vrot.slane %v5834, 4
        %v5837 = vshll.u32 %v5603, 16
        %v5839 = vrot.slane %v5837, 5
        %v5840 = vsel %vm2092, %v5835, %v5839
        %v5842 = vshrl.u32 %v5604, 16
        %v5844 = vrot.slane %v5842, 4
        %v5845 = vshll.u32 %v5604, 16
        %v5847 = vrot.slane %v5845, 5
        %v5848 = vor.u32 %v5844, %v5847
        %v5849 = vrot.slane %v5848, 4
        %v5851 = vshll.u32 %v5605, 16
        %v5853 = vrot.slane %v5851, 5
        %v5854 = vsel %vm2092, %v5849, %v5853
        %v5855 = vshrl.u32 %v5605, 16
        %v5857 = vrot.slane %v5855, 4
        %v5858 = vor.u32 %v5857, %v5853
        %v5859 = vrot.slane %v5858, 4
        %v5861 = vshll.u32 %v5606, 16
        %v5863 = vrot.slane %v5861, 5
        %v5864 = vsel %vm2092, %v5859, %v5863
        %v5866 = vshrl.u32 %v5607, 16
        %v5868 = vrot.slane %v5866, 4
        %v5869 = vshll.u32 %v5607, 16
        %v5871 = vrot.slane %v5869, 5
        %v5872 = vor.u32 %v5868, %v5871
        %v5873 = vrot.slane %v5872, 4
        %v5875 = vshll.u32 %v5608, 16
        %v5877 = vrot.slane %v5875, 5
        %v5878 = vsel %vm2092, %v5873, %v5877
        %v5879 = vshrl.u32 %v5608, 16
        %v5881 = vrot.slane %v5879, 4
        %v5882 = vor.u32 %v5881, %v5877
        %v5883 = vrot.slane %v5882, 4
        %v5885 = vshll.u32 %v5609, 16
        %v5887 = vrot.slane %v5885, 5
        %v5888 = vsel %vm2092, %v5883, %v5887
        %v5890 = vshrl.u32 %v5610, 16
        %v5892 = vrot.slane %v5890, 4
        %v5893 = vshll.u32 %v5610, 16
        %v5895 = vrot.slane %v5893, 5
        %v5896 = vor.u32 %v5892, %v5895
        %v5897 = vrot.slane %v5896, 4
        %v5899 = vshll.u32 %v5611, 16
        %v5901 = vrot.slane %v5899, 5
        %v5902 = vsel %vm2092, %v5897, %v5901
        %v5903 = vshrl.u32 %v5611, 16
        %v5905 = vrot.slane %v5903, 4
        %v5906 = vor.u32 %v5905, %v5901
        %v5907 = vrot.slane %v5906, 4
        %v5909 = vshll.u32 %v5612, 16
        %v5911 = vrot.slane %v5909, 5
        %v5912 = vsel %vm2092, %v5907, %v5911
        %v5914 = vshrl.u32 %v5613, 16
        %v5916 = vrot.slane %v5914, 4
        %v5917 = vshll.u32 %v5613, 16
        %v5919 = vrot.slane %v5917, 5
        %v5920 = vor.u32 %v5916, %v5919
        %v5921 = vrot.slane %v5920, 4
        %v5923 = vshll.u32 %v5614, 16
        %v5925 = vrot.slane %v5923, 5
        %v5926 = vsel %vm2092, %v5921, %v5925
        %v5927 = vshrl.u32 %v5614, 16
        %v5929 = vrot.slane %v5927, 4
        %v5930 = vor.u32 %v5929, %v5925
        %v5931 = vrot.slane %v5930, 4
        %v5933 = vshll.u32 %v5615, 16
        %v5935 = vrot.slane %v5933, 5
        %v5936 = vsel %vm2092, %v5931, %v5935
        %v5938 = vshrl.u32 %v5616, 16
        %v5940 = vrot.slane %v5938, 4
        %v5941 = vshll.u32 %v5616, 16
        %v5943 = vrot.slane %v5941, 5
        %v5944 = vor.u32 %v5940, %v5943
        %v5945 = vrot.slane %v5944, 4
        %v5947 = vshll.u32 %v5617, 16
        %v5949 = vrot.slane %v5947, 5
        %v5950 = vsel %vm2092, %v5945, %v5949
        %v5951 = vshrl.u32 %v5617, 16
        %v5953 = vrot.slane %v5951, 4
        %v5954 = vor.u32 %v5953, %v5949
        %v5955 = vrot.slane %v5954, 4
        %v5957 = vshll.u32 %v5618, 16
        %v5959 = vrot.slane %v5957, 5
        %v5960 = vsel %vm2092, %v5955, %v5959
        %v5962 = vshrl.u32 %v5619, 16
        %v5964 = vrot.slane %v5962, 4
        %v5965 = vshll.u32 %v5619, 16
        %v5967 = vrot.slane %v5965, 5
        %v5968 = vor.u32 %v5964, %v5967
        %v5969 = vrot.slane %v5968, 4
        %v5971 = vshll.u32 %v5620, 16
        %v5973 = vrot.slane %v5971, 5
        %v5974 = vsel %vm2092, %v5969, %v5973
        %v5975 = vshrl.u32 %v5620, 16
        %v5977 = vrot.slane %v5975, 4
        %v5978 = vor.u32 %v5977, %v5973
        %v5979 = vrot.slane %v5978, 4
        %v5981 = vshll.u32 %v5621, 16
        %v5983 = vrot.slane %v5981, 5
        %v5984 = vsel %vm2092, %v5979, %v5983
        %v5986 = vshrl.u32 %v5622, 16
        %v5988 = vrot.slane %v5986, 4
        %v5989 = vshll.u32 %v5622, 16
        %v5991 = vrot.slane %v5989, 5
        %v5992 = vor.u32 %v5988, %v5991
        %v5993 = vrot.slane %v5992, 4
        %v5995 = vshll.u32 %v5623, 16
        %v5997 = vrot.slane %v5995, 5
        %v5998 = vsel %vm2092, %v5993, %v5997
        %v5999 = vshrl.u32 %v5623, 16
        %v6001 = vrot.slane %v5999, 4
        %v6002 = vor.u32 %v6001, %v5997
        %v6003 = vrot.slane %v6002, 4
        %v6005 = vshll.u32 %v5624, 16
        %v6007 = vrot.slane %v6005, 5
        %v6008 = vsel %vm2092, %v6003, %v6007
        %v6009 = vld [vmem:[#allocation9 + $0x1c0] sm:$0xf]
        %v6010 = vld [vmem:[#allocation9 + $0x1c4] sm:$0xf]
        %v6011 = vld [vmem:[#allocation9 + $0x1c8] sm:$0xf]
        %v6012 = vld [vmem:[#allocation9 + $0x1cc] sm:$0xf]
        %v6013 = vld [vmem:[#allocation9 + $0x1d0] sm:$0xf]
        %v6014 = vld [vmem:[#allocation9 + $0x1d4] sm:$0xf]
        %v6015 = vld [vmem:[#allocation9 + $0x1d8] sm:$0xf]
        %v6016 = vld [vmem:[#allocation9 + $0x1dc] sm:$0xf]
        %v6017 = vld [vmem:[#allocation9 + $0x1e0] sm:$0xf]
        %v6018 = vld [vmem:[#allocation9 + $0x1e4] sm:$0xf]
        %v6019 = vld [vmem:[#allocation9 + $0x1e8] sm:$0xf]
        %v6020 = vld [vmem:[#allocation9 + $0x1ec] sm:$0xf]
        %v6021 = vld [vmem:[#allocation9 + $0x1f0] sm:$0xf]
        %v6022 = vld [vmem:[#allocation9 + $0x1f4] sm:$0xf]
        %v6023 = vld [vmem:[#allocation9 + $0x1f8] sm:$0xf]
        %v6024 = vld [vmem:[#allocation9 + $0x1fc] sm:$0xf]
        %v6025 = vunpack.c.l.b16 %v5638
        %v6026 = vunpack.c.l.b16 %v5648
        %v6027 = vunpack.c.l.b16 %v5662
        %v6028 = vunpack.c.l.b16 %v5672
        %v6029 = vunpack.c.l.b16 %v5686
        %v6030 = vunpack.c.l.b16 %v5696
        %v6031 = vunpack.c.l.b16 %v5710
        %v6032 = vunpack.c.l.b16 %v5720
        %v6033 = vunpack.c.l.b16 %v5734
        %v6034 = vunpack.c.l.b16 %v5744
        %v6035 = vunpack.c.l.b16 %v5758
        %v6036 = vunpack.c.l.b16 %v5768
        %v6037 = vunpack.c.l.b16 %v5782
        %v6038 = vunpack.c.l.b16 %v5792
        %v6039 = vunpack.c.l.b16 %v5806
        %v6040 = vunpack.c.l.b16 %v5816
        %v6041 = vunpack.c.l.b16 %v5830
        %v6042 = vunpack.c.l.b16 %v5840
        %v6043 = vunpack.c.l.b16 %v5854
        %v6044 = vunpack.c.l.b16 %v5864
        %v6045 = vunpack.c.l.b16 %v5878
        %v6046 = vunpack.c.l.b16 %v5888
        %v6047 = vunpack.c.l.b16 %v5902
        %v6048 = vunpack.c.l.b16 %v5912
        %v6049 = vunpack.c.l.b16 %v5926
        %v6050 = vunpack.c.l.b16 %v5936
        %v6051 = vunpack.c.l.b16 %v5950
        %v6052 = vunpack.c.l.b16 %v5960
        %v6053 = vunpack.c.l.b16 %v5974
        %v6054 = vunpack.c.l.b16 %v5984
        %v6055 = vunpack.c.l.b16 %v5998
        %v6056 = vunpack.c.l.b16 %v6008
        %v6057 = vpack.c.b16 %v6026, %v6025
        %v6058 = vpack.c.b16 %v6028, %v6027
        %v6059 = vpack.c.b16 %v6030, %v6029
        %v6060 = vpack.c.b16 %v6032, %v6031
        %v6061 = vpack.c.b16 %v6034, %v6033
        %v6062 = vpack.c.b16 %v6036, %v6035
        %v6063 = vpack.c.b16 %v6038, %v6037
        %v6064 = vpack.c.b16 %v6040, %v6039
        %v6065 = vpack.c.b16 %v6042, %v6041
        %v6066 = vpack.c.b16 %v6044, %v6043
        %v6067 = vpack.c.b16 %v6046, %v6045
        %v6068 = vpack.c.b16 %v6048, %v6047
        %v6069 = vpack.c.b16 %v6050, %v6049
        %v6070 = vpack.c.b16 %v6052, %v6051
        %v6071 = vpack.c.b16 %v6054, %v6053
        %v6072 = vpack.c.b16 %v6056, %v6055
        %v6105 = vunpack.c.l.b16 %v6009
        %v6106 = vunpack.c.l.b16 %v6010
        %v6107 = vunpack.c.l.b16 %v6011
        %v6108 = vunpack.c.l.b16 %v6012
        %v6109 = vunpack.c.l.b16 %v6013
        %v6110 = vunpack.c.l.b16 %v6014
        %v6111 = vunpack.c.l.b16 %v6015
        %v6112 = vunpack.c.l.b16 %v6016
        %v6113 = vunpack.c.l.b16 %v6017
        %v6114 = vunpack.c.l.b16 %v6018
        %v6115 = vunpack.c.l.b16 %v6019
        %v6116 = vunpack.c.l.b16 %v6020
        %v6117 = vunpack.c.l.b16 %v6021
        %v6118 = vunpack.c.l.b16 %v6022
        %v6119 = vunpack.c.l.b16 %v6023
        %v6120 = vunpack.c.l.b16 %v6024
        %v6121 = vpack.c.b16 %v6106, %v6105
        %v6122 = vpack.c.b16 %v6108, %v6107
        %v6123 = vpack.c.b16 %v6110, %v6109
        %v6124 = vpack.c.b16 %v6112, %v6111
        %v6125 = vpack.c.b16 %v6114, %v6113
        %v6126 = vpack.c.b16 %v6116, %v6115
        %v6127 = vpack.c.b16 %v6118, %v6117
        %v6128 = vpack.c.b16 %v6120, %v6119
        %6137 = vmatprep.subr.bf16.mxu0 0
        %6138 = vmatpush1.bf16.msra.mxu0 %v6121
        %6139 = vmatprep.subr.bf16.mxu0 0
        %6140 = vmatpush1.bf16.msra.mxu0 %v6122
        %6141 = vmatprep.subr.bf16.mxu0 0
        %6142 = vmatpush1.bf16.msra.mxu0 %v6123
        %6143 = vmatprep.subr.bf16.mxu0 0
        %6144 = vmatpush1.bf16.msra.mxu0 %v6124
        %6145 = vmatprep.subr.bf16.mxu0 0
        %6146 = vmatpush1.bf16.msra.mxu0 %v6125
        %6147 = vmatprep.subr.bf16.mxu0 0
        %6148 = vmatpush1.bf16.msra.mxu0 %v6126
        %6149 = vmatprep.subr.bf16.mxu0 0
        %6150 = vmatpush1.bf16.msra.mxu0 %v6127
        %6151 = vmatprep.subr.bf16.mxu0 0
        %6152 = vmatpush1.bf16.msra.mxu0 %v6128
        %6153 = vmatprep.subr.bf16.mxu0 0
        %6154 = vmatpush1.bf16.msra.mxu0 0
        %6155 = vmatprep.subr.bf16.mxu0 0
        %6156 = vmatpush1.bf16.msra.mxu0 0
        %6157 = vmatprep.subr.bf16.mxu0 0
        %6158 = vmatpush1.bf16.msra.mxu0 0
        %6159 = vmatprep.subr.bf16.mxu0 0
        %6160 = vmatpush1.bf16.msra.mxu0 0
        %6161 = vmatprep.subr.bf16.mxu0 0
        %6162 = vmatpush1.bf16.msra.mxu0 0
        %6163 = vmatprep.subr.bf16.mxu0 0
        %6164 = vmatpush1.bf16.msra.mxu0 0
        %6165 = vmatprep.subr.bf16.mxu0 0
        %6166 = vmatpush1.bf16.msra.mxu0 0
        %6167 = vmatprep.subr.bf16.mxu0 0
        %6168 = vmatpush1.bf16.msra.mxu0 0
        %6169 = vmatprep.mubr.bf16.mxu0 0
        %6170 = vmatmul.mubr.bf16.gmra.mrb[0].mxu0 %v6057
        %v6171 = vpop.f32.mrb[0].mxu0
        %v6172 = vadd.f32 0.0, %v6171
        %v6173 = vpop.f32.mrb[0].mxu0
        %v6174 = vpop.f32.mrb[0].mxu0
        %v6175 = vadd.f32 0.0, %v6174
        %v6176 = vpop.f32.mrb[0].mxu0
        %6177 = vmatprep.mubr.bf16.mxu0 0
        %6178 = vmatmul.mubr.bf16.gmra.mrb[0].mxu0 %v6058
        %v6179 = vpop.f32.mrb[0].mxu0
        %v6180 = vadd.f32 0.0, %v6179
        %v6181 = vpop.f32.mrb[0].mxu0
        %v6182 = vpop.f32.mrb[0].mxu0
        %v6183 = vadd.f32 0.0, %v6182
        %v6184 = vpop.f32.mrb[0].mxu0
        %6185 = vmatprep.mubr.bf16.mxu0 0
        %6186 = vmatmul.mubr.bf16.gmra.mrb[0].mxu0 %v6059
        %v6187 = vpop.f32.mrb[0].mxu0
        %v6188 = vadd.f32 0.0, %v6187
        %v6189 = vpop.f32.mrb[0].mxu0
        %v6190 = vpop.f32.mrb[0].mxu0
        %v6191 = vadd.f32 0.0, %v6190
        %v6192 = vpop.f32.mrb[0].mxu0
        %6193 = vmatprep.mubr.bf16.mxu0 0
        %6194 = vmatmul.mubr.bf16.gmra.mrb[0].mxu0 %v6060
        %v6195 = vpop.f32.mrb[0].mxu0
        %v6196 = vadd.f32 0.0, %v6195
        %v6197 = vpop.f32.mrb[0].mxu0
        %v6198 = vpop.f32.mrb[0].mxu0
        %v6199 = vadd.f32 0.0, %v6198
        %v6200 = vpop.f32.mrb[0].mxu0
        %6201 = vmatprep.mubr.bf16.mxu0 0
        %6202 = vmatmul.mubr.bf16.gmra.mrb[0].mxu0 %v6061
        %v6203 = vpop.f32.mrb[0].mxu0
        %v6204 = vadd.f32 0.0, %v6203
        %v6205 = vpop.f32.mrb[0].mxu0
        %v6206 = vpop.f32.mrb[0].mxu0
        %v6207 = vadd.f32 0.0, %v6206
        %v6208 = vpop.f32.mrb[0].mxu0
        %6209 = vmatprep.mubr.bf16.mxu0 0
        %6210 = vmatmul.mubr.bf16.gmra.mrb[0].mxu0 %v6062
        %v6211 = vpop.f32.mrb[0].mxu0
        %v6212 = vadd.f32 0.0, %v6211
        %v6213 = vpop.f32.mrb[0].mxu0
        %v6214 = vpop.f32.mrb[0].mxu0
        %v6215 = vadd.f32 0.0, %v6214
        %v6216 = vpop.f32.mrb[0].mxu0
        %6217 = vmatprep.mubr.bf16.mxu0 0
        %6218 = vmatmul.mubr.bf16.gmra.mrb[0].mxu0 %v6063
        %v6219 = vpop.f32.mrb[0].mxu0
        %v6220 = vadd.f32 0.0, %v6219
        %v6221 = vpop.f32.mrb[0].mxu0
        %v6222 = vpop.f32.mrb[0].mxu0
        %v6223 = vadd.f32 0.0, %v6222
        %v6224 = vpop.f32.mrb[0].mxu0
        %6225 = vmatprep.mubr.bf16.mxu0 0
        %6226 = vmatmul.mubr.bf16.gmra.mrb[0].mxu0 %v6064
        %v6227 = vpop.f32.mrb[0].mxu0
        %v6228 = vadd.f32 0.0, %v6227
        %v6229 = vpop.f32.mrb[0].mxu0
        %v6230 = vpop.f32.mrb[0].mxu0
        %v6231 = vadd.f32 0.0, %v6230
        %v6232 = vpop.f32.mrb[0].mxu0
        %6233 = vmatprep.mubr.bf16.mxu0 0
        %6234 = vmatmul.mubr.bf16.gmra.mrb[0].mxu0 %v6065
        %v6235 = vpop.f32.mrb[0].mxu0
        %v6236 = vadd.f32 0.0, %v6235
        %v6237 = vpop.f32.mrb[0].mxu0
        %v6238 = vpop.f32.mrb[0].mxu0
        %v6239 = vadd.f32 0.0, %v6238
        %v6240 = vpop.f32.mrb[0].mxu0
        %6241 = vmatprep.mubr.bf16.mxu0 0
        %6242 = vmatmul.mubr.bf16.gmra.mrb[0].mxu0 %v6066
        %v6243 = vpop.f32.mrb[0].mxu0
        %v6244 = vadd.f32 0.0, %v6243
        %v6245 = vpop.f32.mrb[0].mxu0
        %v6246 = vpop.f32.mrb[0].mxu0
        %v6247 = vadd.f32 0.0, %v6246
        %v6248 = vpop.f32.mrb[0].mxu0
        %6249 = vmatprep.mubr.bf16.mxu0 0
        %6250 = vmatmul.mubr.bf16.gmra.mrb[0].mxu0 %v6067
        %v6251 = vpop.f32.mrb[0].mxu0
        %v6252 = vadd.f32 0.0, %v6251
        %v6253 = vpop.f32.mrb[0].mxu0
        %v6254 = vpop.f32.mrb[0].mxu0
        %v6255 = vadd.f32 0.0, %v6254
        %v6256 = vpop.f32.mrb[0].mxu0
        %6257 = vmatprep.mubr.bf16.mxu0 0
        %6258 = vmatmul.mubr.bf16.gmra.mrb[0].mxu0 %v6068
        %v6259 = vpop.f32.mrb[0].mxu0
        %v6260 = vadd.f32 0.0, %v6259
        %v6261 = vpop.f32.mrb[0].mxu0
        %v6262 = vpop.f32.mrb[0].mxu0
        %v6263 = vadd.f32 0.0, %v6262
        %v6264 = vpop.f32.mrb[0].mxu0
        %6265 = vmatprep.mubr.bf16.mxu0 0
        %6266 = vmatmul.mubr.bf16.gmra.mrb[0].mxu0 %v6069
        %v6267 = vpop.f32.mrb[0].mxu0
        %v6268 = vadd.f32 0.0, %v6267
        %v6269 = vpop.f32.mrb[0].mxu0
        %v6270 = vpop.f32.mrb[0].mxu0
        %v6271 = vadd.f32 0.0, %v6270
        %v6272 = vpop.f32.mrb[0].mxu0
        %6273 = vmatprep.mubr.bf16.mxu0 0
        %6274 = vmatmul.mubr.bf16.gmra.mrb[0].mxu0 %v6070
        %v6275 = vpop.f32.mrb[0].mxu0
        %v6276 = vadd.f32 0.0, %v6275
        %v6277 = vpop.f32.mrb[0].mxu0
        %v6278 = vpop.f32.mrb[0].mxu0
        %v6279 = vadd.f32 0.0, %v6278
        %v6280 = vpop.f32.mrb[0].mxu0
        %6281 = vmatprep.mubr.bf16.mxu0 0
        %6282 = vmatmul.mubr.bf16.gmra.mrb[0].mxu0 %v6071
        %v6283 = vpop.f32.mrb[0].mxu0
        %v6284 = vadd.f32 0.0, %v6283
        %v6285 = vpop.f32.mrb[0].mxu0
        %v6286 = vpop.f32.mrb[0].mxu0
        %v6287 = vadd.f32 0.0, %v6286
        %v6288 = vpop.f32.mrb[0].mxu0
        %6289 = vmatprep.mubr.bf16.mxu0 0
        %6290 = vmatmul.mubr.bf16.gmra.mrb[0].mxu0 %v6072
        %v6291 = vpop.f32.mrb[0].mxu0
        %v6292 = vadd.f32 0.0, %v6291
        %v6293 = vpop.f32.mrb[0].mxu0
        %v6294 = vpop.f32.mrb[0].mxu0
        %v6295 = vadd.f32 0.0, %v6294
        %v6296 = vpop.f32.mrb[0].mxu0
        %6297 = vdwg.mxu0
        %v6298 = vadd.f32 %v5545, %v6172
        %v6299 = vadd.f32 %v5546, %v6175
        %v6300 = vadd.f32 %v5547, %v6180
        %v6301 = vadd.f32 %v5548, %v6183
        %v6302 = vadd.f32 %v5549, %v6188
        %v6303 = vadd.f32 %v5550, %v6191
        %v6304 = vadd.f32 %v5551, %v6196
        %v6305 = vadd.f32 %v5552, %v6199
        %v6306 = vadd.f32 %v5553, %v6204
        %v6307 = vadd.f32 %v5554, %v6207
        %v6308 = vadd.f32 %v5555, %v6212
        %v6309 = vadd.f32 %v5556, %v6215
        %v6310 = vadd.f32 %v5557, %v6220
        %v6311 = vadd.f32 %v5558, %v6223
        %v6312 = vadd.f32 %v5559, %v6228
        %v6313 = vadd.f32 %v5560, %v6231
        %v6314 = vadd.f32 %v5561, %v6236
        %v6315 = vadd.f32 %v5562, %v6239
        %v6316 = vadd.f32 %v5563, %v6244
        %v6317 = vadd.f32 %v5564, %v6247
        %v6318 = vadd.f32 %v5565, %v6252
        %v6319 = vadd.f32 %v5566, %v6255
        %v6320 = vadd.f32 %v5567, %v6260
        %v6321 = vadd.f32 %v5568, %v6263
        %v6322 = vadd.f32 %v5569, %v6268
        %v6323 = vadd.f32 %v5570, %v6271
        %v6324 = vadd.f32 %v5571, %v6276
        %v6325 = vadd.f32 %v5572, %v6279
        %v6326 = vadd.f32 %v5573, %v6284
        %v6327 = vadd.f32 %v5574, %v6287
        %v6328 = vadd.f32 %v5575, %v6292
        %v6329 = vadd.f32 %v5576, %v6295
        %v6330 = vld [vmem:[%s5191] sm:$0xe]
        %v6331 = vld [vmem:[%s5191 + $0xc] sm:$0xe]
        %v6332 = vld [vmem:[%s5191 + $0x18] sm:$0xe]
        %v6333 = vld [vmem:[%s5191 + $0x24] sm:$0xe]
        %v6334 = vld [vmem:[%s5191 + $0x30] sm:$0xe]
        %v6335 = vld [vmem:[%s5191 + $0x3c] sm:$0xe]
        %v6336 = vld [vmem:[%s5191 + $0x48] sm:$0xe]
        %v6337 = vld [vmem:[%s5191 + $0x54] sm:$0xe]
        %v6338 = vld [vmem:[%s5191 + $0x60] sm:$0xe]
        %v6339 = vld [vmem:[%s5191 + $0x6c] sm:$0xe]
        %v6340 = vld [vmem:[%s5191 + $0x78] sm:$0xe]
        %v6341 = vld [vmem:[%s5191 + $0x84] sm:$0xe]
        %v6342 = vld [vmem:[%s5191 + $0x90] sm:$0xe]
        %v6343 = vld [vmem:[%s5191 + $0x9c] sm:$0xe]
        %v6344 = vld [vmem:[%s5191 + $0xa8] sm:$0xe]
        %v6345 = vld [vmem:[%s5191 + $0xb4] sm:$0xe]
        %v6394 = vrot.slane %v6330, 5
        %v6395 = vrot.slane %v6394, 4
        %v6396 = vrot.slane %v5578, 5
        %v6397 = vsel %vm3121, %v6395, %v6396
        %v6398 = vrot.slane %v6396, 4
        %v6399 = vrot.slane %v5579, 5
        %v6400 = vsel %vm3121, %v6398, %v6399
        %v6401 = vrot.slane %v6331, 5
        %v6402 = vrot.slane %v6401, 4
        %v6403 = vrot.slane %v5581, 5
        %v6404 = vsel %vm3121, %v6402, %v6403
        %v6405 = vrot.slane %v6403, 4
        %v6406 = vrot.slane %v5582, 5
        %v6407 = vsel %vm3121, %v6405, %v6406
        %v6408 = vrot.slane %v6332, 5
        %v6409 = vrot.slane %v6408, 4
        %v6410 = vrot.slane %v5584, 5
        %v6411 = vsel %vm3121, %v6409, %v6410
        %v6412 = vrot.slane %v6410, 4
        %v6413 = vrot.slane %v5585, 5
        %v6414 = vsel %vm3121, %v6412, %v6413
        %v6415 = vrot.slane %v6333, 5
        %v6416 = vrot.slane %v6415, 4
        %v6417 = vrot.slane %v5587, 5
        %v6418 = vsel %vm3121, %v6416, %v6417
        %v6419 = vrot.slane %v6417, 4
        %v6420 = vrot.slane %v5588, 5
        %v6421 = vsel %vm3121, %v6419, %v6420
        %v6422 = vrot.slane %v6334, 5
        %v6423 = vrot.slane %v6422, 4
        %v6424 = vrot.slane %v5590, 5
        %v6425 = vsel %vm3121, %v6423, %v6424
        %v6426 = vrot.slane %v6424, 4
        %v6427 = vrot.slane %v5591, 5
        %v6428 = vsel %vm3121, %v6426, %v6427
        %v6429 = vrot.slane %v6335, 5
        %v6430 = vrot.slane %v6429, 4
        %v6431 = vrot.slane %v5593, 5
        %v6432 = vsel %vm3121, %v6430, %v6431
        %v6433 = vrot.slane %v6431, 4
        %v6434 = vrot.slane %v5594, 5
        %v6435 = vsel %vm3121, %v6433, %v6434
        %v6436 = vrot.slane %v6336, 5
        %v6437 = vrot.slane %v6436, 4
        %v6438 = vrot.slane %v5596, 5
        %v6439 = vsel %vm3121, %v6437, %v6438
        %v6440 = vrot.slane %v6438, 4
        %v6441 = vrot.slane %v5597, 5
        %v6442 = vsel %vm3121, %v6440, %v6441
        %v6443 = vrot.slane %v6337, 5
        %v6444 = vrot.slane %v6443, 4
        %v6445 = vrot.slane %v5599, 5
        %v6446 = vsel %vm3121, %v6444, %v6445
        %v6447 = vrot.slane %v6445, 4
        %v6448 = vrot.slane %v5600, 5
        %v6449 = vsel %vm3121, %v6447, %v6448
        %v6450 = vrot.slane %v6338, 5
        %v6451 = vrot.slane %v6450, 4
        %v6452 = vrot.slane %v5602, 5
        %v6453 = vsel %vm3121, %v6451, %v6452
        %v6454 = vrot.slane %v6452, 4
        %v6455 = vrot.slane %v5603, 5
        %v6456 = vsel %vm3121, %v6454, %v6455
        %v6457 = vrot.slane %v6339, 5
        %v6458 = vrot.slane %v6457, 4
        %v6459 = vrot.slane %v5605, 5
        %v6460 = vsel %vm3121, %v6458, %v6459
        %v6461 = vrot.slane %v6459, 4
        %v6462 = vrot.slane %v5606, 5
        %v6463 = vsel %vm3121, %v6461, %v6462
        %v6464 = vrot.slane %v6340, 5
        %v6465 = vrot.slane %v6464, 4
        %v6466 = vrot.slane %v5608, 5
        %v6467 = vsel %vm3121, %v6465, %v6466
        %v6468 = vrot.slane %v6466, 4
        %v6469 = vrot.slane %v5609, 5
        %v6470 = vsel %vm3121, %v6468, %v6469
        %v6471 = vrot.slane %v6341, 5
        %v6472 = vrot.slane %v6471, 4
        %v6473 = vrot.slane %v5611, 5
        %v6474 = vsel %vm3121, %v6472, %v6473
        %v6475 = vrot.slane %v6473, 4
        %v6476 = vrot.slane %v5612, 5
        %v6477 = vsel %vm3121, %v6475, %v6476
        %v6478 = vrot.slane %v6342, 5
        %v6479 = vrot.slane %v6478, 4
        %v6480 = vrot.slane %v5614, 5
        %v6481 = vsel %vm3121, %v6479, %v6480
        %v6482 = vrot.slane %v6480, 4
        %v6483 = vrot.slane %v5615, 5
        %v6484 = vsel %vm3121, %v6482, %v6483
        %v6485 = vrot.slane %v6343, 5
        %v6486 = vrot.slane %v6485, 4
        %v6487 = vrot.slane %v5617, 5
        %v6488 = vsel %vm3121, %v6486, %v6487
        %v6489 = vrot.slane %v6487, 4
        %v6490 = vrot.slane %v5618, 5
        %v6491 = vsel %vm3121, %v6489, %v6490
        %v6492 = vrot.slane %v6344, 5
        %v6493 = vrot.slane %v6492, 4
        %v6494 = vrot.slane %v5620, 5
        %v6495 = vsel %vm3121, %v6493, %v6494
        %v6496 = vrot.slane %v6494, 4
        %v6497 = vrot.slane %v5621, 5
        %v6498 = vsel %vm3121, %v6496, %v6497
        %v6499 = vrot.slane %v6345, 5
        %v6500 = vrot.slane %v6499, 4
        %v6501 = vrot.slane %v5623, 5
        %v6502 = vsel %vm3121, %v6500, %v6501
        %v6503 = vrot.slane %v6501, 4
        %v6504 = vrot.slane %v5624, 5
        %v6505 = vsel %vm3121, %v6503, %v6504
        %v6506 = vld [vmem:[#allocation9 + $0x200] sm:$0xf]
        %v6507 = vld [vmem:[#allocation9 + $0x204] sm:$0xf]
        %v6508 = vld [vmem:[#allocation9 + $0x208] sm:$0xf]
        %v6509 = vld [vmem:[#allocation9 + $0x20c] sm:$0xf]
        %v6510 = vld [vmem:[#allocation9 + $0x210] sm:$0xf]
        %v6511 = vld [vmem:[#allocation9 + $0x214] sm:$0xf]
        %v6512 = vld [vmem:[#allocation9 + $0x218] sm:$0xf]
        %v6513 = vld [vmem:[#allocation9 + $0x21c] sm:$0xf]
        %v6514 = vld [vmem:[#allocation9 + $0x220] sm:$0xf]
        %v6515 = vld [vmem:[#allocation9 + $0x224] sm:$0xf]
        %v6516 = vld [vmem:[#allocation9 + $0x228] sm:$0xf]
        %v6517 = vld [vmem:[#allocation9 + $0x22c] sm:$0xf]
        %v6518 = vld [vmem:[#allocation9 + $0x230] sm:$0xf]
        %v6519 = vld [vmem:[#allocation9 + $0x234] sm:$0xf]
        %v6520 = vld [vmem:[#allocation9 + $0x238] sm:$0xf]
        %v6521 = vld [vmem:[#allocation9 + $0x23c] sm:$0xf]
        %v6522 = vunpack.c.l.b16 %v6397
        %v6523 = vunpack.c.l.b16 %v6400
        %v6524 = vunpack.c.l.b16 %v6404
        %v6525 = vunpack.c.l.b16 %v6407
        %v6526 = vunpack.c.l.b16 %v6411
        %v6527 = vunpack.c.l.b16 %v6414
        %v6528 = vunpack.c.l.b16 %v6418
        %v6529 = vunpack.c.l.b16 %v6421
        %v6530 = vunpack.c.l.b16 %v6425
        %v6531 = vunpack.c.l.b16 %v6428
        %v6532 = vunpack.c.l.b16 %v6432
        %v6533 = vunpack.c.l.b16 %v6435
        %v6534 = vunpack.c.l.b16 %v6439
        %v6535 = vunpack.c.l.b16 %v6442
        %v6536 = vunpack.c.l.b16 %v6446
        %v6537 = vunpack.c.l.b16 %v6449
        %v6538 = vunpack.c.l.b16 %v6453
        %v6539 = vunpack.c.l.b16 %v6456
        %v6540 = vunpack.c.l.b16 %v6460
        %v6541 = vunpack.c.l.b16 %v6463
        %v6542 = vunpack.c.l.b16 %v6467
        %v6543 = vunpack.c.l.b16 %v6470
        %v6544 = vunpack.c.l.b16 %v6474
        %v6545 = vunpack.c.l.b16 %v6477
        %v6546 = vunpack.c.l.b16 %v6481
        %v6547 = vunpack.c.l.b16 %v6484
        %v6548 = vunpack.c.l.b16 %v6488
        %v6549 = vunpack.c.l.b16 %v6491
        %v6550 = vunpack.c.l.b16 %v6495
        %v6551 = vunpack.c.l.b16 %v6498
        %v6552 = vunpack.c.l.b16 %v6502
        %v6553 = vunpack.c.l.b16 %v6505
        %v6554 = vpack.c.b16 %v6523, %v6522
        %v6555 = vpack.c.b16 %v6525, %v6524
        %v6556 = vpack.c.b16 %v6527, %v6526
        %v6557 = vpack.c.b16 %v6529, %v6528
        %v6558 = vpack.c.b16 %v6531, %v6530
        %v6559 = vpack.c.b16 %v6533, %v6532
        %v6560 = vpack.c.b16 %v6535, %v6534
        %v6561 = vpack.c.b16 %v6537, %v6536
        %v6562 = vpack.c.b16 %v6539, %v6538
        %v6563 = vpack.c.b16 %v6541, %v6540
        %v6564 = vpack.c.b16 %v6543, %v6542
        %v6565 = vpack.c.b16 %v6545, %v6544
        %v6566 = vpack.c.b16 %v6547, %v6546
        %v6567 = vpack.c.b16 %v6549, %v6548
        %v6568 = vpack.c.b16 %v6551, %v6550
        %v6569 = vpack.c.b16 %v6553, %v6552
        %v6602 = vunpack.c.l.b16 %v6506
        %v6603 = vunpack.c.l.b16 %v6507
        %v6604 = vunpack.c.l.b16 %v6508
        %v6605 = vunpack.c.l.b16 %v6509
        %v6606 = vunpack.c.l.b16 %v6510
        %v6607 = vunpack.c.l.b16 %v6511
        %v6608 = vunpack.c.l.b16 %v6512
        %v6609 = vunpack.c.l.b16 %v6513
        %v6610 = vunpack.c.l.b16 %v6514
        %v6611 = vunpack.c.l.b16 %v6515
        %v6612 = vunpack.c.l.b16 %v6516
        %v6613 = vunpack.c.l.b16 %v6517
        %v6614 = vunpack.c.l.b16 %v6518
        %v6615 = vunpack.c.l.b16 %v6519
        %v6616 = vunpack.c.l.b16 %v6520
        %v6617 = vunpack.c.l.b16 %v6521
        %v6618 = vpack.c.b16 %v6603, %v6602
        %v6619 = vpack.c.b16 %v6605, %v6604
        %v6620 = vpack.c.b16 %v6607, %v6606
        %v6621 = vpack.c.b16 %v6609, %v6608
        %v6622 = vpack.c.b16 %v6611, %v6610
        %v6623 = vpack.c.b16 %v6613, %v6612
        %v6624 = vpack.c.b16 %v6615, %v6614
        %v6625 = vpack.c.b16 %v6617, %v6616
        %6634 = vmatprep.subr.bf16.mxu0 0
        %6635 = vmatpush1.bf16.msra.mxu0 %v6618
        %6636 = vmatprep.subr.bf16.mxu0 0
        %6637 = vmatpush1.bf16.msra.mxu0 %v6619
        %6638 = vmatprep.subr.bf16.mxu0 0
        %6639 = vmatpush1.bf16.msra.mxu0 %v6620
        %6640 = vmatprep.subr.bf16.mxu0 0
        %6641 = vmatpush1.bf16.msra.mxu0 %v6621
        %6642 = vmatprep.subr.bf16.mxu0 0
        %6643 = vmatpush1.bf16.msra.mxu0 %v6622
        %6644 = vmatprep.subr.bf16.mxu0 0
        %6645 = vmatpush1.bf16.msra.mxu0 %v6623
        %6646 = vmatprep.subr.bf16.mxu0 0
        %6647 = vmatpush1.bf16.msra.mxu0 %v6624
        %6648 = vmatprep.subr.bf16.mxu0 0
        %6649 = vmatpush1.bf16.msra.mxu0 %v6625
        %6650 = vmatprep.subr.bf16.mxu0 0
        %6651 = vmatpush1.bf16.msra.mxu0 0
        %6652 = vmatprep.subr.bf16.mxu0 0
        %6653 = vmatpush1.bf16.msra.mxu0 0
        %6654 = vmatprep.subr.bf16.mxu0 0
        %6655 = vmatpush1.bf16.msra.mxu0 0
        %6656 = vmatprep.subr.bf16.mxu0 0
        %6657 = vmatpush1.bf16.msra.mxu0 0
        %6658 = vmatprep.subr.bf16.mxu0 0
        %6659 = vmatpush1.bf16.msra.mxu0 0
        %6660 = vmatprep.subr.bf16.mxu0 0
        %6661 = vmatpush1.bf16.msra.mxu0 0
        %6662 = vmatprep.subr.bf16.mxu0 0
        %6663 = vmatpush1.bf16.msra.mxu0 0
        %6664 = vmatprep.subr.bf16.mxu0 0
        %6665 = vmatpush1.bf16.msra.mxu0 0
        %6666 = vmatprep.mubr.bf16.mxu0 0
        %6667 = vmatmul.mubr.bf16.gmra.mrb[0].mxu0 %v6554
        %v6668 = vpop.f32.mrb[0].mxu0
        %v6669 = vadd.f32 0.0, %v6668
        %v6670 = vpop.f32.mrb[0].mxu0
        %v6671 = vpop.f32.mrb[0].mxu0
        %v6672 = vadd.f32 0.0, %v6671
        %v6673 = vpop.f32.mrb[0].mxu0
        %6674 = vmatprep.mubr.bf16.mxu0 0
        %6675 = vmatmul.mubr.bf16.gmra.mrb[0].mxu0 %v6555
        %v6676 = vpop.f32.mrb[0].mxu0
        %v6677 = vadd.f32 0.0, %v6676
        %v6678 = vpop.f32.mrb[0].mxu0
        %v6679 = vpop.f32.mrb[0].mxu0
        %v6680 = vadd.f32 0.0, %v6679
        %v6681 = vpop.f32.mrb[0].mxu0
        %6682 = vmatprep.mubr.bf16.mxu0 0
        %6683 = vmatmul.mubr.bf16.gmra.mrb[0].mxu0 %v6556
        %v6684 = vpop.f32.mrb[0].mxu0
        %v6685 = vadd.f32 0.0, %v6684
        %v6686 = vpop.f32.mrb[0].mxu0
        %v6687 = vpop.f32.mrb[0].mxu0
        %v6688 = vadd.f32 0.0, %v6687
        %v6689 = vpop.f32.mrb[0].mxu0
        %6690 = vmatprep.mubr.bf16.mxu0 0
        %6691 = vmatmul.mubr.bf16.gmra.mrb[0].mxu0 %v6557
        %v6692 = vpop.f32.mrb[0].mxu0
        %v6693 = vadd.f32 0.0, %v6692
        %v6694 = vpop.f32.mrb[0].mxu0
        %v6695 = vpop.f32.mrb[0].mxu0
        %v6696 = vadd.f32 0.0, %v6695
        %v6697 = vpop.f32.mrb[0].mxu0
        %6698 = vmatprep.mubr.bf16.mxu0 0
        %6699 = vmatmul.mubr.bf16.gmra.mrb[0].mxu0 %v6558
        %v6700 = vpop.f32.mrb[0].mxu0
        %v6701 = vadd.f32 0.0, %v6700
        %v6702 = vpop.f32.mrb[0].mxu0
        %v6703 = vpop.f32.mrb[0].mxu0
        %v6704 = vadd.f32 0.0, %v6703
        %v6705 = vpop.f32.mrb[0].mxu0
        %6706 = vmatprep.mubr.bf16.mxu0 0
        %6707 = vmatmul.mubr.bf16.gmra.mrb[0].mxu0 %v6559
        %v6708 = vpop.f32.mrb[0].mxu0
        %v6709 = vadd.f32 0.0, %v6708
        %v6710 = vpop.f32.mrb[0].mxu0
        %v6711 = vpop.f32.mrb[0].mxu0
        %v6712 = vadd.f32 0.0, %v6711
        %v6713 = vpop.f32.mrb[0].mxu0
        %6714 = vmatprep.mubr.bf16.mxu0 0
        %6715 = vmatmul.mubr.bf16.gmra.mrb[0].mxu0 %v6560
        %v6716 = vpop.f32.mrb[0].mxu0
        %v6717 = vadd.f32 0.0, %v6716
        %v6718 = vpop.f32.mrb[0].mxu0
        %v6719 = vpop.f32.mrb[0].mxu0
        %v6720 = vadd.f32 0.0, %v6719
        %v6721 = vpop.f32.mrb[0].mxu0
        %6722 = vmatprep.mubr.bf16.mxu0 0
        %6723 = vmatmul.mubr.bf16.gmra.mrb[0].mxu0 %v6561
        %v6724 = vpop.f32.mrb[0].mxu0
        %v6725 = vadd.f32 0.0, %v6724
        %v6726 = vpop.f32.mrb[0].mxu0
        %v6727 = vpop.f32.mrb[0].mxu0
        %v6728 = vadd.f32 0.0, %v6727
        %v6729 = vpop.f32.mrb[0].mxu0
        %6730 = vmatprep.mubr.bf16.mxu0 0
        %6731 = vmatmul.mubr.bf16.gmra.mrb[0].mxu0 %v6562
        %v6732 = vpop.f32.mrb[0].mxu0
        %v6733 = vadd.f32 0.0, %v6732
        %v6734 = vpop.f32.mrb[0].mxu0
        %v6735 = vpop.f32.mrb[0].mxu0
        %v6736 = vadd.f32 0.0, %v6735
        %v6737 = vpop.f32.mrb[0].mxu0
        %6738 = vmatprep.mubr.bf16.mxu0 0
        %6739 = vmatmul.mubr.bf16.gmra.mrb[0].mxu0 %v6563
        %v6740 = vpop.f32.mrb[0].mxu0
        %v6741 = vadd.f32 0.0, %v6740
        %v6742 = vpop.f32.mrb[0].mxu0
        %v6743 = vpop.f32.mrb[0].mxu0
        %v6744 = vadd.f32 0.0, %v6743
        %v6745 = vpop.f32.mrb[0].mxu0
        %6746 = vmatprep.mubr.bf16.mxu0 0
        %6747 = vmatmul.mubr.bf16.gmra.mrb[0].mxu0 %v6564
        %v6748 = vpop.f32.mrb[0].mxu0
        %v6749 = vadd.f32 0.0, %v6748
        %v6750 = vpop.f32.mrb[0].mxu0
        %v6751 = vpop.f32.mrb[0].mxu0
        %v6752 = vadd.f32 0.0, %v6751
        %v6753 = vpop.f32.mrb[0].mxu0
        %6754 = vmatprep.mubr.bf16.mxu0 0
        %6755 = vmatmul.mubr.bf16.gmra.mrb[0].mxu0 %v6565
        %v6756 = vpop.f32.mrb[0].mxu0
        %v6757 = vadd.f32 0.0, %v6756
        %v6758 = vpop.f32.mrb[0].mxu0
        %v6759 = vpop.f32.mrb[0].mxu0
        %v6760 = vadd.f32 0.0, %v6759
        %v6761 = vpop.f32.mrb[0].mxu0
        %6762 = vmatprep.mubr.bf16.mxu0 0
        %6763 = vmatmul.mubr.bf16.gmra.mrb[0].mxu0 %v6566
        %v6764 = vpop.f32.mrb[0].mxu0
        %v6765 = vadd.f32 0.0, %v6764
        %v6766 = vpop.f32.mrb[0].mxu0
        %v6767 = vpop.f32.mrb[0].mxu0
        %v6768 = vadd.f32 0.0, %v6767
        %v6769 = vpop.f32.mrb[0].mxu0
        %6770 = vmatprep.mubr.bf16.mxu0 0
        %6771 = vmatmul.mubr.bf16.gmra.mrb[0].mxu0 %v6567
        %v6772 = vpop.f32.mrb[0].mxu0
        %v6773 = vadd.f32 0.0, %v6772
        %v6774 = vpop.f32.mrb[0].mxu0
        %v6775 = vpop.f32.mrb[0].mxu0
        %v6776 = vadd.f32 0.0, %v6775
        %v6777 = vpop.f32.mrb[0].mxu0
        %6778 = vmatprep.mubr.bf16.mxu0 0
        %6779 = vmatmul.mubr.bf16.gmra.mrb[0].mxu0 %v6568
        %v6780 = vpop.f32.mrb[0].mxu0
        %v6781 = vadd.f32 0.0, %v6780
        %v6782 = vpop.f32.mrb[0].mxu0
        %v6783 = vpop.f32.mrb[0].mxu0
        %v6784 = vadd.f32 0.0, %v6783
        %v6785 = vpop.f32.mrb[0].mxu0
        %6786 = vmatprep.mubr.bf16.mxu0 0
        %6787 = vmatmul.mubr.bf16.gmra.mrb[0].mxu0 %v6569
        %v6788 = vpop.f32.mrb[0].mxu0
        %v6789 = vadd.f32 0.0, %v6788
        %v6790 = vpop.f32.mrb[0].mxu0
        %v6791 = vpop.f32.mrb[0].mxu0
        %v6792 = vadd.f32 0.0, %v6791
        %v6793 = vpop.f32.mrb[0].mxu0
        %6794 = vdwg.mxu0
        %v6795 = vadd.f32 %v6298, %v6669
        %v6796 = vadd.f32 %v6299, %v6672
        %v6797 = vadd.f32 %v6300, %v6677
        %v6798 = vadd.f32 %v6301, %v6680
        %v6799 = vadd.f32 %v6302, %v6685
        %v6800 = vadd.f32 %v6303, %v6688
        %v6801 = vadd.f32 %v6304, %v6693
        %v6802 = vadd.f32 %v6305, %v6696
        %v6803 = vadd.f32 %v6306, %v6701
        %v6804 = vadd.f32 %v6307, %v6704
        %v6805 = vadd.f32 %v6308, %v6709
        %v6806 = vadd.f32 %v6309, %v6712
        %v6807 = vadd.f32 %v6310, %v6717
        %v6808 = vadd.f32 %v6311, %v6720
        %v6809 = vadd.f32 %v6312, %v6725
        %v6810 = vadd.f32 %v6313, %v6728
        %v6811 = vadd.f32 %v6314, %v6733
        %v6812 = vadd.f32 %v6315, %v6736
        %v6813 = vadd.f32 %v6316, %v6741
        %v6814 = vadd.f32 %v6317, %v6744
        %v6815 = vadd.f32 %v6318, %v6749
        %v6816 = vadd.f32 %v6319, %v6752
        %v6817 = vadd.f32 %v6320, %v6757
        %v6818 = vadd.f32 %v6321, %v6760
        %v6819 = vadd.f32 %v6322, %v6765
        %v6820 = vadd.f32 %v6323, %v6768
        %v6821 = vadd.f32 %v6324, %v6773
        %v6822 = vadd.f32 %v6325, %v6776
        %v6823 = vadd.f32 %v6326, %v6781
        %v6824 = vadd.f32 %v6327, %v6784
        %v6825 = vadd.f32 %v6328, %v6789
        %v6826 = vadd.f32 %v6329, %v6792
        %v6827 = vld [vmem:[#allocation11] sm:$0x1]
        %v6829 = vlaneseq
        %v6830 = vshrl.u32 %v6829, 7
        %v6831 = vsub.s32 0, %v6830
        %v6832 = vrot.slane %v6827, %v6831
        %v6834 = vadd.f32 %v6795, %v6832
        %v6835 = vadd.f32 %v6796, %v6832
        %v6836 = vadd.f32 %v6797, %v6832
        %v6837 = vadd.f32 %v6798, %v6832
        %v6838 = vadd.f32 %v6799, %v6832
        %v6839 = vadd.f32 %v6800, %v6832
        %v6840 = vadd.f32 %v6801, %v6832
        %v6841 = vadd.f32 %v6802, %v6832
        %v6842 = vadd.f32 %v6803, %v6832
        %v6843 = vadd.f32 %v6804, %v6832
        %v6844 = vadd.f32 %v6805, %v6832
        %v6845 = vadd.f32 %v6806, %v6832
        %v6846 = vadd.f32 %v6807, %v6832
        %v6847 = vadd.f32 %v6808, %v6832
        %v6848 = vadd.f32 %v6809, %v6832
        %v6849 = vadd.f32 %v6810, %v6832
        %v6850 = vadd.f32 %v6811, %v6832
        %v6851 = vadd.f32 %v6812, %v6832
        %v6852 = vadd.f32 %v6813, %v6832
        %v6853 = vadd.f32 %v6814, %v6832
        %v6854 = vadd.f32 %v6815, %v6832
        %v6855 = vadd.f32 %v6816, %v6832
        %v6856 = vadd.f32 %v6817, %v6832
        %v6857 = vadd.f32 %v6818, %v6832
        %v6858 = vadd.f32 %v6819, %v6832
        %v6859 = vadd.f32 %v6820, %v6832
        %v6860 = vadd.f32 %v6821, %v6832
        %v6861 = vadd.f32 %v6822, %v6832
        %v6862 = vadd.f32 %v6823, %v6832
        %v6863 = vadd.f32 %v6824, %v6832
        %v6864 = vadd.f32 %v6825, %v6832
        %v6865 = vadd.f32 %v6826, %v6832
        %v6866 = vmax.f32 %v6834, 0.0
        %v6867 = vmax.f32 %v6835, 0.0
        %v6868 = vmax.f32 %v6836, 0.0
        %v6869 = vmax.f32 %v6837, 0.0
        %v6870 = vmax.f32 %v6838, 0.0
        %v6871 = vmax.f32 %v6839, 0.0
        %v6872 = vmax.f32 %v6840, 0.0
        %v6873 = vmax.f32 %v6841, 0.0
        %v6874 = vmax.f32 %v6842, 0.0
        %v6875 = vmax.f32 %v6843, 0.0
        %v6876 = vmax.f32 %v6844, 0.0
        %v6877 = vmax.f32 %v6845, 0.0
        %v6878 = vmax.f32 %v6846, 0.0
        %v6879 = vmax.f32 %v6847, 0.0
        %v6880 = vmax.f32 %v6848, 0.0
        %v6881 = vmax.f32 %v6849, 0.0
        %v6882 = vmax.f32 %v6850, 0.0
        %v6883 = vmax.f32 %v6851, 0.0
        %v6884 = vmax.f32 %v6852, 0.0
        %v6885 = vmax.f32 %v6853, 0.0
        %v6886 = vmax.f32 %v6854, 0.0
        %v6887 = vmax.f32 %v6855, 0.0
        %v6888 = vmax.f32 %v6856, 0.0
        %v6889 = vmax.f32 %v6857, 0.0
        %v6890 = vmax.f32 %v6858, 0.0
        %v6891 = vmax.f32 %v6859, 0.0
        %v6892 = vmax.f32 %v6860, 0.0
        %v6893 = vmax.f32 %v6861, 0.0
        %v6894 = vmax.f32 %v6862, 0.0
        %v6895 = vmax.f32 %v6863, 0.0
        %v6896 = vmax.f32 %v6864, 0.0
        %v6897 = vmax.f32 %v6865, 0.0
        %v6898 = vpack.c.bf16 %v6867, %v6866
        %v6899 = vpack.c.bf16 %v6869, %v6868
        %v6900 = vpack.c.bf16 %v6871, %v6870
        %v6901 = vpack.c.bf16 %v6873, %v6872
        %v6902 = vpack.c.bf16 %v6875, %v6874
        %v6903 = vpack.c.bf16 %v6877, %v6876
        %v6904 = vpack.c.bf16 %v6879, %v6878
        %v6905 = vpack.c.bf16 %v6881, %v6880
        %v6906 = vpack.c.bf16 %v6883, %v6882
        %v6907 = vpack.c.bf16 %v6885, %v6884
        %v6908 = vpack.c.bf16 %v6887, %v6886
        %v6909 = vpack.c.bf16 %v6889, %v6888
        %v6910 = vpack.c.bf16 %v6891, %v6890
        %v6911 = vpack.c.bf16 %v6893, %v6892
        %v6912 = vpack.c.bf16 %v6895, %v6894
        %v6913 = vpack.c.bf16 %v6897, %v6896
        %v6914 = vld [vmem:[#allocation12] sm:$0xf]
        %v6915 = vld [vmem:[#allocation12 + $0x10] sm:$0xf]
        %v6916 = vld [vmem:[#allocation12 + $0x20] sm:$0xf]
        %v6917 = vld [vmem:[#allocation12 + $0x30] sm:$0xf]
        %v6918 = vld [vmem:[#allocation12 + $0x40] sm:$0xf]
        %v6919 = vld [vmem:[#allocation12 + $0x50] sm:$0xf]
        %v6920 = vld [vmem:[#allocation12 + $0x60] sm:$0xf]
        %v6921 = vld [vmem:[#allocation12 + $0x70] sm:$0xf]
        %v6922 = vld [vmem:[#allocation12 + $0x80] sm:$0xf]
        %v6923 = vld [vmem:[#allocation12 + $0x90] sm:$0xf]
        %v6924 = vld [vmem:[#allocation12 + $0xa0] sm:$0xf]
        %v6925 = vld [vmem:[#allocation12 + $0xb0] sm:$0xf]
        %v6926 = vld [vmem:[#allocation12 + $0xc0] sm:$0xf]
        %v6927 = vld [vmem:[#allocation12 + $0xd0] sm:$0xf]
        %v6928 = vld [vmem:[#allocation12 + $0xe0] sm:$0xf]
        %v6929 = vld [vmem:[#allocation12 + $0xf0] sm:$0xf]
        %v6946 = vunpack.c.l.b16 %v6914
        %v6947 = vunpack.c.l.b16 %v6915
        %v6948 = vunpack.c.l.b16 %v6916
        %v6949 = vunpack.c.l.b16 %v6917
        %v6950 = vunpack.c.l.b16 %v6918
        %v6951 = vunpack.c.l.b16 %v6919
        %v6952 = vunpack.c.l.b16 %v6920
        %v6953 = vunpack.c.l.b16 %v6921
        %v6954 = vunpack.c.l.b16 %v6922
        %v6955 = vunpack.c.l.b16 %v6923
        %v6956 = vunpack.c.l.b16 %v6924
        %v6957 = vunpack.c.l.b16 %v6925
        %v6958 = vunpack.c.l.b16 %v6926
        %v6959 = vunpack.c.l.b16 %v6927
        %v6960 = vunpack.c.l.b16 %v6928
        %v6961 = vunpack.c.l.b16 %v6929
        %v6962 = vpack.c.b16 %v6947, %v6946
        %v6963 = vpack.c.b16 %v6949, %v6948
        %v6964 = vpack.c.b16 %v6951, %v6950
        %v6965 = vpack.c.b16 %v6953, %v6952
        %v6966 = vpack.c.b16 %v6955, %v6954
        %v6967 = vpack.c.b16 %v6957, %v6956
        %v6968 = vpack.c.b16 %v6959, %v6958
        %v6969 = vpack.c.b16 %v6961, %v6960
        %6978 = vmatprep.subr.bf16.mxu0 0
        %6979 = vmatpush1.bf16.msra.mxu0 %v6962
        %6980 = vmatprep.subr.bf16.mxu0 0
        %6981 = vmatpush1.bf16.msra.mxu0 %v6963
        %6982 = vmatprep.subr.bf16.mxu0 0
        %6983 = vmatpush1.bf16.msra.mxu0 %v6964
        %6984 = vmatprep.subr.bf16.mxu0 0
        %6985 = vmatpush1.bf16.msra.mxu0 %v6965
        %6986 = vmatprep.subr.bf16.mxu0 0
        %6987 = vmatpush1.bf16.msra.mxu0 %v6966
        %6988 = vmatprep.subr.bf16.mxu0 0
        %6989 = vmatpush1.bf16.msra.mxu0 %v6967
        %6990 = vmatprep.subr.bf16.mxu0 0
        %6991 = vmatpush1.bf16.msra.mxu0 %v6968
        %6992 = vmatprep.subr.bf16.mxu0 0
        %6993 = vmatpush1.bf16.msra.mxu0 %v6969
        %6994 = vmatprep.subr.bf16.mxu0 0
        %6995 = vmatpush1.bf16.msra.mxu0 0
        %6996 = vmatprep.subr.bf16.mxu0 0
        %6997 = vmatpush1.bf16.msra.mxu0 0
        %6998 = vmatprep.subr.bf16.mxu0 0
        %6999 = vmatpush1.bf16.msra.mxu0 0
        %7000 = vmatprep.subr.bf16.mxu0 0
        %7001 = vmatpush1.bf16.msra.mxu0 0
        %7002 = vmatprep.subr.bf16.mxu0 0
        %7003 = vmatpush1.bf16.msra.mxu0 0
        %7004 = vmatprep.subr.bf16.mxu0 0
        %7005 = vmatpush1.bf16.msra.mxu0 0
        %7006 = vmatprep.subr.bf16.mxu0 0
        %7007 = vmatpush1.bf16.msra.mxu0 0
        %7008 = vmatprep.subr.bf16.mxu0 0
        %7009 = vmatpush1.bf16.msra.mxu0 0
        %7010 = vmatprep.mubr.bf16.mxu0 0
        %7011 = vmatmul.mubr.bf16.gmra.mrb[0].mxu0 %v6898
        %v7012 = vpop.f32.mrb[0].mxu0
        %v7013 = vadd.f32 0.0, %v7012
        %v7014 = vpop.f32.mrb[0].mxu0
        %v7015 = vpop.f32.mrb[0].mxu0
        %v7016 = vadd.f32 0.0, %v7015
        %v7017 = vpop.f32.mrb[0].mxu0
        %7018 = vmatprep.mubr.bf16.mxu0 0
        %7019 = vmatmul.mubr.bf16.gmra.mrb[0].mxu0 %v6899
        %v7020 = vpop.f32.mrb[0].mxu0
        %v7021 = vadd.f32 0.0, %v7020
        %v7022 = vpop.f32.mrb[0].mxu0
        %v7023 = vpop.f32.mrb[0].mxu0
        %v7024 = vadd.f32 0.0, %v7023
        %v7025 = vpop.f32.mrb[0].mxu0
        %7026 = vmatprep.mubr.bf16.mxu0 0
        %7027 = vmatmul.mubr.bf16.gmra.mrb[0].mxu0 %v6900
        %v7028 = vpop.f32.mrb[0].mxu0
        %v7029 = vadd.f32 0.0, %v7028
        %v7030 = vpop.f32.mrb[0].mxu0
        %v7031 = vpop.f32.mrb[0].mxu0
        %v7032 = vadd.f32 0.0, %v7031
        %v7033 = vpop.f32.mrb[0].mxu0
        %7034 = vmatprep.mubr.bf16.mxu0 0
        %7035 = vmatmul.mubr.bf16.gmra.mrb[0].mxu0 %v6901
        %v7036 = vpop.f32.mrb[0].mxu0
        %v7037 = vadd.f32 0.0, %v7036
        %v7038 = vpop.f32.mrb[0].mxu0
        %v7039 = vpop.f32.mrb[0].mxu0
        %v7040 = vadd.f32 0.0, %v7039
        %v7041 = vpop.f32.mrb[0].mxu0
        %7042 = vmatprep.mubr.bf16.mxu0 0
        %7043 = vmatmul.mubr.bf16.gmra.mrb[0].mxu0 %v6902
        %v7044 = vpop.f32.mrb[0].mxu0
        %v7045 = vadd.f32 0.0, %v7044
        %v7046 = vpop.f32.mrb[0].mxu0
        %v7047 = vpop.f32.mrb[0].mxu0
        %v7048 = vadd.f32 0.0, %v7047
        %v7049 = vpop.f32.mrb[0].mxu0
        %7050 = vmatprep.mubr.bf16.mxu0 0
        %7051 = vmatmul.mubr.bf16.gmra.mrb[0].mxu0 %v6903
        %v7052 = vpop.f32.mrb[0].mxu0
        %v7053 = vadd.f32 0.0, %v7052
        %v7054 = vpop.f32.mrb[0].mxu0
        %v7055 = vpop.f32.mrb[0].mxu0
        %v7056 = vadd.f32 0.0, %v7055
        %v7057 = vpop.f32.mrb[0].mxu0
        %7058 = vmatprep.mubr.bf16.mxu0 0
        %7059 = vmatmul.mubr.bf16.gmra.mrb[0].mxu0 %v6904
        %v7060 = vpop.f32.mrb[0].mxu0
        %v7061 = vadd.f32 0.0, %v7060
        %v7062 = vpop.f32.mrb[0].mxu0
        %v7063 = vpop.f32.mrb[0].mxu0
        %v7064 = vadd.f32 0.0, %v7063
        %v7065 = vpop.f32.mrb[0].mxu0
        %7066 = vmatprep.mubr.bf16.mxu0 0
        %7067 = vmatmul.mubr.bf16.gmra.mrb[0].mxu0 %v6905
        %v7068 = vpop.f32.mrb[0].mxu0
        %v7069 = vadd.f32 0.0, %v7068
        %v7070 = vpop.f32.mrb[0].mxu0
        %v7071 = vpop.f32.mrb[0].mxu0
        %v7072 = vadd.f32 0.0, %v7071
        %v7073 = vpop.f32.mrb[0].mxu0
        %7074 = vmatprep.mubr.bf16.mxu0 0
        %7075 = vmatmul.mubr.bf16.gmra.mrb[0].mxu0 %v6906
        %v7076 = vpop.f32.mrb[0].mxu0
        %v7077 = vadd.f32 0.0, %v7076
        %v7078 = vpop.f32.mrb[0].mxu0
        %v7079 = vpop.f32.mrb[0].mxu0
        %v7080 = vadd.f32 0.0, %v7079
        %v7081 = vpop.f32.mrb[0].mxu0
        %7082 = vmatprep.mubr.bf16.mxu0 0
        %7083 = vmatmul.mubr.bf16.gmra.mrb[0].mxu0 %v6907
        %v7084 = vpop.f32.mrb[0].mxu0
        %v7085 = vadd.f32 0.0, %v7084
        %v7086 = vpop.f32.mrb[0].mxu0
        %v7087 = vpop.f32.mrb[0].mxu0
        %v7088 = vadd.f32 0.0, %v7087
        %v7089 = vpop.f32.mrb[0].mxu0
        %7090 = vmatprep.mubr.bf16.mxu0 0
        %7091 = vmatmul.mubr.bf16.gmra.mrb[0].mxu0 %v6908
        %v7092 = vpop.f32.mrb[0].mxu0
        %v7093 = vadd.f32 0.0, %v7092
        %v7094 = vpop.f32.mrb[0].mxu0
        %v7095 = vpop.f32.mrb[0].mxu0
        %v7096 = vadd.f32 0.0, %v7095
        %v7097 = vpop.f32.mrb[0].mxu0
        %7098 = vmatprep.mubr.bf16.mxu0 0
        %7099 = vmatmul.mubr.bf16.gmra.mrb[0].mxu0 %v6909
        %v7100 = vpop.f32.mrb[0].mxu0
        %v7101 = vadd.f32 0.0, %v7100
        %v7102 = vpop.f32.mrb[0].mxu0
        %v7103 = vpop.f32.mrb[0].mxu0
        %v7104 = vadd.f32 0.0, %v7103
        %v7105 = vpop.f32.mrb[0].mxu0
        %7106 = vmatprep.mubr.bf16.mxu0 0
        %7107 = vmatmul.mubr.bf16.gmra.mrb[0].mxu0 %v6910
        %v7108 = vpop.f32.mrb[0].mxu0
        %v7109 = vadd.f32 0.0, %v7108
        %v7110 = vpop.f32.mrb[0].mxu0
        %v7111 = vpop.f32.mrb[0].mxu0
        %v7112 = vadd.f32 0.0, %v7111
        %v7113 = vpop.f32.mrb[0].mxu0
        %7114 = vmatprep.mubr.bf16.mxu0 0
        %7115 = vmatmul.mubr.bf16.gmra.mrb[0].mxu0 %v6911
        %v7116 = vpop.f32.mrb[0].mxu0
        %v7117 = vadd.f32 0.0, %v7116
        %v7118 = vpop.f32.mrb[0].mxu0
        %v7119 = vpop.f32.mrb[0].mxu0
        %v7120 = vadd.f32 0.0, %v7119
        %v7121 = vpop.f32.mrb[0].mxu0
        %7122 = vmatprep.mubr.bf16.mxu0 0
        %7123 = vmatmul.mubr.bf16.gmra.mrb[0].mxu0 %v6912
        %v7124 = vpop.f32.mrb[0].mxu0
        %v7125 = vadd.f32 0.0, %v7124
        %v7126 = vpop.f32.mrb[0].mxu0
        %v7127 = vpop.f32.mrb[0].mxu0
        %v7128 = vadd.f32 0.0, %v7127
        %v7129 = vpop.f32.mrb[0].mxu0
        %7130 = vmatprep.mubr.bf16.mxu0 0
        %7131 = vmatmul.mubr.bf16.gmra.mrb[0].mxu0 %v6913
        %v7132 = vpop.f32.mrb[0].mxu0
        %v7133 = vadd.f32 0.0, %v7132
        %v7134 = vpop.f32.mrb[0].mxu0
        %v7135 = vpop.f32.mrb[0].mxu0
        %v7136 = vadd.f32 0.0, %v7135
        %v7137 = vpop.f32.mrb[0].mxu0
        %7138 = vdwg.mxu0
        %s7139 = sadd.s32 %s394, 1
        %s7140 = smul.u32 %s7139, 8
        %s7141 = smul.addr %s7140, 8
        %s7142 = scalar_lea.vmem %s337, %s7141 [#allocation3]
        %v7143 = vld [vmem:[%s7142] sm:$0xff]
        %v7144 = vld [vmem:[%s7142 + $0x20] sm:$0xff]
        %v7145 = vld [vmem:[%s7142 + $0x40] sm:$0xff]
        %v7146 = vld [vmem:[%s7142 + $0x60] sm:$0xff]
        %v7147 = vld [vmem:[%s7142 + $0x80] sm:$0xff]
        %v7148 = vld [vmem:[%s7142 + $0xa0] sm:$0xff]
        %v7149 = vld [vmem:[%s7142 + $0xc0] sm:$0xff]
        %v7150 = vld [vmem:[%s7142 + $0xe0] sm:$0xff]
        %v7151 = vld [vmem:[%s7142 + $0x100] sm:$0xff]
        %v7152 = vld [vmem:[%s7142 + $0x120] sm:$0xff]
        %v7153 = vld [vmem:[%s7142 + $0x140] sm:$0xff]
        %v7154 = vld [vmem:[%s7142 + $0x160] sm:$0xff]
        %v7155 = vld [vmem:[%s7142 + $0x180] sm:$0xff]
        %v7156 = vld [vmem:[%s7142 + $0x1a0] sm:$0xff]
        %v7157 = vld [vmem:[%s7142 + $0x1c0] sm:$0xff]
        %v7158 = vld [vmem:[%s7142 + $0x1e0] sm:$0xff]
        %v7159 = vld [vmem:[%s7142 + $0x200] sm:$0xff]
        %v7160 = vld [vmem:[%s7142 + $0x220] sm:$0xff]
        %v7161 = vld [vmem:[%s7142 + $0x240] sm:$0xff]
        %v7162 = vld [vmem:[%s7142 + $0x260] sm:$0xff]
        %v7163 = vld [vmem:[%s7142 + $0x280] sm:$0xff]
        %v7164 = vld [vmem:[%s7142 + $0x2a0] sm:$0xff]
        %v7165 = vld [vmem:[%s7142 + $0x2c0] sm:$0xff]
        %v7166 = vld [vmem:[%s7142 + $0x2e0] sm:$0xff]
        %v7167 = vld [vmem:[%s7142 + $0x300] sm:$0xff]
        %v7168 = vld [vmem:[%s7142 + $0x320] sm:$0xff]
        %v7169 = vld [vmem:[%s7142 + $0x340] sm:$0xff]
        %v7170 = vld [vmem:[%s7142 + $0x360] sm:$0xff]
        %v7171 = vld [vmem:[%s7142 + $0x380] sm:$0xff]
        %v7172 = vld [vmem:[%s7142 + $0x3a0] sm:$0xff]
        %v7173 = vld [vmem:[%s7142 + $0x3c0] sm:$0xff]
        %v7174 = vld [vmem:[%s7142 + $0x3e0] sm:$0xff]
        %v7175 = vld [vmem:[#allocation14] sm:$0x1]
        %v7177 = vlaneseq
        %v7178 = vshrl.u32 %v7177, 7
        %v7179 = vsub.s32 0, %v7178
        %v7180 = vrot.slane %v7175, %v7179
        %v7182 = vadd.f32 %v7013, %v7180
        %v7183 = vadd.f32 %v7016, %v7180
        %v7184 = vadd.f32 %v7021, %v7180
        %v7185 = vadd.f32 %v7024, %v7180
        %v7186 = vadd.f32 %v7029, %v7180
        %v7187 = vadd.f32 %v7032, %v7180
        %v7188 = vadd.f32 %v7037, %v7180
        %v7189 = vadd.f32 %v7040, %v7180
        %v7190 = vadd.f32 %v7045, %v7180
        %v7191 = vadd.f32 %v7048, %v7180
        %v7192 = vadd.f32 %v7053, %v7180
        %v7193 = vadd.f32 %v7056, %v7180
        %v7194 = vadd.f32 %v7061, %v7180
        %v7195 = vadd.f32 %v7064, %v7180
        %v7196 = vadd.f32 %v7069, %v7180
        %v7197 = vadd.f32 %v7072, %v7180
        %v7198 = vadd.f32 %v7077, %v7180
        %v7199 = vadd.f32 %v7080, %v7180
        %v7200 = vadd.f32 %v7085, %v7180
        %v7201 = vadd.f32 %v7088, %v7180
        %v7202 = vadd.f32 %v7093, %v7180
        %v7203 = vadd.f32 %v7096, %v7180
        %v7204 = vadd.f32 %v7101, %v7180
        %v7205 = vadd.f32 %v7104, %v7180
        %v7206 = vadd.f32 %v7109, %v7180
        %v7207 = vadd.f32 %v7112, %v7180
        %v7208 = vadd.f32 %v7117, %v7180
        %v7209 = vadd.f32 %v7120, %v7180
        %v7210 = vadd.f32 %v7125, %v7180
        %v7211 = vadd.f32 %v7128, %v7180
        %v7212 = vadd.f32 %v7133, %v7180
        %v7213 = vadd.f32 %v7136, %v7180
        %v7214 = vadd.f32 %v7182, %v7143
        %v7215 = vadd.f32 %v7183, %v7144
        %v7216 = vadd.f32 %v7184, %v7145
        %v7217 = vadd.f32 %v7185, %v7146
        %v7218 = vadd.f32 %v7186, %v7147
        %v7219 = vadd.f32 %v7187, %v7148
        %v7220 = vadd.f32 %v7188, %v7149
        %v7221 = vadd.f32 %v7189, %v7150
        %v7222 = vadd.f32 %v7190, %v7151
        %v7223 = vadd.f32 %v7191, %v7152
        %v7224 = vadd.f32 %v7192, %v7153
        %v7225 = vadd.f32 %v7193, %v7154
        %v7226 = vadd.f32 %v7194, %v7155
        %v7227 = vadd.f32 %v7195, %v7156
        %v7228 = vadd.f32 %v7196, %v7157
        %v7229 = vadd.f32 %v7197, %v7158
        %v7230 = vadd.f32 %v7198, %v7159
        %v7231 = vadd.f32 %v7199, %v7160
        %v7232 = vadd.f32 %v7200, %v7161
        %v7233 = vadd.f32 %v7201, %v7162
        %v7234 = vadd.f32 %v7202, %v7163
        %v7235 = vadd.f32 %v7203, %v7164
        %v7236 = vadd.f32 %v7204, %v7165
        %v7237 = vadd.f32 %v7205, %v7166
        %v7238 = vadd.f32 %v7206, %v7167
        %v7239 = vadd.f32 %v7207, %v7168
        %v7240 = vadd.f32 %v7208, %v7169
        %v7241 = vadd.f32 %v7209, %v7170
        %v7242 = vadd.f32 %v7210, %v7171
        %v7243 = vadd.f32 %v7211, %v7172
        %v7244 = vadd.f32 %v7212, %v7173
        %v7245 = vadd.f32 %v7213, %v7174
        %v7246 = vmax.f32 %v7214, 0.0
        %v7247 = vmax.f32 %v7215, 0.0
        %v7248 = vmax.f32 %v7216, 0.0
        %v7249 = vmax.f32 %v7217, 0.0
        %v7250 = vmax.f32 %v7218, 0.0
        %v7251 = vmax.f32 %v7219, 0.0
        %v7252 = vmax.f32 %v7220, 0.0
        %v7253 = vmax.f32 %v7221, 0.0
        %v7254 = vmax.f32 %v7222, 0.0
        %v7255 = vmax.f32 %v7223, 0.0
        %v7256 = vmax.f32 %v7224, 0.0
        %v7257 = vmax.f32 %v7225, 0.0
        %v7258 = vmax.f32 %v7226, 0.0
        %v7259 = vmax.f32 %v7227, 0.0
        %v7260 = vmax.f32 %v7228, 0.0
        %v7261 = vmax.f32 %v7229, 0.0
        %v7262 = vmax.f32 %v7230, 0.0
        %v7263 = vmax.f32 %v7231, 0.0
        %v7264 = vmax.f32 %v7232, 0.0
        %v7265 = vmax.f32 %v7233, 0.0
        %v7266 = vmax.f32 %v7234, 0.0
        %v7267 = vmax.f32 %v7235, 0.0
        %v7268 = vmax.f32 %v7236, 0.0
        %v7269 = vmax.f32 %v7237, 0.0
        %v7270 = vmax.f32 %v7238, 0.0
        %v7271 = vmax.f32 %v7239, 0.0
        %v7272 = vmax.f32 %v7240, 0.0
        %v7273 = vmax.f32 %v7241, 0.0
        %v7274 = vmax.f32 %v7242, 0.0
        %v7275 = vmax.f32 %v7243, 0.0
        %v7276 = vmax.f32 %v7244, 0.0
        %v7277 = vmax.f32 %v7245, 0.0
        %v7278 = vpack.c.bf16 %v7247, %v7246
        %v7279 = vpack.c.bf16 %v7249, %v7248
        %v7280 = vpack.c.bf16 %v7251, %v7250
        %v7281 = vpack.c.bf16 %v7253, %v7252
        %v7282 = vpack.c.bf16 %v7255, %v7254
        %v7283 = vpack.c.bf16 %v7257, %v7256
        %v7284 = vpack.c.bf16 %v7259, %v7258
        %v7285 = vpack.c.bf16 %v7261, %v7260
        %v7286 = vpack.c.bf16 %v7263, %v7262
        %v7287 = vpack.c.bf16 %v7265, %v7264
        %v7288 = vpack.c.bf16 %v7267, %v7266
        %v7289 = vpack.c.bf16 %v7269, %v7268
        %v7290 = vpack.c.bf16 %v7271, %v7270
        %v7291 = vpack.c.bf16 %v7273, %v7272
        %v7292 = vpack.c.bf16 %v7275, %v7274
        %v7293 = vpack.c.bf16 %v7277, %v7276
        %v7310 = vunpack.c.l.b16 %v7278
        %v7311 = vunpack.c.h.b16 %v7278
        %v7312 = vunpack.c.l.b16 %v7279
        %v7313 = vunpack.c.h.b16 %v7279
        %v7314 = vunpack.c.l.b16 %v7280
        %v7315 = vunpack.c.h.b16 %v7280
        %v7316 = vunpack.c.l.b16 %v7281
        %v7317 = vunpack.c.h.b16 %v7281
        %v7318 = vunpack.c.l.b16 %v7282
        %v7319 = vunpack.c.h.b16 %v7282
        %v7320 = vunpack.c.l.b16 %v7283
        %v7321 = vunpack.c.h.b16 %v7283
        %v7322 = vunpack.c.l.b16 %v7284
        %v7323 = vunpack.c.h.b16 %v7284
        %v7324 = vunpack.c.l.b16 %v7285
        %v7325 = vunpack.c.h.b16 %v7285
        %v7326 = vunpack.c.l.b16 %v7286
        %v7327 = vunpack.c.h.b16 %v7286
        %v7328 = vunpack.c.l.b16 %v7287
        %v7329 = vunpack.c.h.b16 %v7287
        %v7330 = vunpack.c.l.b16 %v7288
        %v7331 = vunpack.c.h.b16 %v7288
        %v7332 = vunpack.c.l.b16 %v7289
        %v7333 = vunpack.c.h.b16 %v7289
        %v7334 = vunpack.c.l.b16 %v7290
        %v7335 = vunpack.c.h.b16 %v7290
        %v7336 = vunpack.c.l.b16 %v7291
        %v7337 = vunpack.c.h.b16 %v7291
        %v7338 = vunpack.c.l.b16 %v7292
        %v7339 = vunpack.c.h.b16 %v7292
        %v7340 = vunpack.c.l.b16 %v7293
        %v7341 = vunpack.c.h.b16 %v7293
        %v7342 = vpack.c.b16 %v7310, %v7310
        %v7343 = vpack.c.b16 %v7311, %v7311
        %v7344 = vpack.c.b16 %v7312, %v7312
        %v7345 = vpack.c.b16 %v7313, %v7313
        %v7346 = vpack.c.b16 %v7314, %v7314
        %v7347 = vpack.c.b16 %v7315, %v7315
        %v7348 = vpack.c.b16 %v7316, %v7316
        %v7349 = vpack.c.b16 %v7317, %v7317
        %v7350 = vpack.c.b16 %v7318, %v7318
        %v7351 = vpack.c.b16 %v7319, %v7319
        %v7352 = vpack.c.b16 %v7320, %v7320
        %v7353 = vpack.c.b16 %v7321, %v7321
        %v7354 = vpack.c.b16 %v7322, %v7322
        %v7355 = vpack.c.b16 %v7323, %v7323
        %v7356 = vpack.c.b16 %v7324, %v7324
        %v7357 = vpack.c.b16 %v7325, %v7325
        %v7358 = vpack.c.b16 %v7326, %v7326
        %v7359 = vpack.c.b16 %v7327, %v7327
        %v7360 = vpack.c.b16 %v7328, %v7328
        %v7361 = vpack.c.b16 %v7329, %v7329
        %v7362 = vpack.c.b16 %v7330, %v7330
        %v7363 = vpack.c.b16 %v7331, %v7331
        %v7364 = vpack.c.b16 %v7332, %v7332
        %v7365 = vpack.c.b16 %v7333, %v7333
        %v7366 = vpack.c.b16 %v7334, %v7334
        %v7367 = vpack.c.b16 %v7335, %v7335
        %v7368 = vpack.c.b16 %v7336, %v7336
        %v7369 = vpack.c.b16 %v7337, %v7337
        %v7370 = vpack.c.b16 %v7338, %v7338
        %v7371 = vpack.c.b16 %v7339, %v7339
        %v7372 = vpack.c.b16 %v7340, %v7340
        %v7373 = vpack.c.b16 %v7341, %v7341
        %7406 = vst [vmem:[%s391] sm:$0xf] %v7342
        %7407 = vst [vmem:[%s391 + $0x10] sm:$0xf] %v7343
        %7408 = vst [vmem:[%s391 + $0x20] sm:$0xf] %v7344
        %7409 = vst [vmem:[%s391 + $0x30] sm:$0xf] %v7345
        %7410 = vst [vmem:[%s391 + $0x40] sm:$0xf] %v7346
        %7411 = vst [vmem:[%s391 + $0x50] sm:$0xf] %v7347
        %7412 = vst [vmem:[%s391 + $0x60] sm:$0xf] %v7348
        %7413 = vst [vmem:[%s391 + $0x70] sm:$0xf] %v7349
        %7414 = vst [vmem:[%s391 + $0x80] sm:$0xf] %v7350
        %7415 = vst [vmem:[%s391 + $0x90] sm:$0xf] %v7351
        %7416 = vst [vmem:[%s391 + $0xa0] sm:$0xf] %v7352
        %7417 = vst [vmem:[%s391 + $0xb0] sm:$0xf] %v7353
        %7418 = vst [vmem:[%s391 + $0xc0] sm:$0xf] %v7354
        %7419 = vst [vmem:[%s391 + $0xd0] sm:$0xf] %v7355
        %7420 = vst [vmem:[%s391 + $0xe0] sm:$0xf] %v7356
        %7421 = vst [vmem:[%s391 + $0xf0] sm:$0xf] %v7357
        %7422 = vst [vmem:[%s391 + $0x100] sm:$0xf] %v7358
        %7423 = vst [vmem:[%s391 + $0x110] sm:$0xf] %v7359
        %7424 = vst [vmem:[%s391 + $0x120] sm:$0xf] %v7360
        %7425 = vst [vmem:[%s391 + $0x130] sm:$0xf] %v7361
        %7426 = vst [vmem:[%s391 + $0x140] sm:$0xf] %v7362
        %7427 = vst [vmem:[%s391 + $0x150] sm:$0xf] %v7363
        %7428 = vst [vmem:[%s391 + $0x160] sm:$0xf] %v7364
        %7429 = vst [vmem:[%s391 + $0x170] sm:$0xf] %v7365
        %7430 = vst [vmem:[%s391 + $0x180] sm:$0xf] %v7366
        %7431 = vst [vmem:[%s391 + $0x190] sm:$0xf] %v7367
        %7432 = vst [vmem:[%s391 + $0x1a0] sm:$0xf] %v7368
        %7433 = vst [vmem:[%s391 + $0x1b0] sm:$0xf] %v7369
        %7434 = vst [vmem:[%s391 + $0x1c0] sm:$0xf] %v7370
        %7435 = vst [vmem:[%s391 + $0x1d0] sm:$0xf] %v7371
        %7436 = vst [vmem:[%s391 + $0x1e0] sm:$0xf] %v7372
        %7437 = vst [vmem:[%s391 + $0x1f0] sm:$0xf] %v7373
        %v7438 = vld [vmem:[#allocation12 + $0x4] sm:$0xf]
        %v7439 = vld [vmem:[#allocation12 + $0x14] sm:$0xf]
        %v7440 = vld [vmem:[#allocation12 + $0x24] sm:$0xf]
        %v7441 = vld [vmem:[#allocation12 + $0x34] sm:$0xf]
        %v7442 = vld [vmem:[#allocation12 + $0x44] sm:$0xf]
        %v7443 = vld [vmem:[#allocation12 + $0x54] sm:$0xf]
        %v7444 = vld [vmem:[#allocation12 + $0x64] sm:$0xf]
        %v7445 = vld [vmem:[#allocation12 + $0x74] sm:$0xf]
        %v7446 = vld [vmem:[#allocation12 + $0x84] sm:$0xf]
        %v7447 = vld [vmem:[#allocation12 + $0x94] sm:$0xf]
        %v7448 = vld [vmem:[#allocation12 + $0xa4] sm:$0xf]
        %v7449 = vld [vmem:[#allocation12 + $0xb4] sm:$0xf]
        %v7450 = vld [vmem:[#allocation12 + $0xc4] sm:$0xf]
        %v7451 = vld [vmem:[#allocation12 + $0xd4] sm:$0xf]
        %v7452 = vld [vmem:[#allocation12 + $0xe4] sm:$0xf]
        %v7453 = vld [vmem:[#allocation12 + $0xf4] sm:$0xf]
        %v7470 = vunpack.c.l.b16 %v7438
        %v7471 = vunpack.c.l.b16 %v7439
        %v7472 = vunpack.c.l.b16 %v7440
        %v7473 = vunpack.c.l.b16 %v7441
        %v7474 = vunpack.c.l.b16 %v7442
        %v7475 = vunpack.c.l.b16 %v7443
        %v7476 = vunpack.c.l.b16 %v7444
        %v7477 = vunpack.c.l.b16 %v7445
        %v7478 = vunpack.c.l.b16 %v7446
        %v7479 = vunpack.c.l.b16 %v7447
        %v7480 = vunpack.c.l.b16 %v7448
        %v7481 = vunpack.c.l.b16 %v7449
        %v7482 = vunpack.c.l.b16 %v7450
        %v7483 = vunpack.c.l.b16 %v7451
        %v7484 = vunpack.c.l.b16 %v7452
        %v7485 = vunpack.c.l.b16 %v7453
        %v7486 = vpack.c.b16 %v7471, %v7470
        %v7487 = vpack.c.b16 %v7473, %v7472
        %v7488 = vpack.c.b16 %v7475, %v7474
        %v7489 = vpack.c.b16 %v7477, %v7476
        %v7490 = vpack.c.b16 %v7479, %v7478
        %v7491 = vpack.c.b16 %v7481, %v7480
        %v7492 = vpack.c.b16 %v7483, %v7482
        %v7493 = vpack.c.b16 %v7485, %v7484
        %7502 = vmatprep.subr.bf16.mxu0 0
        %7503 = vmatpush1.bf16.msra.mxu0 %v7486
        %7504 = vmatprep.subr.bf16.mxu0 0
        %7505 = vmatpush1.bf16.msra.mxu0 %v7487
        %7506 = vmatprep.subr.bf16.mxu0 0
        %7507 = vmatpush1.bf16.msra.mxu0 %v7488
        %7508 = vmatprep.subr.bf16.mxu0 0
        %7509 = vmatpush1.bf16.msra.mxu0 %v7489
        %7510 = vmatprep.subr.bf16.mxu0 0
        %7511 = vmatpush1.bf16.msra.mxu0 %v7490
        %7512 = vmatprep.subr.bf16.mxu0 0
        %7513 = vmatpush1.bf16.msra.mxu0 %v7491
        %7514 = vmatprep.subr.bf16.mxu0 0
        %7515 = vmatpush1.bf16.msra.mxu0 %v7492
        %7516 = vmatprep.subr.bf16.mxu0 0
        %7517 = vmatpush1.bf16.msra.mxu0 %v7493
        %7518 = vmatprep.subr.bf16.mxu0 0
        %7519 = vmatpush1.bf16.msra.mxu0 0
        %7520 = vmatprep.subr.bf16.mxu0 0
        %7521 = vmatpush1.bf16.msra.mxu0 0
        %7522 = vmatprep.subr.bf16.mxu0 0
        %7523 = vmatpush1.bf16.msra.mxu0 0
        %7524 = vmatprep.subr.bf16.mxu0 0
        %7525 = vmatpush1.bf16.msra.mxu0 0
        %7526 = vmatprep.subr.bf16.mxu0 0
        %7527 = vmatpush1.bf16.msra.mxu0 0
        %7528 = vmatprep.subr.bf16.mxu0 0
        %7529 = vmatpush1.bf16.msra.mxu0 0
        %7530 = vmatprep.subr.bf16.mxu0 0
        %7531 = vmatpush1.bf16.msra.mxu0 0
        %7532 = vmatprep.subr.bf16.mxu0 0
        %7533 = vmatpush1.bf16.msra.mxu0 0
        %7534 = vmatprep.mubr.bf16.mxu0 0
        %7535 = vmatmul.mubr.bf16.gmra.mrb[0].mxu0 %v6898
        %v7536 = vpop.f32.mrb[0].mxu0
        %v7537 = vadd.f32 0.0, %v7536
        %v7538 = vpop.f32.mrb[0].mxu0
        %v7539 = vpop.f32.mrb[0].mxu0
        %v7540 = vadd.f32 0.0, %v7539
        %v7541 = vpop.f32.mrb[0].mxu0
        %7542 = vmatprep.mubr.bf16.mxu0 0
        %7543 = vmatmul.mubr.bf16.gmra.mrb[0].mxu0 %v6899
        %v7544 = vpop.f32.mrb[0].mxu0
        %v7545 = vadd.f32 0.0, %v7544
        %v7546 = vpop.f32.mrb[0].mxu0
        %v7547 = vpop.f32.mrb[0].mxu0
        %v7548 = vadd.f32 0.0, %v7547
        %v7549 = vpop.f32.mrb[0].mxu0
        %7550 = vmatprep.mubr.bf16.mxu0 0
        %7551 = vmatmul.mubr.bf16.gmra.mrb[0].mxu0 %v6900
        %v7552 = vpop.f32.mrb[0].mxu0
        %v7553 = vadd.f32 0.0, %v7552
        %v7554 = vpop.f32.mrb[0].mxu0
        %v7555 = vpop.f32.mrb[0].mxu0
        %v7556 = vadd.f32 0.0, %v7555
        %v7557 = vpop.f32.mrb[0].mxu0
        %7558 = vmatprep.mubr.bf16.mxu0 0
        %7559 = vmatmul.mubr.bf16.gmra.mrb[0].mxu0 %v6901
        %v7560 = vpop.f32.mrb[0].mxu0
        %v7561 = vadd.f32 0.0, %v7560
        %v7562 = vpop.f32.mrb[0].mxu0
        %v7563 = vpop.f32.mrb[0].mxu0
        %v7564 = vadd.f32 0.0, %v7563
        %v7565 = vpop.f32.mrb[0].mxu0
        %7566 = vmatprep.mubr.bf16.mxu0 0
        %7567 = vmatmul.mubr.bf16.gmra.mrb[0].mxu0 %v6902
        %v7568 = vpop.f32.mrb[0].mxu0
        %v7569 = vadd.f32 0.0, %v7568
        %v7570 = vpop.f32.mrb[0].mxu0
        %v7571 = vpop.f32.mrb[0].mxu0
        %v7572 = vadd.f32 0.0, %v7571
        %v7573 = vpop.f32.mrb[0].mxu0
        %7574 = vmatprep.mubr.bf16.mxu0 0
        %7575 = vmatmul.mubr.bf16.gmra.mrb[0].mxu0 %v6903
        %v7576 = vpop.f32.mrb[0].mxu0
        %v7577 = vadd.f32 0.0, %v7576
        %v7578 = vpop.f32.mrb[0].mxu0
        %v7579 = vpop.f32.mrb[0].mxu0
        %v7580 = vadd.f32 0.0, %v7579
        %v7581 = vpop.f32.mrb[0].mxu0
        %7582 = vmatprep.mubr.bf16.mxu0 0
        %7583 = vmatmul.mubr.bf16.gmra.mrb[0].mxu0 %v6904
        %v7584 = vpop.f32.mrb[0].mxu0
        %v7585 = vadd.f32 0.0, %v7584
        %v7586 = vpop.f32.mrb[0].mxu0
        %v7587 = vpop.f32.mrb[0].mxu0
        %v7588 = vadd.f32 0.0, %v7587
        %v7589 = vpop.f32.mrb[0].mxu0
        %7590 = vmatprep.mubr.bf16.mxu0 0
        %7591 = vmatmul.mubr.bf16.gmra.mrb[0].mxu0 %v6905
        %v7592 = vpop.f32.mrb[0].mxu0
        %v7593 = vadd.f32 0.0, %v7592
        %v7594 = vpop.f32.mrb[0].mxu0
        %v7595 = vpop.f32.mrb[0].mxu0
        %v7596 = vadd.f32 0.0, %v7595
        %v7597 = vpop.f32.mrb[0].mxu0
        %7598 = vmatprep.mubr.bf16.mxu0 0
        %7599 = vmatmul.mubr.bf16.gmra.mrb[0].mxu0 %v6906
        %v7600 = vpop.f32.mrb[0].mxu0
        %v7601 = vadd.f32 0.0, %v7600
        %v7602 = vpop.f32.mrb[0].mxu0
        %v7603 = vpop.f32.mrb[0].mxu0
        %v7604 = vadd.f32 0.0, %v7603
        %v7605 = vpop.f32.mrb[0].mxu0
        %7606 = vmatprep.mubr.bf16.mxu0 0
        %7607 = vmatmul.mubr.bf16.gmra.mrb[0].mxu0 %v6907
        %v7608 = vpop.f32.mrb[0].mxu0
        %v7609 = vadd.f32 0.0, %v7608
        %v7610 = vpop.f32.mrb[0].mxu0
        %v7611 = vpop.f32.mrb[0].mxu0
        %v7612 = vadd.f32 0.0, %v7611
        %v7613 = vpop.f32.mrb[0].mxu0
        %7614 = vmatprep.mubr.bf16.mxu0 0
        %7615 = vmatmul.mubr.bf16.gmra.mrb[0].mxu0 %v6908
        %v7616 = vpop.f32.mrb[0].mxu0
        %v7617 = vadd.f32 0.0, %v7616
        %v7618 = vpop.f32.mrb[0].mxu0
        %v7619 = vpop.f32.mrb[0].mxu0
        %v7620 = vadd.f32 0.0, %v7619
        %v7621 = vpop.f32.mrb[0].mxu0
        %7622 = vmatprep.mubr.bf16.mxu0 0
        %7623 = vmatmul.mubr.bf16.gmra.mrb[0].mxu0 %v6909
        %v7624 = vpop.f32.mrb[0].mxu0
        %v7625 = vadd.f32 0.0, %v7624
        %v7626 = vpop.f32.mrb[0].mxu0
        %v7627 = vpop.f32.mrb[0].mxu0
        %v7628 = vadd.f32 0.0, %v7627
        %v7629 = vpop.f32.mrb[0].mxu0
        %7630 = vmatprep.mubr.bf16.mxu0 0
        %7631 = vmatmul.mubr.bf16.gmra.mrb[0].mxu0 %v6910
        %v7632 = vpop.f32.mrb[0].mxu0
        %v7633 = vadd.f32 0.0, %v7632
        %v7634 = vpop.f32.mrb[0].mxu0
        %v7635 = vpop.f32.mrb[0].mxu0
        %v7636 = vadd.f32 0.0, %v7635
        %v7637 = vpop.f32.mrb[0].mxu0
        %7638 = vmatprep.mubr.bf16.mxu0 0
        %7639 = vmatmul.mubr.bf16.gmra.mrb[0].mxu0 %v6911
        %v7640 = vpop.f32.mrb[0].mxu0
        %v7641 = vadd.f32 0.0, %v7640
        %v7642 = vpop.f32.mrb[0].mxu0
        %v7643 = vpop.f32.mrb[0].mxu0
        %v7644 = vadd.f32 0.0, %v7643
        %v7645 = vpop.f32.mrb[0].mxu0
        %7646 = vmatprep.mubr.bf16.mxu0 0
        %7647 = vmatmul.mubr.bf16.gmra.mrb[0].mxu0 %v6912
        %v7648 = vpop.f32.mrb[0].mxu0
        %v7649 = vadd.f32 0.0, %v7648
        %v7650 = vpop.f32.mrb[0].mxu0
        %v7651 = vpop.f32.mrb[0].mxu0
        %v7652 = vadd.f32 0.0, %v7651
        %v7653 = vpop.f32.mrb[0].mxu0
        %7654 = vmatprep.mubr.bf16.mxu0 0
        %7655 = vmatmul.mubr.bf16.gmra.mrb[0].mxu0 %v6913
        %v7656 = vpop.f32.mrb[0].mxu0
        %v7657 = vadd.f32 0.0, %v7656
        %v7658 = vpop.f32.mrb[0].mxu0
        %v7659 = vpop.f32.mrb[0].mxu0
        %v7660 = vadd.f32 0.0, %v7659
        %v7661 = vpop.f32.mrb[0].mxu0
        %7662 = vdwg.mxu0
        %v7663 = vld [vmem:[%s7142 + $0x8] sm:$0xff]
        %v7664 = vld [vmem:[%s7142 + $0x28] sm:$0xff]
        %v7665 = vld [vmem:[%s7142 + $0x48] sm:$0xff]
        %v7666 = vld [vmem:[%s7142 + $0x68] sm:$0xff]
        %v7667 = vld [vmem:[%s7142 + $0x88] sm:$0xff]
        %v7668 = vld [vmem:[%s7142 + $0xa8] sm:$0xff]
        %v7669 = vld [vmem:[%s7142 + $0xc8] sm:$0xff]
        %v7670 = vld [vmem:[%s7142 + $0xe8] sm:$0xff]
        %v7671 = vld [vmem:[%s7142 + $0x108] sm:$0xff]
        %v7672 = vld [vmem:[%s7142 + $0x128] sm:$0xff]
        %v7673 = vld [vmem:[%s7142 + $0x148] sm:$0xff]
        %v7674 = vld [vmem:[%s7142 + $0x168] sm:$0xff]
        %v7675 = vld [vmem:[%s7142 + $0x188] sm:$0xff]
        %v7676 = vld [vmem:[%s7142 + $0x1a8] sm:$0xff]
        %v7677 = vld [vmem:[%s7142 + $0x1c8] sm:$0xff]
        %v7678 = vld [vmem:[%s7142 + $0x1e8] sm:$0xff]
        %v7679 = vld [vmem:[%s7142 + $0x208] sm:$0xff]
        %v7680 = vld [vmem:[%s7142 + $0x228] sm:$0xff]
        %v7681 = vld [vmem:[%s7142 + $0x248] sm:$0xff]
        %v7682 = vld [vmem:[%s7142 + $0x268] sm:$0xff]
        %v7683 = vld [vmem:[%s7142 + $0x288] sm:$0xff]
        %v7684 = vld [vmem:[%s7142 + $0x2a8] sm:$0xff]
        %v7685 = vld [vmem:[%s7142 + $0x2c8] sm:$0xff]
        %v7686 = vld [vmem:[%s7142 + $0x2e8] sm:$0xff]
        %v7687 = vld [vmem:[%s7142 + $0x308] sm:$0xff]
        %v7688 = vld [vmem:[%s7142 + $0x328] sm:$0xff]
        %v7689 = vld [vmem:[%s7142 + $0x348] sm:$0xff]
        %v7690 = vld [vmem:[%s7142 + $0x368] sm:$0xff]
        %v7691 = vld [vmem:[%s7142 + $0x388] sm:$0xff]
        %v7692 = vld [vmem:[%s7142 + $0x3a8] sm:$0xff]
        %v7693 = vld [vmem:[%s7142 + $0x3c8] sm:$0xff]
        %v7694 = vld [vmem:[%s7142 + $0x3e8] sm:$0xff]
        %v7695 = vld [vmem:[#allocation14 + $0x1] sm:$0x1]
        %v7697 = vlaneseq
        %v7698 = vshrl.u32 %v7697, 7
        %v7699 = vsub.s32 0, %v7698
        %v7700 = vrot.slane %v7695, %v7699
        %v7702 = vadd.f32 %v7537, %v7700
        %v7703 = vadd.f32 %v7540, %v7700
        %v7704 = vadd.f32 %v7545, %v7700
        %v7705 = vadd.f32 %v7548, %v7700
        %v7706 = vadd.f32 %v7553, %v7700
        %v7707 = vadd.f32 %v7556, %v7700
        %v7708 = vadd.f32 %v7561, %v7700
        %v7709 = vadd.f32 %v7564, %v7700
        %v7710 = vadd.f32 %v7569, %v7700
        %v7711 = vadd.f32 %v7572, %v7700
        %v7712 = vadd.f32 %v7577, %v7700
        %v7713 = vadd.f32 %v7580, %v7700
        %v7714 = vadd.f32 %v7585, %v7700
        %v7715 = vadd.f32 %v7588, %v7700
        %v7716 = vadd.f32 %v7593, %v7700
        %v7717 = vadd.f32 %v7596, %v7700
        %v7718 = vadd.f32 %v7601, %v7700
        %v7719 = vadd.f32 %v7604, %v7700
        %v7720 = vadd.f32 %v7609, %v7700
        %v7721 = vadd.f32 %v7612, %v7700
        %v7722 = vadd.f32 %v7617, %v7700
        %v7723 = vadd.f32 %v7620, %v7700
        %v7724 = vadd.f32 %v7625, %v7700
        %v7725 = vadd.f32 %v7628, %v7700
        %v7726 = vadd.f32 %v7633, %v7700
        %v7727 = vadd.f32 %v7636, %v7700
        %v7728 = vadd.f32 %v7641, %v7700
        %v7729 = vadd.f32 %v7644, %v7700
        %v7730 = vadd.f32 %v7649, %v7700
        %v7731 = vadd.f32 %v7652, %v7700
        %v7732 = vadd.f32 %v7657, %v7700
        %v7733 = vadd.f32 %v7660, %v7700
        %v7734 = vadd.f32 %v7702, %v7663
        %v7735 = vadd.f32 %v7703, %v7664
        %v7736 = vadd.f32 %v7704, %v7665
        %v7737 = vadd.f32 %v7705, %v7666
        %v7738 = vadd.f32 %v7706, %v7667
        %v7739 = vadd.f32 %v7707, %v7668
        %v7740 = vadd.f32 %v7708, %v7669
        %v7741 = vadd.f32 %v7709, %v7670
        %v7742 = vadd.f32 %v7710, %v7671
        %v7743 = vadd.f32 %v7711, %v7672
        %v7744 = vadd.f32 %v7712, %v7673
        %v7745 = vadd.f32 %v7713, %v7674
        %v7746 = vadd.f32 %v7714, %v7675
        %v7747 = vadd.f32 %v7715, %v7676
        %v7748 = vadd.f32 %v7716, %v7677
        %v7749 = vadd.f32 %v7717, %v7678
        %v7750 = vadd.f32 %v7718, %v7679
        %v7751 = vadd.f32 %v7719, %v7680
        %v7752 = vadd.f32 %v7720, %v7681
        %v7753 = vadd.f32 %v7721, %v7682
        %v7754 = vadd.f32 %v7722, %v7683
        %v7755 = vadd.f32 %v7723, %v7684
        %v7756 = vadd.f32 %v7724, %v7685
        %v7757 = vadd.f32 %v7725, %v7686
        %v7758 = vadd.f32 %v7726, %v7687
        %v7759 = vadd.f32 %v7727, %v7688
        %v7760 = vadd.f32 %v7728, %v7689
        %v7761 = vadd.f32 %v7729, %v7690
        %v7762 = vadd.f32 %v7730, %v7691
        %v7763 = vadd.f32 %v7731, %v7692
        %v7764 = vadd.f32 %v7732, %v7693
        %v7765 = vadd.f32 %v7733, %v7694
        %v7766 = vmax.f32 %v7734, 0.0
        %v7767 = vmax.f32 %v7735, 0.0
        %v7768 = vmax.f32 %v7736, 0.0
        %v7769 = vmax.f32 %v7737, 0.0
        %v7770 = vmax.f32 %v7738, 0.0
        %v7771 = vmax.f32 %v7739, 0.0
        %v7772 = vmax.f32 %v7740, 0.0
        %v7773 = vmax.f32 %v7741, 0.0
        %v7774 = vmax.f32 %v7742, 0.0
        %v7775 = vmax.f32 %v7743, 0.0
        %v7776 = vmax.f32 %v7744, 0.0
        %v7777 = vmax.f32 %v7745, 0.0
        %v7778 = vmax.f32 %v7746, 0.0
        %v7779 = vmax.f32 %v7747, 0.0
        %v7780 = vmax.f32 %v7748, 0.0
        %v7781 = vmax.f32 %v7749, 0.0
        %v7782 = vmax.f32 %v7750, 0.0
        %v7783 = vmax.f32 %v7751, 0.0
        %v7784 = vmax.f32 %v7752, 0.0
        %v7785 = vmax.f32 %v7753, 0.0
        %v7786 = vmax.f32 %v7754, 0.0
        %v7787 = vmax.f32 %v7755, 0.0
        %v7788 = vmax.f32 %v7756, 0.0
        %v7789 = vmax.f32 %v7757, 0.0
        %v7790 = vmax.f32 %v7758, 0.0
        %v7791 = vmax.f32 %v7759, 0.0
        %v7792 = vmax.f32 %v7760, 0.0
        %v7793 = vmax.f32 %v7761, 0.0
        %v7794 = vmax.f32 %v7762, 0.0
        %v7795 = vmax.f32 %v7763, 0.0
        %v7796 = vmax.f32 %v7764, 0.0
        %v7797 = vmax.f32 %v7765, 0.0
        %v7798 = vpack.c.bf16 %v7767, %v7766
        %v7799 = vpack.c.bf16 %v7769, %v7768
        %v7800 = vpack.c.bf16 %v7771, %v7770
        %v7801 = vpack.c.bf16 %v7773, %v7772
        %v7802 = vpack.c.bf16 %v7775, %v7774
        %v7803 = vpack.c.bf16 %v7777, %v7776
        %v7804 = vpack.c.bf16 %v7779, %v7778
        %v7805 = vpack.c.bf16 %v7781, %v7780
        %v7806 = vpack.c.bf16 %v7783, %v7782
        %v7807 = vpack.c.bf16 %v7785, %v7784
        %v7808 = vpack.c.bf16 %v7787, %v7786
        %v7809 = vpack.c.bf16 %v7789, %v7788
        %v7810 = vpack.c.bf16 %v7791, %v7790
        %v7811 = vpack.c.bf16 %v7793, %v7792
        %v7812 = vpack.c.bf16 %v7795, %v7794
        %v7813 = vpack.c.bf16 %v7797, %v7796
        %v7830 = vunpack.c.l.b16 %v7798
        %v7831 = vunpack.c.h.b16 %v7798
        %v7832 = vunpack.c.l.b16 %v7799
        %v7833 = vunpack.c.h.b16 %v7799
        %v7834 = vunpack.c.l.b16 %v7800
        %v7835 = vunpack.c.h.b16 %v7800
        %v7836 = vunpack.c.l.b16 %v7801
        %v7837 = vunpack.c.h.b16 %v7801
        %v7838 = vunpack.c.l.b16 %v7802
        %v7839 = vunpack.c.h.b16 %v7802
        %v7840 = vunpack.c.l.b16 %v7803
        %v7841 = vunpack.c.h.b16 %v7803
        %v7842 = vunpack.c.l.b16 %v7804
        %v7843 = vunpack.c.h.b16 %v7804
        %v7844 = vunpack.c.l.b16 %v7805
        %v7845 = vunpack.c.h.b16 %v7805
        %v7846 = vunpack.c.l.b16 %v7806
        %v7847 = vunpack.c.h.b16 %v7806
        %v7848 = vunpack.c.l.b16 %v7807
        %v7849 = vunpack.c.h.b16 %v7807
        %v7850 = vunpack.c.l.b16 %v7808
        %v7851 = vunpack.c.h.b16 %v7808
        %v7852 = vunpack.c.l.b16 %v7809
        %v7853 = vunpack.c.h.b16 %v7809
        %v7854 = vunpack.c.l.b16 %v7810
        %v7855 = vunpack.c.h.b16 %v7810
        %v7856 = vunpack.c.l.b16 %v7811
        %v7857 = vunpack.c.h.b16 %v7811
        %v7858 = vunpack.c.l.b16 %v7812
        %v7859 = vunpack.c.h.b16 %v7812
        %v7860 = vunpack.c.l.b16 %v7813
        %v7861 = vunpack.c.h.b16 %v7813
        %v7862 = vpack.c.b16 %v7830, %v7830
        %v7863 = vpack.c.b16 %v7831, %v7831
        %v7864 = vpack.c.b16 %v7832, %v7832
        %v7865 = vpack.c.b16 %v7833, %v7833
        %v7866 = vpack.c.b16 %v7834, %v7834
        %v7867 = vpack.c.b16 %v7835, %v7835
        %v7868 = vpack.c.b16 %v7836, %v7836
        %v7869 = vpack.c.b16 %v7837, %v7837
        %v7870 = vpack.c.b16 %v7838, %v7838
        %v7871 = vpack.c.b16 %v7839, %v7839
        %v7872 = vpack.c.b16 %v7840, %v7840
        %v7873 = vpack.c.b16 %v7841, %v7841
        %v7874 = vpack.c.b16 %v7842, %v7842
        %v7875 = vpack.c.b16 %v7843, %v7843
        %v7876 = vpack.c.b16 %v7844, %v7844
        %v7877 = vpack.c.b16 %v7845, %v7845
        %v7878 = vpack.c.b16 %v7846, %v7846
        %v7879 = vpack.c.b16 %v7847, %v7847
        %v7880 = vpack.c.b16 %v7848, %v7848
        %v7881 = vpack.c.b16 %v7849, %v7849
        %v7882 = vpack.c.b16 %v7850, %v7850
        %v7883 = vpack.c.b16 %v7851, %v7851
        %v7884 = vpack.c.b16 %v7852, %v7852
        %v7885 = vpack.c.b16 %v7853, %v7853
        %v7886 = vpack.c.b16 %v7854, %v7854
        %v7887 = vpack.c.b16 %v7855, %v7855
        %v7888 = vpack.c.b16 %v7856, %v7856
        %v7889 = vpack.c.b16 %v7857, %v7857
        %v7890 = vpack.c.b16 %v7858, %v7858
        %v7891 = vpack.c.b16 %v7859, %v7859
        %v7892 = vpack.c.b16 %v7860, %v7860
        %v7893 = vpack.c.b16 %v7861, %v7861
        %7926 = vst [vmem:[%s391 + $0x4] sm:$0xf] %v7862
        %7927 = vst [vmem:[%s391 + $0x14] sm:$0xf] %v7863
        %7928 = vst [vmem:[%s391 + $0x24] sm:$0xf] %v7864
        %7929 = vst [vmem:[%s391 + $0x34] sm:$0xf] %v7865
        %7930 = vst [vmem:[%s391 + $0x44] sm:$0xf] %v7866
        %7931 = vst [vmem:[%s391 + $0x54] sm:$0xf] %v7867
        %7932 = vst [vmem:[%s391 + $0x64] sm:$0xf] %v7868
        %7933 = vst [vmem:[%s391 + $0x74] sm:$0xf] %v7869
        %7934 = vst [vmem:[%s391 + $0x84] sm:$0xf] %v7870
        %7935 = vst [vmem:[%s391 + $0x94] sm:$0xf] %v7871
        %7936 = vst [vmem:[%s391 + $0xa4] sm:$0xf] %v7872
        %7937 = vst [vmem:[%s391 + $0xb4] sm:$0xf] %v7873
        %7938 = vst [vmem:[%s391 + $0xc4] sm:$0xf] %v7874
        %7939 = vst [vmem:[%s391 + $0xd4] sm:$0xf] %v7875
        %7940 = vst [vmem:[%s391 + $0xe4] sm:$0xf] %v7876
        %7941 = vst [vmem:[%s391 + $0xf4] sm:$0xf] %v7877
        %7942 = vst [vmem:[%s391 + $0x104] sm:$0xf] %v7878
        %7943 = vst [vmem:[%s391 + $0x114] sm:$0xf] %v7879
        %7944 = vst [vmem:[%s391 + $0x124] sm:$0xf] %v7880
        %7945 = vst [vmem:[%s391 + $0x134] sm:$0xf] %v7881
        %7946 = vst [vmem:[%s391 + $0x144] sm:$0xf] %v7882
        %7947 = vst [vmem:[%s391 + $0x154] sm:$0xf] %v7883
        %7948 = vst [vmem:[%s391 + $0x164] sm:$0xf] %v7884
        %7949 = vst [vmem:[%s391 + $0x174] sm:$0xf] %v7885
        %7950 = vst [vmem:[%s391 + $0x184] sm:$0xf] %v7886
        %7951 = vst [vmem:[%s391 + $0x194] sm:$0xf] %v7887
        %7952 = vst [vmem:[%s391 + $0x1a4] sm:$0xf] %v7888
        %7953 = vst [vmem:[%s391 + $0x1b4] sm:$0xf] %v7889
        %7954 = vst [vmem:[%s391 + $0x1c4] sm:$0xf] %v7890
        %7955 = vst [vmem:[%s391 + $0x1d4] sm:$0xf] %v7891
        %7956 = vst [vmem:[%s391 + $0x1e4] sm:$0xf] %v7892
        %7957 = vst [vmem:[%s391 + $0x1f4] sm:$0xf] %v7893
        %v7958 = vld [vmem:[#allocation12 + $0x8] sm:$0xf]
        %v7959 = vld [vmem:[#allocation12 + $0x18] sm:$0xf]
        %v7960 = vld [vmem:[#allocation12 + $0x28] sm:$0xf]
        %v7961 = vld [vmem:[#allocation12 + $0x38] sm:$0xf]
        %v7962 = vld [vmem:[#allocation12 + $0x48] sm:$0xf]
        %v7963 = vld [vmem:[#allocation12 + $0x58] sm:$0xf]
        %v7964 = vld [vmem:[#allocation12 + $0x68] sm:$0xf]
        %v7965 = vld [vmem:[#allocation12 + $0x78] sm:$0xf]
        %v7966 = vld [vmem:[#allocation12 + $0x88] sm:$0xf]
        %v7967 = vld [vmem:[#allocation12 + $0x98] sm:$0xf]
        %v7968 = vld [vmem:[#allocation12 + $0xa8] sm:$0xf]
        %v7969 = vld [vmem:[#allocation12 + $0xb8] sm:$0xf]
        %v7970 = vld [vmem:[#allocation12 + $0xc8] sm:$0xf]
        %v7971 = vld [vmem:[#allocation12 + $0xd8] sm:$0xf]
        %v7972 = vld [vmem:[#allocation12 + $0xe8] sm:$0xf]
        %v7973 = vld [vmem:[#allocation12 + $0xf8] sm:$0xf]
        %v7990 = vunpack.c.l.b16 %v7958
        %v7991 = vunpack.c.l.b16 %v7959
        %v7992 = vunpack.c.l.b16 %v7960
        %v7993 = vunpack.c.l.b16 %v7961
        %v7994 = vunpack.c.l.b16 %v7962
        %v7995 = vunpack.c.l.b16 %v7963
        %v7996 = vunpack.c.l.b16 %v7964
        %v7997 = vunpack.c.l.b16 %v7965
        %v7998 = vunpack.c.l.b16 %v7966
        %v7999 = vunpack.c.l.b16 %v7967
        %v8000 = vunpack.c.l.b16 %v7968
        %v8001 = vunpack.c.l.b16 %v7969
        %v8002 = vunpack.c.l.b16 %v7970
        %v8003 = vunpack.c.l.b16 %v7971
        %v8004 = vunpack.c.l.b16 %v7972
        %v8005 = vunpack.c.l.b16 %v7973
        %v8006 = vpack.c.b16 %v7991, %v7990
        %v8007 = vpack.c.b16 %v7993, %v7992
        %v8008 = vpack.c.b16 %v7995, %v7994
        %v8009 = vpack.c.b16 %v7997, %v7996
        %v8010 = vpack.c.b16 %v7999, %v7998
        %v8011 = vpack.c.b16 %v8001, %v8000
        %v8012 = vpack.c.b16 %v8003, %v8002
        %v8013 = vpack.c.b16 %v8005, %v8004
        %8022 = vmatprep.subr.bf16.mxu0 0
        %8023 = vmatpush1.bf16.msra.mxu0 %v8006
        %8024 = vmatprep.subr.bf16.mxu0 0
        %8025 = vmatpush1.bf16.msra.mxu0 %v8007
        %8026 = vmatprep.subr.bf16.mxu0 0
        %8027 = vmatpush1.bf16.msra.mxu0 %v8008
        %8028 = vmatprep.subr.bf16.mxu0 0
        %8029 = vmatpush1.bf16.msra.mxu0 %v8009
        %8030 = vmatprep.subr.bf16.mxu0 0
        %8031 = vmatpush1.bf16.msra.mxu0 %v8010
        %8032 = vmatprep.subr.bf16.mxu0 0
        %8033 = vmatpush1.bf16.msra.mxu0 %v8011
        %8034 = vmatprep.subr.bf16.mxu0 0
        %8035 = vmatpush1.bf16.msra.mxu0 %v8012
        %8036 = vmatprep.subr.bf16.mxu0 0
        %8037 = vmatpush1.bf16.msra.mxu0 %v8013
        %8038 = vmatprep.subr.bf16.mxu0 0
        %8039 = vmatpush1.bf16.msra.mxu0 0
        %8040 = vmatprep.subr.bf16.mxu0 0
        %8041 = vmatpush1.bf16.msra.mxu0 0
        %8042 = vmatprep.subr.bf16.mxu0 0
        %8043 = vmatpush1.bf16.msra.mxu0 0
        %8044 = vmatprep.subr.bf16.mxu0 0
        %8045 = vmatpush1.bf16.msra.mxu0 0
        %8046 = vmatprep.subr.bf16.mxu0 0
        %8047 = vmatpush1.bf16.msra.mxu0 0
        %8048 = vmatprep.subr.bf16.mxu0 0
        %8049 = vmatpush1.bf16.msra.mxu0 0
        %8050 = vmatprep.subr.bf16.mxu0 0
        %8051 = vmatpush1.bf16.msra.mxu0 0
        %8052 = vmatprep.subr.bf16.mxu0 0
        %8053 = vmatpush1.bf16.msra.mxu0 0
        %8054 = vmatprep.mubr.bf16.mxu0 0
        %8055 = vmatmul.mubr.bf16.gmra.mrb[0].mxu0 %v6898
        %v8056 = vpop.f32.mrb[0].mxu0
        %v8057 = vadd.f32 0.0, %v8056
        %v8058 = vpop.f32.mrb[0].mxu0
        %v8059 = vpop.f32.mrb[0].mxu0
        %v8060 = vadd.f32 0.0, %v8059
        %v8061 = vpop.f32.mrb[0].mxu0
        %8062 = vmatprep.mubr.bf16.mxu0 0
        %8063 = vmatmul.mubr.bf16.gmra.mrb[0].mxu0 %v6899
        %v8064 = vpop.f32.mrb[0].mxu0
        %v8065 = vadd.f32 0.0, %v8064
        %v8066 = vpop.f32.mrb[0].mxu0
        %v8067 = vpop.f32.mrb[0].mxu0
        %v8068 = vadd.f32 0.0, %v8067
        %v8069 = vpop.f32.mrb[0].mxu0
        %8070 = vmatprep.mubr.bf16.mxu0 0
        %8071 = vmatmul.mubr.bf16.gmra.mrb[0].mxu0 %v6900
        %v8072 = vpop.f32.mrb[0].mxu0
        %v8073 = vadd.f32 0.0, %v8072
        %v8074 = vpop.f32.mrb[0].mxu0
        %v8075 = vpop.f32.mrb[0].mxu0
        %v8076 = vadd.f32 0.0, %v8075
        %v8077 = vpop.f32.mrb[0].mxu0
        %8078 = vmatprep.mubr.bf16.mxu0 0
        %8079 = vmatmul.mubr.bf16.gmra.mrb[0].mxu0 %v6901
        %v8080 = vpop.f32.mrb[0].mxu0
        %v8081 = vadd.f32 0.0, %v8080
        %v8082 = vpop.f32.mrb[0].mxu0
        %v8083 = vpop.f32.mrb[0].mxu0
        %v8084 = vadd.f32 0.0, %v8083
        %v8085 = vpop.f32.mrb[0].mxu0
        %8086 = vmatprep.mubr.bf16.mxu0 0
        %8087 = vmatmul.mubr.bf16.gmra.mrb[0].mxu0 %v6902
        %v8088 = vpop.f32.mrb[0].mxu0
        %v8089 = vadd.f32 0.0, %v8088
        %v8090 = vpop.f32.mrb[0].mxu0
        %v8091 = vpop.f32.mrb[0].mxu0
        %v8092 = vadd.f32 0.0, %v8091
        %v8093 = vpop.f32.mrb[0].mxu0
        %8094 = vmatprep.mubr.bf16.mxu0 0
        %8095 = vmatmul.mubr.bf16.gmra.mrb[0].mxu0 %v6903
        %v8096 = vpop.f32.mrb[0].mxu0
        %v8097 = vadd.f32 0.0, %v8096
        %v8098 = vpop.f32.mrb[0].mxu0
        %v8099 = vpop.f32.mrb[0].mxu0
        %v8100 = vadd.f32 0.0, %v8099
        %v8101 = vpop.f32.mrb[0].mxu0
        %8102 = vmatprep.mubr.bf16.mxu0 0
        %8103 = vmatmul.mubr.bf16.gmra.mrb[0].mxu0 %v6904
        %v8104 = vpop.f32.mrb[0].mxu0
        %v8105 = vadd.f32 0.0, %v8104
        %v8106 = vpop.f32.mrb[0].mxu0
        %v8107 = vpop.f32.mrb[0].mxu0
        %v8108 = vadd.f32 0.0, %v8107
        %v8109 = vpop.f32.mrb[0].mxu0
        %8110 = vmatprep.mubr.bf16.mxu0 0
        %8111 = vmatmul.mubr.bf16.gmra.mrb[0].mxu0 %v6905
        %v8112 = vpop.f32.mrb[0].mxu0
        %v8113 = vadd.f32 0.0, %v8112
        %v8114 = vpop.f32.mrb[0].mxu0
        %v8115 = vpop.f32.mrb[0].mxu0
        %v8116 = vadd.f32 0.0, %v8115
        %v8117 = vpop.f32.mrb[0].mxu0
        %8118 = vmatprep.mubr.bf16.mxu0 0
        %8119 = vmatmul.mubr.bf16.gmra.mrb[0].mxu0 %v6906
        %v8120 = vpop.f32.mrb[0].mxu0
        %v8121 = vadd.f32 0.0, %v8120
        %v8122 = vpop.f32.mrb[0].mxu0
        %v8123 = vpop.f32.mrb[0].mxu0
        %v8124 = vadd.f32 0.0, %v8123
        %v8125 = vpop.f32.mrb[0].mxu0
        %8126 = vmatprep.mubr.bf16.mxu0 0
        %8127 = vmatmul.mubr.bf16.gmra.mrb[0].mxu0 %v6907
        %v8128 = vpop.f32.mrb[0].mxu0
        %v8129 = vadd.f32 0.0, %v8128
        %v8130 = vpop.f32.mrb[0].mxu0
        %v8131 = vpop.f32.mrb[0].mxu0
        %v8132 = vadd.f32 0.0, %v8131
        %v8133 = vpop.f32.mrb[0].mxu0
        %8134 = vmatprep.mubr.bf16.mxu0 0
        %8135 = vmatmul.mubr.bf16.gmra.mrb[0].mxu0 %v6908
        %v8136 = vpop.f32.mrb[0].mxu0
        %v8137 = vadd.f32 0.0, %v8136
        %v8138 = vpop.f32.mrb[0].mxu0
        %v8139 = vpop.f32.mrb[0].mxu0
        %v8140 = vadd.f32 0.0, %v8139
        %v8141 = vpop.f32.mrb[0].mxu0
        %8142 = vmatprep.mubr.bf16.mxu0 0
        %8143 = vmatmul.mubr.bf16.gmra.mrb[0].mxu0 %v6909
        %v8144 = vpop.f32.mrb[0].mxu0
        %v8145 = vadd.f32 0.0, %v8144
        %v8146 = vpop.f32.mrb[0].mxu0
        %v8147 = vpop.f32.mrb[0].mxu0
        %v8148 = vadd.f32 0.0, %v8147
        %v8149 = vpop.f32.mrb[0].mxu0
        %8150 = vmatprep.mubr.bf16.mxu0 0
        %8151 = vmatmul.mubr.bf16.gmra.mrb[0].mxu0 %v6910
        %v8152 = vpop.f32.mrb[0].mxu0
        %v8153 = vadd.f32 0.0, %v8152
        %v8154 = vpop.f32.mrb[0].mxu0
        %v8155 = vpop.f32.mrb[0].mxu0
        %v8156 = vadd.f32 0.0, %v8155
        %v8157 = vpop.f32.mrb[0].mxu0
        %8158 = vmatprep.mubr.bf16.mxu0 0
        %8159 = vmatmul.mubr.bf16.gmra.mrb[0].mxu0 %v6911
        %v8160 = vpop.f32.mrb[0].mxu0
        %v8161 = vadd.f32 0.0, %v8160
        %v8162 = vpop.f32.mrb[0].mxu0
        %v8163 = vpop.f32.mrb[0].mxu0
        %v8164 = vadd.f32 0.0, %v8163
        %v8165 = vpop.f32.mrb[0].mxu0
        %8166 = vmatprep.mubr.bf16.mxu0 0
        %8167 = vmatmul.mubr.bf16.gmra.mrb[0].mxu0 %v6912
        %v8168 = vpop.f32.mrb[0].mxu0
        %v8169 = vadd.f32 0.0, %v8168
        %v8170 = vpop.f32.mrb[0].mxu0
        %v8171 = vpop.f32.mrb[0].mxu0
        %v8172 = vadd.f32 0.0, %v8171
        %v8173 = vpop.f32.mrb[0].mxu0
        %8174 = vmatprep.mubr.bf16.mxu0 0
        %8175 = vmatmul.mubr.bf16.gmra.mrb[0].mxu0 %v6913
        %v8176 = vpop.f32.mrb[0].mxu0
        %v8177 = vadd.f32 0.0, %v8176
        %v8178 = vpop.f32.mrb[0].mxu0
        %v8179 = vpop.f32.mrb[0].mxu0
        %v8180 = vadd.f32 0.0, %v8179
        %v8181 = vpop.f32.mrb[0].mxu0
        %8182 = vdwg.mxu0
        %v8183 = vld [vmem:[%s7142 + $0x10] sm:$0xff]
        %v8184 = vld [vmem:[%s7142 + $0x30] sm:$0xff]
        %v8185 = vld [vmem:[%s7142 + $0x50] sm:$0xff]
        %v8186 = vld [vmem:[%s7142 + $0x70] sm:$0xff]
        %v8187 = vld [vmem:[%s7142 + $0x90] sm:$0xff]
        %v8188 = vld [vmem:[%s7142 + $0xb0] sm:$0xff]
        %v8189 = vld [vmem:[%s7142 + $0xd0] sm:$0xff]
        %v8190 = vld [vmem:[%s7142 + $0xf0] sm:$0xff]
        %v8191 = vld [vmem:[%s7142 + $0x110] sm:$0xff]
        %v8192 = vld [vmem:[%s7142 + $0x130] sm:$0xff]
        %v8193 = vld [vmem:[%s7142 + $0x150] sm:$0xff]
        %v8194 = vld [vmem:[%s7142 + $0x170] sm:$0xff]
        %v8195 = vld [vmem:[%s7142 + $0x190] sm:$0xff]
        %v8196 = vld [vmem:[%s7142 + $0x1b0] sm:$0xff]
        %v8197 = vld [vmem:[%s7142 + $0x1d0] sm:$0xff]
        %v8198 = vld [vmem:[%s7142 + $0x1f0] sm:$0xff]
        %v8199 = vld [vmem:[%s7142 + $0x210] sm:$0xff]
        %v8200 = vld [vmem:[%s7142 + $0x230] sm:$0xff]
        %v8201 = vld [vmem:[%s7142 + $0x250] sm:$0xff]
        %v8202 = vld [vmem:[%s7142 + $0x270] sm:$0xff]
        %v8203 = vld [vmem:[%s7142 + $0x290] sm:$0xff]
        %v8204 = vld [vmem:[%s7142 + $0x2b0] sm:$0xff]
        %v8205 = vld [vmem:[%s7142 + $0x2d0] sm:$0xff]
        %v8206 = vld [vmem:[%s7142 + $0x2f0] sm:$0xff]
        %v8207 = vld [vmem:[%s7142 + $0x310] sm:$0xff]
        %v8208 = vld [vmem:[%s7142 + $0x330] sm:$0xff]
        %v8209 = vld [vmem:[%s7142 + $0x350] sm:$0xff]
        %v8210 = vld [vmem:[%s7142 + $0x370] sm:$0xff]
        %v8211 = vld [vmem:[%s7142 + $0x390] sm:$0xff]
        %v8212 = vld [vmem:[%s7142 + $0x3b0] sm:$0xff]
        %v8213 = vld [vmem:[%s7142 + $0x3d0] sm:$0xff]
        %v8214 = vld [vmem:[%s7142 + $0x3f0] sm:$0xff]
        %v8215 = vld [vmem:[#allocation14 + $0x2] sm:$0x1]
        %v8217 = vlaneseq
        %v8218 = vshrl.u32 %v8217, 7
        %v8219 = vsub.s32 0, %v8218
        %v8220 = vrot.slane %v8215, %v8219
        %v8222 = vadd.f32 %v8057, %v8220
        %v8223 = vadd.f32 %v8060, %v8220
        %v8224 = vadd.f32 %v8065, %v8220
        %v8225 = vadd.f32 %v8068, %v8220
        %v8226 = vadd.f32 %v8073, %v8220
        %v8227 = vadd.f32 %v8076, %v8220
        %v8228 = vadd.f32 %v8081, %v8220
        %v8229 = vadd.f32 %v8084, %v8220
        %v8230 = vadd.f32 %v8089, %v8220
        %v8231 = vadd.f32 %v8092, %v8220
        %v8232 = vadd.f32 %v8097, %v8220
        %v8233 = vadd.f32 %v8100, %v8220
        %v8234 = vadd.f32 %v8105, %v8220
        %v8235 = vadd.f32 %v8108, %v8220
        %v8236 = vadd.f32 %v8113, %v8220
        %v8237 = vadd.f32 %v8116, %v8220
        %v8238 = vadd.f32 %v8121, %v8220
        %v8239 = vadd.f32 %v8124, %v8220
        %v8240 = vadd.f32 %v8129, %v8220
        %v8241 = vadd.f32 %v8132, %v8220
        %v8242 = vadd.f32 %v8137, %v8220
        %v8243 = vadd.f32 %v8140, %v8220
        %v8244 = vadd.f32 %v8145, %v8220
        %v8245 = vadd.f32 %v8148, %v8220
        %v8246 = vadd.f32 %v8153, %v8220
        %v8247 = vadd.f32 %v8156, %v8220
        %v8248 = vadd.f32 %v8161, %v8220
        %v8249 = vadd.f32 %v8164, %v8220
        %v8250 = vadd.f32 %v8169, %v8220
        %v8251 = vadd.f32 %v8172, %v8220
        %v8252 = vadd.f32 %v8177, %v8220
        %v8253 = vadd.f32 %v8180, %v8220
        %v8254 = vadd.f32 %v8222, %v8183
        %v8255 = vadd.f32 %v8223, %v8184
        %v8256 = vadd.f32 %v8224, %v8185
        %v8257 = vadd.f32 %v8225, %v8186
        %v8258 = vadd.f32 %v8226, %v8187
        %v8259 = vadd.f32 %v8227, %v8188
        %v8260 = vadd.f32 %v8228, %v8189
        %v8261 = vadd.f32 %v8229, %v8190
        %v8262 = vadd.f32 %v8230, %v8191
        %v8263 = vadd.f32 %v8231, %v8192
        %v8264 = vadd.f32 %v8232, %v8193
        %v8265 = vadd.f32 %v8233, %v8194
        %v8266 = vadd.f32 %v8234, %v8195
        %v8267 = vadd.f32 %v8235, %v8196
        %v8268 = vadd.f32 %v8236, %v8197
        %v8269 = vadd.f32 %v8237, %v8198
        %v8270 = vadd.f32 %v8238, %v8199
        %v8271 = vadd.f32 %v8239, %v8200
        %v8272 = vadd.f32 %v8240, %v8201
        %v8273 = vadd.f32 %v8241, %v8202
        %v8274 = vadd.f32 %v8242, %v8203
        %v8275 = vadd.f32 %v8243, %v8204
        %v8276 = vadd.f32 %v8244, %v8205
        %v8277 = vadd.f32 %v8245, %v8206
        %v8278 = vadd.f32 %v8246, %v8207
        %v8279 = vadd.f32 %v8247, %v8208
        %v8280 = vadd.f32 %v8248, %v8209
        %v8281 = vadd.f32 %v8249, %v8210
        %v8282 = vadd.f32 %v8250, %v8211
        %v8283 = vadd.f32 %v8251, %v8212
        %v8284 = vadd.f32 %v8252, %v8213
        %v8285 = vadd.f32 %v8253, %v8214
        %v8286 = vmax.f32 %v8254, 0.0
        %v8287 = vmax.f32 %v8255, 0.0
        %v8288 = vmax.f32 %v8256, 0.0
        %v8289 = vmax.f32 %v8257, 0.0
        %v8290 = vmax.f32 %v8258, 0.0
        %v8291 = vmax.f32 %v8259, 0.0
        %v8292 = vmax.f32 %v8260, 0.0
        %v8293 = vmax.f32 %v8261, 0.0
        %v8294 = vmax.f32 %v8262, 0.0
        %v8295 = vmax.f32 %v8263, 0.0
        %v8296 = vmax.f32 %v8264, 0.0
        %v8297 = vmax.f32 %v8265, 0.0
        %v8298 = vmax.f32 %v8266, 0.0
        %v8299 = vmax.f32 %v8267, 0.0
        %v8300 = vmax.f32 %v8268, 0.0
        %v8301 = vmax.f32 %v8269, 0.0
        %v8302 = vmax.f32 %v8270, 0.0
        %v8303 = vmax.f32 %v8271, 0.0
        %v8304 = vmax.f32 %v8272, 0.0
        %v8305 = vmax.f32 %v8273, 0.0
        %v8306 = vmax.f32 %v8274, 0.0
        %v8307 = vmax.f32 %v8275, 0.0
        %v8308 = vmax.f32 %v8276, 0.0
        %v8309 = vmax.f32 %v8277, 0.0
        %v8310 = vmax.f32 %v8278, 0.0
        %v8311 = vmax.f32 %v8279, 0.0
        %v8312 = vmax.f32 %v8280, 0.0
        %v8313 = vmax.f32 %v8281, 0.0
        %v8314 = vmax.f32 %v8282, 0.0
        %v8315 = vmax.f32 %v8283, 0.0
        %v8316 = vmax.f32 %v8284, 0.0
        %v8317 = vmax.f32 %v8285, 0.0
        %v8318 = vpack.c.bf16 %v8287, %v8286
        %v8319 = vpack.c.bf16 %v8289, %v8288
        %v8320 = vpack.c.bf16 %v8291, %v8290
        %v8321 = vpack.c.bf16 %v8293, %v8292
        %v8322 = vpack.c.bf16 %v8295, %v8294
        %v8323 = vpack.c.bf16 %v8297, %v8296
        %v8324 = vpack.c.bf16 %v8299, %v8298
        %v8325 = vpack.c.bf16 %v8301, %v8300
        %v8326 = vpack.c.bf16 %v8303, %v8302
        %v8327 = vpack.c.bf16 %v8305, %v8304
        %v8328 = vpack.c.bf16 %v8307, %v8306
        %v8329 = vpack.c.bf16 %v8309, %v8308
        %v8330 = vpack.c.bf16 %v8311, %v8310
        %v8331 = vpack.c.bf16 %v8313, %v8312
        %v8332 = vpack.c.bf16 %v8315, %v8314
        %v8333 = vpack.c.bf16 %v8317, %v8316
        %v8350 = vunpack.c.l.b16 %v8318
        %v8351 = vunpack.c.h.b16 %v8318
        %v8352 = vunpack.c.l.b16 %v8319
        %v8353 = vunpack.c.h.b16 %v8319
        %v8354 = vunpack.c.l.b16 %v8320
        %v8355 = vunpack.c.h.b16 %v8320
        %v8356 = vunpack.c.l.b16 %v8321
        %v8357 = vunpack.c.h.b16 %v8321
        %v8358 = vunpack.c.l.b16 %v8322
        %v8359 = vunpack.c.h.b16 %v8322
        %v8360 = vunpack.c.l.b16 %v8323
        %v8361 = vunpack.c.h.b16 %v8323
        %v8362 = vunpack.c.l.b16 %v8324
        %v8363 = vunpack.c.h.b16 %v8324
        %v8364 = vunpack.c.l.b16 %v8325
        %v8365 = vunpack.c.h.b16 %v8325
        %v8366 = vunpack.c.l.b16 %v8326
        %v8367 = vunpack.c.h.b16 %v8326
        %v8368 = vunpack.c.l.b16 %v8327
        %v8369 = vunpack.c.h.b16 %v8327
        %v8370 = vunpack.c.l.b16 %v8328
        %v8371 = vunpack.c.h.b16 %v8328
        %v8372 = vunpack.c.l.b16 %v8329
        %v8373 = vunpack.c.h.b16 %v8329
        %v8374 = vunpack.c.l.b16 %v8330
        %v8375 = vunpack.c.h.b16 %v8330
        %v8376 = vunpack.c.l.b16 %v8331
        %v8377 = vunpack.c.h.b16 %v8331
        %v8378 = vunpack.c.l.b16 %v8332
        %v8379 = vunpack.c.h.b16 %v8332
        %v8380 = vunpack.c.l.b16 %v8333
        %v8381 = vunpack.c.h.b16 %v8333
        %v8382 = vpack.c.b16 %v8350, %v8350
        %v8383 = vpack.c.b16 %v8351, %v8351
        %v8384 = vpack.c.b16 %v8352, %v8352
        %v8385 = vpack.c.b16 %v8353, %v8353
        %v8386 = vpack.c.b16 %v8354, %v8354
        %v8387 = vpack.c.b16 %v8355, %v8355
        %v8388 = vpack.c.b16 %v8356, %v8356
        %v8389 = vpack.c.b16 %v8357, %v8357
        %v8390 = vpack.c.b16 %v8358, %v8358
        %v8391 = vpack.c.b16 %v8359, %v8359
        %v8392 = vpack.c.b16 %v8360, %v8360
        %v8393 = vpack.c.b16 %v8361, %v8361
        %v8394 = vpack.c.b16 %v8362, %v8362
        %v8395 = vpack.c.b16 %v8363, %v8363
        %v8396 = vpack.c.b16 %v8364, %v8364
        %v8397 = vpack.c.b16 %v8365, %v8365
        %v8398 = vpack.c.b16 %v8366, %v8366
        %v8399 = vpack.c.b16 %v8367, %v8367
        %v8400 = vpack.c.b16 %v8368, %v8368
        %v8401 = vpack.c.b16 %v8369, %v8369
        %v8402 = vpack.c.b16 %v8370, %v8370
        %v8403 = vpack.c.b16 %v8371, %v8371
        %v8404 = vpack.c.b16 %v8372, %v8372
        %v8405 = vpack.c.b16 %v8373, %v8373
        %v8406 = vpack.c.b16 %v8374, %v8374
        %v8407 = vpack.c.b16 %v8375, %v8375
        %v8408 = vpack.c.b16 %v8376, %v8376
        %v8409 = vpack.c.b16 %v8377, %v8377
        %v8410 = vpack.c.b16 %v8378, %v8378
        %v8411 = vpack.c.b16 %v8379, %v8379
        %v8412 = vpack.c.b16 %v8380, %v8380
        %v8413 = vpack.c.b16 %v8381, %v8381
        %8446 = vst [vmem:[%s391 + $0x8] sm:$0xf] %v8382
        %8447 = vst [vmem:[%s391 + $0x18] sm:$0xf] %v8383
        %8448 = vst [vmem:[%s391 + $0x28] sm:$0xf] %v8384
        %8449 = vst [vmem:[%s391 + $0x38] sm:$0xf] %v8385
        %8450 = vst [vmem:[%s391 + $0x48] sm:$0xf] %v8386
        %8451 = vst [vmem:[%s391 + $0x58] sm:$0xf] %v8387
        %8452 = vst [vmem:[%s391 + $0x68] sm:$0xf] %v8388
        %8453 = vst [vmem:[%s391 + $0x78] sm:$0xf] %v8389
        %8454 = vst [vmem:[%s391 + $0x88] sm:$0xf] %v8390
        %8455 = vst [vmem:[%s391 + $0x98] sm:$0xf] %v8391
        %8456 = vst [vmem:[%s391 + $0xa8] sm:$0xf] %v8392
        %8457 = vst [vmem:[%s391 + $0xb8] sm:$0xf] %v8393
        %8458 = vst [vmem:[%s391 + $0xc8] sm:$0xf] %v8394
        %8459 = vst [vmem:[%s391 + $0xd8] sm:$0xf] %v8395
        %8460 = vst [vmem:[%s391 + $0xe8] sm:$0xf] %v8396
        %8461 = vst [vmem:[%s391 + $0xf8] sm:$0xf] %v8397
        %8462 = vst [vmem:[%s391 + $0x108] sm:$0xf] %v8398
        %8463 = vst [vmem:[%s391 + $0x118] sm:$0xf] %v8399
        %8464 = vst [vmem:[%s391 + $0x128] sm:$0xf] %v8400
        %8465 = vst [vmem:[%s391 + $0x138] sm:$0xf] %v8401
        %8466 = vst [vmem:[%s391 + $0x148] sm:$0xf] %v8402
        %8467 = vst [vmem:[%s391 + $0x158] sm:$0xf] %v8403
        %8468 = vst [vmem:[%s391 + $0x168] sm:$0xf] %v8404
        %8469 = vst [vmem:[%s391 + $0x178] sm:$0xf] %v8405
        %8470 = vst [vmem:[%s391 + $0x188] sm:$0xf] %v8406
        %8471 = vst [vmem:[%s391 + $0x198] sm:$0xf] %v8407
        %8472 = vst [vmem:[%s391 + $0x1a8] sm:$0xf] %v8408
        %8473 = vst [vmem:[%s391 + $0x1b8] sm:$0xf] %v8409
        %8474 = vst [vmem:[%s391 + $0x1c8] sm:$0xf] %v8410
        %8475 = vst [vmem:[%s391 + $0x1d8] sm:$0xf] %v8411
        %8476 = vst [vmem:[%s391 + $0x1e8] sm:$0xf] %v8412
        %8477 = vst [vmem:[%s391 + $0x1f8] sm:$0xf] %v8413
        %v8478 = vld [vmem:[#allocation12 + $0xc] sm:$0xf]
        %v8479 = vld [vmem:[#allocation12 + $0x1c] sm:$0xf]
        %v8480 = vld [vmem:[#allocation12 + $0x2c] sm:$0xf]
        %v8481 = vld [vmem:[#allocation12 + $0x3c] sm:$0xf]
        %v8482 = vld [vmem:[#allocation12 + $0x4c] sm:$0xf]
        %v8483 = vld [vmem:[#allocation12 + $0x5c] sm:$0xf]
        %v8484 = vld [vmem:[#allocation12 + $0x6c] sm:$0xf]
        %v8485 = vld [vmem:[#allocation12 + $0x7c] sm:$0xf]
        %v8486 = vld [vmem:[#allocation12 + $0x8c] sm:$0xf]
        %v8487 = vld [vmem:[#allocation12 + $0x9c] sm:$0xf]
        %v8488 = vld [vmem:[#allocation12 + $0xac] sm:$0xf]
        %v8489 = vld [vmem:[#allocation12 + $0xbc] sm:$0xf]
        %v8490 = vld [vmem:[#allocation12 + $0xcc] sm:$0xf]
        %v8491 = vld [vmem:[#allocation12 + $0xdc] sm:$0xf]
        %v8492 = vld [vmem:[#allocation12 + $0xec] sm:$0xf]
        %v8493 = vld [vmem:[#allocation12 + $0xfc] sm:$0xf]
        %v8510 = vunpack.c.l.b16 %v8478
        %v8511 = vunpack.c.l.b16 %v8479
        %v8512 = vunpack.c.l.b16 %v8480
        %v8513 = vunpack.c.l.b16 %v8481
        %v8514 = vunpack.c.l.b16 %v8482
        %v8515 = vunpack.c.l.b16 %v8483
        %v8516 = vunpack.c.l.b16 %v8484
        %v8517 = vunpack.c.l.b16 %v8485
        %v8518 = vunpack.c.l.b16 %v8486
        %v8519 = vunpack.c.l.b16 %v8487
        %v8520 = vunpack.c.l.b16 %v8488
        %v8521 = vunpack.c.l.b16 %v8489
        %v8522 = vunpack.c.l.b16 %v8490
        %v8523 = vunpack.c.l.b16 %v8491
        %v8524 = vunpack.c.l.b16 %v8492
        %v8525 = vunpack.c.l.b16 %v8493
        %v8526 = vpack.c.b16 %v8511, %v8510
        %v8527 = vpack.c.b16 %v8513, %v8512
        %v8528 = vpack.c.b16 %v8515, %v8514
        %v8529 = vpack.c.b16 %v8517, %v8516
        %v8530 = vpack.c.b16 %v8519, %v8518
        %v8531 = vpack.c.b16 %v8521, %v8520
        %v8532 = vpack.c.b16 %v8523, %v8522
        %v8533 = vpack.c.b16 %v8525, %v8524
        %8542 = vmatprep.subr.bf16.mxu0 0
        %8543 = vmatpush1.bf16.msra.mxu0 %v8526
        %8544 = vmatprep.subr.bf16.mxu0 0
        %8545 = vmatpush1.bf16.msra.mxu0 %v8527
        %8546 = vmatprep.subr.bf16.mxu0 0
        %8547 = vmatpush1.bf16.msra.mxu0 %v8528
        %8548 = vmatprep.subr.bf16.mxu0 0
        %8549 = vmatpush1.bf16.msra.mxu0 %v8529
        %8550 = vmatprep.subr.bf16.mxu0 0
        %8551 = vmatpush1.bf16.msra.mxu0 %v8530
        %8552 = vmatprep.subr.bf16.mxu0 0
        %8553 = vmatpush1.bf16.msra.mxu0 %v8531
        %8554 = vmatprep.subr.bf16.mxu0 0
        %8555 = vmatpush1.bf16.msra.mxu0 %v8532
        %8556 = vmatprep.subr.bf16.mxu0 0
        %8557 = vmatpush1.bf16.msra.mxu0 %v8533
        %8558 = vmatprep.subr.bf16.mxu0 0
        %8559 = vmatpush1.bf16.msra.mxu0 0
        %8560 = vmatprep.subr.bf16.mxu0 0
        %8561 = vmatpush1.bf16.msra.mxu0 0
        %8562 = vmatprep.subr.bf16.mxu0 0
        %8563 = vmatpush1.bf16.msra.mxu0 0
        %8564 = vmatprep.subr.bf16.mxu0 0
        %8565 = vmatpush1.bf16.msra.mxu0 0
        %8566 = vmatprep.subr.bf16.mxu0 0
        %8567 = vmatpush1.bf16.msra.mxu0 0
        %8568 = vmatprep.subr.bf16.mxu0 0
        %8569 = vmatpush1.bf16.msra.mxu0 0
        %8570 = vmatprep.subr.bf16.mxu0 0
        %8571 = vmatpush1.bf16.msra.mxu0 0
        %8572 = vmatprep.subr.bf16.mxu0 0
        %8573 = vmatpush1.bf16.msra.mxu0 0
        %8574 = vmatprep.mubr.bf16.mxu0 0
        %8575 = vmatmul.mubr.bf16.gmra.mrb[0].mxu0 %v6898
        %v8576 = vpop.f32.mrb[0].mxu0
        %v8577 = vadd.f32 0.0, %v8576
        %v8578 = vpop.f32.mrb[0].mxu0
        %v8579 = vpop.f32.mrb[0].mxu0
        %v8580 = vadd.f32 0.0, %v8579
        %v8581 = vpop.f32.mrb[0].mxu0
        %8582 = vmatprep.mubr.bf16.mxu0 0
        %8583 = vmatmul.mubr.bf16.gmra.mrb[0].mxu0 %v6899
        %v8584 = vpop.f32.mrb[0].mxu0
        %v8585 = vadd.f32 0.0, %v8584
        %v8586 = vpop.f32.mrb[0].mxu0
        %v8587 = vpop.f32.mrb[0].mxu0
        %v8588 = vadd.f32 0.0, %v8587
        %v8589 = vpop.f32.mrb[0].mxu0
        %8590 = vmatprep.mubr.bf16.mxu0 0
        %8591 = vmatmul.mubr.bf16.gmra.mrb[0].mxu0 %v6900
        %v8592 = vpop.f32.mrb[0].mxu0
        %v8593 = vadd.f32 0.0, %v8592
        %v8594 = vpop.f32.mrb[0].mxu0
        %v8595 = vpop.f32.mrb[0].mxu0
        %v8596 = vadd.f32 0.0, %v8595
        %v8597 = vpop.f32.mrb[0].mxu0
        %8598 = vmatprep.mubr.bf16.mxu0 0
        %8599 = vmatmul.mubr.bf16.gmra.mrb[0].mxu0 %v6901
        %v8600 = vpop.f32.mrb[0].mxu0
        %v8601 = vadd.f32 0.0, %v8600
        %v8602 = vpop.f32.mrb[0].mxu0
        %v8603 = vpop.f32.mrb[0].mxu0
        %v8604 = vadd.f32 0.0, %v8603
        %v8605 = vpop.f32.mrb[0].mxu0
        %8606 = vmatprep.mubr.bf16.mxu0 0
        %8607 = vmatmul.mubr.bf16.gmra.mrb[0].mxu0 %v6902
        %v8608 = vpop.f32.mrb[0].mxu0
        %v8609 = vadd.f32 0.0, %v8608
        %v8610 = vpop.f32.mrb[0].mxu0
        %v8611 = vpop.f32.mrb[0].mxu0
        %v8612 = vadd.f32 0.0, %v8611
        %v8613 = vpop.f32.mrb[0].mxu0
        %8614 = vmatprep.mubr.bf16.mxu0 0
        %8615 = vmatmul.mubr.bf16.gmra.mrb[0].mxu0 %v6903
        %v8616 = vpop.f32.mrb[0].mxu0
        %v8617 = vadd.f32 0.0, %v8616
        %v8618 = vpop.f32.mrb[0].mxu0
        %v8619 = vpop.f32.mrb[0].mxu0
        %v8620 = vadd.f32 0.0, %v8619
        %v8621 = vpop.f32.mrb[0].mxu0
        %8622 = vmatprep.mubr.bf16.mxu0 0
        %8623 = vmatmul.mubr.bf16.gmra.mrb[0].mxu0 %v6904
        %v8624 = vpop.f32.mrb[0].mxu0
        %v8625 = vadd.f32 0.0, %v8624
        %v8626 = vpop.f32.mrb[0].mxu0
        %v8627 = vpop.f32.mrb[0].mxu0
        %v8628 = vadd.f32 0.0, %v8627
        %v8629 = vpop.f32.mrb[0].mxu0
        %8630 = vmatprep.mubr.bf16.mxu0 0
        %8631 = vmatmul.mubr.bf16.gmra.mrb[0].mxu0 %v6905
        %v8632 = vpop.f32.mrb[0].mxu0
        %v8633 = vadd.f32 0.0, %v8632
        %v8634 = vpop.f32.mrb[0].mxu0
        %v8635 = vpop.f32.mrb[0].mxu0
        %v8636 = vadd.f32 0.0, %v8635
        %v8637 = vpop.f32.mrb[0].mxu0
        %8638 = vmatprep.mubr.bf16.mxu0 0
        %8639 = vmatmul.mubr.bf16.gmra.mrb[0].mxu0 %v6906
        %v8640 = vpop.f32.mrb[0].mxu0
        %v8641 = vadd.f32 0.0, %v8640
        %v8642 = vpop.f32.mrb[0].mxu0
        %v8643 = vpop.f32.mrb[0].mxu0
        %v8644 = vadd.f32 0.0, %v8643
        %v8645 = vpop.f32.mrb[0].mxu0
        %8646 = vmatprep.mubr.bf16.mxu0 0
        %8647 = vmatmul.mubr.bf16.gmra.mrb[0].mxu0 %v6907
        %v8648 = vpop.f32.mrb[0].mxu0
        %v8649 = vadd.f32 0.0, %v8648
        %v8650 = vpop.f32.mrb[0].mxu0
        %v8651 = vpop.f32.mrb[0].mxu0
        %v8652 = vadd.f32 0.0, %v8651
        %v8653 = vpop.f32.mrb[0].mxu0
        %8654 = vmatprep.mubr.bf16.mxu0 0
        %8655 = vmatmul.mubr.bf16.gmra.mrb[0].mxu0 %v6908
        %v8656 = vpop.f32.mrb[0].mxu0
        %v8657 = vadd.f32 0.0, %v8656
        %v8658 = vpop.f32.mrb[0].mxu0
        %v8659 = vpop.f32.mrb[0].mxu0
        %v8660 = vadd.f32 0.0, %v8659
        %v8661 = vpop.f32.mrb[0].mxu0
        %8662 = vmatprep.mubr.bf16.mxu0 0
        %8663 = vmatmul.mubr.bf16.gmra.mrb[0].mxu0 %v6909
        %v8664 = vpop.f32.mrb[0].mxu0
        %v8665 = vadd.f32 0.0, %v8664
        %v8666 = vpop.f32.mrb[0].mxu0
        %v8667 = vpop.f32.mrb[0].mxu0
        %v8668 = vadd.f32 0.0, %v8667
        %v8669 = vpop.f32.mrb[0].mxu0
        %8670 = vmatprep.mubr.bf16.mxu0 0
        %8671 = vmatmul.mubr.bf16.gmra.mrb[0].mxu0 %v6910
        %v8672 = vpop.f32.mrb[0].mxu0
        %v8673 = vadd.f32 0.0, %v8672
        %v8674 = vpop.f32.mrb[0].mxu0
        %v8675 = vpop.f32.mrb[0].mxu0
        %v8676 = vadd.f32 0.0, %v8675
        %v8677 = vpop.f32.mrb[0].mxu0
        %8678 = vmatprep.mubr.bf16.mxu0 0
        %8679 = vmatmul.mubr.bf16.gmra.mrb[0].mxu0 %v6911
        %v8680 = vpop.f32.mrb[0].mxu0
        %v8681 = vadd.f32 0.0, %v8680
        %v8682 = vpop.f32.mrb[0].mxu0
        %v8683 = vpop.f32.mrb[0].mxu0
        %v8684 = vadd.f32 0.0, %v8683
        %v8685 = vpop.f32.mrb[0].mxu0
        %8686 = vmatprep.mubr.bf16.mxu0 0
        %8687 = vmatmul.mubr.bf16.gmra.mrb[0].mxu0 %v6912
        %v8688 = vpop.f32.mrb[0].mxu0
        %v8689 = vadd.f32 0.0, %v8688
        %v8690 = vpop.f32.mrb[0].mxu0
        %v8691 = vpop.f32.mrb[0].mxu0
        %v8692 = vadd.f32 0.0, %v8691
        %v8693 = vpop.f32.mrb[0].mxu0
        %8694 = vmatprep.mubr.bf16.mxu0 0
        %8695 = vmatmul.mubr.bf16.gmra.mrb[0].mxu0 %v6913
        %v8696 = vpop.f32.mrb[0].mxu0
        %v8697 = vadd.f32 0.0, %v8696
        %v8698 = vpop.f32.mrb[0].mxu0
        %v8699 = vpop.f32.mrb[0].mxu0
        %v8700 = vadd.f32 0.0, %v8699
        %v8701 = vpop.f32.mrb[0].mxu0
        %8702 = vdwg.mxu0
        %v8703 = vld [vmem:[%s7142 + $0x18] sm:$0xff]
        %v8704 = vld [vmem:[%s7142 + $0x38] sm:$0xff]
        %v8705 = vld [vmem:[%s7142 + $0x58] sm:$0xff]
        %v8706 = vld [vmem:[%s7142 + $0x78] sm:$0xff]
        %v8707 = vld [vmem:[%s7142 + $0x98] sm:$0xff]
        %v8708 = vld [vmem:[%s7142 + $0xb8] sm:$0xff]
        %v8709 = vld [vmem:[%s7142 + $0xd8] sm:$0xff]
        %v8710 = vld [vmem:[%s7142 + $0xf8] sm:$0xff]
        %v8711 = vld [vmem:[%s7142 + $0x118] sm:$0xff]
        %v8712 = vld [vmem:[%s7142 + $0x138] sm:$0xff]
        %v8713 = vld [vmem:[%s7142 + $0x158] sm:$0xff]
        %v8714 = vld [vmem:[%s7142 + $0x178] sm:$0xff]
        %v8715 = vld [vmem:[%s7142 + $0x198] sm:$0xff]
        %v8716 = vld [vmem:[%s7142 + $0x1b8] sm:$0xff]
        %v8717 = vld [vmem:[%s7142 + $0x1d8] sm:$0xff]
        %v8718 = vld [vmem:[%s7142 + $0x1f8] sm:$0xff]
        %v8719 = vld [vmem:[%s7142 + $0x218] sm:$0xff]
        %v8720 = vld [vmem:[%s7142 + $0x238] sm:$0xff]
        %v8721 = vld [vmem:[%s7142 + $0x258] sm:$0xff]
        %v8722 = vld [vmem:[%s7142 + $0x278] sm:$0xff]
        %v8723 = vld [vmem:[%s7142 + $0x298] sm:$0xff]
        %v8724 = vld [vmem:[%s7142 + $0x2b8] sm:$0xff]
        %v8725 = vld [vmem:[%s7142 + $0x2d8] sm:$0xff]
        %v8726 = vld [vmem:[%s7142 + $0x2f8] sm:$0xff]
        %v8727 = vld [vmem:[%s7142 + $0x318] sm:$0xff]
        %v8728 = vld [vmem:[%s7142 + $0x338] sm:$0xff]
        %v8729 = vld [vmem:[%s7142 + $0x358] sm:$0xff]
        %v8730 = vld [vmem:[%s7142 + $0x378] sm:$0xff]
        %v8731 = vld [vmem:[%s7142 + $0x398] sm:$0xff]
        %v8732 = vld [vmem:[%s7142 + $0x3b8] sm:$0xff]
        %v8733 = vld [vmem:[%s7142 + $0x3d8] sm:$0xff]
        %v8734 = vld [vmem:[%s7142 + $0x3f8] sm:$0xff]
        %v8735 = vld [vmem:[#allocation14 + $0x3] sm:$0x1]
        %v8737 = vlaneseq
        %v8738 = vshrl.u32 %v8737, 7
        %v8739 = vsub.s32 0, %v8738
        %v8740 = vrot.slane %v8735, %v8739
        %v8742 = vadd.f32 %v8577, %v8740
        %v8743 = vadd.f32 %v8580, %v8740
        %v8744 = vadd.f32 %v8585, %v8740
        %v8745 = vadd.f32 %v8588, %v8740
        %v8746 = vadd.f32 %v8593, %v8740
        %v8747 = vadd.f32 %v8596, %v8740
        %v8748 = vadd.f32 %v8601, %v8740
        %v8749 = vadd.f32 %v8604, %v8740
        %v8750 = vadd.f32 %v8609, %v8740
        %v8751 = vadd.f32 %v8612, %v8740
        %v8752 = vadd.f32 %v8617, %v8740
        %v8753 = vadd.f32 %v8620, %v8740
        %v8754 = vadd.f32 %v8625, %v8740
        %v8755 = vadd.f32 %v8628, %v8740
        %v8756 = vadd.f32 %v8633, %v8740
        %v8757 = vadd.f32 %v8636, %v8740
        %v8758 = vadd.f32 %v8641, %v8740
        %v8759 = vadd.f32 %v8644, %v8740
        %v8760 = vadd.f32 %v8649, %v8740
        %v8761 = vadd.f32 %v8652, %v8740
        %v8762 = vadd.f32 %v8657, %v8740
        %v8763 = vadd.f32 %v8660, %v8740
        %v8764 = vadd.f32 %v8665, %v8740
        %v8765 = vadd.f32 %v8668, %v8740
        %v8766 = vadd.f32 %v8673, %v8740
        %v8767 = vadd.f32 %v8676, %v8740
        %v8768 = vadd.f32 %v8681, %v8740
        %v8769 = vadd.f32 %v8684, %v8740
        %v8770 = vadd.f32 %v8689, %v8740
        %v8771 = vadd.f32 %v8692, %v8740
        %v8772 = vadd.f32 %v8697, %v8740
        %v8773 = vadd.f32 %v8700, %v8740
        %v8774 = vadd.f32 %v8742, %v8703
        %v8775 = vadd.f32 %v8743, %v8704
        %v8776 = vadd.f32 %v8744, %v8705
        %v8777 = vadd.f32 %v8745, %v8706
        %v8778 = vadd.f32 %v8746, %v8707
        %v8779 = vadd.f32 %v8747, %v8708
        %v8780 = vadd.f32 %v8748, %v8709
        %v8781 = vadd.f32 %v8749, %v8710
        %v8782 = vadd.f32 %v8750, %v8711
        %v8783 = vadd.f32 %v8751, %v8712
        %v8784 = vadd.f32 %v8752, %v8713
        %v8785 = vadd.f32 %v8753, %v8714
        %v8786 = vadd.f32 %v8754, %v8715
        %v8787 = vadd.f32 %v8755, %v8716
        %v8788 = vadd.f32 %v8756, %v8717
        %v8789 = vadd.f32 %v8757, %v8718
        %v8790 = vadd.f32 %v8758, %v8719
        %v8791 = vadd.f32 %v8759, %v8720
        %v8792 = vadd.f32 %v8760, %v8721
        %v8793 = vadd.f32 %v8761, %v8722
        %v8794 = vadd.f32 %v8762, %v8723
        %v8795 = vadd.f32 %v8763, %v8724
        %v8796 = vadd.f32 %v8764, %v8725
        %v8797 = vadd.f32 %v8765, %v8726
        %v8798 = vadd.f32 %v8766, %v8727
        %v8799 = vadd.f32 %v8767, %v8728
        %v8800 = vadd.f32 %v8768, %v8729
        %v8801 = vadd.f32 %v8769, %v8730
        %v8802 = vadd.f32 %v8770, %v8731
        %v8803 = vadd.f32 %v8771, %v8732
        %v8804 = vadd.f32 %v8772, %v8733
        %v8805 = vadd.f32 %v8773, %v8734
        %v8806 = vmax.f32 %v8774, 0.0
        %v8807 = vmax.f32 %v8775, 0.0
        %v8808 = vmax.f32 %v8776, 0.0
        %v8809 = vmax.f32 %v8777, 0.0
        %v8810 = vmax.f32 %v8778, 0.0
        %v8811 = vmax.f32 %v8779, 0.0
        %v8812 = vmax.f32 %v8780, 0.0
        %v8813 = vmax.f32 %v8781, 0.0
        %v8814 = vmax.f32 %v8782, 0.0
        %v8815 = vmax.f32 %v8783, 0.0
        %v8816 = vmax.f32 %v8784, 0.0
        %v8817 = vmax.f32 %v8785, 0.0
        %v8818 = vmax.f32 %v8786, 0.0
        %v8819 = vmax.f32 %v8787, 0.0
        %v8820 = vmax.f32 %v8788, 0.0
        %v8821 = vmax.f32 %v8789, 0.0
        %v8822 = vmax.f32 %v8790, 0.0
        %v8823 = vmax.f32 %v8791, 0.0
        %v8824 = vmax.f32 %v8792, 0.0
        %v8825 = vmax.f32 %v8793, 0.0
        %v8826 = vmax.f32 %v8794, 0.0
        %v8827 = vmax.f32 %v8795, 0.0
        %v8828 = vmax.f32 %v8796, 0.0
        %v8829 = vmax.f32 %v8797, 0.0
        %v8830 = vmax.f32 %v8798, 0.0
        %v8831 = vmax.f32 %v8799, 0.0
        %v8832 = vmax.f32 %v8800, 0.0
        %v8833 = vmax.f32 %v8801, 0.0
        %v8834 = vmax.f32 %v8802, 0.0
        %v8835 = vmax.f32 %v8803, 0.0
        %v8836 = vmax.f32 %v8804, 0.0
        %v8837 = vmax.f32 %v8805, 0.0
        %v8838 = vpack.c.bf16 %v8807, %v8806
        %v8839 = vpack.c.bf16 %v8809, %v8808
        %v8840 = vpack.c.bf16 %v8811, %v8810
        %v8841 = vpack.c.bf16 %v8813, %v8812
        %v8842 = vpack.c.bf16 %v8815, %v8814
        %v8843 = vpack.c.bf16 %v8817, %v8816
        %v8844 = vpack.c.bf16 %v8819, %v8818
        %v8845 = vpack.c.bf16 %v8821, %v8820
        %v8846 = vpack.c.bf16 %v8823, %v8822
        %v8847 = vpack.c.bf16 %v8825, %v8824
        %v8848 = vpack.c.bf16 %v8827, %v8826
        %v8849 = vpack.c.bf16 %v8829, %v8828
        %v8850 = vpack.c.bf16 %v8831, %v8830
        %v8851 = vpack.c.bf16 %v8833, %v8832
        %v8852 = vpack.c.bf16 %v8835, %v8834
        %v8853 = vpack.c.bf16 %v8837, %v8836
        %v8870 = vunpack.c.l.b16 %v8838
        %v8871 = vunpack.c.h.b16 %v8838
        %v8872 = vunpack.c.l.b16 %v8839
        %v8873 = vunpack.c.h.b16 %v8839
        %v8874 = vunpack.c.l.b16 %v8840
        %v8875 = vunpack.c.h.b16 %v8840
        %v8876 = vunpack.c.l.b16 %v8841
        %v8877 = vunpack.c.h.b16 %v8841
        %v8878 = vunpack.c.l.b16 %v8842
        %v8879 = vunpack.c.h.b16 %v8842
        %v8880 = vunpack.c.l.b16 %v8843
        %v8881 = vunpack.c.h.b16 %v8843
        %v8882 = vunpack.c.l.b16 %v8844
        %v8883 = vunpack.c.h.b16 %v8844
        %v8884 = vunpack.c.l.b16 %v8845
        %v8885 = vunpack.c.h.b16 %v8845
        %v8886 = vunpack.c.l.b16 %v8846
        %v8887 = vunpack.c.h.b16 %v8846
        %v8888 = vunpack.c.l.b16 %v8847
        %v8889 = vunpack.c.h.b16 %v8847
        %v8890 = vunpack.c.l.b16 %v8848
        %v8891 = vunpack.c.h.b16 %v8848
        %v8892 = vunpack.c.l.b16 %v8849
        %v8893 = vunpack.c.h.b16 %v8849
        %v8894 = vunpack.c.l.b16 %v8850
        %v8895 = vunpack.c.h.b16 %v8850
        %v8896 = vunpack.c.l.b16 %v8851
        %v8897 = vunpack.c.h.b16 %v8851
        %v8898 = vunpack.c.l.b16 %v8852
        %v8899 = vunpack.c.h.b16 %v8852
        %v8900 = vunpack.c.l.b16 %v8853
        %v8901 = vunpack.c.h.b16 %v8853
        %v8902 = vpack.c.b16 %v8870, %v8870
        %v8903 = vpack.c.b16 %v8871, %v8871
        %v8904 = vpack.c.b16 %v8872, %v8872
        %v8905 = vpack.c.b16 %v8873, %v8873
        %v8906 = vpack.c.b16 %v8874, %v8874
        %v8907 = vpack.c.b16 %v8875, %v8875
        %v8908 = vpack.c.b16 %v8876, %v8876
        %v8909 = vpack.c.b16 %v8877, %v8877
        %v8910 = vpack.c.b16 %v8878, %v8878
        %v8911 = vpack.c.b16 %v8879, %v8879
        %v8912 = vpack.c.b16 %v8880, %v8880
        %v8913 = vpack.c.b16 %v8881, %v8881
        %v8914 = vpack.c.b16 %v8882, %v8882
        %v8915 = vpack.c.b16 %v8883, %v8883
        %v8916 = vpack.c.b16 %v8884, %v8884
        %v8917 = vpack.c.b16 %v8885, %v8885
        %v8918 = vpack.c.b16 %v8886, %v8886
        %v8919 = vpack.c.b16 %v8887, %v8887
        %v8920 = vpack.c.b16 %v8888, %v8888
        %v8921 = vpack.c.b16 %v8889, %v8889
        %v8922 = vpack.c.b16 %v8890, %v8890
        %v8923 = vpack.c.b16 %v8891, %v8891
        %v8924 = vpack.c.b16 %v8892, %v8892
        %v8925 = vpack.c.b16 %v8893, %v8893
        %v8926 = vpack.c.b16 %v8894, %v8894
        %v8927 = vpack.c.b16 %v8895, %v8895
        %v8928 = vpack.c.b16 %v8896, %v8896
        %v8929 = vpack.c.b16 %v8897, %v8897
        %v8930 = vpack.c.b16 %v8898, %v8898
        %v8931 = vpack.c.b16 %v8899, %v8899
        %v8932 = vpack.c.b16 %v8900, %v8900
        %v8933 = vpack.c.b16 %v8901, %v8901
        %8966 = vst [vmem:[%s391 + $0xc] sm:$0xf] %v8902
        %8967 = vst [vmem:[%s391 + $0x1c] sm:$0xf] %v8903
        %8968 = vst [vmem:[%s391 + $0x2c] sm:$0xf] %v8904
        %8969 = vst [vmem:[%s391 + $0x3c] sm:$0xf] %v8905
        %8970 = vst [vmem:[%s391 + $0x4c] sm:$0xf] %v8906
        %8971 = vst [vmem:[%s391 + $0x5c] sm:$0xf] %v8907
        %8972 = vst [vmem:[%s391 + $0x6c] sm:$0xf] %v8908
        %8973 = vst [vmem:[%s391 + $0x7c] sm:$0xf] %v8909
        %8974 = vst [vmem:[%s391 + $0x8c] sm:$0xf] %v8910
        %8975 = vst [vmem:[%s391 + $0x9c] sm:$0xf] %v8911
        %8976 = vst [vmem:[%s391 + $0xac] sm:$0xf] %v8912
        %8977 = vst [vmem:[%s391 + $0xbc] sm:$0xf] %v8913
        %8978 = vst [vmem:[%s391 + $0xcc] sm:$0xf] %v8914
        %8979 = vst [vmem:[%s391 + $0xdc] sm:$0xf] %v8915
        %8980 = vst [vmem:[%s391 + $0xec] sm:$0xf] %v8916
        %8981 = vst [vmem:[%s391 + $0xfc] sm:$0xf] %v8917
        %8982 = vst [vmem:[%s391 + $0x10c] sm:$0xf] %v8918
        %8983 = vst [vmem:[%s391 + $0x11c] sm:$0xf] %v8919
        %8984 = vst [vmem:[%s391 + $0x12c] sm:$0xf] %v8920
        %8985 = vst [vmem:[%s391 + $0x13c] sm:$0xf] %v8921
        %8986 = vst [vmem:[%s391 + $0x14c] sm:$0xf] %v8922
        %8987 = vst [vmem:[%s391 + $0x15c] sm:$0xf] %v8923
        %8988 = vst [vmem:[%s391 + $0x16c] sm:$0xf] %v8924
        %8989 = vst [vmem:[%s391 + $0x17c] sm:$0xf] %v8925
        %8990 = vst [vmem:[%s391 + $0x18c] sm:$0xf] %v8926
        %8991 = vst [vmem:[%s391 + $0x19c] sm:$0xf] %v8927
        %8992 = vst [vmem:[%s391 + $0x1ac] sm:$0xf] %v8928
        %8993 = vst [vmem:[%s391 + $0x1bc] sm:$0xf] %v8929
        %8994 = vst [vmem:[%s391 + $0x1cc] sm:$0xf] %v8930
        %8995 = vst [vmem:[%s391 + $0x1dc] sm:$0xf] %v8931
        %8996 = vst [vmem:[%s391 + $0x1ec] sm:$0xf] %v8932
        %8997 = vst [vmem:[%s391 + $0x1fc] sm:$0xf] %v8933
        %s8998 = sand.u32 %s201, 1
        %s8999 = scalar_lea.sflag [#allocation5], %s8998
        %s9000 = sand.u32 %s201, 1
        %s9001 = smul.addr %s9000, 512
        %s9002 = scalar_lea.vmem [#allocation15], %s9001
        // Predicated region
        $region77: #{tpu_custom_call.1} parent=47 // pred_check
          %p9003 = pneg %p211
        $region78: #{tpu_custom_call.1} parent=47 // pred_check_branch
          %9005 = sbr.rel (%p9003) target = $region80
        $region79: #{tpu_custom_call.1} parent=47 // pred_region
          %s9006 = smul.u32 16, %s32
          %s9008 = ssub.s32 8192, 8192
          %9009 = vsyncadd %s8999, %s9008
          %s9010 = smul.addr %s9006, 8
          %s9011 = smul.addr %s31, 128
          %s9012 = sadd.s32 %s9010, %s9011
          %s9013 = smul.addr %s9012, 64
          %s9014 = scalar_lea.hbm %s7, %s9013
          %s9015 = sshll.u32 %s9002, 4
          %s9016 = int_to_ptr.vmem [resolvable:$true] %s9015
          %9021 = dma.vmem_to_hbm [thread:$0]  %s9016, 8192, %s9014, %s8999, 256, 256, 16
        $region80: #{tpu_custom_call.1} parent=47 // pred_fallthru
          _
      $region48: #{tpu_custom_call.1} parent=5 // pred_fallthru
        _
      %p9022 = scmp.le.s32.totalorder 2, %s22
      // Predicated region
      $region81: #{tpu_custom_call.1} parent=5 // pred_check
        %p9023 = pneg %p9022
      $region82: #{tpu_custom_call.1} parent=5 // pred_check_branch
        %9025 = sbr.rel (%p9023) target = $region84
      $region83: #{tpu_custom_call.1} parent=5 // pred_region
        %s9026 = ssub.s32 %s22, 2
        // Predicated region
        $region85: #{tpu_custom_call.1} parent=83 // pred_check
          %p9027 = pneg %p217
        $region86: #{tpu_custom_call.1} parent=83 // pred_check_branch
          %9029 = sbr.rel (%p9027) target = $region88
        $region87: #{tpu_custom_call.1} parent=83 // pred_region
          %s9030 = sand.u32 %s202, 1
          %s9031 = scalar_lea.sflag [#allocation5], %s9030
          %s9032 = sand.u32 %s202, 1
          %s9033 = smul.addr %s9032, 512
          %s9034 = scalar_lea.vmem [#allocation15], %s9033
          %9035 = dma.done %s9031, 8192
        $region88: #{tpu_custom_call.1} parent=83 // pred_fallthru
          _
      $region84: #{tpu_custom_call.1} parent=5 // pred_fallthru
        _
    $region6: #{tpu_custom_call.1} parent=1 // loop_footer
      %s26 = sadd.s32 1, %s22
    $region7: #{tpu_custom_call.1} parent=1 // loop_footer_branch
      %21 = sbr.rel target = $region3
    $region8: #{tpu_custom_call.1} parent=1 // loop_exit
      _
    %9036 = vsyncpa [#allocation4], 1
    %s9037 = scalar_lea.sflag [#allocation4], 1
    %9038 = vsyncpa %s9037, 1
    %9039 = vsyncpa [#allocation7], 1
    %9040 = vsyncpa [#allocation10], 1
    %9041 = vsyncpa [#allocation13], 1
    %9042 = vsyncpa [#allocation5], 1
    %s9043 = scalar_lea.sflag [#allocation5], 1
    %9044 = vsyncpa %s9043, 1

</llo_original>
